<compile_context>
chip_gen: v5e
topology: v5e:2x2
jax: 0.10.0
libtpu: 0.0.40
codegen_flags: <defaults>
</compile_context>

<pallas_src>
import math

import jax
import jax.numpy as jnp
import numpy as np
from jax.experimental import pallas as pl
from jax.experimental.pallas import tpu as pltpu


def mf_kernel(u_idx_ref, i_idx_ref,     # (ROWS, 128) int32 index tiles (VMEM)
              u_ref, i_ref,             # augmented tables, fully VMEM-resident
              o_ref):                   # (ROWS, 128) f32 output tile
    rows, lanes = u_idx_ref.shape
    nu = u_ref.shape[0]
    ni = i_ref.shape[0]
    tdt = u_ref.dtype                   # masks in table dtype (native bf16 pass if bf16)

    # Eight 128-lane chunks per grid step; each writes one sublane row of the
    # full (8, 128) output vreg tile.  Static unroll -> static slices.
    for r in range(rows):
        # --- user gather: one-hot built right before its single MXU use ----
        u_idx = u_idx_ref[pl.ds(r, 1), :]                               # (1, 128)
        oh_u = (jax.lax.broadcasted_iota(jnp.int32, (nu, lanes), 0)
                == u_idx).astype(tdt)                                   # (nu, 128)
        vu_t = jax.lax.dot_general(
            u_ref[...], oh_u, (((0,), (0,)), ((), ())),
            preferred_element_type=jnp.float32,
            precision=jax.lax.Precision.HIGHEST)                        # (Daug, 128)

        # --- item gather ----------------------------------------------------
        i_idx = i_idx_ref[pl.ds(r, 1), :]                               # (1, 128)
        oh_i = (jax.lax.broadcasted_iota(jnp.int32, (ni, lanes), 0)
                == i_idx).astype(tdt)                                   # (ni, 128)
        vi_t = jax.lax.dot_general(
            i_ref[...], oh_i, (((0,), (0,)), ((), ())),
            preferred_element_type=jnp.float32,
            precision=jax.lax.Precision.HIGHEST)                        # (Daug, 128)

        # Augmented contraction already contains user/item/global biases.
        o_ref[pl.ds(r, 1), :] = jnp.sum(vu_t * vi_t, axis=0, keepdims=True)


def basic_mf_forward(U, I, user_bias, item_bias, global_bias, u_idx, i_idx,
                     *, rows_per_step=8):
    """Pallas implementation of BasicMF.forward(u_idx, i_idx)."""
    B = u_idx.shape[0]
    num_users, D = U.shape
    num_items = I.shape[0]
    assert num_users >= 1 and num_items >= 1, "padded lanes gather row 0"
    assert rows_per_step >= 1

    lanes = 128                                   # one vreg lane width per chunk
    tb = rows_per_step * lanes                    # pairs per grid step

    # ---- augmented tables: fold user/item/global biases into the dot ------
    tdt = U.dtype
    d_aug = ((D + 2 + 7) // 8) * 8                # 34 -> 40, multiple of 8
    pad_cols = d_aug - (D + 2)
    U_aug = jnp.concatenate(
        [U,
         user_bias.reshape(num_users, 1).astype(tdt),
         jnp.ones((num_users, 1), tdt),
         jnp.zeros((num_users, pad_cols), tdt)], axis=1)
    I_aug = jnp.concatenate(
        [I,
         jnp.ones((num_items, 1), tdt),
         (item_bias.reshape(num_items, 1) + global_bias).astype(tdt),
         jnp.zeros((num_items, pad_cols), tdt)], axis=1)
    # dot(U_aug[u], I_aug[i]) = <U[u],I[i]> + user_bias[u] + item_bias[i] + gb

    # ---- batch -> (num_tiles, 8, 128) full-vreg index / output tiles ------
    num_tiles = max(1, (B + tb - 1) // tb)
    bp = num_tiles * tb
    u_pad = jnp.pad(u_idx.astype(jnp.int32), (0, bp - B)) \
        .reshape(num_tiles, rows_per_step, lanes)
    i_pad = jnp.pad(i_idx.astype(jnp.int32), (0, bp - B)) \
        .reshape(num_tiles, rows_per_step, lanes)

    out = pl.pallas_call(
        mf_kernel,
        out_shape=jax.ShapeDtypeStruct((num_tiles, rows_per_step, lanes),
                                       jnp.float32),
        grid=(num_tiles,),
        in_specs=[
            pl.BlockSpec((None, rows_per_step, lanes), lambda t: (t, 0, 0)),
            pl.BlockSpec((None, rows_per_step, lanes), lambda t: (t, 0, 0)),
            pl.BlockSpec((num_users, d_aug), lambda t: (0, 0)),   # VMEM-resident
            pl.BlockSpec((num_items, d_aug), lambda t: (0, 0)),   # VMEM-resident
        ],
        out_specs=pl.BlockSpec((None, rows_per_step, lanes), lambda t: (t, 0, 0)),
        compiler_params=pltpu.CompilerParams(
            dimension_semantics=("parallel",)),                   # megacore on v7x
    )(u_pad, i_pad, U_aug, I_aug)

    return out.reshape(-1)[:B]


def ref_forward(U, I, user_bias, item_bias, global_bias, u_idx, i_idx):
    """Pure-JAX reference mirroring the PyTorch forward."""
    vu = U[u_idx, :]
    vi = I[i_idx, :]
    return jnp.sum(vu * vi, axis=1) + user_bias[u_idx] + item_bias[i_idx] + global_bias


if __name__ == "__main__":
    num_users, num_items, embedding_dim = 64, 96, 32

    key = jax.random.PRNGKey(0)
    k_u, k_i, k_ub, k_ib, k_idx = jax.random.split(key, 5)

    # Deterministic xavier_normal_ equivalents (std = sqrt(2 / (fan_in + fan_out)))
    std_u = math.sqrt(2.0 / (num_users + embedding_dim))
    std_i = math.sqrt(2.0 / (num_items + embedding_dim))
    U = jax.random.normal(k_u, (num_users, embedding_dim), jnp.float32) * std_u
    I = jax.random.normal(k_i, (num_items, embedding_dim), jnp.float32) * std_i
    user_bias = jax.random.normal(k_ub, (num_users,), jnp.float32)
    item_bias = jax.random.normal(k_ib, (num_items,), jnp.float32)
    global_bias = jnp.float32(0.001)

    for batch in (8, 200, 2500):   # single-tile (padded) and multi-tile cases
        k_idx, k_uidx, k_iidx = jax.random.split(k_idx, 3)
        u_idx = jax.random.randint(k_uidx, (batch,), 0, num_users, dtype=jnp.int32)
        i_idx = jax.random.randint(k_iidx, (batch,), 0, num_items, dtype=jnp.int32)

        out = basic_mf_forward(U, I, user_bias, item_bias, global_bias, u_idx, i_idx)
        out = jax.block_until_ready(out)

        expected = ref_forward(U, I, user_bias, item_bias, global_bias, u_idx, i_idx)
        np.testing.assert_allclose(np.asarray(out), np.asarray(expected),
                                   rtol=1e-4, atol=1e-4)

    print("KERNEL_OK")
</pallas_src>

<mosaic_0001>
module attributes {stable_mosaic.version = 11 : i64} {
  func.func @mf_kernel(%arg0: i32, %arg1: memref<1x8x128xi32, #tpu.memory_space<vmem>>, %arg2: memref<1x8x128xi32, #tpu.memory_space<vmem>>, %arg3: memref<64x40xf32, #tpu.memory_space<vmem>>, %arg4: memref<96x40xf32, #tpu.memory_space<vmem>>, %arg5: memref<1x8x128xf32, #tpu.memory_space<vmem>>) attributes {dimension_semantics = [#tpu.dimension_semantics<parallel>], iteration_bounds = array<i64: 1>, scalar_prefetch = 0 : i64, scratch_operands = 0 : i64, tpu.core_type = #tpu.core_type<tc>, window_params = [{transform_indices = @transform_0, window_bounds = array<i64: 1, 8, 128>}, {transform_indices = @transform_1, window_bounds = array<i64: 1, 8, 128>}, {pipeline_mode = #tpu.pipeline_mode<synchronous>, transform_indices = @transform_2, window_bounds = array<i64: 64, 40>}, {pipeline_mode = #tpu.pipeline_mode<synchronous>, transform_indices = @transform_3, window_bounds = array<i64: 96, 40>}, {transform_indices = @transform_4, window_bounds = array<i64: 1, 8, 128>}]} {
    %c0 = arith.constant 0 : index
    %c0_0 = arith.constant 0 : index
    %c0_1 = arith.constant 0 : index
    %0 = vector.load %arg1[%c0, %c0_0, %c0_1] : memref<1x8x128xi32, #tpu.memory_space<vmem>>, vector<1x1x128xi32>
    %1 = vector.shape_cast %0 : vector<1x1x128xi32> to vector<1x128xi32>
    %2 = tpu.iota {dimensions = array<i32: 0>} : vector<64x128xi32>
    %3 = vector.broadcast %1 : vector<1x128xi32> to vector<64x128xi32>
    %4 = arith.cmpi eq, %2, %3 : vector<64x128xi32>
    %5 = arith.extui %4 : vector<64x128xi1> to vector<64x128xi32>
    %6 = arith.sitofp %5 : vector<64x128xi32> to vector<64x128xf32>
    %c0_2 = arith.constant 0 : index
    %c0_3 = arith.constant 0 : index
    %7 = vector.load %arg3[%c0_2, %c0_3] : memref<64x40xf32, #tpu.memory_space<vmem>>, vector<64x40xf32>
    %cst = arith.constant dense<0.000000e+00> : vector<40x128xf32>
    %8 = tpu.matmul %7, %6, %cst {dimension_numbers = #tpu.dot_dimension_numbers<[0], [0], [1], [1], [0, 1, 1, 1], [], []>, precision = #tpu.contract_precision<fp32>} : vector<64x40xf32>, vector<64x128xf32>, vector<40x128xf32> -> vector<40x128xf32>
    %c0_4 = arith.constant 0 : index
    %c0_5 = arith.constant 0 : index
    %c0_6 = arith.constant 0 : index
    %9 = vector.load %arg2[%c0_4, %c0_5, %c0_6] : memref<1x8x128xi32, #tpu.memory_space<vmem>>, vector<1x1x128xi32>
    %10 = vector.shape_cast %9 : vector<1x1x128xi32> to vector<1x128xi32>
    %11 = tpu.iota {dimensions = array<i32: 0>} : vector<96x128xi32>
    %12 = vector.broadcast %10 : vector<1x128xi32> to vector<96x128xi32>
    %13 = arith.cmpi eq, %11, %12 : vector<96x128xi32>
    %14 = arith.extui %13 : vector<96x128xi1> to vector<96x128xi32>
    %15 = arith.sitofp %14 : vector<96x128xi32> to vector<96x128xf32>
    %c0_7 = arith.constant 0 : index
    %c0_8 = arith.constant 0 : index
    %16 = vector.load %arg4[%c0_7, %c0_8] : memref<96x40xf32, #tpu.memory_space<vmem>>, vector<96x40xf32>
    %cst_9 = arith.constant dense<0.000000e+00> : vector<40x128xf32>
    %17 = tpu.matmul %16, %15, %cst_9 {dimension_numbers = #tpu.dot_dimension_numbers<[0], [0], [1], [1], [0, 1, 1, 1], [], []>, precision = #tpu.contract_precision<fp32>} : vector<96x40xf32>, vector<96x128xf32>, vector<40x128xf32> -> vector<40x128xf32>
    %18 = arith.mulf %8, %17 : vector<40x128xf32>
    %cst_10 = arith.constant dense<0.000000e+00> : vector<128xf32>
    %19 = vector.multi_reduction <add>, %18, %cst_10 [0] : vector<40x128xf32> to vector<128xf32>
    %20 = vector.shape_cast %19 : vector<128xf32> to vector<1x128xf32>
    %c0_11 = arith.constant 0 : index
    %c0_12 = arith.constant 0 : index
    %c0_13 = arith.constant 0 : index
    %21 = vector.load %arg5[%c0_11, %c0_12, %c0_13] : memref<1x8x128xf32, #tpu.memory_space<vmem>>, vector<1x1x128xf32>
    %22 = vector.shape_cast %21 : vector<1x1x128xf32> to vector<1x128xf32>
    %23 = vector.shape_cast %20 : vector<1x128xf32> to vector<1x1x128xf32>
    tpu.vector_store %arg5[%c0_11, %c0_12, %c0_13], %23 {strides = array<i32>} : memref<1x8x128xf32, #tpu.memory_space<vmem>>, vector<1x1x128xf32>,
    %c0_14 = arith.constant 0 : index
    %c1 = arith.constant 1 : index
    %c0_15 = arith.constant 0 : index
    %24 = vector.load %arg1[%c0_14, %c1, %c0_15] : memref<1x8x128xi32, #tpu.memory_space<vmem>>, vector<1x1x128xi32>
    %25 = vector.shape_cast %24 : vector<1x1x128xi32> to vector<1x128xi32>
    %26 = tpu.iota {dimensions = array<i32: 0>} : vector<64x128xi32>
    %27 = vector.broadcast %25 : vector<1x128xi32> to vector<64x128xi32>
    %28 = arith.cmpi eq, %26, %27 : vector<64x128xi32>
    %29 = arith.extui %28 : vector<64x128xi1> to vector<64x128xi32>
    %30 = arith.sitofp %29 : vector<64x128xi32> to vector<64x128xf32>
    %c0_16 = arith.constant 0 : index
    %c0_17 = arith.constant 0 : index
    %31 = vector.load %arg3[%c0_16, %c0_17] : memref<64x40xf32, #tpu.memory_space<vmem>>, vector<64x40xf32>
    %cst_18 = arith.constant dense<0.000000e+00> : vector<40x128xf32>
    %32 = tpu.matmul %31, %30, %cst_18 {dimension_numbers = #tpu.dot_dimension_numbers<[0], [0], [1], [1], [0, 1, 1, 1], [], []>, precision = #tpu.contract_precision<fp32>} : vector<64x40xf32>, vector<64x128xf32>, vector<40x128xf32> -> vector<40x128xf32>
    %c0_19 = arith.constant 0 : index
    %c1_20 = arith.constant 1 : index
    %c0_21 = arith.constant 0 : index
    %33 = vector.load %arg2[%c0_19, %c1_20, %c0_21] : memref<1x8x128xi32, #tpu.memory_space<vmem>>, vector<1x1x128xi32>
    %34 = vector.shape_cast %33 : vector<1x1x128xi32> to vector<1x128xi32>
    %35 = tpu.iota {dimensions = array<i32: 0>} : vector<96x128xi32>
    %36 = vector.broadcast %34 : vector<1x128xi32> to vector<96x128xi32>
    %37 = arith.cmpi eq, %35, %36 : vector<96x128xi32>
    %38 = arith.extui %37 : vector<96x128xi1> to vector<96x128xi32>
    %39 = arith.sitofp %38 : vector<96x128xi32> to vector<96x128xf32>
    %c0_22 = arith.constant 0 : index
    %c0_23 = arith.constant 0 : index
    %40 = vector.load %arg4[%c0_22, %c0_23] : memref<96x40xf32, #tpu.memory_space<vmem>>, vector<96x40xf32>
    %cst_24 = arith.constant dense<0.000000e+00> : vector<40x128xf32>
    %41 = tpu.matmul %40, %39, %cst_24 {dimension_numbers = #tpu.dot_dimension_numbers<[0], [0], [1], [1], [0, 1, 1, 1], [], []>, precision = #tpu.contract_precision<fp32>} : vector<96x40xf32>, vector<96x128xf32>, vector<40x128xf32> -> vector<40x128xf32>
    %42 = arith.mulf %32, %41 : vector<40x128xf32>
    %cst_25 = arith.constant dense<0.000000e+00> : vector<128xf32>
    %43 = vector.multi_reduction <add>, %42, %cst_25 [0] : vector<40x128xf32> to vector<128xf32>
    %44 = vector.shape_cast %43 : vector<128xf32> to vector<1x128xf32>
    %c0_26 = arith.constant 0 : index
    %c1_27 = arith.constant 1 : index
    %c0_28 = arith.constant 0 : index
    %45 = vector.load %arg5[%c0_26, %c1_27, %c0_28] : memref<1x8x128xf32, #tpu.memory_space<vmem>>, vector<1x1x128xf32>
    %46 = vector.shape_cast %45 : vector<1x1x128xf32> to vector<1x128xf32>
    %47 = vector.shape_cast %44 : vector<1x128xf32> to vector<1x1x128xf32>
    tpu.vector_store %arg5[%c0_26, %c1_27, %c0_28], %47 {strides = array<i32>} : memref<1x8x128xf32, #tpu.memory_space<vmem>>, vector<1x1x128xf32>,
    %c0_29 = arith.constant 0 : index
    %c2 = arith.constant 2 : index
    %c0_30 = arith.constant 0 : index
    %48 = vector.load %arg1[%c0_29, %c2, %c0_30] : memref<1x8x128xi32, #tpu.memory_space<vmem>>, vector<1x1x128xi32>
    %49 = vector.shape_cast %48 : vector<1x1x128xi32> to vector<1x128xi32>
    %50 = tpu.iota {dimensions = array<i32: 0>} : vector<64x128xi32>
    %51 = vector.broadcast %49 : vector<1x128xi32> to vector<64x128xi32>
    %52 = arith.cmpi eq, %50, %51 : vector<64x128xi32>
    %53 = arith.extui %52 : vector<64x128xi1> to vector<64x128xi32>
    %54 = arith.sitofp %53 : vector<64x128xi32> to vector<64x128xf32>
    %c0_31 = arith.constant 0 : index
    %c0_32 = arith.constant 0 : index
    %55 = vector.load %arg3[%c0_31, %c0_32] : memref<64x40xf32, #tpu.memory_space<vmem>>, vector<64x40xf32>
    %cst_33 = arith.constant dense<0.000000e+00> : vector<40x128xf32>
    %56 = tpu.matmul %55, %54, %cst_33 {dimension_numbers = #tpu.dot_dimension_numbers<[0], [0], [1], [1], [0, 1, 1, 1], [], []>, precision = #tpu.contract_precision<fp32>} : vector<64x40xf32>, vector<64x128xf32>, vector<40x128xf32> -> vector<40x128xf32>
    %c0_34 = arith.constant 0 : index
    %c2_35 = arith.constant 2 : index
    %c0_36 = arith.constant 0 : index
    %57 = vector.load %arg2[%c0_34, %c2_35, %c0_36] : memref<1x8x128xi32, #tpu.memory_space<vmem>>, vector<1x1x128xi32>
    %58 = vector.shape_cast %57 : vector<1x1x128xi32> to vector<1x128xi32>
    %59 = tpu.iota {dimensions = array<i32: 0>} : vector<96x128xi32>
    %60 = vector.broadcast %58 : vector<1x128xi32> to vector<96x128xi32>
    %61 = arith.cmpi eq, %59, %60 : vector<96x128xi32>
    %62 = arith.extui %61 : vector<96x128xi1> to vector<96x128xi32>
    %63 = arith.sitofp %62 : vector<96x128xi32> to vector<96x128xf32>
    %c0_37 = arith.constant 0 : index
    %c0_38 = arith.constant 0 : index
    %64 = vector.load %arg4[%c0_37, %c0_38] : memref<96x40xf32, #tpu.memory_space<vmem>>, vector<96x40xf32>
    %cst_39 = arith.constant dense<0.000000e+00> : vector<40x128xf32>
    %65 = tpu.matmul %64, %63, %cst_39 {dimension_numbers = #tpu.dot_dimension_numbers<[0], [0], [1], [1], [0, 1, 1, 1], [], []>, precision = #tpu.contract_precision<fp32>} : vector<96x40xf32>, vector<96x128xf32>, vector<40x128xf32> -> vector<40x128xf32>
    %66 = arith.mulf %56, %65 : vector<40x128xf32>
    %cst_40 = arith.constant dense<0.000000e+00> : vector<128xf32>
    %67 = vector.multi_reduction <add>, %66, %cst_40 [0] : vector<40x128xf32> to vector<128xf32>
    %68 = vector.shape_cast %67 : vector<128xf32> to vector<1x128xf32>
    %c0_41 = arith.constant 0 : index
    %c2_42 = arith.constant 2 : index
    %c0_43 = arith.constant 0 : index
    %69 = vector.load %arg5[%c0_41, %c2_42, %c0_43] : memref<1x8x128xf32, #tpu.memory_space<vmem>>, vector<1x1x128xf32>
    %70 = vector.shape_cast %69 : vector<1x1x128xf32> to vector<1x128xf32>
    %71 = vector.shape_cast %68 : vector<1x128xf32> to vector<1x1x128xf32>
    tpu.vector_store %arg5[%c0_41, %c2_42, %c0_43], %71 {strides = array<i32>} : memref<1x8x128xf32, #tpu.memory_space<vmem>>, vector<1x1x128xf32>,
    %c0_44 = arith.constant 0 : index
    %c3 = arith.constant 3 : index
    %c0_45 = arith.constant 0 : index
    %72 = vector.load %arg1[%c0_44, %c3, %c0_45] : memref<1x8x128xi32, #tpu.memory_space<vmem>>, vector<1x1x128xi32>
    %73 = vector.shape_cast %72 : vector<1x1x128xi32> to vector<1x128xi32>
    %74 = tpu.iota {dimensions = array<i32: 0>} : vector<64x128xi32>
    %75 = vector.broadcast %73 : vector<1x128xi32> to vector<64x128xi32>
    %76 = arith.cmpi eq, %74, %75 : vector<64x128xi32>
    %77 = arith.extui %76 : vector<64x128xi1> to vector<64x128xi32>
    %78 = arith.sitofp %77 : vector<64x128xi32> to vector<64x128xf32>
    %c0_46 = arith.constant 0 : index
    %c0_47 = arith.constant 0 : index
    %79 = vector.load %arg3[%c0_46, %c0_47] : memref<64x40xf32, #tpu.memory_space<vmem>>, vector<64x40xf32>
    %cst_48 = arith.constant dense<0.000000e+00> : vector<40x128xf32>
    %80 = tpu.matmul %79, %78, %cst_48 {dimension_numbers = #tpu.dot_dimension_numbers<[0], [0], [1], [1], [0, 1, 1, 1], [], []>, precision = #tpu.contract_precision<fp32>} : vector<64x40xf32>, vector<64x128xf32>, vector<40x128xf32> -> vector<40x128xf32>
    %c0_49 = arith.constant 0 : index
    %c3_50 = arith.constant 3 : index
    %c0_51 = arith.constant 0 : index
    %81 = vector.load %arg2[%c0_49, %c3_50, %c0_51] : memref<1x8x128xi32, #tpu.memory_space<vmem>>, vector<1x1x128xi32>
    %82 = vector.shape_cast %81 : vector<1x1x128xi32> to vector<1x128xi32>
    %83 = tpu.iota {dimensions = array<i32: 0>} : vector<96x128xi32>
    %84 = vector.broadcast %82 : vector<1x128xi32> to vector<96x128xi32>
    %85 = arith.cmpi eq, %83, %84 : vector<96x128xi32>
    %86 = arith.extui %85 : vector<96x128xi1> to vector<96x128xi32>
    %87 = arith.sitofp %86 : vector<96x128xi32> to vector<96x128xf32>
    %c0_52 = arith.constant 0 : index
    %c0_53 = arith.constant 0 : index
    %88 = vector.load %arg4[%c0_52, %c0_53] : memref<96x40xf32, #tpu.memory_space<vmem>>, vector<96x40xf32>
    %cst_54 = arith.constant dense<0.000000e+00> : vector<40x128xf32>
    %89 = tpu.matmul %88, %87, %cst_54 {dimension_numbers = #tpu.dot_dimension_numbers<[0], [0], [1], [1], [0, 1, 1, 1], [], []>, precision = #tpu.contract_precision<fp32>} : vector<96x40xf32>, vector<96x128xf32>, vector<40x128xf32> -> vector<40x128xf32>
    %90 = arith.mulf %80, %89 : vector<40x128xf32>
    %cst_55 = arith.constant dense<0.000000e+00> : vector<128xf32>
    %91 = vector.multi_reduction <add>, %90, %cst_55 [0] : vector<40x128xf32> to vector<128xf32>
    %92 = vector.shape_cast %91 : vector<128xf32> to vector<1x128xf32>
    %c0_56 = arith.constant 0 : index
    %c3_57 = arith.constant 3 : index
    %c0_58 = arith.constant 0 : index
    %93 = vector.load %arg5[%c0_56, %c3_57, %c0_58] : memref<1x8x128xf32, #tpu.memory_space<vmem>>, vector<1x1x128xf32>
    %94 = vector.shape_cast %93 : vector<1x1x128xf32> to vector<1x128xf32>
    %95 = vector.shape_cast %92 : vector<1x128xf32> to vector<1x1x128xf32>
    tpu.vector_store %arg5[%c0_56, %c3_57, %c0_58], %95 {strides = array<i32>} : memref<1x8x128xf32, #tpu.memory_space<vmem>>, vector<1x1x128xf32>,
    %c0_59 = arith.constant 0 : index
    %c4 = arith.constant 4 : index
    %c0_60 = arith.constant 0 : index
    %96 = vector.load %arg1[%c0_59, %c4, %c0_60] : memref<1x8x128xi32, #tpu.memory_space<vmem>>, vector<1x1x128xi32>
    %97 = vector.shape_cast %96 : vector<1x1x128xi32> to vector<1x128xi32>
    %98 = tpu.iota {dimensions = array<i32: 0>} : vector<64x128xi32>
    %99 = vector.broadcast %97 : vector<1x128xi32> to vector<64x128xi32>
    %100 = arith.cmpi eq, %98, %99 : vector<64x128xi32>
    %101 = arith.extui %100 : vector<64x128xi1> to vector<64x128xi32>
    %102 = arith.sitofp %101 : vector<64x128xi32> to vector<64x128xf32>
    %c0_61 = arith.constant 0 : index
    %c0_62 = arith.constant 0 : index
    %103 = vector.load %arg3[%c0_61, %c0_62] : memref<64x40xf32, #tpu.memory_space<vmem>>, vector<64x40xf32>
    %cst_63 = arith.constant dense<0.000000e+00> : vector<40x128xf32>
    %104 = tpu.matmul %103, %102, %cst_63 {dimension_numbers = #tpu.dot_dimension_numbers<[0], [0], [1], [1], [0, 1, 1, 1], [], []>, precision = #tpu.contract_precision<fp32>} : vector<64x40xf32>, vector<64x128xf32>, vector<40x128xf32> -> vector<40x128xf32>
    %c0_64 = arith.constant 0 : index
    %c4_65 = arith.constant 4 : index
    %c0_66 = arith.constant 0 : index
    %105 = vector.load %arg2[%c0_64, %c4_65, %c0_66] : memref<1x8x128xi32, #tpu.memory_space<vmem>>, vector<1x1x128xi32>
    %106 = vector.shape_cast %105 : vector<1x1x128xi32> to vector<1x128xi32>
    %107 = tpu.iota {dimensions = array<i32: 0>} : vector<96x128xi32>
    %108 = vector.broadcast %106 : vector<1x128xi32> to vector<96x128xi32>
    %109 = arith.cmpi eq, %107, %108 : vector<96x128xi32>
    %110 = arith.extui %109 : vector<96x128xi1> to vector<96x128xi32>
    %111 = arith.sitofp %110 : vector<96x128xi32> to vector<96x128xf32>
    %c0_67 = arith.constant 0 : index
    %c0_68 = arith.constant 0 : index
    %112 = vector.load %arg4[%c0_67, %c0_68] : memref<96x40xf32, #tpu.memory_space<vmem>>, vector<96x40xf32>
    %cst_69 = arith.constant dense<0.000000e+00> : vector<40x128xf32>
    %113 = tpu.matmul %112, %111, %cst_69 {dimension_numbers = #tpu.dot_dimension_numbers<[0], [0], [1], [1], [0, 1, 1, 1], [], []>, precision = #tpu.contract_precision<fp32>} : vector<96x40xf32>, vector<96x128xf32>, vector<40x128xf32> -> vector<40x128xf32>
    %114 = arith.mulf %104, %113 : vector<40x128xf32>
    %cst_70 = arith.constant dense<0.000000e+00> : vector<128xf32>
    %115 = vector.multi_reduction <add>, %114, %cst_70 [0] : vector<40x128xf32> to vector<128xf32>
    %116 = vector.shape_cast %115 : vector<128xf32> to vector<1x128xf32>
    %c0_71 = arith.constant 0 : index
    %c4_72 = arith.constant 4 : index
    %c0_73 = arith.constant 0 : index
    %117 = vector.load %arg5[%c0_71, %c4_72, %c0_73] : memref<1x8x128xf32, #tpu.memory_space<vmem>>, vector<1x1x128xf32>
    %118 = vector.shape_cast %117 : vector<1x1x128xf32> to vector<1x128xf32>
    %119 = vector.shape_cast %116 : vector<1x128xf32> to vector<1x1x128xf32>
    tpu.vector_store %arg5[%c0_71, %c4_72, %c0_73], %119 {strides = array<i32>} : memref<1x8x128xf32, #tpu.memory_space<vmem>>, vector<1x1x128xf32>,
    %c0_74 = arith.constant 0 : index
    %c5 = arith.constant 5 : index
    %c0_75 = arith.constant 0 : index
    %120 = vector.load %arg1[%c0_74, %c5, %c0_75] : memref<1x8x128xi32, #tpu.memory_space<vmem>>, vector<1x1x128xi32>
    %121 = vector.shape_cast %120 : vector<1x1x128xi32> to vector<1x128xi32>
    %122 = tpu.iota {dimensions = array<i32: 0>} : vector<64x128xi32>
    %123 = vector.broadcast %121 : vector<1x128xi32> to vector<64x128xi32>
    %124 = arith.cmpi eq, %122, %123 : vector<64x128xi32>
    %125 = arith.extui %124 : vector<64x128xi1> to vector<64x128xi32>
    %126 = arith.sitofp %125 : vector<64x128xi32> to vector<64x128xf32>
    %c0_76 = arith.constant 0 : index
    %c0_77 = arith.constant 0 : index
    %127 = vector.load %arg3[%c0_76, %c0_77] : memref<64x40xf32, #tpu.memory_space<vmem>>, vector<64x40xf32>
    %cst_78 = arith.constant dense<0.000000e+00> : vector<40x128xf32>
    %128 = tpu.matmul %127, %126, %cst_78 {dimension_numbers = #tpu.dot_dimension_numbers<[0], [0], [1], [1], [0, 1, 1, 1], [], []>, precision = #tpu.contract_precision<fp32>} : vector<64x40xf32>, vector<64x128xf32>, vector<40x128xf32> -> vector<40x128xf32>
    %c0_79 = arith.constant 0 : index
    %c5_80 = arith.constant 5 : index
    %c0_81 = arith.constant 0 : index
    %129 = vector.load %arg2[%c0_79, %c5_80, %c0_81] : memref<1x8x128xi32, #tpu.memory_space<vmem>>, vector<1x1x128xi32>
    %130 = vector.shape_cast %129 : vector<1x1x128xi32> to vector<1x128xi32>
    %131 = tpu.iota {dimensions = array<i32: 0>} : vector<96x128xi32>
    %132 = vector.broadcast %130 : vector<1x128xi32> to vector<96x128xi32>
    %133 = arith.cmpi eq, %131, %132 : vector<96x128xi32>
    %134 = arith.extui %133 : vector<96x128xi1> to vector<96x128xi32>
    %135 = arith.sitofp %134 : vector<96x128xi32> to vector<96x128xf32>
    %c0_82 = arith.constant 0 : index
    %c0_83 = arith.constant 0 : index
    %136 = vector.load %arg4[%c0_82, %c0_83] : memref<96x40xf32, #tpu.memory_space<vmem>>, vector<96x40xf32>
    %cst_84 = arith.constant dense<0.000000e+00> : vector<40x128xf32>
    %137 = tpu.matmul %136, %135, %cst_84 {dimension_numbers = #tpu.dot_dimension_numbers<[0], [0], [1], [1], [0, 1, 1, 1], [], []>, precision = #tpu.contract_precision<fp32>} : vector<96x40xf32>, vector<96x128xf32>, vector<40x128xf32> -> vector<40x128xf32>
    %138 = arith.mulf %128, %137 : vector<40x128xf32>
    %cst_85 = arith.constant dense<0.000000e+00> : vector<128xf32>
    %139 = vector.multi_reduction <add>, %138, %cst_85 [0] : vector<40x128xf32> to vector<128xf32>
    %140 = vector.shape_cast %139 : vector<128xf32> to vector<1x128xf32>
    %c0_86 = arith.constant 0 : index
    %c5_87 = arith.constant 5 : index
    %c0_88 = arith.constant 0 : index
    %141 = vector.load %arg5[%c0_86, %c5_87, %c0_88] : memref<1x8x128xf32, #tpu.memory_space<vmem>>, vector<1x1x128xf32>
    %142 = vector.shape_cast %141 : vector<1x1x128xf32> to vector<1x128xf32>
    %143 = vector.shape_cast %140 : vector<1x128xf32> to vector<1x1x128xf32>
    tpu.vector_store %arg5[%c0_86, %c5_87, %c0_88], %143 {strides = array<i32>} : memref<1x8x128xf32, #tpu.memory_space<vmem>>, vector<1x1x128xf32>,
    %c0_89 = arith.constant 0 : index
    %c6 = arith.constant 6 : index
    %c0_90 = arith.constant 0 : index
    %144 = vector.load %arg1[%c0_89, %c6, %c0_90] : memref<1x8x128xi32, #tpu.memory_space<vmem>>, vector<1x1x128xi32>
    %145 = vector.shape_cast %144 : vector<1x1x128xi32> to vector<1x128xi32>
    %146 = tpu.iota {dimensions = array<i32: 0>} : vector<64x128xi32>
    %147 = vector.broadcast %145 : vector<1x128xi32> to vector<64x128xi32>
    %148 = arith.cmpi eq, %146, %147 : vector<64x128xi32>
    %149 = arith.extui %148 : vector<64x128xi1> to vector<64x128xi32>
    %150 = arith.sitofp %149 : vector<64x128xi32> to vector<64x128xf32>
    %c0_91 = arith.constant 0 : index
    %c0_92 = arith.constant 0 : index
    %151 = vector.load %arg3[%c0_91, %c0_92] : memref<64x40xf32, #tpu.memory_space<vmem>>, vector<64x40xf32>
    %cst_93 = arith.constant dense<0.000000e+00> : vector<40x128xf32>
    %152 = tpu.matmul %151, %150, %cst_93 {dimension_numbers = #tpu.dot_dimension_numbers<[0], [0], [1], [1], [0, 1, 1, 1], [], []>, precision = #tpu.contract_precision<fp32>} : vector<64x40xf32>, vector<64x128xf32>, vector<40x128xf32> -> vector<40x128xf32>
    %c0_94 = arith.constant 0 : index
    %c6_95 = arith.constant 6 : index
    %c0_96 = arith.constant 0 : index
    %153 = vector.load %arg2[%c0_94, %c6_95, %c0_96] : memref<1x8x128xi32, #tpu.memory_space<vmem>>, vector<1x1x128xi32>
    %154 = vector.shape_cast %153 : vector<1x1x128xi32> to vector<1x128xi32>
    %155 = tpu.iota {dimensions = array<i32: 0>} : vector<96x128xi32>
    %156 = vector.broadcast %154 : vector<1x128xi32> to vector<96x128xi32>
    %157 = arith.cmpi eq, %155, %156 : vector<96x128xi32>
    %158 = arith.extui %157 : vector<96x128xi1> to vector<96x128xi32>
    %159 = arith.sitofp %158 : vector<96x128xi32> to vector<96x128xf32>
    %c0_97 = arith.constant 0 : index
    %c0_98 = arith.constant 0 : index
    %160 = vector.load %arg4[%c0_97, %c0_98] : memref<96x40xf32, #tpu.memory_space<vmem>>, vector<96x40xf32>
    %cst_99 = arith.constant dense<0.000000e+00> : vector<40x128xf32>
    %161 = tpu.matmul %160, %159, %cst_99 {dimension_numbers = #tpu.dot_dimension_numbers<[0], [0], [1], [1], [0, 1, 1, 1], [], []>, precision = #tpu.contract_precision<fp32>} : vector<96x40xf32>, vector<96x128xf32>, vector<40x128xf32> -> vector<40x128xf32>
    %162 = arith.mulf %152, %161 : vector<40x128xf32>
    %cst_100 = arith.constant dense<0.000000e+00> : vector<128xf32>
    %163 = vector.multi_reduction <add>, %162, %cst_100 [0] : vector<40x128xf32> to vector<128xf32>
    %164 = vector.shape_cast %163 : vector<128xf32> to vector<1x128xf32>
    %c0_101 = arith.constant 0 : index
    %c6_102 = arith.constant 6 : index
    %c0_103 = arith.constant 0 : index
    %165 = vector.load %arg5[%c0_101, %c6_102, %c0_103] : memref<1x8x128xf32, #tpu.memory_space<vmem>>, vector<1x1x128xf32>
    %166 = vector.shape_cast %165 : vector<1x1x128xf32> to vector<1x128xf32>
    %167 = vector.shape_cast %164 : vector<1x128xf32> to vector<1x1x128xf32>
    tpu.vector_store %arg5[%c0_101, %c6_102, %c0_103], %167 {strides = array<i32>} : memref<1x8x128xf32, #tpu.memory_space<vmem>>, vector<1x1x128xf32>,
    %c0_104 = arith.constant 0 : index
    %c7 = arith.constant 7 : index
    %c0_105 = arith.constant 0 : index
    %168 = vector.load %arg1[%c0_104, %c7, %c0_105] : memref<1x8x128xi32, #tpu.memory_space<vmem>>, vector<1x1x128xi32>
    %169 = vector.shape_cast %168 : vector<1x1x128xi32> to vector<1x128xi32>
    %170 = tpu.iota {dimensions = array<i32: 0>} : vector<64x128xi32>
    %171 = vector.broadcast %169 : vector<1x128xi32> to vector<64x128xi32>
    %172 = arith.cmpi eq, %170, %171 : vector<64x128xi32>
    %173 = arith.extui %172 : vector<64x128xi1> to vector<64x128xi32>
    %174 = arith.sitofp %173 : vector<64x128xi32> to vector<64x128xf32>
    %c0_106 = arith.constant 0 : index
    %c0_107 = arith.constant 0 : index
    %175 = vector.load %arg3[%c0_106, %c0_107] : memref<64x40xf32, #tpu.memory_space<vmem>>, vector<64x40xf32>
    %cst_108 = arith.constant dense<0.000000e+00> : vector<40x128xf32>
    %176 = tpu.matmul %175, %174, %cst_108 {dimension_numbers = #tpu.dot_dimension_numbers<[0], [0], [1], [1], [0, 1, 1, 1], [], []>, precision = #tpu.contract_precision<fp32>} : vector<64x40xf32>, vector<64x128xf32>, vector<40x128xf32> -> vector<40x128xf32>
    %c0_109 = arith.constant 0 : index
    %c7_110 = arith.constant 7 : index
    %c0_111 = arith.constant 0 : index
    %177 = vector.load %arg2[%c0_109, %c7_110, %c0_111] : memref<1x8x128xi32, #tpu.memory_space<vmem>>, vector<1x1x128xi32>
    %178 = vector.shape_cast %177 : vector<1x1x128xi32> to vector<1x128xi32>
    %179 = tpu.iota {dimensions = array<i32: 0>} : vector<96x128xi32>
    %180 = vector.broadcast %178 : vector<1x128xi32> to vector<96x128xi32>
    %181 = arith.cmpi eq, %179, %180 : vector<96x128xi32>
    %182 = arith.extui %181 : vector<96x128xi1> to vector<96x128xi32>
    %183 = arith.sitofp %182 : vector<96x128xi32> to vector<96x128xf32>
    %c0_112 = arith.constant 0 : index
    %c0_113 = arith.constant 0 : index
    %184 = vector.load %arg4[%c0_112, %c0_113] : memref<96x40xf32, #tpu.memory_space<vmem>>, vector<96x40xf32>
    %cst_114 = arith.constant dense<0.000000e+00> : vector<40x128xf32>
    %185 = tpu.matmul %184, %183, %cst_114 {dimension_numbers = #tpu.dot_dimension_numbers<[0], [0], [1], [1], [0, 1, 1, 1], [], []>, precision = #tpu.contract_precision<fp32>} : vector<96x40xf32>, vector<96x128xf32>, vector<40x128xf32> -> vector<40x128xf32>
    %186 = arith.mulf %176, %185 : vector<40x128xf32>
    %cst_115 = arith.constant dense<0.000000e+00> : vector<128xf32>
    %187 = vector.multi_reduction <add>, %186, %cst_115 [0] : vector<40x128xf32> to vector<128xf32>
    %188 = vector.shape_cast %187 : vector<128xf32> to vector<1x128xf32>
    %c0_116 = arith.constant 0 : index
    %c7_117 = arith.constant 7 : index
    %c0_118 = arith.constant 0 : index
    %189 = vector.load %arg5[%c0_116, %c7_117, %c0_118] : memref<1x8x128xf32, #tpu.memory_space<vmem>>, vector<1x1x128xf32>
    %190 = vector.shape_cast %189 : vector<1x1x128xf32> to vector<1x128xf32>
    %191 = vector.shape_cast %188 : vector<1x128xf32> to vector<1x1x128xf32>
    tpu.vector_store %arg5[%c0_116, %c7_117, %c0_118], %191 {strides = array<i32>} : memref<1x8x128xf32, #tpu.memory_space<vmem>>, vector<1x1x128xf32>,
    return
  }
  func.func @transform_0(%arg0: i32) -> (i32, i32, i32) {
    %c0_i32 = arith.constant 0 : i32
    %c0_i32_0 = arith.constant 0 : i32
    %c0_i32_1 = arith.constant 0 : i32
    return %arg0, %c0_i32, %c0_i32_0 : i32, i32, i32
  }
  func.func @transform_1(%arg0: i32) -> (i32, i32, i32) {
    %c0_i32 = arith.constant 0 : i32
    %c0_i32_0 = arith.constant 0 : i32
    %c0_i32_1 = arith.constant 0 : i32
    return %arg0, %c0_i32, %c0_i32_0 : i32, i32, i32
  }
  func.func @transform_2(%arg0: i32) -> (i32, i32) {
    %c0_i32 = arith.constant 0 : i32
    %c0_i32_0 = arith.constant 0 : i32
    %c0_i32_1 = arith.constant 0 : i32
    return %c0_i32, %c0_i32_0 : i32, i32
  }
  func.func @transform_3(%arg0: i32) -> (i32, i32) {
    %c0_i32 = arith.constant 0 : i32
    %c0_i32_0 = arith.constant 0 : i32
    %c0_i32_1 = arith.constant 0 : i32
    return %c0_i32, %c0_i32_0 : i32, i32
  }
  func.func @transform_4(%arg0: i32) -> (i32, i32, i32) {
    %c0_i32 = arith.constant 0 : i32
    %c0_i32_0 = arith.constant 0 : i32
    %c0_i32_1 = arith.constant 0 : i32
    return %arg0, %c0_i32, %c0_i32_0 : i32, i32, i32
  }
}

</mosaic_0001>

<llo_original>
// kernel: tpu_custom_call.1
$region0: #{tpu_custom_call.1}
  #allocation0 [shape = 'u32[]', space=smem, size = 0x4, offset = 0x4, fixed_abs, tag = 'smem constant byte address 0x4 - core index']
  #allocation1 [shape = 'u32[72,128]{1,0:T(1,128)}', space=vmem, size = 0x9000, scoped, tag = 'internal scratch']
  %s0 = inlined_call_operand.vmem [shape: s32[1,8,128], index: 0, kind: input, shape index: {}]
  %s1 = inlined_call_operand.vmem [shape: s32[1,8,128], index: 1, kind: input, shape index: {}]
  %s2 = inlined_call_operand.vmem [shape: f32[64,40], index: 2, kind: input, shape index: {}]
  %s3 = inlined_call_operand.vmem [shape: f32[96,40], index: 3, kind: input, shape index: {}]
  %s4 = inlined_call_operand.hbm [shape: f32[1,8,128], index: 4, kind: output, shape index: {}]
  %s5 = sld [smem:[#allocation0]]
  $region26: #{tpu_custom_call.1} parent=0
    _
  %s7 = ssub.s32 1, %s5
  %s8 = scalar_select 0, %s7, %s5
  $region1: #{tpu_custom_call.1} parent=0
    #allocation2 [shape = 'u8[4096]{0}', space=vmem, size = 0x1000, scoped, tag = 'output window, operand 0, single buffered']
    #allocation3 [shape = 's32[1]{0}', space=sflag, size = 0x4, scoped, tag = 'scoped memory for tpu_custom_call.1']
    %9 = vsyncpa [#allocation3], 0
    // Predicated region
    $region2: #{tpu_custom_call.1} parent=1 // pred_check
      _
    $region3: #{tpu_custom_call.1} parent=1 // pred_check_branch
      %11 = sbr.rel (0) target = $region5
    $region4: #{tpu_custom_call.1} parent=1 // pred_region
      _
    $region5: #{tpu_custom_call.1} parent=1 // pred_fallthru
      _
    // Predicated region
    $region6: #{tpu_custom_call.1} parent=1 // pred_check
      _
    $region7: #{tpu_custom_call.1} parent=1 // pred_check_branch
      %13 = sbr.rel (0) target = $region9
    $region8: #{tpu_custom_call.1} parent=1 // pred_region
      _
    $region9: #{tpu_custom_call.1} parent=1 // pred_fallthru
      _
    // Predicated region
    $region10: #{tpu_custom_call.1} parent=1 // pred_check
      _
    $region11: #{tpu_custom_call.1} parent=1 // pred_check_branch
      %15 = sbr.rel (0) target = $region13
    $region12: #{tpu_custom_call.1} parent=1 // pred_region
      _
    $region13: #{tpu_custom_call.1} parent=1 // pred_fallthru
      _
    // Predicated region
    $region14: #{tpu_custom_call.1} parent=1 // pred_check
      _
    $region15: #{tpu_custom_call.1} parent=1 // pred_check_branch
      %17 = sbr.rel (0) target = $region17
    $region16: #{tpu_custom_call.1} parent=1 // pred_region
      _
    $region17: #{tpu_custom_call.1} parent=1 // pred_fallthru
      _
    %v18 = vld [vmem:[%s0] sm:$0x1]
    %v19 = vlaneseq
    %v20 = vshrl.u32 %v19, 7
    %v21 = vadd.s32 %v20, 8
    %v22 = vadd.s32 %v20, 16
    %v23 = vadd.s32 %v20, 24
    %v24 = vadd.s32 %v20, 32
    %v25 = vadd.s32 %v20, 40
    %v26 = vadd.s32 %v20, 48
    %v27 = vadd.s32 %v20, 56
    %v28 = vperm.slane %v18, 0
    %vm29 = vcmp.eq.s32.totalorder %v20, %v28
    %vm30 = vcmp.eq.s32.totalorder %v21, %v28
    %vm31 = vcmp.eq.s32.totalorder %v22, %v28
    %vm32 = vcmp.eq.s32.totalorder %v23, %v28
    %vm33 = vcmp.eq.s32.totalorder %v24, %v28
    %vm34 = vcmp.eq.s32.totalorder %v25, %v28
    %vm35 = vcmp.eq.s32.totalorder %v26, %v28
    %vm36 = vcmp.eq.s32.totalorder %v27, %v28
    %v37 = vsel %vm29, 1, 0
    %v38 = vsel %vm30, 1, 0
    %v39 = vsel %vm31, 1, 0
    %v40 = vsel %vm32, 1, 0
    %v41 = vsel %vm33, 1, 0
    %v42 = vsel %vm34, 1, 0
    %v43 = vsel %vm35, 1, 0
    %v44 = vsel %vm36, 1, 0
    %v45 = vcvt.s32.f32 %v37
    %v46 = vcvt.s32.f32 %v38
    %v47 = vcvt.s32.f32 %v39
    %v48 = vcvt.s32.f32 %v40
    %v49 = vcvt.s32.f32 %v41
    %v50 = vcvt.s32.f32 %v42
    %v51 = vcvt.s32.f32 %v43
    %v52 = vcvt.s32.f32 %v44
    %v53 = vld [vmem:[%s2] sm:$0xff]
    %v54 = vld [vmem:[%s2 + $0x8] sm:$0xff]
    %v55 = vld [vmem:[%s2 + $0x10] sm:$0xff]
    %v56 = vld [vmem:[%s2 + $0x18] sm:$0xff]
    %v57 = vld [vmem:[%s2 + $0x20] sm:$0xff]
    %v58 = vld [vmem:[%s2 + $0x28] sm:$0xff]
    %v59 = vld [vmem:[%s2 + $0x30] sm:$0xff]
    %v60 = vld [vmem:[%s2 + $0x38] sm:$0xff]
    %61 = vxpose.xlu0.b32.start [1/16] %v53, 128
    %62 = vxpose.xlu0.b32.cont [2/16] %v54, 128
    %63 = vxpose.xlu0.b32.cont [3/16] %v55, 128
    %64 = vxpose.xlu0.b32.cont [4/16] %v56, 128
    %65 = vxpose.xlu0.b32.cont [5/16] %v57, 128
    %66 = vxpose.xlu0.b32.cont [6/16] %v58, 128
    %67 = vxpose.xlu0.b32.cont [7/16] %v59, 128
    %68 = vxpose.xlu0.b32.cont [8/16] %v60, 128
    %69 = vxpose.xlu0.b32.cont [9/16] 0.0, 128
    %70 = vxpose.xlu0.b32.cont [10/16] 0.0, 128
    %71 = vxpose.xlu0.b32.cont [11/16] 0.0, 128
    %72 = vxpose.xlu0.b32.cont [12/16] 0.0, 128
    %73 = vxpose.xlu0.b32.cont [13/16] 0.0, 128
    %74 = vxpose.xlu0.b32.cont [14/16] 0.0, 128
    %75 = vxpose.xlu0.b32.cont [15/16] 0.0, 128
    %76 = vxpose.xlu0.b32.end [16/16] 0.0, 128
    %v77 = vpop.trf.xlu0
    %v78 = vpop.trf.xlu0
    %v79 = vpop.trf.xlu0
    %v80 = vpop.trf.xlu0
    %v81 = vpop.trf.xlu0
    %v82 = vpop.trf.xlu0
    %v83 = vpop.trf.xlu0
    %v84 = vpop.trf.xlu0
    %v85 = vpop.trf.xlu0
    %v86 = vpop.trf.xlu0
    %v87 = vpop.trf.xlu0
    %v88 = vpop.trf.xlu0
    %v89 = vpop.trf.xlu0
    %v90 = vpop.trf.xlu0
    %v91 = vpop.trf.xlu0
    %v92 = vpop.trf.xlu0
    %vm93 = vcmask 523264
    %v95 = vsel %vm93, %v77, 0
    %v98 = vsel %vm93, %v78, 0
    %v101 = vsel %vm93, %v79, 0
    %v104 = vsel %vm93, %v80, 0
    %v107 = vsel %vm93, %v81, 0
    %109 = vmatpush.msra.mxu0 0.0
    %110 = vmatpush.msra.mxu0 0.0
    %111 = vmatpush.msra.mxu0 0.0
    %112 = vmatpush.msra.mxu0 0.0
    %113 = vmatpush.msra.mxu0 0.0
    %114 = vmatpush.msra.mxu0 0.0
    %115 = vmatpush.msra.mxu0 0.0
    %116 = vmatpush.msra.mxu0 0.0
    %v117 = vand.u32 %v52, 4294901760
    %118 = vmatpush.msra.mxu0 %v117
    %v119 = vand.u32 %v51, 4294901760
    %120 = vmatpush.msra.mxu0 %v119
    %v121 = vand.u32 %v50, 4294901760
    %122 = vmatpush.msra.mxu0 %v121
    %v123 = vand.u32 %v49, 4294901760
    %124 = vmatpush.msra.mxu0 %v123
    %v125 = vand.u32 %v48, 4294901760
    %126 = vmatpush.msra.mxu0 %v125
    %v127 = vand.u32 %v47, 4294901760
    %128 = vmatpush.msra.mxu0 %v127
    %v129 = vand.u32 %v46, 4294901760
    %130 = vmatpush.msra.mxu0 %v129
    %v131 = vand.u32 %v45, 4294901760
    %132 = vmatpush.msra.mxu0 %v131
    %v133 = vand.u32 %v95, 4294901760
    %v134 = vsub.f32 %v95, %v133
    %v135 = vand.u32 %v134, 4294901760
    %v136 = vsub.f32 %v134, %v135
    %v137 = vand.u32 %v136, 4294901760
    %138 = vmatmul.f32.gmra.mxu0 %v137
    %v139 = vpop.f32.mrf.mxu0
    %v140 = vadd.f32 0.0, %v139
    %v141 = vand.u32 %v98, 4294901760
    %v142 = vsub.f32 %v98, %v141
    %v143 = vand.u32 %v142, 4294901760
    %v144 = vsub.f32 %v142, %v143
    %v145 = vand.u32 %v144, 4294901760
    %146 = vmatmul.f32.gmra.mxu0 %v145
    %v147 = vpop.f32.mrf.mxu0
    %v148 = vadd.f32 0.0, %v147
    %v149 = vand.u32 %v101, 4294901760
    %v150 = vsub.f32 %v101, %v149
    %v151 = vand.u32 %v150, 4294901760
    %v152 = vsub.f32 %v150, %v151
    %v153 = vand.u32 %v152, 4294901760
    %154 = vmatmul.f32.gmra.mxu0 %v153
    %v155 = vpop.f32.mrf.mxu0
    %v156 = vadd.f32 0.0, %v155
    %v157 = vand.u32 %v104, 4294901760
    %v158 = vsub.f32 %v104, %v157
    %v159 = vand.u32 %v158, 4294901760
    %v160 = vsub.f32 %v158, %v159
    %v161 = vand.u32 %v160, 4294901760
    %162 = vmatmul.f32.gmra.mxu0 %v161
    %v163 = vpop.f32.mrf.mxu0
    %v164 = vadd.f32 0.0, %v163
    %v165 = vand.u32 %v107, 4294901760
    %v166 = vsub.f32 %v107, %v165
    %v167 = vand.u32 %v166, 4294901760
    %v168 = vsub.f32 %v166, %v167
    %v169 = vand.u32 %v168, 4294901760
    %170 = vmatmul.f32.gmra.mxu0 %v169
    %v171 = vpop.f32.mrf.mxu0
    %v172 = vadd.f32 0.0, %v171
    %173 = vdwg.mxu0
    %174 = vmatpush.msra.mxu0 0.0
    %175 = vmatpush.msra.mxu0 0.0
    %176 = vmatpush.msra.mxu0 0.0
    %177 = vmatpush.msra.mxu0 0.0
    %178 = vmatpush.msra.mxu0 0.0
    %179 = vmatpush.msra.mxu0 0.0
    %180 = vmatpush.msra.mxu0 0.0
    %181 = vmatpush.msra.mxu0 0.0
    %v182 = vand.u32 %v52, 4294901760
    %v183 = vsub.f32 %v52, %v182
    %v184 = vand.u32 %v183, 4294901760
    %v185 = vsub.f32 %v183, %v184
    %v186 = vand.u32 %v185, 4294901760
    %187 = vmatpush.msra.mxu0 %v186
    %v188 = vand.u32 %v51, 4294901760
    %v189 = vsub.f32 %v51, %v188
    %v190 = vand.u32 %v189, 4294901760
    %v191 = vsub.f32 %v189, %v190
    %v192 = vand.u32 %v191, 4294901760
    %193 = vmatpush.msra.mxu0 %v192
    %v194 = vand.u32 %v50, 4294901760
    %v195 = vsub.f32 %v50, %v194
    %v196 = vand.u32 %v195, 4294901760
    %v197 = vsub.f32 %v195, %v196
    %v198 = vand.u32 %v197, 4294901760
    %199 = vmatpush.msra.mxu0 %v198
    %v200 = vand.u32 %v49, 4294901760
    %v201 = vsub.f32 %v49, %v200
    %v202 = vand.u32 %v201, 4294901760
    %v203 = vsub.f32 %v201, %v202
    %v204 = vand.u32 %v203, 4294901760
    %205 = vmatpush.msra.mxu0 %v204
    %v206 = vand.u32 %v48, 4294901760
    %v207 = vsub.f32 %v48, %v206
    %v208 = vand.u32 %v207, 4294901760
    %v209 = vsub.f32 %v207, %v208
    %v210 = vand.u32 %v209, 4294901760
    %211 = vmatpush.msra.mxu0 %v210
    %v212 = vand.u32 %v47, 4294901760
    %v213 = vsub.f32 %v47, %v212
    %v214 = vand.u32 %v213, 4294901760
    %v215 = vsub.f32 %v213, %v214
    %v216 = vand.u32 %v215, 4294901760
    %217 = vmatpush.msra.mxu0 %v216
    %v218 = vand.u32 %v46, 4294901760
    %v219 = vsub.f32 %v46, %v218
    %v220 = vand.u32 %v219, 4294901760
    %v221 = vsub.f32 %v219, %v220
    %v222 = vand.u32 %v221, 4294901760
    %223 = vmatpush.msra.mxu0 %v222
    %v224 = vand.u32 %v45, 4294901760
    %v225 = vsub.f32 %v45, %v224
    %v226 = vand.u32 %v225, 4294901760
    %v227 = vsub.f32 %v225, %v226
    %v228 = vand.u32 %v227, 4294901760
    %229 = vmatpush.msra.mxu0 %v228
    %v230 = vand.u32 %v95, 4294901760
    %231 = vmatmul.f32.gmra.mxu0 %v230
    %v232 = vpop.f32.mrf.mxu0
    %v233 = vadd.f32 %v140, %v232
    %v234 = vand.u32 %v98, 4294901760
    %235 = vmatmul.f32.gmra.mxu0 %v234
    %v236 = vpop.f32.mrf.mxu0
    %v237 = vadd.f32 %v148, %v236
    %v238 = vand.u32 %v101, 4294901760
    %239 = vmatmul.f32.gmra.mxu0 %v238
    %v240 = vpop.f32.mrf.mxu0
    %v241 = vadd.f32 %v156, %v240
    %v242 = vand.u32 %v104, 4294901760
    %243 = vmatmul.f32.gmra.mxu0 %v242
    %v244 = vpop.f32.mrf.mxu0
    %v245 = vadd.f32 %v164, %v244
    %v246 = vand.u32 %v107, 4294901760
    %247 = vmatmul.f32.gmra.mxu0 %v246
    %v248 = vpop.f32.mrf.mxu0
    %v249 = vadd.f32 %v172, %v248
    %250 = vdwg.mxu0
    %251 = vmatpush.msra.mxu0 0.0
    %252 = vmatpush.msra.mxu0 0.0
    %253 = vmatpush.msra.mxu0 0.0
    %254 = vmatpush.msra.mxu0 0.0
    %255 = vmatpush.msra.mxu0 0.0
    %256 = vmatpush.msra.mxu0 0.0
    %257 = vmatpush.msra.mxu0 0.0
    %258 = vmatpush.msra.mxu0 0.0
    %v259 = vand.u32 %v52, 4294901760
    %v260 = vsub.f32 %v52, %v259
    %261 = vmatpush.msra.mxu0 %v260
    %v262 = vand.u32 %v51, 4294901760
    %v263 = vsub.f32 %v51, %v262
    %264 = vmatpush.msra.mxu0 %v263
    %v265 = vand.u32 %v50, 4294901760
    %v266 = vsub.f32 %v50, %v265
    %267 = vmatpush.msra.mxu0 %v266
    %v268 = vand.u32 %v49, 4294901760
    %v269 = vsub.f32 %v49, %v268
    %270 = vmatpush.msra.mxu0 %v269
    %v271 = vand.u32 %v48, 4294901760
    %v272 = vsub.f32 %v48, %v271
    %273 = vmatpush.msra.mxu0 %v272
    %v274 = vand.u32 %v47, 4294901760
    %v275 = vsub.f32 %v47, %v274
    %276 = vmatpush.msra.mxu0 %v275
    %v277 = vand.u32 %v46, 4294901760
    %v278 = vsub.f32 %v46, %v277
    %279 = vmatpush.msra.mxu0 %v278
    %v280 = vand.u32 %v45, 4294901760
    %v281 = vsub.f32 %v45, %v280
    %282 = vmatpush.msra.mxu0 %v281
    %v283 = vand.u32 %v95, 4294901760
    %v284 = vsub.f32 %v95, %v283
    %285 = vmatmul.f32.gmra.mxu0 %v284
    %v286 = vpop.f32.mrf.mxu0
    %v287 = vadd.f32 %v233, %v286
    %v288 = vand.u32 %v98, 4294901760
    %v289 = vsub.f32 %v98, %v288
    %290 = vmatmul.f32.gmra.mxu0 %v289
    %v291 = vpop.f32.mrf.mxu0
    %v292 = vadd.f32 %v237, %v291
    %v293 = vand.u32 %v101, 4294901760
    %v294 = vsub.f32 %v101, %v293
    %295 = vmatmul.f32.gmra.mxu0 %v294
    %v296 = vpop.f32.mrf.mxu0
    %v297 = vadd.f32 %v241, %v296
    %v298 = vand.u32 %v104, 4294901760
    %v299 = vsub.f32 %v104, %v298
    %300 = vmatmul.f32.gmra.mxu0 %v299
    %v301 = vpop.f32.mrf.mxu0
    %v302 = vadd.f32 %v245, %v301
    %v303 = vand.u32 %v107, 4294901760
    %v304 = vsub.f32 %v107, %v303
    %305 = vmatmul.f32.gmra.mxu0 %v304
    %v306 = vpop.f32.mrf.mxu0
    %v307 = vadd.f32 %v249, %v306
    %308 = vdwg.mxu0
    %309 = vmatpush.msra.mxu0 0.0
    %310 = vmatpush.msra.mxu0 0.0
    %311 = vmatpush.msra.mxu0 0.0
    %312 = vmatpush.msra.mxu0 0.0
    %313 = vmatpush.msra.mxu0 0.0
    %314 = vmatpush.msra.mxu0 0.0
    %315 = vmatpush.msra.mxu0 0.0
    %316 = vmatpush.msra.mxu0 0.0
    %v317 = vand.u32 %v52, 4294901760
    %318 = vmatpush.msra.mxu0 %v317
    %v319 = vand.u32 %v51, 4294901760
    %320 = vmatpush.msra.mxu0 %v319
    %v321 = vand.u32 %v50, 4294901760
    %322 = vmatpush.msra.mxu0 %v321
    %v323 = vand.u32 %v49, 4294901760
    %324 = vmatpush.msra.mxu0 %v323
    %v325 = vand.u32 %v48, 4294901760
    %326 = vmatpush.msra.mxu0 %v325
    %v327 = vand.u32 %v47, 4294901760
    %328 = vmatpush.msra.mxu0 %v327
    %v329 = vand.u32 %v46, 4294901760
    %330 = vmatpush.msra.mxu0 %v329
    %v331 = vand.u32 %v45, 4294901760
    %332 = vmatpush.msra.mxu0 %v331
    %v333 = vand.u32 %v95, 4294901760
    %v334 = vsub.f32 %v95, %v333
    %v335 = vand.u32 %v334, 4294901760
    %336 = vmatmul.f32.gmra.mxu0 %v335
    %v337 = vpop.f32.mrf.mxu0
    %v338 = vadd.f32 %v287, %v337
    %v339 = vand.u32 %v98, 4294901760
    %v340 = vsub.f32 %v98, %v339
    %v341 = vand.u32 %v340, 4294901760
    %342 = vmatmul.f32.gmra.mxu0 %v341
    %v343 = vpop.f32.mrf.mxu0
    %v344 = vadd.f32 %v292, %v343
    %v345 = vand.u32 %v101, 4294901760
    %v346 = vsub.f32 %v101, %v345
    %v347 = vand.u32 %v346, 4294901760
    %348 = vmatmul.f32.gmra.mxu0 %v347
    %v349 = vpop.f32.mrf.mxu0
    %v350 = vadd.f32 %v297, %v349
    %v351 = vand.u32 %v104, 4294901760
    %v352 = vsub.f32 %v104, %v351
    %v353 = vand.u32 %v352, 4294901760
    %354 = vmatmul.f32.gmra.mxu0 %v353
    %v355 = vpop.f32.mrf.mxu0
    %v356 = vadd.f32 %v302, %v355
    %v357 = vand.u32 %v107, 4294901760
    %v358 = vsub.f32 %v107, %v357
    %v359 = vand.u32 %v358, 4294901760
    %360 = vmatmul.f32.gmra.mxu0 %v359
    %v361 = vpop.f32.mrf.mxu0
    %v362 = vadd.f32 %v307, %v361
    %363 = vdwg.mxu0
    %364 = vmatpush.msra.mxu0 0.0
    %365 = vmatpush.msra.mxu0 0.0
    %366 = vmatpush.msra.mxu0 0.0
    %367 = vmatpush.msra.mxu0 0.0
    %368 = vmatpush.msra.mxu0 0.0
    %369 = vmatpush.msra.mxu0 0.0
    %370 = vmatpush.msra.mxu0 0.0
    %371 = vmatpush.msra.mxu0 0.0
    %v372 = vand.u32 %v52, 4294901760
    %v373 = vsub.f32 %v52, %v372
    %v374 = vand.u32 %v373, 4294901760
    %375 = vmatpush.msra.mxu0 %v374
    %v376 = vand.u32 %v51, 4294901760
    %v377 = vsub.f32 %v51, %v376
    %v378 = vand.u32 %v377, 4294901760
    %379 = vmatpush.msra.mxu0 %v378
    %v380 = vand.u32 %v50, 4294901760
    %v381 = vsub.f32 %v50, %v380
    %v382 = vand.u32 %v381, 4294901760
    %383 = vmatpush.msra.mxu0 %v382
    %v384 = vand.u32 %v49, 4294901760
    %v385 = vsub.f32 %v49, %v384
    %v386 = vand.u32 %v385, 4294901760
    %387 = vmatpush.msra.mxu0 %v386
    %v388 = vand.u32 %v48, 4294901760
    %v389 = vsub.f32 %v48, %v388
    %v390 = vand.u32 %v389, 4294901760
    %391 = vmatpush.msra.mxu0 %v390
    %v392 = vand.u32 %v47, 4294901760
    %v393 = vsub.f32 %v47, %v392
    %v394 = vand.u32 %v393, 4294901760
    %395 = vmatpush.msra.mxu0 %v394
    %v396 = vand.u32 %v46, 4294901760
    %v397 = vsub.f32 %v46, %v396
    %v398 = vand.u32 %v397, 4294901760
    %399 = vmatpush.msra.mxu0 %v398
    %v400 = vand.u32 %v45, 4294901760
    %v401 = vsub.f32 %v45, %v400
    %v402 = vand.u32 %v401, 4294901760
    %403 = vmatpush.msra.mxu0 %v402
    %v404 = vand.u32 %v95, 4294901760
    %405 = vmatmul.f32.gmra.mxu0 %v404
    %v406 = vpop.f32.mrf.mxu0
    %v407 = vadd.f32 %v338, %v406
    %v408 = vand.u32 %v98, 4294901760
    %409 = vmatmul.f32.gmra.mxu0 %v408
    %v410 = vpop.f32.mrf.mxu0
    %v411 = vadd.f32 %v344, %v410
    %v412 = vand.u32 %v101, 4294901760
    %413 = vmatmul.f32.gmra.mxu0 %v412
    %v414 = vpop.f32.mrf.mxu0
    %v415 = vadd.f32 %v350, %v414
    %v416 = vand.u32 %v104, 4294901760
    %417 = vmatmul.f32.gmra.mxu0 %v416
    %v418 = vpop.f32.mrf.mxu0
    %v419 = vadd.f32 %v356, %v418
    %v420 = vand.u32 %v107, 4294901760
    %421 = vmatmul.f32.gmra.mxu0 %v420
    %v422 = vpop.f32.mrf.mxu0
    %v423 = vadd.f32 %v362, %v422
    %424 = vdwg.mxu0
    %425 = vmatpush.msra.mxu0 0.0
    %426 = vmatpush.msra.mxu0 0.0
    %427 = vmatpush.msra.mxu0 0.0
    %428 = vmatpush.msra.mxu0 0.0
    %429 = vmatpush.msra.mxu0 0.0
    %430 = vmatpush.msra.mxu0 0.0
    %431 = vmatpush.msra.mxu0 0.0
    %432 = vmatpush.msra.mxu0 0.0
    %v433 = vand.u32 %v52, 4294901760
    %434 = vmatpush.msra.mxu0 %v433
    %v435 = vand.u32 %v51, 4294901760
    %436 = vmatpush.msra.mxu0 %v435
    %v437 = vand.u32 %v50, 4294901760
    %438 = vmatpush.msra.mxu0 %v437
    %v439 = vand.u32 %v49, 4294901760
    %440 = vmatpush.msra.mxu0 %v439
    %v441 = vand.u32 %v48, 4294901760
    %442 = vmatpush.msra.mxu0 %v441
    %v443 = vand.u32 %v47, 4294901760
    %444 = vmatpush.msra.mxu0 %v443
    %v445 = vand.u32 %v46, 4294901760
    %446 = vmatpush.msra.mxu0 %v445
    %v447 = vand.u32 %v45, 4294901760
    %448 = vmatpush.msra.mxu0 %v447
    %v449 = vand.u32 %v95, 4294901760
    %450 = vmatmul.f32.gmra.mxu0 %v449
    %v451 = vpop.f32.mrf.mxu0
    %v452 = vadd.f32 %v407, %v451
    %v453 = vand.u32 %v98, 4294901760
    %454 = vmatmul.f32.gmra.mxu0 %v453
    %v455 = vpop.f32.mrf.mxu0
    %v456 = vadd.f32 %v411, %v455
    %v457 = vand.u32 %v101, 4294901760
    %458 = vmatmul.f32.gmra.mxu0 %v457
    %v459 = vpop.f32.mrf.mxu0
    %v460 = vadd.f32 %v415, %v459
    %v461 = vand.u32 %v104, 4294901760
    %462 = vmatmul.f32.gmra.mxu0 %v461
    %v463 = vpop.f32.mrf.mxu0
    %v464 = vadd.f32 %v419, %v463
    %v465 = vand.u32 %v107, 4294901760
    %466 = vmatmul.f32.gmra.mxu0 %v465
    %v467 = vpop.f32.mrf.mxu0
    %v468 = vadd.f32 %v423, %v467
    %469 = vdwg.mxu0
    %v470 = vld [vmem:[%s1] sm:$0x1]
    %v471 = vadd.s32 %v20, 64
    %v472 = vadd.s32 %v20, 72
    %v473 = vadd.s32 %v20, 80
    %v474 = vadd.s32 %v20, 88
    %v475 = vperm.slane %v470, 0
    %vm476 = vcmp.eq.s32.totalorder %v20, %v475
    %vm477 = vcmp.eq.s32.totalorder %v21, %v475
    %vm478 = vcmp.eq.s32.totalorder %v22, %v475
    %vm479 = vcmp.eq.s32.totalorder %v23, %v475
    %vm480 = vcmp.eq.s32.totalorder %v24, %v475
    %vm481 = vcmp.eq.s32.totalorder %v25, %v475
    %vm482 = vcmp.eq.s32.totalorder %v26, %v475
    %vm483 = vcmp.eq.s32.totalorder %v27, %v475
    %vm484 = vcmp.eq.s32.totalorder %v471, %v475
    %vm485 = vcmp.eq.s32.totalorder %v472, %v475
    %vm486 = vcmp.eq.s32.totalorder %v473, %v475
    %vm487 = vcmp.eq.s32.totalorder %v474, %v475
    %v488 = vsel %vm476, 1, 0
    %v489 = vsel %vm477, 1, 0
    %v490 = vsel %vm478, 1, 0
    %v491 = vsel %vm479, 1, 0
    %v492 = vsel %vm480, 1, 0
    %v493 = vsel %vm481, 1, 0
    %v494 = vsel %vm482, 1, 0
    %v495 = vsel %vm483, 1, 0
    %v496 = vsel %vm484, 1, 0
    %v497 = vsel %vm485, 1, 0
    %v498 = vsel %vm486, 1, 0
    %v499 = vsel %vm487, 1, 0
    %v500 = vcvt.s32.f32 %v488
    %v501 = vcvt.s32.f32 %v489
    %v502 = vcvt.s32.f32 %v490
    %v503 = vcvt.s32.f32 %v491
    %v504 = vcvt.s32.f32 %v492
    %v505 = vcvt.s32.f32 %v493
    %v506 = vcvt.s32.f32 %v494
    %v507 = vcvt.s32.f32 %v495
    %v508 = vcvt.s32.f32 %v496
    %v509 = vcvt.s32.f32 %v497
    %v510 = vcvt.s32.f32 %v498
    %v511 = vcvt.s32.f32 %v499
    %v512 = vld [vmem:[%s3] sm:$0xff]
    %v513 = vld [vmem:[%s3 + $0x8] sm:$0xff]
    %v514 = vld [vmem:[%s3 + $0x10] sm:$0xff]
    %v515 = vld [vmem:[%s3 + $0x18] sm:$0xff]
    %v516 = vld [vmem:[%s3 + $0x20] sm:$0xff]
    %v517 = vld [vmem:[%s3 + $0x28] sm:$0xff]
    %v518 = vld [vmem:[%s3 + $0x30] sm:$0xff]
    %v519 = vld [vmem:[%s3 + $0x38] sm:$0xff]
    %v520 = vld [vmem:[%s3 + $0x40] sm:$0xff]
    %v521 = vld [vmem:[%s3 + $0x48] sm:$0xff]
    %v522 = vld [vmem:[%s3 + $0x50] sm:$0xff]
    %v523 = vld [vmem:[%s3 + $0x58] sm:$0xff]
    %524 = vxpose.xlu0.b32.start [1/16] %v512, 128
    %525 = vxpose.xlu0.b32.cont [2/16] %v513, 128
    %526 = vxpose.xlu0.b32.cont [3/16] %v514, 128
    %527 = vxpose.xlu0.b32.cont [4/16] %v515, 128
    %528 = vxpose.xlu0.b32.cont [5/16] %v516, 128
    %529 = vxpose.xlu0.b32.cont [6/16] %v517, 128
    %530 = vxpose.xlu0.b32.cont [7/16] %v518, 128
    %531 = vxpose.xlu0.b32.cont [8/16] %v519, 128
    %532 = vxpose.xlu0.b32.cont [9/16] %v520, 128
    %533 = vxpose.xlu0.b32.cont [10/16] %v521, 128
    %534 = vxpose.xlu0.b32.cont [11/16] %v522, 128
    %535 = vxpose.xlu0.b32.cont [12/16] %v523, 128
    %536 = vxpose.xlu0.b32.cont [13/16] 0.0, 128
    %537 = vxpose.xlu0.b32.cont [14/16] 0.0, 128
    %538 = vxpose.xlu0.b32.cont [15/16] 0.0, 128
    %539 = vxpose.xlu0.b32.end [16/16] 0.0, 128
    %v540 = vpop.trf.xlu0
    %v541 = vpop.trf.xlu0
    %v542 = vpop.trf.xlu0
    %v543 = vpop.trf.xlu0
    %v544 = vpop.trf.xlu0
    %v545 = vpop.trf.xlu0
    %v546 = vpop.trf.xlu0
    %v547 = vpop.trf.xlu0
    %v548 = vpop.trf.xlu0
    %v549 = vpop.trf.xlu0
    %v550 = vpop.trf.xlu0
    %v551 = vpop.trf.xlu0
    %v552 = vpop.trf.xlu0
    %v553 = vpop.trf.xlu0
    %v554 = vpop.trf.xlu0
    %v555 = vpop.trf.xlu0
    %vm556 = vcmask 785408
    %v558 = vsel %vm556, %v540, 0
    %v561 = vsel %vm556, %v541, 0
    %v564 = vsel %vm556, %v542, 0
    %v567 = vsel %vm556, %v543, 0
    %v570 = vsel %vm556, %v544, 0
    %572 = vmatpush.msra.mxu0 0.0
    %573 = vmatpush.msra.mxu0 0.0
    %574 = vmatpush.msra.mxu0 0.0
    %575 = vmatpush.msra.mxu0 0.0
    %v576 = vand.u32 %v511, 4294901760
    %577 = vmatpush.msra.mxu0 %v576
    %v578 = vand.u32 %v510, 4294901760
    %579 = vmatpush.msra.mxu0 %v578
    %v580 = vand.u32 %v509, 4294901760
    %581 = vmatpush.msra.mxu0 %v580
    %v582 = vand.u32 %v508, 4294901760
    %583 = vmatpush.msra.mxu0 %v582
    %v584 = vand.u32 %v507, 4294901760
    %585 = vmatpush.msra.mxu0 %v584
    %v586 = vand.u32 %v506, 4294901760
    %587 = vmatpush.msra.mxu0 %v586
    %v588 = vand.u32 %v505, 4294901760
    %589 = vmatpush.msra.mxu0 %v588
    %v590 = vand.u32 %v504, 4294901760
    %591 = vmatpush.msra.mxu0 %v590
    %v592 = vand.u32 %v503, 4294901760
    %593 = vmatpush.msra.mxu0 %v592
    %v594 = vand.u32 %v502, 4294901760
    %595 = vmatpush.msra.mxu0 %v594
    %v596 = vand.u32 %v501, 4294901760
    %597 = vmatpush.msra.mxu0 %v596
    %v598 = vand.u32 %v500, 4294901760
    %599 = vmatpush.msra.mxu0 %v598
    %v600 = vand.u32 %v558, 4294901760
    %v601 = vsub.f32 %v558, %v600
    %v602 = vand.u32 %v601, 4294901760
    %v603 = vsub.f32 %v601, %v602
    %v604 = vand.u32 %v603, 4294901760
    %605 = vmatmul.f32.gmra.mxu0 %v604
    %v606 = vpop.f32.mrf.mxu0
    %v607 = vadd.f32 0.0, %v606
    %v608 = vand.u32 %v561, 4294901760
    %v609 = vsub.f32 %v561, %v608
    %v610 = vand.u32 %v609, 4294901760
    %v611 = vsub.f32 %v609, %v610
    %v612 = vand.u32 %v611, 4294901760
    %613 = vmatmul.f32.gmra.mxu0 %v612
    %v614 = vpop.f32.mrf.mxu0
    %v615 = vadd.f32 0.0, %v614
    %v616 = vand.u32 %v564, 4294901760
    %v617 = vsub.f32 %v564, %v616
    %v618 = vand.u32 %v617, 4294901760
    %v619 = vsub.f32 %v617, %v618
    %v620 = vand.u32 %v619, 4294901760
    %621 = vmatmul.f32.gmra.mxu0 %v620
    %v622 = vpop.f32.mrf.mxu0
    %v623 = vadd.f32 0.0, %v622
    %v624 = vand.u32 %v567, 4294901760
    %v625 = vsub.f32 %v567, %v624
    %v626 = vand.u32 %v625, 4294901760
    %v627 = vsub.f32 %v625, %v626
    %v628 = vand.u32 %v627, 4294901760
    %629 = vmatmul.f32.gmra.mxu0 %v628
    %v630 = vpop.f32.mrf.mxu0
    %v631 = vadd.f32 0.0, %v630
    %v632 = vand.u32 %v570, 4294901760
    %v633 = vsub.f32 %v570, %v632
    %v634 = vand.u32 %v633, 4294901760
    %v635 = vsub.f32 %v633, %v634
    %v636 = vand.u32 %v635, 4294901760
    %637 = vmatmul.f32.gmra.mxu0 %v636
    %v638 = vpop.f32.mrf.mxu0
    %v639 = vadd.f32 0.0, %v638
    %640 = vdwg.mxu0
    %641 = vmatpush.msra.mxu0 0.0
    %642 = vmatpush.msra.mxu0 0.0
    %643 = vmatpush.msra.mxu0 0.0
    %644 = vmatpush.msra.mxu0 0.0
    %v645 = vand.u32 %v511, 4294901760
    %v646 = vsub.f32 %v511, %v645
    %v647 = vand.u32 %v646, 4294901760
    %v648 = vsub.f32 %v646, %v647
    %v649 = vand.u32 %v648, 4294901760
    %650 = vmatpush.msra.mxu0 %v649
    %v651 = vand.u32 %v510, 4294901760
    %v652 = vsub.f32 %v510, %v651
    %v653 = vand.u32 %v652, 4294901760
    %v654 = vsub.f32 %v652, %v653
    %v655 = vand.u32 %v654, 4294901760
    %656 = vmatpush.msra.mxu0 %v655
    %v657 = vand.u32 %v509, 4294901760
    %v658 = vsub.f32 %v509, %v657
    %v659 = vand.u32 %v658, 4294901760
    %v660 = vsub.f32 %v658, %v659
    %v661 = vand.u32 %v660, 4294901760
    %662 = vmatpush.msra.mxu0 %v661
    %v663 = vand.u32 %v508, 4294901760
    %v664 = vsub.f32 %v508, %v663
    %v665 = vand.u32 %v664, 4294901760
    %v666 = vsub.f32 %v664, %v665
    %v667 = vand.u32 %v666, 4294901760
    %668 = vmatpush.msra.mxu0 %v667
    %v669 = vand.u32 %v507, 4294901760
    %v670 = vsub.f32 %v507, %v669
    %v671 = vand.u32 %v670, 4294901760
    %v672 = vsub.f32 %v670, %v671
    %v673 = vand.u32 %v672, 4294901760
    %674 = vmatpush.msra.mxu0 %v673
    %v675 = vand.u32 %v506, 4294901760
    %v676 = vsub.f32 %v506, %v675
    %v677 = vand.u32 %v676, 4294901760
    %v678 = vsub.f32 %v676, %v677
    %v679 = vand.u32 %v678, 4294901760
    %680 = vmatpush.msra.mxu0 %v679
    %v681 = vand.u32 %v505, 4294901760
    %v682 = vsub.f32 %v505, %v681
    %v683 = vand.u32 %v682, 4294901760
    %v684 = vsub.f32 %v682, %v683
    %v685 = vand.u32 %v684, 4294901760
    %686 = vmatpush.msra.mxu0 %v685
    %v687 = vand.u32 %v504, 4294901760
    %v688 = vsub.f32 %v504, %v687
    %v689 = vand.u32 %v688, 4294901760
    %v690 = vsub.f32 %v688, %v689
    %v691 = vand.u32 %v690, 4294901760
    %692 = vmatpush.msra.mxu0 %v691
    %v693 = vand.u32 %v503, 4294901760
    %v694 = vsub.f32 %v503, %v693
    %v695 = vand.u32 %v694, 4294901760
    %v696 = vsub.f32 %v694, %v695
    %v697 = vand.u32 %v696, 4294901760
    %698 = vmatpush.msra.mxu0 %v697
    %v699 = vand.u32 %v502, 4294901760
    %v700 = vsub.f32 %v502, %v699
    %v701 = vand.u32 %v700, 4294901760
    %v702 = vsub.f32 %v700, %v701
    %v703 = vand.u32 %v702, 4294901760
    %704 = vmatpush.msra.mxu0 %v703
    %v705 = vand.u32 %v501, 4294901760
    %v706 = vsub.f32 %v501, %v705
    %v707 = vand.u32 %v706, 4294901760
    %v708 = vsub.f32 %v706, %v707
    %v709 = vand.u32 %v708, 4294901760
    %710 = vmatpush.msra.mxu0 %v709
    %v711 = vand.u32 %v500, 4294901760
    %v712 = vsub.f32 %v500, %v711
    %v713 = vand.u32 %v712, 4294901760
    %v714 = vsub.f32 %v712, %v713
    %v715 = vand.u32 %v714, 4294901760
    %716 = vmatpush.msra.mxu0 %v715
    %v717 = vand.u32 %v558, 4294901760
    %718 = vmatmul.f32.gmra.mxu0 %v717
    %v719 = vpop.f32.mrf.mxu0
    %v720 = vadd.f32 %v607, %v719
    %v721 = vand.u32 %v561, 4294901760
    %722 = vmatmul.f32.gmra.mxu0 %v721
    %v723 = vpop.f32.mrf.mxu0
    %v724 = vadd.f32 %v615, %v723
    %v725 = vand.u32 %v564, 4294901760
    %726 = vmatmul.f32.gmra.mxu0 %v725
    %v727 = vpop.f32.mrf.mxu0
    %v728 = vadd.f32 %v623, %v727
    %v729 = vand.u32 %v567, 4294901760
    %730 = vmatmul.f32.gmra.mxu0 %v729
    %v731 = vpop.f32.mrf.mxu0
    %v732 = vadd.f32 %v631, %v731
    %v733 = vand.u32 %v570, 4294901760
    %734 = vmatmul.f32.gmra.mxu0 %v733
    %v735 = vpop.f32.mrf.mxu0
    %v736 = vadd.f32 %v639, %v735
    %737 = vdwg.mxu0
    %738 = vmatpush.msra.mxu0 0.0
    %739 = vmatpush.msra.mxu0 0.0
    %740 = vmatpush.msra.mxu0 0.0
    %741 = vmatpush.msra.mxu0 0.0
    %v742 = vand.u32 %v511, 4294901760
    %v743 = vsub.f32 %v511, %v742
    %744 = vmatpush.msra.mxu0 %v743
    %v745 = vand.u32 %v510, 4294901760
    %v746 = vsub.f32 %v510, %v745
    %747 = vmatpush.msra.mxu0 %v746
    %v748 = vand.u32 %v509, 4294901760
    %v749 = vsub.f32 %v509, %v748
    %750 = vmatpush.msra.mxu0 %v749
    %v751 = vand.u32 %v508, 4294901760
    %v752 = vsub.f32 %v508, %v751
    %753 = vmatpush.msra.mxu0 %v752
    %v754 = vand.u32 %v507, 4294901760
    %v755 = vsub.f32 %v507, %v754
    %756 = vmatpush.msra.mxu0 %v755
    %v757 = vand.u32 %v506, 4294901760
    %v758 = vsub.f32 %v506, %v757
    %759 = vmatpush.msra.mxu0 %v758
    %v760 = vand.u32 %v505, 4294901760
    %v761 = vsub.f32 %v505, %v760
    %762 = vmatpush.msra.mxu0 %v761
    %v763 = vand.u32 %v504, 4294901760
    %v764 = vsub.f32 %v504, %v763
    %765 = vmatpush.msra.mxu0 %v764
    %v766 = vand.u32 %v503, 4294901760
    %v767 = vsub.f32 %v503, %v766
    %768 = vmatpush.msra.mxu0 %v767
    %v769 = vand.u32 %v502, 4294901760
    %v770 = vsub.f32 %v502, %v769
    %771 = vmatpush.msra.mxu0 %v770
    %v772 = vand.u32 %v501, 4294901760
    %v773 = vsub.f32 %v501, %v772
    %774 = vmatpush.msra.mxu0 %v773
    %v775 = vand.u32 %v500, 4294901760
    %v776 = vsub.f32 %v500, %v775
    %777 = vmatpush.msra.mxu0 %v776
    %v778 = vand.u32 %v558, 4294901760
    %v779 = vsub.f32 %v558, %v778
    %780 = vmatmul.f32.gmra.mxu0 %v779
    %v781 = vpop.f32.mrf.mxu0
    %v782 = vadd.f32 %v720, %v781
    %v783 = vand.u32 %v561, 4294901760
    %v784 = vsub.f32 %v561, %v783
    %785 = vmatmul.f32.gmra.mxu0 %v784
    %v786 = vpop.f32.mrf.mxu0
    %v787 = vadd.f32 %v724, %v786
    %v788 = vand.u32 %v564, 4294901760
    %v789 = vsub.f32 %v564, %v788
    %790 = vmatmul.f32.gmra.mxu0 %v789
    %v791 = vpop.f32.mrf.mxu0
    %v792 = vadd.f32 %v728, %v791
    %v793 = vand.u32 %v567, 4294901760
    %v794 = vsub.f32 %v567, %v793
    %795 = vmatmul.f32.gmra.mxu0 %v794
    %v796 = vpop.f32.mrf.mxu0
    %v797 = vadd.f32 %v732, %v796
    %v798 = vand.u32 %v570, 4294901760
    %v799 = vsub.f32 %v570, %v798
    %800 = vmatmul.f32.gmra.mxu0 %v799
    %v801 = vpop.f32.mrf.mxu0
    %v802 = vadd.f32 %v736, %v801
    %803 = vdwg.mxu0
    %804 = vmatpush.msra.mxu0 0.0
    %805 = vmatpush.msra.mxu0 0.0
    %806 = vmatpush.msra.mxu0 0.0
    %807 = vmatpush.msra.mxu0 0.0
    %v808 = vand.u32 %v511, 4294901760
    %809 = vmatpush.msra.mxu0 %v808
    %v810 = vand.u32 %v510, 4294901760
    %811 = vmatpush.msra.mxu0 %v810
    %v812 = vand.u32 %v509, 4294901760
    %813 = vmatpush.msra.mxu0 %v812
    %v814 = vand.u32 %v508, 4294901760
    %815 = vmatpush.msra.mxu0 %v814
    %v816 = vand.u32 %v507, 4294901760
    %817 = vmatpush.msra.mxu0 %v816
    %v818 = vand.u32 %v506, 4294901760
    %819 = vmatpush.msra.mxu0 %v818
    %v820 = vand.u32 %v505, 4294901760
    %821 = vmatpush.msra.mxu0 %v820
    %v822 = vand.u32 %v504, 4294901760
    %823 = vmatpush.msra.mxu0 %v822
    %v824 = vand.u32 %v503, 4294901760
    %825 = vmatpush.msra.mxu0 %v824
    %v826 = vand.u32 %v502, 4294901760
    %827 = vmatpush.msra.mxu0 %v826
    %v828 = vand.u32 %v501, 4294901760
    %829 = vmatpush.msra.mxu0 %v828
    %v830 = vand.u32 %v500, 4294901760
    %831 = vmatpush.msra.mxu0 %v830
    %v832 = vand.u32 %v558, 4294901760
    %v833 = vsub.f32 %v558, %v832
    %v834 = vand.u32 %v833, 4294901760
    %835 = vmatmul.f32.gmra.mxu0 %v834
    %v836 = vpop.f32.mrf.mxu0
    %v837 = vadd.f32 %v782, %v836
    %v838 = vand.u32 %v561, 4294901760
    %v839 = vsub.f32 %v561, %v838
    %v840 = vand.u32 %v839, 4294901760
    %841 = vmatmul.f32.gmra.mxu0 %v840
    %v842 = vpop.f32.mrf.mxu0
    %v843 = vadd.f32 %v787, %v842
    %v844 = vand.u32 %v564, 4294901760
    %v845 = vsub.f32 %v564, %v844
    %v846 = vand.u32 %v845, 4294901760
    %847 = vmatmul.f32.gmra.mxu0 %v846
    %v848 = vpop.f32.mrf.mxu0
    %v849 = vadd.f32 %v792, %v848
    %v850 = vand.u32 %v567, 4294901760
    %v851 = vsub.f32 %v567, %v850
    %v852 = vand.u32 %v851, 4294901760
    %853 = vmatmul.f32.gmra.mxu0 %v852
    %v854 = vpop.f32.mrf.mxu0
    %v855 = vadd.f32 %v797, %v854
    %v856 = vand.u32 %v570, 4294901760
    %v857 = vsub.f32 %v570, %v856
    %v858 = vand.u32 %v857, 4294901760
    %859 = vmatmul.f32.gmra.mxu0 %v858
    %v860 = vpop.f32.mrf.mxu0
    %v861 = vadd.f32 %v802, %v860
    %862 = vdwg.mxu0
    %863 = vmatpush.msra.mxu0 0.0
    %864 = vmatpush.msra.mxu0 0.0
    %865 = vmatpush.msra.mxu0 0.0
    %866 = vmatpush.msra.mxu0 0.0
    %v867 = vand.u32 %v511, 4294901760
    %v868 = vsub.f32 %v511, %v867
    %v869 = vand.u32 %v868, 4294901760
    %870 = vmatpush.msra.mxu0 %v869
    %v871 = vand.u32 %v510, 4294901760
    %v872 = vsub.f32 %v510, %v871
    %v873 = vand.u32 %v872, 4294901760
    %874 = vmatpush.msra.mxu0 %v873
    %v875 = vand.u32 %v509, 4294901760
    %v876 = vsub.f32 %v509, %v875
    %v877 = vand.u32 %v876, 4294901760
    %878 = vmatpush.msra.mxu0 %v877
    %v879 = vand.u32 %v508, 4294901760
    %v880 = vsub.f32 %v508, %v879
    %v881 = vand.u32 %v880, 4294901760
    %882 = vmatpush.msra.mxu0 %v881
    %v883 = vand.u32 %v507, 4294901760
    %v884 = vsub.f32 %v507, %v883
    %v885 = vand.u32 %v884, 4294901760
    %886 = vmatpush.msra.mxu0 %v885
    %v887 = vand.u32 %v506, 4294901760
    %v888 = vsub.f32 %v506, %v887
    %v889 = vand.u32 %v888, 4294901760
    %890 = vmatpush.msra.mxu0 %v889
    %v891 = vand.u32 %v505, 4294901760
    %v892 = vsub.f32 %v505, %v891
    %v893 = vand.u32 %v892, 4294901760
    %894 = vmatpush.msra.mxu0 %v893
    %v895 = vand.u32 %v504, 4294901760
    %v896 = vsub.f32 %v504, %v895
    %v897 = vand.u32 %v896, 4294901760
    %898 = vmatpush.msra.mxu0 %v897
    %v899 = vand.u32 %v503, 4294901760
    %v900 = vsub.f32 %v503, %v899
    %v901 = vand.u32 %v900, 4294901760
    %902 = vmatpush.msra.mxu0 %v901
    %v903 = vand.u32 %v502, 4294901760
    %v904 = vsub.f32 %v502, %v903
    %v905 = vand.u32 %v904, 4294901760
    %906 = vmatpush.msra.mxu0 %v905
    %v907 = vand.u32 %v501, 4294901760
    %v908 = vsub.f32 %v501, %v907
    %v909 = vand.u32 %v908, 4294901760
    %910 = vmatpush.msra.mxu0 %v909
    %v911 = vand.u32 %v500, 4294901760
    %v912 = vsub.f32 %v500, %v911
    %v913 = vand.u32 %v912, 4294901760
    %914 = vmatpush.msra.mxu0 %v913
    %v915 = vand.u32 %v558, 4294901760
    %916 = vmatmul.f32.gmra.mxu0 %v915
    %v917 = vpop.f32.mrf.mxu0
    %v918 = vadd.f32 %v837, %v917
    %v919 = vand.u32 %v561, 4294901760
    %920 = vmatmul.f32.gmra.mxu0 %v919
    %v921 = vpop.f32.mrf.mxu0
    %v922 = vadd.f32 %v843, %v921
    %v923 = vand.u32 %v564, 4294901760
    %924 = vmatmul.f32.gmra.mxu0 %v923
    %v925 = vpop.f32.mrf.mxu0
    %v926 = vadd.f32 %v849, %v925
    %v927 = vand.u32 %v567, 4294901760
    %928 = vmatmul.f32.gmra.mxu0 %v927
    %v929 = vpop.f32.mrf.mxu0
    %v930 = vadd.f32 %v855, %v929
    %v931 = vand.u32 %v570, 4294901760
    %932 = vmatmul.f32.gmra.mxu0 %v931
    %v933 = vpop.f32.mrf.mxu0
    %v934 = vadd.f32 %v861, %v933
    %935 = vdwg.mxu0
    %936 = vmatpush.msra.mxu0 0.0
    %937 = vmatpush.msra.mxu0 0.0
    %938 = vmatpush.msra.mxu0 0.0
    %939 = vmatpush.msra.mxu0 0.0
    %v940 = vand.u32 %v511, 4294901760
    %941 = vmatpush.msra.mxu0 %v940
    %v942 = vand.u32 %v510, 4294901760
    %943 = vmatpush.msra.mxu0 %v942
    %v944 = vand.u32 %v509, 4294901760
    %945 = vmatpush.msra.mxu0 %v944
    %v946 = vand.u32 %v508, 4294901760
    %947 = vmatpush.msra.mxu0 %v946
    %v948 = vand.u32 %v507, 4294901760
    %949 = vmatpush.msra.mxu0 %v948
    %v950 = vand.u32 %v506, 4294901760
    %951 = vmatpush.msra.mxu0 %v950
    %v952 = vand.u32 %v505, 4294901760
    %953 = vmatpush.msra.mxu0 %v952
    %v954 = vand.u32 %v504, 4294901760
    %955 = vmatpush.msra.mxu0 %v954
    %v956 = vand.u32 %v503, 4294901760
    %957 = vmatpush.msra.mxu0 %v956
    %v958 = vand.u32 %v502, 4294901760
    %959 = vmatpush.msra.mxu0 %v958
    %v960 = vand.u32 %v501, 4294901760
    %961 = vmatpush.msra.mxu0 %v960
    %v962 = vand.u32 %v500, 4294901760
    %963 = vmatpush.msra.mxu0 %v962
    %v964 = vand.u32 %v558, 4294901760
    %965 = vmatmul.f32.gmra.mxu0 %v964
    %v966 = vpop.f32.mrf.mxu0
    %v967 = vadd.f32 %v918, %v966
    %v968 = vand.u32 %v561, 4294901760
    %969 = vmatmul.f32.gmra.mxu0 %v968
    %v970 = vpop.f32.mrf.mxu0
    %v971 = vadd.f32 %v922, %v970
    %v972 = vand.u32 %v564, 4294901760
    %973 = vmatmul.f32.gmra.mxu0 %v972
    %v974 = vpop.f32.mrf.mxu0
    %v975 = vadd.f32 %v926, %v974
    %v976 = vand.u32 %v567, 4294901760
    %977 = vmatmul.f32.gmra.mxu0 %v976
    %v978 = vpop.f32.mrf.mxu0
    %v979 = vadd.f32 %v930, %v978
    %v980 = vand.u32 %v570, 4294901760
    %981 = vmatmul.f32.gmra.mxu0 %v980
    %v982 = vpop.f32.mrf.mxu0
    %v983 = vadd.f32 %v934, %v982
    %984 = vdwg.mxu0
    %v985 = vmul.f32 %v452, %v967
    %v986 = vmul.f32 %v456, %v971
    %v987 = vmul.f32 %v460, %v975
    %v988 = vmul.f32 %v464, %v979
    %v989 = vmul.f32 %v468, %v983
    %v990 = vadd.f32 %v985, %v986
    %v991 = vadd.f32 %v990, %v987
    %v992 = vadd.f32 %v991, %v988
    %v993 = vadd.f32 %v992, %v989
    %v994 = vrot.slane %v993, 4
    %v995 = vadd.f32 %v993, %v994
    %v996 = vrot.slane %v995, 2
    %v997 = vadd.f32 %v995, %v996
    %v998 = vrot.slane %v997, 1
    %v999 = vadd.f32 %v997, %v998
    %1000 = vst [vmem:[#allocation2] sm:$0x1] %v999
    %v1001 = vld [vmem:[%s0 + $0x1] sm:$0x1]
    %v1002 = vperm.slane %v1001, 0
    %vm1003 = vcmp.eq.s32.totalorder %v20, %v1002
    %vm1004 = vcmp.eq.s32.totalorder %v21, %v1002
    %vm1005 = vcmp.eq.s32.totalorder %v22, %v1002
    %vm1006 = vcmp.eq.s32.totalorder %v23, %v1002
    %vm1007 = vcmp.eq.s32.totalorder %v24, %v1002
    %vm1008 = vcmp.eq.s32.totalorder %v25, %v1002
    %vm1009 = vcmp.eq.s32.totalorder %v26, %v1002
    %vm1010 = vcmp.eq.s32.totalorder %v27, %v1002
    %v1011 = vsel %vm1003, 1, 0
    %v1012 = vsel %vm1004, 1, 0
    %v1013 = vsel %vm1005, 1, 0
    %v1014 = vsel %vm1006, 1, 0
    %v1015 = vsel %vm1007, 1, 0
    %v1016 = vsel %vm1008, 1, 0
    %v1017 = vsel %vm1009, 1, 0
    %v1018 = vsel %vm1010, 1, 0
    %v1019 = vcvt.s32.f32 %v1011
    %v1020 = vcvt.s32.f32 %v1012
    %v1021 = vcvt.s32.f32 %v1013
    %v1022 = vcvt.s32.f32 %v1014
    %v1023 = vcvt.s32.f32 %v1015
    %v1024 = vcvt.s32.f32 %v1016
    %v1025 = vcvt.s32.f32 %v1017
    %v1026 = vcvt.s32.f32 %v1018
    %v1027 = vld [vmem:[%s2] sm:$0xff]
    %v1028 = vld [vmem:[%s2 + $0x8] sm:$0xff]
    %v1029 = vld [vmem:[%s2 + $0x10] sm:$0xff]
    %v1030 = vld [vmem:[%s2 + $0x18] sm:$0xff]
    %v1031 = vld [vmem:[%s2 + $0x20] sm:$0xff]
    %v1032 = vld [vmem:[%s2 + $0x28] sm:$0xff]
    %v1033 = vld [vmem:[%s2 + $0x30] sm:$0xff]
    %v1034 = vld [vmem:[%s2 + $0x38] sm:$0xff]
    %1035 = vxpose.xlu0.b32.start [1/16] %v1027, 128
    %1036 = vxpose.xlu0.b32.cont [2/16] %v1028, 128
    %1037 = vxpose.xlu0.b32.cont [3/16] %v1029, 128
    %1038 = vxpose.xlu0.b32.cont [4/16] %v1030, 128
    %1039 = vxpose.xlu0.b32.cont [5/16] %v1031, 128
    %1040 = vxpose.xlu0.b32.cont [6/16] %v1032, 128
    %1041 = vxpose.xlu0.b32.cont [7/16] %v1033, 128
    %1042 = vxpose.xlu0.b32.cont [8/16] %v1034, 128
    %1043 = vxpose.xlu0.b32.cont [9/16] 0.0, 128
    %1044 = vxpose.xlu0.b32.cont [10/16] 0.0, 128
    %1045 = vxpose.xlu0.b32.cont [11/16] 0.0, 128
    %1046 = vxpose.xlu0.b32.cont [12/16] 0.0, 128
    %1047 = vxpose.xlu0.b32.cont [13/16] 0.0, 128
    %1048 = vxpose.xlu0.b32.cont [14/16] 0.0, 128
    %1049 = vxpose.xlu0.b32.cont [15/16] 0.0, 128
    %1050 = vxpose.xlu0.b32.end [16/16] 0.0, 128
    %v1051 = vpop.trf.xlu0
    %v1052 = vpop.trf.xlu0
    %v1053 = vpop.trf.xlu0
    %v1054 = vpop.trf.xlu0
    %v1055 = vpop.trf.xlu0
    %v1056 = vpop.trf.xlu0
    %v1057 = vpop.trf.xlu0
    %v1058 = vpop.trf.xlu0
    %v1059 = vpop.trf.xlu0
    %v1060 = vpop.trf.xlu0
    %v1061 = vpop.trf.xlu0
    %v1062 = vpop.trf.xlu0
    %v1063 = vpop.trf.xlu0
    %v1064 = vpop.trf.xlu0
    %v1065 = vpop.trf.xlu0
    %v1066 = vpop.trf.xlu0
    %v1068 = vsel %vm93, %v1051, 0
    %v1071 = vsel %vm93, %v1052, 0
    %v1074 = vsel %vm93, %v1053, 0
    %v1077 = vsel %vm93, %v1054, 0
    %v1080 = vsel %vm93, %v1055, 0
    %1082 = vmatpush.msra.mxu0 0.0
    %1083 = vmatpush.msra.mxu0 0.0
    %1084 = vmatpush.msra.mxu0 0.0
    %1085 = vmatpush.msra.mxu0 0.0
    %1086 = vmatpush.msra.mxu0 0.0
    %1087 = vmatpush.msra.mxu0 0.0
    %1088 = vmatpush.msra.mxu0 0.0
    %1089 = vmatpush.msra.mxu0 0.0
    %v1090 = vand.u32 %v1026, 4294901760
    %1091 = vmatpush.msra.mxu0 %v1090
    %v1092 = vand.u32 %v1025, 4294901760
    %1093 = vmatpush.msra.mxu0 %v1092
    %v1094 = vand.u32 %v1024, 4294901760
    %1095 = vmatpush.msra.mxu0 %v1094
    %v1096 = vand.u32 %v1023, 4294901760
    %1097 = vmatpush.msra.mxu0 %v1096
    %v1098 = vand.u32 %v1022, 4294901760
    %1099 = vmatpush.msra.mxu0 %v1098
    %v1100 = vand.u32 %v1021, 4294901760
    %1101 = vmatpush.msra.mxu0 %v1100
    %v1102 = vand.u32 %v1020, 4294901760
    %1103 = vmatpush.msra.mxu0 %v1102
    %v1104 = vand.u32 %v1019, 4294901760
    %1105 = vmatpush.msra.mxu0 %v1104
    %v1106 = vand.u32 %v1068, 4294901760
    %v1107 = vsub.f32 %v1068, %v1106
    %v1108 = vand.u32 %v1107, 4294901760
    %v1109 = vsub.f32 %v1107, %v1108
    %v1110 = vand.u32 %v1109, 4294901760
    %1111 = vmatmul.f32.gmra.mxu0 %v1110
    %v1112 = vpop.f32.mrf.mxu0
    %v1113 = vadd.f32 0.0, %v1112
    %v1114 = vand.u32 %v1071, 4294901760
    %v1115 = vsub.f32 %v1071, %v1114
    %v1116 = vand.u32 %v1115, 4294901760
    %v1117 = vsub.f32 %v1115, %v1116
    %v1118 = vand.u32 %v1117, 4294901760
    %1119 = vmatmul.f32.gmra.mxu0 %v1118
    %v1120 = vpop.f32.mrf.mxu0
    %v1121 = vadd.f32 0.0, %v1120
    %v1122 = vand.u32 %v1074, 4294901760
    %v1123 = vsub.f32 %v1074, %v1122
    %v1124 = vand.u32 %v1123, 4294901760
    %v1125 = vsub.f32 %v1123, %v1124
    %v1126 = vand.u32 %v1125, 4294901760
    %1127 = vmatmul.f32.gmra.mxu0 %v1126
    %v1128 = vpop.f32.mrf.mxu0
    %v1129 = vadd.f32 0.0, %v1128
    %v1130 = vand.u32 %v1077, 4294901760
    %v1131 = vsub.f32 %v1077, %v1130
    %v1132 = vand.u32 %v1131, 4294901760
    %v1133 = vsub.f32 %v1131, %v1132
    %v1134 = vand.u32 %v1133, 4294901760
    %1135 = vmatmul.f32.gmra.mxu0 %v1134
    %v1136 = vpop.f32.mrf.mxu0
    %v1137 = vadd.f32 0.0, %v1136
    %v1138 = vand.u32 %v1080, 4294901760
    %v1139 = vsub.f32 %v1080, %v1138
    %v1140 = vand.u32 %v1139, 4294901760
    %v1141 = vsub.f32 %v1139, %v1140
    %v1142 = vand.u32 %v1141, 4294901760
    %1143 = vmatmul.f32.gmra.mxu0 %v1142
    %v1144 = vpop.f32.mrf.mxu0
    %v1145 = vadd.f32 0.0, %v1144
    %1146 = vdwg.mxu0
    %1147 = vmatpush.msra.mxu0 0.0
    %1148 = vmatpush.msra.mxu0 0.0
    %1149 = vmatpush.msra.mxu0 0.0
    %1150 = vmatpush.msra.mxu0 0.0
    %1151 = vmatpush.msra.mxu0 0.0
    %1152 = vmatpush.msra.mxu0 0.0
    %1153 = vmatpush.msra.mxu0 0.0
    %1154 = vmatpush.msra.mxu0 0.0
    %v1155 = vand.u32 %v1026, 4294901760
    %v1156 = vsub.f32 %v1026, %v1155
    %v1157 = vand.u32 %v1156, 4294901760
    %v1158 = vsub.f32 %v1156, %v1157
    %v1159 = vand.u32 %v1158, 4294901760
    %1160 = vmatpush.msra.mxu0 %v1159
    %v1161 = vand.u32 %v1025, 4294901760
    %v1162 = vsub.f32 %v1025, %v1161
    %v1163 = vand.u32 %v1162, 4294901760
    %v1164 = vsub.f32 %v1162, %v1163
    %v1165 = vand.u32 %v1164, 4294901760
    %1166 = vmatpush.msra.mxu0 %v1165
    %v1167 = vand.u32 %v1024, 4294901760
    %v1168 = vsub.f32 %v1024, %v1167
    %v1169 = vand.u32 %v1168, 4294901760
    %v1170 = vsub.f32 %v1168, %v1169
    %v1171 = vand.u32 %v1170, 4294901760
    %1172 = vmatpush.msra.mxu0 %v1171
    %v1173 = vand.u32 %v1023, 4294901760
    %v1174 = vsub.f32 %v1023, %v1173
    %v1175 = vand.u32 %v1174, 4294901760
    %v1176 = vsub.f32 %v1174, %v1175
    %v1177 = vand.u32 %v1176, 4294901760
    %1178 = vmatpush.msra.mxu0 %v1177
    %v1179 = vand.u32 %v1022, 4294901760
    %v1180 = vsub.f32 %v1022, %v1179
    %v1181 = vand.u32 %v1180, 4294901760
    %v1182 = vsub.f32 %v1180, %v1181
    %v1183 = vand.u32 %v1182, 4294901760
    %1184 = vmatpush.msra.mxu0 %v1183
    %v1185 = vand.u32 %v1021, 4294901760
    %v1186 = vsub.f32 %v1021, %v1185
    %v1187 = vand.u32 %v1186, 4294901760
    %v1188 = vsub.f32 %v1186, %v1187
    %v1189 = vand.u32 %v1188, 4294901760
    %1190 = vmatpush.msra.mxu0 %v1189
    %v1191 = vand.u32 %v1020, 4294901760
    %v1192 = vsub.f32 %v1020, %v1191
    %v1193 = vand.u32 %v1192, 4294901760
    %v1194 = vsub.f32 %v1192, %v1193
    %v1195 = vand.u32 %v1194, 4294901760
    %1196 = vmatpush.msra.mxu0 %v1195
    %v1197 = vand.u32 %v1019, 4294901760
    %v1198 = vsub.f32 %v1019, %v1197
    %v1199 = vand.u32 %v1198, 4294901760
    %v1200 = vsub.f32 %v1198, %v1199
    %v1201 = vand.u32 %v1200, 4294901760
    %1202 = vmatpush.msra.mxu0 %v1201
    %v1203 = vand.u32 %v1068, 4294901760
    %1204 = vmatmul.f32.gmra.mxu0 %v1203
    %v1205 = vpop.f32.mrf.mxu0
    %v1206 = vadd.f32 %v1113, %v1205
    %v1207 = vand.u32 %v1071, 4294901760
    %1208 = vmatmul.f32.gmra.mxu0 %v1207
    %v1209 = vpop.f32.mrf.mxu0
    %v1210 = vadd.f32 %v1121, %v1209
    %v1211 = vand.u32 %v1074, 4294901760
    %1212 = vmatmul.f32.gmra.mxu0 %v1211
    %v1213 = vpop.f32.mrf.mxu0
    %v1214 = vadd.f32 %v1129, %v1213
    %v1215 = vand.u32 %v1077, 4294901760
    %1216 = vmatmul.f32.gmra.mxu0 %v1215
    %v1217 = vpop.f32.mrf.mxu0
    %v1218 = vadd.f32 %v1137, %v1217
    %v1219 = vand.u32 %v1080, 4294901760
    %1220 = vmatmul.f32.gmra.mxu0 %v1219
    %v1221 = vpop.f32.mrf.mxu0
    %v1222 = vadd.f32 %v1145, %v1221
    %1223 = vdwg.mxu0
    %1224 = vmatpush.msra.mxu0 0.0
    %1225 = vmatpush.msra.mxu0 0.0
    %1226 = vmatpush.msra.mxu0 0.0
    %1227 = vmatpush.msra.mxu0 0.0
    %1228 = vmatpush.msra.mxu0 0.0
    %1229 = vmatpush.msra.mxu0 0.0
    %1230 = vmatpush.msra.mxu0 0.0
    %1231 = vmatpush.msra.mxu0 0.0
    %v1232 = vand.u32 %v1026, 4294901760
    %v1233 = vsub.f32 %v1026, %v1232
    %1234 = vmatpush.msra.mxu0 %v1233
    %v1235 = vand.u32 %v1025, 4294901760
    %v1236 = vsub.f32 %v1025, %v1235
    %1237 = vmatpush.msra.mxu0 %v1236
    %v1238 = vand.u32 %v1024, 4294901760
    %v1239 = vsub.f32 %v1024, %v1238
    %1240 = vmatpush.msra.mxu0 %v1239
    %v1241 = vand.u32 %v1023, 4294901760
    %v1242 = vsub.f32 %v1023, %v1241
    %1243 = vmatpush.msra.mxu0 %v1242
    %v1244 = vand.u32 %v1022, 4294901760
    %v1245 = vsub.f32 %v1022, %v1244
    %1246 = vmatpush.msra.mxu0 %v1245
    %v1247 = vand.u32 %v1021, 4294901760
    %v1248 = vsub.f32 %v1021, %v1247
    %1249 = vmatpush.msra.mxu0 %v1248
    %v1250 = vand.u32 %v1020, 4294901760
    %v1251 = vsub.f32 %v1020, %v1250
    %1252 = vmatpush.msra.mxu0 %v1251
    %v1253 = vand.u32 %v1019, 4294901760
    %v1254 = vsub.f32 %v1019, %v1253
    %1255 = vmatpush.msra.mxu0 %v1254
    %v1256 = vand.u32 %v1068, 4294901760
    %v1257 = vsub.f32 %v1068, %v1256
    %1258 = vmatmul.f32.gmra.mxu0 %v1257
    %v1259 = vpop.f32.mrf.mxu0
    %v1260 = vadd.f32 %v1206, %v1259
    %v1261 = vand.u32 %v1071, 4294901760
    %v1262 = vsub.f32 %v1071, %v1261
    %1263 = vmatmul.f32.gmra.mxu0 %v1262
    %v1264 = vpop.f32.mrf.mxu0
    %v1265 = vadd.f32 %v1210, %v1264
    %v1266 = vand.u32 %v1074, 4294901760
    %v1267 = vsub.f32 %v1074, %v1266
    %1268 = vmatmul.f32.gmra.mxu0 %v1267
    %v1269 = vpop.f32.mrf.mxu0
    %v1270 = vadd.f32 %v1214, %v1269
    %v1271 = vand.u32 %v1077, 4294901760
    %v1272 = vsub.f32 %v1077, %v1271
    %1273 = vmatmul.f32.gmra.mxu0 %v1272
    %v1274 = vpop.f32.mrf.mxu0
    %v1275 = vadd.f32 %v1218, %v1274
    %v1276 = vand.u32 %v1080, 4294901760
    %v1277 = vsub.f32 %v1080, %v1276
    %1278 = vmatmul.f32.gmra.mxu0 %v1277
    %v1279 = vpop.f32.mrf.mxu0
    %v1280 = vadd.f32 %v1222, %v1279
    %1281 = vdwg.mxu0
    %1282 = vmatpush.msra.mxu0 0.0
    %1283 = vmatpush.msra.mxu0 0.0
    %1284 = vmatpush.msra.mxu0 0.0
    %1285 = vmatpush.msra.mxu0 0.0
    %1286 = vmatpush.msra.mxu0 0.0
    %1287 = vmatpush.msra.mxu0 0.0
    %1288 = vmatpush.msra.mxu0 0.0
    %1289 = vmatpush.msra.mxu0 0.0
    %v1290 = vand.u32 %v1026, 4294901760
    %1291 = vmatpush.msra.mxu0 %v1290
    %v1292 = vand.u32 %v1025, 4294901760
    %1293 = vmatpush.msra.mxu0 %v1292
    %v1294 = vand.u32 %v1024, 4294901760
    %1295 = vmatpush.msra.mxu0 %v1294
    %v1296 = vand.u32 %v1023, 4294901760
    %1297 = vmatpush.msra.mxu0 %v1296
    %v1298 = vand.u32 %v1022, 4294901760
    %1299 = vmatpush.msra.mxu0 %v1298
    %v1300 = vand.u32 %v1021, 4294901760
    %1301 = vmatpush.msra.mxu0 %v1300
    %v1302 = vand.u32 %v1020, 4294901760
    %1303 = vmatpush.msra.mxu0 %v1302
    %v1304 = vand.u32 %v1019, 4294901760
    %1305 = vmatpush.msra.mxu0 %v1304
    %v1306 = vand.u32 %v1068, 4294901760
    %v1307 = vsub.f32 %v1068, %v1306
    %v1308 = vand.u32 %v1307, 4294901760
    %1309 = vmatmul.f32.gmra.mxu0 %v1308
    %v1310 = vpop.f32.mrf.mxu0
    %v1311 = vadd.f32 %v1260, %v1310
    %v1312 = vand.u32 %v1071, 4294901760
    %v1313 = vsub.f32 %v1071, %v1312
    %v1314 = vand.u32 %v1313, 4294901760
    %1315 = vmatmul.f32.gmra.mxu0 %v1314
    %v1316 = vpop.f32.mrf.mxu0
    %v1317 = vadd.f32 %v1265, %v1316
    %v1318 = vand.u32 %v1074, 4294901760
    %v1319 = vsub.f32 %v1074, %v1318
    %v1320 = vand.u32 %v1319, 4294901760
    %1321 = vmatmul.f32.gmra.mxu0 %v1320
    %v1322 = vpop.f32.mrf.mxu0
    %v1323 = vadd.f32 %v1270, %v1322
    %v1324 = vand.u32 %v1077, 4294901760
    %v1325 = vsub.f32 %v1077, %v1324
    %v1326 = vand.u32 %v1325, 4294901760
    %1327 = vmatmul.f32.gmra.mxu0 %v1326
    %v1328 = vpop.f32.mrf.mxu0
    %v1329 = vadd.f32 %v1275, %v1328
    %v1330 = vand.u32 %v1080, 4294901760
    %v1331 = vsub.f32 %v1080, %v1330
    %v1332 = vand.u32 %v1331, 4294901760
    %1333 = vmatmul.f32.gmra.mxu0 %v1332
    %v1334 = vpop.f32.mrf.mxu0
    %v1335 = vadd.f32 %v1280, %v1334
    %1336 = vdwg.mxu0
    %1337 = vmatpush.msra.mxu0 0.0
    %1338 = vmatpush.msra.mxu0 0.0
    %1339 = vmatpush.msra.mxu0 0.0
    %1340 = vmatpush.msra.mxu0 0.0
    %1341 = vmatpush.msra.mxu0 0.0
    %1342 = vmatpush.msra.mxu0 0.0
    %1343 = vmatpush.msra.mxu0 0.0
    %1344 = vmatpush.msra.mxu0 0.0
    %v1345 = vand.u32 %v1026, 4294901760
    %v1346 = vsub.f32 %v1026, %v1345
    %v1347 = vand.u32 %v1346, 4294901760
    %1348 = vmatpush.msra.mxu0 %v1347
    %v1349 = vand.u32 %v1025, 4294901760
    %v1350 = vsub.f32 %v1025, %v1349
    %v1351 = vand.u32 %v1350, 4294901760
    %1352 = vmatpush.msra.mxu0 %v1351
    %v1353 = vand.u32 %v1024, 4294901760
    %v1354 = vsub.f32 %v1024, %v1353
    %v1355 = vand.u32 %v1354, 4294901760
    %1356 = vmatpush.msra.mxu0 %v1355
    %v1357 = vand.u32 %v1023, 4294901760
    %v1358 = vsub.f32 %v1023, %v1357
    %v1359 = vand.u32 %v1358, 4294901760
    %1360 = vmatpush.msra.mxu0 %v1359
    %v1361 = vand.u32 %v1022, 4294901760
    %v1362 = vsub.f32 %v1022, %v1361
    %v1363 = vand.u32 %v1362, 4294901760
    %1364 = vmatpush.msra.mxu0 %v1363
    %v1365 = vand.u32 %v1021, 4294901760
    %v1366 = vsub.f32 %v1021, %v1365
    %v1367 = vand.u32 %v1366, 4294901760
    %1368 = vmatpush.msra.mxu0 %v1367
    %v1369 = vand.u32 %v1020, 4294901760
    %v1370 = vsub.f32 %v1020, %v1369
    %v1371 = vand.u32 %v1370, 4294901760
    %1372 = vmatpush.msra.mxu0 %v1371
    %v1373 = vand.u32 %v1019, 4294901760
    %v1374 = vsub.f32 %v1019, %v1373
    %v1375 = vand.u32 %v1374, 4294901760
    %1376 = vmatpush.msra.mxu0 %v1375
    %v1377 = vand.u32 %v1068, 4294901760
    %1378 = vmatmul.f32.gmra.mxu0 %v1377
    %v1379 = vpop.f32.mrf.mxu0
    %v1380 = vadd.f32 %v1311, %v1379
    %v1381 = vand.u32 %v1071, 4294901760
    %1382 = vmatmul.f32.gmra.mxu0 %v1381
    %v1383 = vpop.f32.mrf.mxu0
    %v1384 = vadd.f32 %v1317, %v1383
    %v1385 = vand.u32 %v1074, 4294901760
    %1386 = vmatmul.f32.gmra.mxu0 %v1385
    %v1387 = vpop.f32.mrf.mxu0
    %v1388 = vadd.f32 %v1323, %v1387
    %v1389 = vand.u32 %v1077, 4294901760
    %1390 = vmatmul.f32.gmra.mxu0 %v1389
    %v1391 = vpop.f32.mrf.mxu0
    %v1392 = vadd.f32 %v1329, %v1391
    %v1393 = vand.u32 %v1080, 4294901760
    %1394 = vmatmul.f32.gmra.mxu0 %v1393
    %v1395 = vpop.f32.mrf.mxu0
    %v1396 = vadd.f32 %v1335, %v1395
    %1397 = vdwg.mxu0
    %1398 = vmatpush.msra.mxu0 0.0
    %1399 = vmatpush.msra.mxu0 0.0
    %1400 = vmatpush.msra.mxu0 0.0
    %1401 = vmatpush.msra.mxu0 0.0
    %1402 = vmatpush.msra.mxu0 0.0
    %1403 = vmatpush.msra.mxu0 0.0
    %1404 = vmatpush.msra.mxu0 0.0
    %1405 = vmatpush.msra.mxu0 0.0
    %v1406 = vand.u32 %v1026, 4294901760
    %1407 = vmatpush.msra.mxu0 %v1406
    %v1408 = vand.u32 %v1025, 4294901760
    %1409 = vmatpush.msra.mxu0 %v1408
    %v1410 = vand.u32 %v1024, 4294901760
    %1411 = vmatpush.msra.mxu0 %v1410
    %v1412 = vand.u32 %v1023, 4294901760
    %1413 = vmatpush.msra.mxu0 %v1412
    %v1414 = vand.u32 %v1022, 4294901760
    %1415 = vmatpush.msra.mxu0 %v1414
    %v1416 = vand.u32 %v1021, 4294901760
    %1417 = vmatpush.msra.mxu0 %v1416
    %v1418 = vand.u32 %v1020, 4294901760
    %1419 = vmatpush.msra.mxu0 %v1418
    %v1420 = vand.u32 %v1019, 4294901760
    %1421 = vmatpush.msra.mxu0 %v1420
    %v1422 = vand.u32 %v1068, 4294901760
    %1423 = vmatmul.f32.gmra.mxu0 %v1422
    %v1424 = vpop.f32.mrf.mxu0
    %v1425 = vadd.f32 %v1380, %v1424
    %v1426 = vand.u32 %v1071, 4294901760
    %1427 = vmatmul.f32.gmra.mxu0 %v1426
    %v1428 = vpop.f32.mrf.mxu0
    %v1429 = vadd.f32 %v1384, %v1428
    %v1430 = vand.u32 %v1074, 4294901760
    %1431 = vmatmul.f32.gmra.mxu0 %v1430
    %v1432 = vpop.f32.mrf.mxu0
    %v1433 = vadd.f32 %v1388, %v1432
    %v1434 = vand.u32 %v1077, 4294901760
    %1435 = vmatmul.f32.gmra.mxu0 %v1434
    %v1436 = vpop.f32.mrf.mxu0
    %v1437 = vadd.f32 %v1392, %v1436
    %v1438 = vand.u32 %v1080, 4294901760
    %1439 = vmatmul.f32.gmra.mxu0 %v1438
    %v1440 = vpop.f32.mrf.mxu0
    %v1441 = vadd.f32 %v1396, %v1440
    %1442 = vdwg.mxu0
    %v1443 = vld [vmem:[%s1 + $0x1] sm:$0x1]
    %v1444 = vperm.slane %v1443, 0
    %vm1445 = vcmp.eq.s32.totalorder %v20, %v1444
    %vm1446 = vcmp.eq.s32.totalorder %v21, %v1444
    %vm1447 = vcmp.eq.s32.totalorder %v22, %v1444
    %vm1448 = vcmp.eq.s32.totalorder %v23, %v1444
    %vm1449 = vcmp.eq.s32.totalorder %v24, %v1444
    %vm1450 = vcmp.eq.s32.totalorder %v25, %v1444
    %vm1451 = vcmp.eq.s32.totalorder %v26, %v1444
    %vm1452 = vcmp.eq.s32.totalorder %v27, %v1444
    %vm1453 = vcmp.eq.s32.totalorder %v471, %v1444
    %vm1454 = vcmp.eq.s32.totalorder %v472, %v1444
    %vm1455 = vcmp.eq.s32.totalorder %v473, %v1444
    %vm1456 = vcmp.eq.s32.totalorder %v474, %v1444
    %v1457 = vsel %vm1445, 1, 0
    %v1458 = vsel %vm1446, 1, 0
    %v1459 = vsel %vm1447, 1, 0
    %v1460 = vsel %vm1448, 1, 0
    %v1461 = vsel %vm1449, 1, 0
    %v1462 = vsel %vm1450, 1, 0
    %v1463 = vsel %vm1451, 1, 0
    %v1464 = vsel %vm1452, 1, 0
    %v1465 = vsel %vm1453, 1, 0
    %v1466 = vsel %vm1454, 1, 0
    %v1467 = vsel %vm1455, 1, 0
    %v1468 = vsel %vm1456, 1, 0
    %v1469 = vcvt.s32.f32 %v1457
    %v1470 = vcvt.s32.f32 %v1458
    %v1471 = vcvt.s32.f32 %v1459
    %v1472 = vcvt.s32.f32 %v1460
    %v1473 = vcvt.s32.f32 %v1461
    %v1474 = vcvt.s32.f32 %v1462
    %v1475 = vcvt.s32.f32 %v1463
    %v1476 = vcvt.s32.f32 %v1464
    %v1477 = vcvt.s32.f32 %v1465
    %v1478 = vcvt.s32.f32 %v1466
    %v1479 = vcvt.s32.f32 %v1467
    %v1480 = vcvt.s32.f32 %v1468
    %v1481 = vld [vmem:[%s3] sm:$0xff]
    %v1482 = vld [vmem:[%s3 + $0x8] sm:$0xff]
    %v1483 = vld [vmem:[%s3 + $0x10] sm:$0xff]
    %v1484 = vld [vmem:[%s3 + $0x18] sm:$0xff]
    %v1485 = vld [vmem:[%s3 + $0x20] sm:$0xff]
    %v1486 = vld [vmem:[%s3 + $0x28] sm:$0xff]
    %v1487 = vld [vmem:[%s3 + $0x30] sm:$0xff]
    %v1488 = vld [vmem:[%s3 + $0x38] sm:$0xff]
    %v1489 = vld [vmem:[%s3 + $0x40] sm:$0xff]
    %v1490 = vld [vmem:[%s3 + $0x48] sm:$0xff]
    %v1491 = vld [vmem:[%s3 + $0x50] sm:$0xff]
    %v1492 = vld [vmem:[%s3 + $0x58] sm:$0xff]
    %1493 = vxpose.xlu0.b32.start [1/16] %v1481, 128
    %1494 = vxpose.xlu0.b32.cont [2/16] %v1482, 128
    %1495 = vxpose.xlu0.b32.cont [3/16] %v1483, 128
    %1496 = vxpose.xlu0.b32.cont [4/16] %v1484, 128
    %1497 = vxpose.xlu0.b32.cont [5/16] %v1485, 128
    %1498 = vxpose.xlu0.b32.cont [6/16] %v1486, 128
    %1499 = vxpose.xlu0.b32.cont [7/16] %v1487, 128
    %1500 = vxpose.xlu0.b32.cont [8/16] %v1488, 128
    %1501 = vxpose.xlu0.b32.cont [9/16] %v1489, 128
    %1502 = vxpose.xlu0.b32.cont [10/16] %v1490, 128
    %1503 = vxpose.xlu0.b32.cont [11/16] %v1491, 128
    %1504 = vxpose.xlu0.b32.cont [12/16] %v1492, 128
    %1505 = vxpose.xlu0.b32.cont [13/16] 0.0, 128
    %1506 = vxpose.xlu0.b32.cont [14/16] 0.0, 128
    %1507 = vxpose.xlu0.b32.cont [15/16] 0.0, 128
    %1508 = vxpose.xlu0.b32.end [16/16] 0.0, 128
    %v1509 = vpop.trf.xlu0
    %v1510 = vpop.trf.xlu0
    %v1511 = vpop.trf.xlu0
    %v1512 = vpop.trf.xlu0
    %v1513 = vpop.trf.xlu0
    %v1514 = vpop.trf.xlu0
    %v1515 = vpop.trf.xlu0
    %v1516 = vpop.trf.xlu0
    %v1517 = vpop.trf.xlu0
    %v1518 = vpop.trf.xlu0
    %v1519 = vpop.trf.xlu0
    %v1520 = vpop.trf.xlu0
    %v1521 = vpop.trf.xlu0
    %v1522 = vpop.trf.xlu0
    %v1523 = vpop.trf.xlu0
    %v1524 = vpop.trf.xlu0
    %v1526 = vsel %vm556, %v1509, 0
    %v1529 = vsel %vm556, %v1510, 0
    %v1532 = vsel %vm556, %v1511, 0
    %v1535 = vsel %vm556, %v1512, 0
    %v1538 = vsel %vm556, %v1513, 0
    %1540 = vmatpush.msra.mxu0 0.0
    %1541 = vmatpush.msra.mxu0 0.0
    %1542 = vmatpush.msra.mxu0 0.0
    %1543 = vmatpush.msra.mxu0 0.0
    %v1544 = vand.u32 %v1480, 4294901760
    %1545 = vmatpush.msra.mxu0 %v1544
    %v1546 = vand.u32 %v1479, 4294901760
    %1547 = vmatpush.msra.mxu0 %v1546
    %v1548 = vand.u32 %v1478, 4294901760
    %1549 = vmatpush.msra.mxu0 %v1548
    %v1550 = vand.u32 %v1477, 4294901760
    %1551 = vmatpush.msra.mxu0 %v1550
    %v1552 = vand.u32 %v1476, 4294901760
    %1553 = vmatpush.msra.mxu0 %v1552
    %v1554 = vand.u32 %v1475, 4294901760
    %1555 = vmatpush.msra.mxu0 %v1554
    %v1556 = vand.u32 %v1474, 4294901760
    %1557 = vmatpush.msra.mxu0 %v1556
    %v1558 = vand.u32 %v1473, 4294901760
    %1559 = vmatpush.msra.mxu0 %v1558
    %v1560 = vand.u32 %v1472, 4294901760
    %1561 = vmatpush.msra.mxu0 %v1560
    %v1562 = vand.u32 %v1471, 4294901760
    %1563 = vmatpush.msra.mxu0 %v1562
    %v1564 = vand.u32 %v1470, 4294901760
    %1565 = vmatpush.msra.mxu0 %v1564
    %v1566 = vand.u32 %v1469, 4294901760
    %1567 = vmatpush.msra.mxu0 %v1566
    %v1568 = vand.u32 %v1526, 4294901760
    %v1569 = vsub.f32 %v1526, %v1568
    %v1570 = vand.u32 %v1569, 4294901760
    %v1571 = vsub.f32 %v1569, %v1570
    %v1572 = vand.u32 %v1571, 4294901760
    %1573 = vmatmul.f32.gmra.mxu0 %v1572
    %v1574 = vpop.f32.mrf.mxu0
    %v1575 = vadd.f32 0.0, %v1574
    %v1576 = vand.u32 %v1529, 4294901760
    %v1577 = vsub.f32 %v1529, %v1576
    %v1578 = vand.u32 %v1577, 4294901760
    %v1579 = vsub.f32 %v1577, %v1578
    %v1580 = vand.u32 %v1579, 4294901760
    %1581 = vmatmul.f32.gmra.mxu0 %v1580
    %v1582 = vpop.f32.mrf.mxu0
    %v1583 = vadd.f32 0.0, %v1582
    %v1584 = vand.u32 %v1532, 4294901760
    %v1585 = vsub.f32 %v1532, %v1584
    %v1586 = vand.u32 %v1585, 4294901760
    %v1587 = vsub.f32 %v1585, %v1586
    %v1588 = vand.u32 %v1587, 4294901760
    %1589 = vmatmul.f32.gmra.mxu0 %v1588
    %v1590 = vpop.f32.mrf.mxu0
    %v1591 = vadd.f32 0.0, %v1590
    %v1592 = vand.u32 %v1535, 4294901760
    %v1593 = vsub.f32 %v1535, %v1592
    %v1594 = vand.u32 %v1593, 4294901760
    %v1595 = vsub.f32 %v1593, %v1594
    %v1596 = vand.u32 %v1595, 4294901760
    %1597 = vmatmul.f32.gmra.mxu0 %v1596
    %v1598 = vpop.f32.mrf.mxu0
    %v1599 = vadd.f32 0.0, %v1598
    %v1600 = vand.u32 %v1538, 4294901760
    %v1601 = vsub.f32 %v1538, %v1600
    %v1602 = vand.u32 %v1601, 4294901760
    %v1603 = vsub.f32 %v1601, %v1602
    %v1604 = vand.u32 %v1603, 4294901760
    %1605 = vmatmul.f32.gmra.mxu0 %v1604
    %v1606 = vpop.f32.mrf.mxu0
    %v1607 = vadd.f32 0.0, %v1606
    %1608 = vdwg.mxu0
    %1609 = vmatpush.msra.mxu0 0.0
    %1610 = vmatpush.msra.mxu0 0.0
    %1611 = vmatpush.msra.mxu0 0.0
    %1612 = vmatpush.msra.mxu0 0.0
    %v1613 = vand.u32 %v1480, 4294901760
    %v1614 = vsub.f32 %v1480, %v1613
    %v1615 = vand.u32 %v1614, 4294901760
    %v1616 = vsub.f32 %v1614, %v1615
    %v1617 = vand.u32 %v1616, 4294901760
    %1618 = vmatpush.msra.mxu0 %v1617
    %v1619 = vand.u32 %v1479, 4294901760
    %v1620 = vsub.f32 %v1479, %v1619
    %v1621 = vand.u32 %v1620, 4294901760
    %v1622 = vsub.f32 %v1620, %v1621
    %v1623 = vand.u32 %v1622, 4294901760
    %1624 = vmatpush.msra.mxu0 %v1623
    %v1625 = vand.u32 %v1478, 4294901760
    %v1626 = vsub.f32 %v1478, %v1625
    %v1627 = vand.u32 %v1626, 4294901760
    %v1628 = vsub.f32 %v1626, %v1627
    %v1629 = vand.u32 %v1628, 4294901760
    %1630 = vmatpush.msra.mxu0 %v1629
    %v1631 = vand.u32 %v1477, 4294901760
    %v1632 = vsub.f32 %v1477, %v1631
    %v1633 = vand.u32 %v1632, 4294901760
    %v1634 = vsub.f32 %v1632, %v1633
    %v1635 = vand.u32 %v1634, 4294901760
    %1636 = vmatpush.msra.mxu0 %v1635
    %v1637 = vand.u32 %v1476, 4294901760
    %v1638 = vsub.f32 %v1476, %v1637
    %v1639 = vand.u32 %v1638, 4294901760
    %v1640 = vsub.f32 %v1638, %v1639
    %v1641 = vand.u32 %v1640, 4294901760
    %1642 = vmatpush.msra.mxu0 %v1641
    %v1643 = vand.u32 %v1475, 4294901760
    %v1644 = vsub.f32 %v1475, %v1643
    %v1645 = vand.u32 %v1644, 4294901760
    %v1646 = vsub.f32 %v1644, %v1645
    %v1647 = vand.u32 %v1646, 4294901760
    %1648 = vmatpush.msra.mxu0 %v1647
    %v1649 = vand.u32 %v1474, 4294901760
    %v1650 = vsub.f32 %v1474, %v1649
    %v1651 = vand.u32 %v1650, 4294901760
    %v1652 = vsub.f32 %v1650, %v1651
    %v1653 = vand.u32 %v1652, 4294901760
    %1654 = vmatpush.msra.mxu0 %v1653
    %v1655 = vand.u32 %v1473, 4294901760
    %v1656 = vsub.f32 %v1473, %v1655
    %v1657 = vand.u32 %v1656, 4294901760
    %v1658 = vsub.f32 %v1656, %v1657
    %v1659 = vand.u32 %v1658, 4294901760
    %1660 = vmatpush.msra.mxu0 %v1659
    %v1661 = vand.u32 %v1472, 4294901760
    %v1662 = vsub.f32 %v1472, %v1661
    %v1663 = vand.u32 %v1662, 4294901760
    %v1664 = vsub.f32 %v1662, %v1663
    %v1665 = vand.u32 %v1664, 4294901760
    %1666 = vmatpush.msra.mxu0 %v1665
    %v1667 = vand.u32 %v1471, 4294901760
    %v1668 = vsub.f32 %v1471, %v1667
    %v1669 = vand.u32 %v1668, 4294901760
    %v1670 = vsub.f32 %v1668, %v1669
    %v1671 = vand.u32 %v1670, 4294901760
    %1672 = vmatpush.msra.mxu0 %v1671
    %v1673 = vand.u32 %v1470, 4294901760
    %v1674 = vsub.f32 %v1470, %v1673
    %v1675 = vand.u32 %v1674, 4294901760
    %v1676 = vsub.f32 %v1674, %v1675
    %v1677 = vand.u32 %v1676, 4294901760
    %1678 = vmatpush.msra.mxu0 %v1677
    %v1679 = vand.u32 %v1469, 4294901760
    %v1680 = vsub.f32 %v1469, %v1679
    %v1681 = vand.u32 %v1680, 4294901760
    %v1682 = vsub.f32 %v1680, %v1681
    %v1683 = vand.u32 %v1682, 4294901760
    %1684 = vmatpush.msra.mxu0 %v1683
    %v1685 = vand.u32 %v1526, 4294901760
    %1686 = vmatmul.f32.gmra.mxu0 %v1685
    %v1687 = vpop.f32.mrf.mxu0
    %v1688 = vadd.f32 %v1575, %v1687
    %v1689 = vand.u32 %v1529, 4294901760
    %1690 = vmatmul.f32.gmra.mxu0 %v1689
    %v1691 = vpop.f32.mrf.mxu0
    %v1692 = vadd.f32 %v1583, %v1691
    %v1693 = vand.u32 %v1532, 4294901760
    %1694 = vmatmul.f32.gmra.mxu0 %v1693
    %v1695 = vpop.f32.mrf.mxu0
    %v1696 = vadd.f32 %v1591, %v1695
    %v1697 = vand.u32 %v1535, 4294901760
    %1698 = vmatmul.f32.gmra.mxu0 %v1697
    %v1699 = vpop.f32.mrf.mxu0
    %v1700 = vadd.f32 %v1599, %v1699
    %v1701 = vand.u32 %v1538, 4294901760
    %1702 = vmatmul.f32.gmra.mxu0 %v1701
    %v1703 = vpop.f32.mrf.mxu0
    %v1704 = vadd.f32 %v1607, %v1703
    %1705 = vdwg.mxu0
    %1706 = vmatpush.msra.mxu0 0.0
    %1707 = vmatpush.msra.mxu0 0.0
    %1708 = vmatpush.msra.mxu0 0.0
    %1709 = vmatpush.msra.mxu0 0.0
    %v1710 = vand.u32 %v1480, 4294901760
    %v1711 = vsub.f32 %v1480, %v1710
    %1712 = vmatpush.msra.mxu0 %v1711
    %v1713 = vand.u32 %v1479, 4294901760
    %v1714 = vsub.f32 %v1479, %v1713
    %1715 = vmatpush.msra.mxu0 %v1714
    %v1716 = vand.u32 %v1478, 4294901760
    %v1717 = vsub.f32 %v1478, %v1716
    %1718 = vmatpush.msra.mxu0 %v1717
    %v1719 = vand.u32 %v1477, 4294901760
    %v1720 = vsub.f32 %v1477, %v1719
    %1721 = vmatpush.msra.mxu0 %v1720
    %v1722 = vand.u32 %v1476, 4294901760
    %v1723 = vsub.f32 %v1476, %v1722
    %1724 = vmatpush.msra.mxu0 %v1723
    %v1725 = vand.u32 %v1475, 4294901760
    %v1726 = vsub.f32 %v1475, %v1725
    %1727 = vmatpush.msra.mxu0 %v1726
    %v1728 = vand.u32 %v1474, 4294901760
    %v1729 = vsub.f32 %v1474, %v1728
    %1730 = vmatpush.msra.mxu0 %v1729
    %v1731 = vand.u32 %v1473, 4294901760
    %v1732 = vsub.f32 %v1473, %v1731
    %1733 = vmatpush.msra.mxu0 %v1732
    %v1734 = vand.u32 %v1472, 4294901760
    %v1735 = vsub.f32 %v1472, %v1734
    %1736 = vmatpush.msra.mxu0 %v1735
    %v1737 = vand.u32 %v1471, 4294901760
    %v1738 = vsub.f32 %v1471, %v1737
    %1739 = vmatpush.msra.mxu0 %v1738
    %v1740 = vand.u32 %v1470, 4294901760
    %v1741 = vsub.f32 %v1470, %v1740
    %1742 = vmatpush.msra.mxu0 %v1741
    %v1743 = vand.u32 %v1469, 4294901760
    %v1744 = vsub.f32 %v1469, %v1743
    %1745 = vmatpush.msra.mxu0 %v1744
    %v1746 = vand.u32 %v1526, 4294901760
    %v1747 = vsub.f32 %v1526, %v1746
    %1748 = vmatmul.f32.gmra.mxu0 %v1747
    %v1749 = vpop.f32.mrf.mxu0
    %v1750 = vadd.f32 %v1688, %v1749
    %v1751 = vand.u32 %v1529, 4294901760
    %v1752 = vsub.f32 %v1529, %v1751
    %1753 = vmatmul.f32.gmra.mxu0 %v1752
    %v1754 = vpop.f32.mrf.mxu0
    %v1755 = vadd.f32 %v1692, %v1754
    %v1756 = vand.u32 %v1532, 4294901760
    %v1757 = vsub.f32 %v1532, %v1756
    %1758 = vmatmul.f32.gmra.mxu0 %v1757
    %v1759 = vpop.f32.mrf.mxu0
    %v1760 = vadd.f32 %v1696, %v1759
    %v1761 = vand.u32 %v1535, 4294901760
    %v1762 = vsub.f32 %v1535, %v1761
    %1763 = vmatmul.f32.gmra.mxu0 %v1762
    %v1764 = vpop.f32.mrf.mxu0
    %v1765 = vadd.f32 %v1700, %v1764
    %v1766 = vand.u32 %v1538, 4294901760
    %v1767 = vsub.f32 %v1538, %v1766
    %1768 = vmatmul.f32.gmra.mxu0 %v1767
    %v1769 = vpop.f32.mrf.mxu0
    %v1770 = vadd.f32 %v1704, %v1769
    %1771 = vdwg.mxu0
    %1772 = vmatpush.msra.mxu0 0.0
    %1773 = vmatpush.msra.mxu0 0.0
    %1774 = vmatpush.msra.mxu0 0.0
    %1775 = vmatpush.msra.mxu0 0.0
    %v1776 = vand.u32 %v1480, 4294901760
    %1777 = vmatpush.msra.mxu0 %v1776
    %v1778 = vand.u32 %v1479, 4294901760
    %1779 = vmatpush.msra.mxu0 %v1778
    %v1780 = vand.u32 %v1478, 4294901760
    %1781 = vmatpush.msra.mxu0 %v1780
    %v1782 = vand.u32 %v1477, 4294901760
    %1783 = vmatpush.msra.mxu0 %v1782
    %v1784 = vand.u32 %v1476, 4294901760
    %1785 = vmatpush.msra.mxu0 %v1784
    %v1786 = vand.u32 %v1475, 4294901760
    %1787 = vmatpush.msra.mxu0 %v1786
    %v1788 = vand.u32 %v1474, 4294901760
    %1789 = vmatpush.msra.mxu0 %v1788
    %v1790 = vand.u32 %v1473, 4294901760
    %1791 = vmatpush.msra.mxu0 %v1790
    %v1792 = vand.u32 %v1472, 4294901760
    %1793 = vmatpush.msra.mxu0 %v1792
    %v1794 = vand.u32 %v1471, 4294901760
    %1795 = vmatpush.msra.mxu0 %v1794
    %v1796 = vand.u32 %v1470, 4294901760
    %1797 = vmatpush.msra.mxu0 %v1796
    %v1798 = vand.u32 %v1469, 4294901760
    %1799 = vmatpush.msra.mxu0 %v1798
    %v1800 = vand.u32 %v1526, 4294901760
    %v1801 = vsub.f32 %v1526, %v1800
    %v1802 = vand.u32 %v1801, 4294901760
    %1803 = vmatmul.f32.gmra.mxu0 %v1802
    %v1804 = vpop.f32.mrf.mxu0
    %v1805 = vadd.f32 %v1750, %v1804
    %v1806 = vand.u32 %v1529, 4294901760
    %v1807 = vsub.f32 %v1529, %v1806
    %v1808 = vand.u32 %v1807, 4294901760
    %1809 = vmatmul.f32.gmra.mxu0 %v1808
    %v1810 = vpop.f32.mrf.mxu0
    %v1811 = vadd.f32 %v1755, %v1810
    %v1812 = vand.u32 %v1532, 4294901760
    %v1813 = vsub.f32 %v1532, %v1812
    %v1814 = vand.u32 %v1813, 4294901760
    %1815 = vmatmul.f32.gmra.mxu0 %v1814
    %v1816 = vpop.f32.mrf.mxu0
    %v1817 = vadd.f32 %v1760, %v1816
    %v1818 = vand.u32 %v1535, 4294901760
    %v1819 = vsub.f32 %v1535, %v1818
    %v1820 = vand.u32 %v1819, 4294901760
    %1821 = vmatmul.f32.gmra.mxu0 %v1820
    %v1822 = vpop.f32.mrf.mxu0
    %v1823 = vadd.f32 %v1765, %v1822
    %v1824 = vand.u32 %v1538, 4294901760
    %v1825 = vsub.f32 %v1538, %v1824
    %v1826 = vand.u32 %v1825, 4294901760
    %1827 = vmatmul.f32.gmra.mxu0 %v1826
    %v1828 = vpop.f32.mrf.mxu0
    %v1829 = vadd.f32 %v1770, %v1828
    %1830 = vdwg.mxu0
    %1831 = vmatpush.msra.mxu0 0.0
    %1832 = vmatpush.msra.mxu0 0.0
    %1833 = vmatpush.msra.mxu0 0.0
    %1834 = vmatpush.msra.mxu0 0.0
    %v1835 = vand.u32 %v1480, 4294901760
    %v1836 = vsub.f32 %v1480, %v1835
    %v1837 = vand.u32 %v1836, 4294901760
    %1838 = vmatpush.msra.mxu0 %v1837
    %v1839 = vand.u32 %v1479, 4294901760
    %v1840 = vsub.f32 %v1479, %v1839
    %v1841 = vand.u32 %v1840, 4294901760
    %1842 = vmatpush.msra.mxu0 %v1841
    %v1843 = vand.u32 %v1478, 4294901760
    %v1844 = vsub.f32 %v1478, %v1843
    %v1845 = vand.u32 %v1844, 4294901760
    %1846 = vmatpush.msra.mxu0 %v1845
    %v1847 = vand.u32 %v1477, 4294901760
    %v1848 = vsub.f32 %v1477, %v1847
    %v1849 = vand.u32 %v1848, 4294901760
    %1850 = vmatpush.msra.mxu0 %v1849
    %v1851 = vand.u32 %v1476, 4294901760
    %v1852 = vsub.f32 %v1476, %v1851
    %v1853 = vand.u32 %v1852, 4294901760
    %1854 = vmatpush.msra.mxu0 %v1853
    %v1855 = vand.u32 %v1475, 4294901760
    %v1856 = vsub.f32 %v1475, %v1855
    %v1857 = vand.u32 %v1856, 4294901760
    %1858 = vmatpush.msra.mxu0 %v1857
    %v1859 = vand.u32 %v1474, 4294901760
    %v1860 = vsub.f32 %v1474, %v1859
    %v1861 = vand.u32 %v1860, 4294901760
    %1862 = vmatpush.msra.mxu0 %v1861
    %v1863 = vand.u32 %v1473, 4294901760
    %v1864 = vsub.f32 %v1473, %v1863
    %v1865 = vand.u32 %v1864, 4294901760
    %1866 = vmatpush.msra.mxu0 %v1865
    %v1867 = vand.u32 %v1472, 4294901760
    %v1868 = vsub.f32 %v1472, %v1867
    %v1869 = vand.u32 %v1868, 4294901760
    %1870 = vmatpush.msra.mxu0 %v1869
    %v1871 = vand.u32 %v1471, 4294901760
    %v1872 = vsub.f32 %v1471, %v1871
    %v1873 = vand.u32 %v1872, 4294901760
    %1874 = vmatpush.msra.mxu0 %v1873
    %v1875 = vand.u32 %v1470, 4294901760
    %v1876 = vsub.f32 %v1470, %v1875
    %v1877 = vand.u32 %v1876, 4294901760
    %1878 = vmatpush.msra.mxu0 %v1877
    %v1879 = vand.u32 %v1469, 4294901760
    %v1880 = vsub.f32 %v1469, %v1879
    %v1881 = vand.u32 %v1880, 4294901760
    %1882 = vmatpush.msra.mxu0 %v1881
    %v1883 = vand.u32 %v1526, 4294901760
    %1884 = vmatmul.f32.gmra.mxu0 %v1883
    %v1885 = vpop.f32.mrf.mxu0
    %v1886 = vadd.f32 %v1805, %v1885
    %v1887 = vand.u32 %v1529, 4294901760
    %1888 = vmatmul.f32.gmra.mxu0 %v1887
    %v1889 = vpop.f32.mrf.mxu0
    %v1890 = vadd.f32 %v1811, %v1889
    %v1891 = vand.u32 %v1532, 4294901760
    %1892 = vmatmul.f32.gmra.mxu0 %v1891
    %v1893 = vpop.f32.mrf.mxu0
    %v1894 = vadd.f32 %v1817, %v1893
    %v1895 = vand.u32 %v1535, 4294901760
    %1896 = vmatmul.f32.gmra.mxu0 %v1895
    %v1897 = vpop.f32.mrf.mxu0
    %v1898 = vadd.f32 %v1823, %v1897
    %v1899 = vand.u32 %v1538, 4294901760
    %1900 = vmatmul.f32.gmra.mxu0 %v1899
    %v1901 = vpop.f32.mrf.mxu0
    %v1902 = vadd.f32 %v1829, %v1901
    %1903 = vdwg.mxu0
    %1904 = vmatpush.msra.mxu0 0.0
    %1905 = vmatpush.msra.mxu0 0.0
    %1906 = vmatpush.msra.mxu0 0.0
    %1907 = vmatpush.msra.mxu0 0.0
    %v1908 = vand.u32 %v1480, 4294901760
    %1909 = vmatpush.msra.mxu0 %v1908
    %v1910 = vand.u32 %v1479, 4294901760
    %1911 = vmatpush.msra.mxu0 %v1910
    %v1912 = vand.u32 %v1478, 4294901760
    %1913 = vmatpush.msra.mxu0 %v1912
    %v1914 = vand.u32 %v1477, 4294901760
    %1915 = vmatpush.msra.mxu0 %v1914
    %v1916 = vand.u32 %v1476, 4294901760
    %1917 = vmatpush.msra.mxu0 %v1916
    %v1918 = vand.u32 %v1475, 4294901760
    %1919 = vmatpush.msra.mxu0 %v1918
    %v1920 = vand.u32 %v1474, 4294901760
    %1921 = vmatpush.msra.mxu0 %v1920
    %v1922 = vand.u32 %v1473, 4294901760
    %1923 = vmatpush.msra.mxu0 %v1922
    %v1924 = vand.u32 %v1472, 4294901760
    %1925 = vmatpush.msra.mxu0 %v1924
    %v1926 = vand.u32 %v1471, 4294901760
    %1927 = vmatpush.msra.mxu0 %v1926
    %v1928 = vand.u32 %v1470, 4294901760
    %1929 = vmatpush.msra.mxu0 %v1928
    %v1930 = vand.u32 %v1469, 4294901760
    %1931 = vmatpush.msra.mxu0 %v1930
    %v1932 = vand.u32 %v1526, 4294901760
    %1933 = vmatmul.f32.gmra.mxu0 %v1932
    %v1934 = vpop.f32.mrf.mxu0
    %v1935 = vadd.f32 %v1886, %v1934
    %v1936 = vand.u32 %v1529, 4294901760
    %1937 = vmatmul.f32.gmra.mxu0 %v1936
    %v1938 = vpop.f32.mrf.mxu0
    %v1939 = vadd.f32 %v1890, %v1938
    %v1940 = vand.u32 %v1532, 4294901760
    %1941 = vmatmul.f32.gmra.mxu0 %v1940
    %v1942 = vpop.f32.mrf.mxu0
    %v1943 = vadd.f32 %v1894, %v1942
    %v1944 = vand.u32 %v1535, 4294901760
    %1945 = vmatmul.f32.gmra.mxu0 %v1944
    %v1946 = vpop.f32.mrf.mxu0
    %v1947 = vadd.f32 %v1898, %v1946
    %v1948 = vand.u32 %v1538, 4294901760
    %1949 = vmatmul.f32.gmra.mxu0 %v1948
    %v1950 = vpop.f32.mrf.mxu0
    %v1951 = vadd.f32 %v1902, %v1950
    %1952 = vdwg.mxu0
    %v1953 = vmul.f32 %v1425, %v1935
    %v1954 = vmul.f32 %v1429, %v1939
    %v1955 = vmul.f32 %v1433, %v1943
    %v1956 = vmul.f32 %v1437, %v1947
    %v1957 = vmul.f32 %v1441, %v1951
    %v1958 = vadd.f32 %v1953, %v1954
    %v1959 = vadd.f32 %v1958, %v1955
    %v1960 = vadd.f32 %v1959, %v1956
    %v1961 = vadd.f32 %v1960, %v1957
    %v1962 = vrot.slane %v1961, 4
    %v1963 = vadd.f32 %v1961, %v1962
    %v1964 = vrot.slane %v1963, 2
    %v1965 = vadd.f32 %v1963, %v1964
    %v1966 = vrot.slane %v1965, 1
    %v1967 = vadd.f32 %v1965, %v1966
    %1968 = vst [vmem:[#allocation2 + $0x1] sm:$0x1] %v1967
    %v1969 = vld [vmem:[%s0 + $0x2] sm:$0x1]
    %v1970 = vperm.slane %v1969, 0
    %vm1971 = vcmp.eq.s32.totalorder %v20, %v1970
    %vm1972 = vcmp.eq.s32.totalorder %v21, %v1970
    %vm1973 = vcmp.eq.s32.totalorder %v22, %v1970
    %vm1974 = vcmp.eq.s32.totalorder %v23, %v1970
    %vm1975 = vcmp.eq.s32.totalorder %v24, %v1970
    %vm1976 = vcmp.eq.s32.totalorder %v25, %v1970
    %vm1977 = vcmp.eq.s32.totalorder %v26, %v1970
    %vm1978 = vcmp.eq.s32.totalorder %v27, %v1970
    %v1979 = vsel %vm1971, 1, 0
    %v1980 = vsel %vm1972, 1, 0
    %v1981 = vsel %vm1973, 1, 0
    %v1982 = vsel %vm1974, 1, 0
    %v1983 = vsel %vm1975, 1, 0
    %v1984 = vsel %vm1976, 1, 0
    %v1985 = vsel %vm1977, 1, 0
    %v1986 = vsel %vm1978, 1, 0
    %v1987 = vcvt.s32.f32 %v1979
    %v1988 = vcvt.s32.f32 %v1980
    %v1989 = vcvt.s32.f32 %v1981
    %v1990 = vcvt.s32.f32 %v1982
    %v1991 = vcvt.s32.f32 %v1983
    %v1992 = vcvt.s32.f32 %v1984
    %v1993 = vcvt.s32.f32 %v1985
    %v1994 = vcvt.s32.f32 %v1986
    %v1995 = vld [vmem:[%s2] sm:$0xff]
    %v1996 = vld [vmem:[%s2 + $0x8] sm:$0xff]
    %v1997 = vld [vmem:[%s2 + $0x10] sm:$0xff]
    %v1998 = vld [vmem:[%s2 + $0x18] sm:$0xff]
    %v1999 = vld [vmem:[%s2 + $0x20] sm:$0xff]
    %v2000 = vld [vmem:[%s2 + $0x28] sm:$0xff]
    %v2001 = vld [vmem:[%s2 + $0x30] sm:$0xff]
    %v2002 = vld [vmem:[%s2 + $0x38] sm:$0xff]
    %2003 = vxpose.xlu0.b32.start [1/16] %v1995, 128
    %2004 = vxpose.xlu0.b32.cont [2/16] %v1996, 128
    %2005 = vxpose.xlu0.b32.cont [3/16] %v1997, 128
    %2006 = vxpose.xlu0.b32.cont [4/16] %v1998, 128
    %2007 = vxpose.xlu0.b32.cont [5/16] %v1999, 128
    %2008 = vxpose.xlu0.b32.cont [6/16] %v2000, 128
    %2009 = vxpose.xlu0.b32.cont [7/16] %v2001, 128
    %2010 = vxpose.xlu0.b32.cont [8/16] %v2002, 128
    %2011 = vxpose.xlu0.b32.cont [9/16] 0.0, 128
    %2012 = vxpose.xlu0.b32.cont [10/16] 0.0, 128
    %2013 = vxpose.xlu0.b32.cont [11/16] 0.0, 128
    %2014 = vxpose.xlu0.b32.cont [12/16] 0.0, 128
    %2015 = vxpose.xlu0.b32.cont [13/16] 0.0, 128
    %2016 = vxpose.xlu0.b32.cont [14/16] 0.0, 128
    %2017 = vxpose.xlu0.b32.cont [15/16] 0.0, 128
    %2018 = vxpose.xlu0.b32.end [16/16] 0.0, 128
    %v2019 = vpop.trf.xlu0
    %v2020 = vpop.trf.xlu0
    %v2021 = vpop.trf.xlu0
    %v2022 = vpop.trf.xlu0
    %v2023 = vpop.trf.xlu0
    %v2024 = vpop.trf.xlu0
    %v2025 = vpop.trf.xlu0
    %v2026 = vpop.trf.xlu0
    %v2027 = vpop.trf.xlu0
    %v2028 = vpop.trf.xlu0
    %v2029 = vpop.trf.xlu0
    %v2030 = vpop.trf.xlu0
    %v2031 = vpop.trf.xlu0
    %v2032 = vpop.trf.xlu0
    %v2033 = vpop.trf.xlu0
    %v2034 = vpop.trf.xlu0
    %v2036 = vsel %vm93, %v2019, 0
    %v2039 = vsel %vm93, %v2020, 0
    %v2042 = vsel %vm93, %v2021, 0
    %v2045 = vsel %vm93, %v2022, 0
    %v2048 = vsel %vm93, %v2023, 0
    %2050 = vmatpush.msra.mxu0 0.0
    %2051 = vmatpush.msra.mxu0 0.0
    %2052 = vmatpush.msra.mxu0 0.0
    %2053 = vmatpush.msra.mxu0 0.0
    %2054 = vmatpush.msra.mxu0 0.0
    %2055 = vmatpush.msra.mxu0 0.0
    %2056 = vmatpush.msra.mxu0 0.0
    %2057 = vmatpush.msra.mxu0 0.0
    %v2058 = vand.u32 %v1994, 4294901760
    %2059 = vmatpush.msra.mxu0 %v2058
    %v2060 = vand.u32 %v1993, 4294901760
    %2061 = vmatpush.msra.mxu0 %v2060
    %v2062 = vand.u32 %v1992, 4294901760
    %2063 = vmatpush.msra.mxu0 %v2062
    %v2064 = vand.u32 %v1991, 4294901760
    %2065 = vmatpush.msra.mxu0 %v2064
    %v2066 = vand.u32 %v1990, 4294901760
    %2067 = vmatpush.msra.mxu0 %v2066
    %v2068 = vand.u32 %v1989, 4294901760
    %2069 = vmatpush.msra.mxu0 %v2068
    %v2070 = vand.u32 %v1988, 4294901760
    %2071 = vmatpush.msra.mxu0 %v2070
    %v2072 = vand.u32 %v1987, 4294901760
    %2073 = vmatpush.msra.mxu0 %v2072
    %v2074 = vand.u32 %v2036, 4294901760
    %v2075 = vsub.f32 %v2036, %v2074
    %v2076 = vand.u32 %v2075, 4294901760
    %v2077 = vsub.f32 %v2075, %v2076
    %v2078 = vand.u32 %v2077, 4294901760
    %2079 = vmatmul.f32.gmra.mxu0 %v2078
    %v2080 = vpop.f32.mrf.mxu0
    %v2081 = vadd.f32 0.0, %v2080
    %v2082 = vand.u32 %v2039, 4294901760
    %v2083 = vsub.f32 %v2039, %v2082
    %v2084 = vand.u32 %v2083, 4294901760
    %v2085 = vsub.f32 %v2083, %v2084
    %v2086 = vand.u32 %v2085, 4294901760
    %2087 = vmatmul.f32.gmra.mxu0 %v2086
    %v2088 = vpop.f32.mrf.mxu0
    %v2089 = vadd.f32 0.0, %v2088
    %v2090 = vand.u32 %v2042, 4294901760
    %v2091 = vsub.f32 %v2042, %v2090
    %v2092 = vand.u32 %v2091, 4294901760
    %v2093 = vsub.f32 %v2091, %v2092
    %v2094 = vand.u32 %v2093, 4294901760
    %2095 = vmatmul.f32.gmra.mxu0 %v2094
    %v2096 = vpop.f32.mrf.mxu0
    %v2097 = vadd.f32 0.0, %v2096
    %v2098 = vand.u32 %v2045, 4294901760
    %v2099 = vsub.f32 %v2045, %v2098
    %v2100 = vand.u32 %v2099, 4294901760
    %v2101 = vsub.f32 %v2099, %v2100
    %v2102 = vand.u32 %v2101, 4294901760
    %2103 = vmatmul.f32.gmra.mxu0 %v2102
    %v2104 = vpop.f32.mrf.mxu0
    %v2105 = vadd.f32 0.0, %v2104
    %v2106 = vand.u32 %v2048, 4294901760
    %v2107 = vsub.f32 %v2048, %v2106
    %v2108 = vand.u32 %v2107, 4294901760
    %v2109 = vsub.f32 %v2107, %v2108
    %v2110 = vand.u32 %v2109, 4294901760
    %2111 = vmatmul.f32.gmra.mxu0 %v2110
    %v2112 = vpop.f32.mrf.mxu0
    %v2113 = vadd.f32 0.0, %v2112
    %2114 = vdwg.mxu0
    %2115 = vmatpush.msra.mxu0 0.0
    %2116 = vmatpush.msra.mxu0 0.0
    %2117 = vmatpush.msra.mxu0 0.0
    %2118 = vmatpush.msra.mxu0 0.0
    %2119 = vmatpush.msra.mxu0 0.0
    %2120 = vmatpush.msra.mxu0 0.0
    %2121 = vmatpush.msra.mxu0 0.0
    %2122 = vmatpush.msra.mxu0 0.0
    %v2123 = vand.u32 %v1994, 4294901760
    %v2124 = vsub.f32 %v1994, %v2123
    %v2125 = vand.u32 %v2124, 4294901760
    %v2126 = vsub.f32 %v2124, %v2125
    %v2127 = vand.u32 %v2126, 4294901760
    %2128 = vmatpush.msra.mxu0 %v2127
    %v2129 = vand.u32 %v1993, 4294901760
    %v2130 = vsub.f32 %v1993, %v2129
    %v2131 = vand.u32 %v2130, 4294901760
    %v2132 = vsub.f32 %v2130, %v2131
    %v2133 = vand.u32 %v2132, 4294901760
    %2134 = vmatpush.msra.mxu0 %v2133
    %v2135 = vand.u32 %v1992, 4294901760
    %v2136 = vsub.f32 %v1992, %v2135
    %v2137 = vand.u32 %v2136, 4294901760
    %v2138 = vsub.f32 %v2136, %v2137
    %v2139 = vand.u32 %v2138, 4294901760
    %2140 = vmatpush.msra.mxu0 %v2139
    %v2141 = vand.u32 %v1991, 4294901760
    %v2142 = vsub.f32 %v1991, %v2141
    %v2143 = vand.u32 %v2142, 4294901760
    %v2144 = vsub.f32 %v2142, %v2143
    %v2145 = vand.u32 %v2144, 4294901760
    %2146 = vmatpush.msra.mxu0 %v2145
    %v2147 = vand.u32 %v1990, 4294901760
    %v2148 = vsub.f32 %v1990, %v2147
    %v2149 = vand.u32 %v2148, 4294901760
    %v2150 = vsub.f32 %v2148, %v2149
    %v2151 = vand.u32 %v2150, 4294901760
    %2152 = vmatpush.msra.mxu0 %v2151
    %v2153 = vand.u32 %v1989, 4294901760
    %v2154 = vsub.f32 %v1989, %v2153
    %v2155 = vand.u32 %v2154, 4294901760
    %v2156 = vsub.f32 %v2154, %v2155
    %v2157 = vand.u32 %v2156, 4294901760
    %2158 = vmatpush.msra.mxu0 %v2157
    %v2159 = vand.u32 %v1988, 4294901760
    %v2160 = vsub.f32 %v1988, %v2159
    %v2161 = vand.u32 %v2160, 4294901760
    %v2162 = vsub.f32 %v2160, %v2161
    %v2163 = vand.u32 %v2162, 4294901760
    %2164 = vmatpush.msra.mxu0 %v2163
    %v2165 = vand.u32 %v1987, 4294901760
    %v2166 = vsub.f32 %v1987, %v2165
    %v2167 = vand.u32 %v2166, 4294901760
    %v2168 = vsub.f32 %v2166, %v2167
    %v2169 = vand.u32 %v2168, 4294901760
    %2170 = vmatpush.msra.mxu0 %v2169
    %v2171 = vand.u32 %v2036, 4294901760
    %2172 = vmatmul.f32.gmra.mxu0 %v2171
    %v2173 = vpop.f32.mrf.mxu0
    %v2174 = vadd.f32 %v2081, %v2173
    %v2175 = vand.u32 %v2039, 4294901760
    %2176 = vmatmul.f32.gmra.mxu0 %v2175
    %v2177 = vpop.f32.mrf.mxu0
    %v2178 = vadd.f32 %v2089, %v2177
    %v2179 = vand.u32 %v2042, 4294901760
    %2180 = vmatmul.f32.gmra.mxu0 %v2179
    %v2181 = vpop.f32.mrf.mxu0
    %v2182 = vadd.f32 %v2097, %v2181
    %v2183 = vand.u32 %v2045, 4294901760
    %2184 = vmatmul.f32.gmra.mxu0 %v2183
    %v2185 = vpop.f32.mrf.mxu0
    %v2186 = vadd.f32 %v2105, %v2185
    %v2187 = vand.u32 %v2048, 4294901760
    %2188 = vmatmul.f32.gmra.mxu0 %v2187
    %v2189 = vpop.f32.mrf.mxu0
    %v2190 = vadd.f32 %v2113, %v2189
    %2191 = vdwg.mxu0
    %2192 = vmatpush.msra.mxu0 0.0
    %2193 = vmatpush.msra.mxu0 0.0
    %2194 = vmatpush.msra.mxu0 0.0
    %2195 = vmatpush.msra.mxu0 0.0
    %2196 = vmatpush.msra.mxu0 0.0
    %2197 = vmatpush.msra.mxu0 0.0
    %2198 = vmatpush.msra.mxu0 0.0
    %2199 = vmatpush.msra.mxu0 0.0
    %v2200 = vand.u32 %v1994, 4294901760
    %v2201 = vsub.f32 %v1994, %v2200
    %2202 = vmatpush.msra.mxu0 %v2201
    %v2203 = vand.u32 %v1993, 4294901760
    %v2204 = vsub.f32 %v1993, %v2203
    %2205 = vmatpush.msra.mxu0 %v2204
    %v2206 = vand.u32 %v1992, 4294901760
    %v2207 = vsub.f32 %v1992, %v2206
    %2208 = vmatpush.msra.mxu0 %v2207
    %v2209 = vand.u32 %v1991, 4294901760
    %v2210 = vsub.f32 %v1991, %v2209
    %2211 = vmatpush.msra.mxu0 %v2210
    %v2212 = vand.u32 %v1990, 4294901760
    %v2213 = vsub.f32 %v1990, %v2212
    %2214 = vmatpush.msra.mxu0 %v2213
    %v2215 = vand.u32 %v1989, 4294901760
    %v2216 = vsub.f32 %v1989, %v2215
    %2217 = vmatpush.msra.mxu0 %v2216
    %v2218 = vand.u32 %v1988, 4294901760
    %v2219 = vsub.f32 %v1988, %v2218
    %2220 = vmatpush.msra.mxu0 %v2219
    %v2221 = vand.u32 %v1987, 4294901760
    %v2222 = vsub.f32 %v1987, %v2221
    %2223 = vmatpush.msra.mxu0 %v2222
    %v2224 = vand.u32 %v2036, 4294901760
    %v2225 = vsub.f32 %v2036, %v2224
    %2226 = vmatmul.f32.gmra.mxu0 %v2225
    %v2227 = vpop.f32.mrf.mxu0
    %v2228 = vadd.f32 %v2174, %v2227
    %v2229 = vand.u32 %v2039, 4294901760
    %v2230 = vsub.f32 %v2039, %v2229
    %2231 = vmatmul.f32.gmra.mxu0 %v2230
    %v2232 = vpop.f32.mrf.mxu0
    %v2233 = vadd.f32 %v2178, %v2232
    %v2234 = vand.u32 %v2042, 4294901760
    %v2235 = vsub.f32 %v2042, %v2234
    %2236 = vmatmul.f32.gmra.mxu0 %v2235
    %v2237 = vpop.f32.mrf.mxu0
    %v2238 = vadd.f32 %v2182, %v2237
    %v2239 = vand.u32 %v2045, 4294901760
    %v2240 = vsub.f32 %v2045, %v2239
    %2241 = vmatmul.f32.gmra.mxu0 %v2240
    %v2242 = vpop.f32.mrf.mxu0
    %v2243 = vadd.f32 %v2186, %v2242
    %v2244 = vand.u32 %v2048, 4294901760
    %v2245 = vsub.f32 %v2048, %v2244
    %2246 = vmatmul.f32.gmra.mxu0 %v2245
    %v2247 = vpop.f32.mrf.mxu0
    %v2248 = vadd.f32 %v2190, %v2247
    %2249 = vdwg.mxu0
    %2250 = vmatpush.msra.mxu0 0.0
    %2251 = vmatpush.msra.mxu0 0.0
    %2252 = vmatpush.msra.mxu0 0.0
    %2253 = vmatpush.msra.mxu0 0.0
    %2254 = vmatpush.msra.mxu0 0.0
    %2255 = vmatpush.msra.mxu0 0.0
    %2256 = vmatpush.msra.mxu0 0.0
    %2257 = vmatpush.msra.mxu0 0.0
    %v2258 = vand.u32 %v1994, 4294901760
    %2259 = vmatpush.msra.mxu0 %v2258
    %v2260 = vand.u32 %v1993, 4294901760
    %2261 = vmatpush.msra.mxu0 %v2260
    %v2262 = vand.u32 %v1992, 4294901760
    %2263 = vmatpush.msra.mxu0 %v2262
    %v2264 = vand.u32 %v1991, 4294901760
    %2265 = vmatpush.msra.mxu0 %v2264
    %v2266 = vand.u32 %v1990, 4294901760
    %2267 = vmatpush.msra.mxu0 %v2266
    %v2268 = vand.u32 %v1989, 4294901760
    %2269 = vmatpush.msra.mxu0 %v2268
    %v2270 = vand.u32 %v1988, 4294901760
    %2271 = vmatpush.msra.mxu0 %v2270
    %v2272 = vand.u32 %v1987, 4294901760
    %2273 = vmatpush.msra.mxu0 %v2272
    %v2274 = vand.u32 %v2036, 4294901760
    %v2275 = vsub.f32 %v2036, %v2274
    %v2276 = vand.u32 %v2275, 4294901760
    %2277 = vmatmul.f32.gmra.mxu0 %v2276
    %v2278 = vpop.f32.mrf.mxu0
    %v2279 = vadd.f32 %v2228, %v2278
    %v2280 = vand.u32 %v2039, 4294901760
    %v2281 = vsub.f32 %v2039, %v2280
    %v2282 = vand.u32 %v2281, 4294901760
    %2283 = vmatmul.f32.gmra.mxu0 %v2282
    %v2284 = vpop.f32.mrf.mxu0
    %v2285 = vadd.f32 %v2233, %v2284
    %v2286 = vand.u32 %v2042, 4294901760
    %v2287 = vsub.f32 %v2042, %v2286
    %v2288 = vand.u32 %v2287, 4294901760
    %2289 = vmatmul.f32.gmra.mxu0 %v2288
    %v2290 = vpop.f32.mrf.mxu0
    %v2291 = vadd.f32 %v2238, %v2290
    %v2292 = vand.u32 %v2045, 4294901760
    %v2293 = vsub.f32 %v2045, %v2292
    %v2294 = vand.u32 %v2293, 4294901760
    %2295 = vmatmul.f32.gmra.mxu0 %v2294
    %v2296 = vpop.f32.mrf.mxu0
    %v2297 = vadd.f32 %v2243, %v2296
    %v2298 = vand.u32 %v2048, 4294901760
    %v2299 = vsub.f32 %v2048, %v2298
    %v2300 = vand.u32 %v2299, 4294901760
    %2301 = vmatmul.f32.gmra.mxu0 %v2300
    %v2302 = vpop.f32.mrf.mxu0
    %v2303 = vadd.f32 %v2248, %v2302
    %2304 = vdwg.mxu0
    %2305 = vmatpush.msra.mxu0 0.0
    %2306 = vmatpush.msra.mxu0 0.0
    %2307 = vmatpush.msra.mxu0 0.0
    %2308 = vmatpush.msra.mxu0 0.0
    %2309 = vmatpush.msra.mxu0 0.0
    %2310 = vmatpush.msra.mxu0 0.0
    %2311 = vmatpush.msra.mxu0 0.0
    %2312 = vmatpush.msra.mxu0 0.0
    %v2313 = vand.u32 %v1994, 4294901760
    %v2314 = vsub.f32 %v1994, %v2313
    %v2315 = vand.u32 %v2314, 4294901760
    %2316 = vmatpush.msra.mxu0 %v2315
    %v2317 = vand.u32 %v1993, 4294901760
    %v2318 = vsub.f32 %v1993, %v2317
    %v2319 = vand.u32 %v2318, 4294901760
    %2320 = vmatpush.msra.mxu0 %v2319
    %v2321 = vand.u32 %v1992, 4294901760
    %v2322 = vsub.f32 %v1992, %v2321
    %v2323 = vand.u32 %v2322, 4294901760
    %2324 = vmatpush.msra.mxu0 %v2323
    %v2325 = vand.u32 %v1991, 4294901760
    %v2326 = vsub.f32 %v1991, %v2325
    %v2327 = vand.u32 %v2326, 4294901760
    %2328 = vmatpush.msra.mxu0 %v2327
    %v2329 = vand.u32 %v1990, 4294901760
    %v2330 = vsub.f32 %v1990, %v2329
    %v2331 = vand.u32 %v2330, 4294901760
    %2332 = vmatpush.msra.mxu0 %v2331
    %v2333 = vand.u32 %v1989, 4294901760
    %v2334 = vsub.f32 %v1989, %v2333
    %v2335 = vand.u32 %v2334, 4294901760
    %2336 = vmatpush.msra.mxu0 %v2335
    %v2337 = vand.u32 %v1988, 4294901760
    %v2338 = vsub.f32 %v1988, %v2337
    %v2339 = vand.u32 %v2338, 4294901760
    %2340 = vmatpush.msra.mxu0 %v2339
    %v2341 = vand.u32 %v1987, 4294901760
    %v2342 = vsub.f32 %v1987, %v2341
    %v2343 = vand.u32 %v2342, 4294901760
    %2344 = vmatpush.msra.mxu0 %v2343
    %v2345 = vand.u32 %v2036, 4294901760
    %2346 = vmatmul.f32.gmra.mxu0 %v2345
    %v2347 = vpop.f32.mrf.mxu0
    %v2348 = vadd.f32 %v2279, %v2347
    %v2349 = vand.u32 %v2039, 4294901760
    %2350 = vmatmul.f32.gmra.mxu0 %v2349
    %v2351 = vpop.f32.mrf.mxu0
    %v2352 = vadd.f32 %v2285, %v2351
    %v2353 = vand.u32 %v2042, 4294901760
    %2354 = vmatmul.f32.gmra.mxu0 %v2353
    %v2355 = vpop.f32.mrf.mxu0
    %v2356 = vadd.f32 %v2291, %v2355
    %v2357 = vand.u32 %v2045, 4294901760
    %2358 = vmatmul.f32.gmra.mxu0 %v2357
    %v2359 = vpop.f32.mrf.mxu0
    %v2360 = vadd.f32 %v2297, %v2359
    %v2361 = vand.u32 %v2048, 4294901760
    %2362 = vmatmul.f32.gmra.mxu0 %v2361
    %v2363 = vpop.f32.mrf.mxu0
    %v2364 = vadd.f32 %v2303, %v2363
    %2365 = vdwg.mxu0
    %2366 = vmatpush.msra.mxu0 0.0
    %2367 = vmatpush.msra.mxu0 0.0
    %2368 = vmatpush.msra.mxu0 0.0
    %2369 = vmatpush.msra.mxu0 0.0
    %2370 = vmatpush.msra.mxu0 0.0
    %2371 = vmatpush.msra.mxu0 0.0
    %2372 = vmatpush.msra.mxu0 0.0
    %2373 = vmatpush.msra.mxu0 0.0
    %v2374 = vand.u32 %v1994, 4294901760
    %2375 = vmatpush.msra.mxu0 %v2374
    %v2376 = vand.u32 %v1993, 4294901760
    %2377 = vmatpush.msra.mxu0 %v2376
    %v2378 = vand.u32 %v1992, 4294901760
    %2379 = vmatpush.msra.mxu0 %v2378
    %v2380 = vand.u32 %v1991, 4294901760
    %2381 = vmatpush.msra.mxu0 %v2380
    %v2382 = vand.u32 %v1990, 4294901760
    %2383 = vmatpush.msra.mxu0 %v2382
    %v2384 = vand.u32 %v1989, 4294901760
    %2385 = vmatpush.msra.mxu0 %v2384
    %v2386 = vand.u32 %v1988, 4294901760
    %2387 = vmatpush.msra.mxu0 %v2386
    %v2388 = vand.u32 %v1987, 4294901760
    %2389 = vmatpush.msra.mxu0 %v2388
    %v2390 = vand.u32 %v2036, 4294901760
    %2391 = vmatmul.f32.gmra.mxu0 %v2390
    %v2392 = vpop.f32.mrf.mxu0
    %v2393 = vadd.f32 %v2348, %v2392
    %v2394 = vand.u32 %v2039, 4294901760
    %2395 = vmatmul.f32.gmra.mxu0 %v2394
    %v2396 = vpop.f32.mrf.mxu0
    %v2397 = vadd.f32 %v2352, %v2396
    %v2398 = vand.u32 %v2042, 4294901760
    %2399 = vmatmul.f32.gmra.mxu0 %v2398
    %v2400 = vpop.f32.mrf.mxu0
    %v2401 = vadd.f32 %v2356, %v2400
    %v2402 = vand.u32 %v2045, 4294901760
    %2403 = vmatmul.f32.gmra.mxu0 %v2402
    %v2404 = vpop.f32.mrf.mxu0
    %v2405 = vadd.f32 %v2360, %v2404
    %v2406 = vand.u32 %v2048, 4294901760
    %2407 = vmatmul.f32.gmra.mxu0 %v2406
    %v2408 = vpop.f32.mrf.mxu0
    %v2409 = vadd.f32 %v2364, %v2408
    %2410 = vdwg.mxu0
    %v2411 = vld [vmem:[%s1 + $0x2] sm:$0x1]
    %v2412 = vperm.slane %v2411, 0
    %vm2413 = vcmp.eq.s32.totalorder %v20, %v2412
    %vm2414 = vcmp.eq.s32.totalorder %v21, %v2412
    %vm2415 = vcmp.eq.s32.totalorder %v22, %v2412
    %vm2416 = vcmp.eq.s32.totalorder %v23, %v2412
    %vm2417 = vcmp.eq.s32.totalorder %v24, %v2412
    %vm2418 = vcmp.eq.s32.totalorder %v25, %v2412
    %vm2419 = vcmp.eq.s32.totalorder %v26, %v2412
    %vm2420 = vcmp.eq.s32.totalorder %v27, %v2412
    %vm2421 = vcmp.eq.s32.totalorder %v471, %v2412
    %vm2422 = vcmp.eq.s32.totalorder %v472, %v2412
    %vm2423 = vcmp.eq.s32.totalorder %v473, %v2412
    %vm2424 = vcmp.eq.s32.totalorder %v474, %v2412
    %v2425 = vsel %vm2413, 1, 0
    %v2426 = vsel %vm2414, 1, 0
    %v2427 = vsel %vm2415, 1, 0
    %v2428 = vsel %vm2416, 1, 0
    %v2429 = vsel %vm2417, 1, 0
    %v2430 = vsel %vm2418, 1, 0
    %v2431 = vsel %vm2419, 1, 0
    %v2432 = vsel %vm2420, 1, 0
    %v2433 = vsel %vm2421, 1, 0
    %v2434 = vsel %vm2422, 1, 0
    %v2435 = vsel %vm2423, 1, 0
    %v2436 = vsel %vm2424, 1, 0
    %v2437 = vcvt.s32.f32 %v2425
    %v2438 = vcvt.s32.f32 %v2426
    %v2439 = vcvt.s32.f32 %v2427
    %v2440 = vcvt.s32.f32 %v2428
    %v2441 = vcvt.s32.f32 %v2429
    %v2442 = vcvt.s32.f32 %v2430
    %v2443 = vcvt.s32.f32 %v2431
    %v2444 = vcvt.s32.f32 %v2432
    %v2445 = vcvt.s32.f32 %v2433
    %v2446 = vcvt.s32.f32 %v2434
    %v2447 = vcvt.s32.f32 %v2435
    %v2448 = vcvt.s32.f32 %v2436
    %v2449 = vld [vmem:[%s3] sm:$0xff]
    %v2450 = vld [vmem:[%s3 + $0x8] sm:$0xff]
    %v2451 = vld [vmem:[%s3 + $0x10] sm:$0xff]
    %v2452 = vld [vmem:[%s3 + $0x18] sm:$0xff]
    %v2453 = vld [vmem:[%s3 + $0x20] sm:$0xff]
    %v2454 = vld [vmem:[%s3 + $0x28] sm:$0xff]
    %v2455 = vld [vmem:[%s3 + $0x30] sm:$0xff]
    %v2456 = vld [vmem:[%s3 + $0x38] sm:$0xff]
    %v2457 = vld [vmem:[%s3 + $0x40] sm:$0xff]
    %v2458 = vld [vmem:[%s3 + $0x48] sm:$0xff]
    %v2459 = vld [vmem:[%s3 + $0x50] sm:$0xff]
    %v2460 = vld [vmem:[%s3 + $0x58] sm:$0xff]
    %2461 = vxpose.xlu0.b32.start [1/16] %v2449, 128
    %2462 = vxpose.xlu0.b32.cont [2/16] %v2450, 128
    %2463 = vxpose.xlu0.b32.cont [3/16] %v2451, 128
    %2464 = vxpose.xlu0.b32.cont [4/16] %v2452, 128
    %2465 = vxpose.xlu0.b32.cont [5/16] %v2453, 128
    %2466 = vxpose.xlu0.b32.cont [6/16] %v2454, 128
    %2467 = vxpose.xlu0.b32.cont [7/16] %v2455, 128
    %2468 = vxpose.xlu0.b32.cont [8/16] %v2456, 128
    %2469 = vxpose.xlu0.b32.cont [9/16] %v2457, 128
    %2470 = vxpose.xlu0.b32.cont [10/16] %v2458, 128
    %2471 = vxpose.xlu0.b32.cont [11/16] %v2459, 128
    %2472 = vxpose.xlu0.b32.cont [12/16] %v2460, 128
    %2473 = vxpose.xlu0.b32.cont [13/16] 0.0, 128
    %2474 = vxpose.xlu0.b32.cont [14/16] 0.0, 128
    %2475 = vxpose.xlu0.b32.cont [15/16] 0.0, 128
    %2476 = vxpose.xlu0.b32.end [16/16] 0.0, 128
    %v2477 = vpop.trf.xlu0
    %v2478 = vpop.trf.xlu0
    %v2479 = vpop.trf.xlu0
    %v2480 = vpop.trf.xlu0
    %v2481 = vpop.trf.xlu0
    %v2482 = vpop.trf.xlu0
    %v2483 = vpop.trf.xlu0
    %v2484 = vpop.trf.xlu0
    %v2485 = vpop.trf.xlu0
    %v2486 = vpop.trf.xlu0
    %v2487 = vpop.trf.xlu0
    %v2488 = vpop.trf.xlu0
    %v2489 = vpop.trf.xlu0
    %v2490 = vpop.trf.xlu0
    %v2491 = vpop.trf.xlu0
    %v2492 = vpop.trf.xlu0
    %v2494 = vsel %vm556, %v2477, 0
    %v2497 = vsel %vm556, %v2478, 0
    %v2500 = vsel %vm556, %v2479, 0
    %v2503 = vsel %vm556, %v2480, 0
    %v2506 = vsel %vm556, %v2481, 0
    %2508 = vmatpush.msra.mxu0 0.0
    %2509 = vmatpush.msra.mxu0 0.0
    %2510 = vmatpush.msra.mxu0 0.0
    %2511 = vmatpush.msra.mxu0 0.0
    %v2512 = vand.u32 %v2448, 4294901760
    %2513 = vmatpush.msra.mxu0 %v2512
    %v2514 = vand.u32 %v2447, 4294901760
    %2515 = vmatpush.msra.mxu0 %v2514
    %v2516 = vand.u32 %v2446, 4294901760
    %2517 = vmatpush.msra.mxu0 %v2516
    %v2518 = vand.u32 %v2445, 4294901760
    %2519 = vmatpush.msra.mxu0 %v2518
    %v2520 = vand.u32 %v2444, 4294901760
    %2521 = vmatpush.msra.mxu0 %v2520
    %v2522 = vand.u32 %v2443, 4294901760
    %2523 = vmatpush.msra.mxu0 %v2522
    %v2524 = vand.u32 %v2442, 4294901760
    %2525 = vmatpush.msra.mxu0 %v2524
    %v2526 = vand.u32 %v2441, 4294901760
    %2527 = vmatpush.msra.mxu0 %v2526
    %v2528 = vand.u32 %v2440, 4294901760
    %2529 = vmatpush.msra.mxu0 %v2528
    %v2530 = vand.u32 %v2439, 4294901760
    %2531 = vmatpush.msra.mxu0 %v2530
    %v2532 = vand.u32 %v2438, 4294901760
    %2533 = vmatpush.msra.mxu0 %v2532
    %v2534 = vand.u32 %v2437, 4294901760
    %2535 = vmatpush.msra.mxu0 %v2534
    %v2536 = vand.u32 %v2494, 4294901760
    %v2537 = vsub.f32 %v2494, %v2536
    %v2538 = vand.u32 %v2537, 4294901760
    %v2539 = vsub.f32 %v2537, %v2538
    %v2540 = vand.u32 %v2539, 4294901760
    %2541 = vmatmul.f32.gmra.mxu0 %v2540
    %v2542 = vpop.f32.mrf.mxu0
    %v2543 = vadd.f32 0.0, %v2542
    %v2544 = vand.u32 %v2497, 4294901760
    %v2545 = vsub.f32 %v2497, %v2544
    %v2546 = vand.u32 %v2545, 4294901760
    %v2547 = vsub.f32 %v2545, %v2546
    %v2548 = vand.u32 %v2547, 4294901760
    %2549 = vmatmul.f32.gmra.mxu0 %v2548
    %v2550 = vpop.f32.mrf.mxu0
    %v2551 = vadd.f32 0.0, %v2550
    %v2552 = vand.u32 %v2500, 4294901760
    %v2553 = vsub.f32 %v2500, %v2552
    %v2554 = vand.u32 %v2553, 4294901760
    %v2555 = vsub.f32 %v2553, %v2554
    %v2556 = vand.u32 %v2555, 4294901760
    %2557 = vmatmul.f32.gmra.mxu0 %v2556
    %v2558 = vpop.f32.mrf.mxu0
    %v2559 = vadd.f32 0.0, %v2558
    %v2560 = vand.u32 %v2503, 4294901760
    %v2561 = vsub.f32 %v2503, %v2560
    %v2562 = vand.u32 %v2561, 4294901760
    %v2563 = vsub.f32 %v2561, %v2562
    %v2564 = vand.u32 %v2563, 4294901760
    %2565 = vmatmul.f32.gmra.mxu0 %v2564
    %v2566 = vpop.f32.mrf.mxu0
    %v2567 = vadd.f32 0.0, %v2566
    %v2568 = vand.u32 %v2506, 4294901760
    %v2569 = vsub.f32 %v2506, %v2568
    %v2570 = vand.u32 %v2569, 4294901760
    %v2571 = vsub.f32 %v2569, %v2570
    %v2572 = vand.u32 %v2571, 4294901760
    %2573 = vmatmul.f32.gmra.mxu0 %v2572
    %v2574 = vpop.f32.mrf.mxu0
    %v2575 = vadd.f32 0.0, %v2574
    %2576 = vdwg.mxu0
    %2577 = vmatpush.msra.mxu0 0.0
    %2578 = vmatpush.msra.mxu0 0.0
    %2579 = vmatpush.msra.mxu0 0.0
    %2580 = vmatpush.msra.mxu0 0.0
    %v2581 = vand.u32 %v2448, 4294901760
    %v2582 = vsub.f32 %v2448, %v2581
    %v2583 = vand.u32 %v2582, 4294901760
    %v2584 = vsub.f32 %v2582, %v2583
    %v2585 = vand.u32 %v2584, 4294901760
    %2586 = vmatpush.msra.mxu0 %v2585
    %v2587 = vand.u32 %v2447, 4294901760
    %v2588 = vsub.f32 %v2447, %v2587
    %v2589 = vand.u32 %v2588, 4294901760
    %v2590 = vsub.f32 %v2588, %v2589
    %v2591 = vand.u32 %v2590, 4294901760
    %2592 = vmatpush.msra.mxu0 %v2591
    %v2593 = vand.u32 %v2446, 4294901760
    %v2594 = vsub.f32 %v2446, %v2593
    %v2595 = vand.u32 %v2594, 4294901760
    %v2596 = vsub.f32 %v2594, %v2595
    %v2597 = vand.u32 %v2596, 4294901760
    %2598 = vmatpush.msra.mxu0 %v2597
    %v2599 = vand.u32 %v2445, 4294901760
    %v2600 = vsub.f32 %v2445, %v2599
    %v2601 = vand.u32 %v2600, 4294901760
    %v2602 = vsub.f32 %v2600, %v2601
    %v2603 = vand.u32 %v2602, 4294901760
    %2604 = vmatpush.msra.mxu0 %v2603
    %v2605 = vand.u32 %v2444, 4294901760
    %v2606 = vsub.f32 %v2444, %v2605
    %v2607 = vand.u32 %v2606, 4294901760
    %v2608 = vsub.f32 %v2606, %v2607
    %v2609 = vand.u32 %v2608, 4294901760
    %2610 = vmatpush.msra.mxu0 %v2609
    %v2611 = vand.u32 %v2443, 4294901760
    %v2612 = vsub.f32 %v2443, %v2611
    %v2613 = vand.u32 %v2612, 4294901760
    %v2614 = vsub.f32 %v2612, %v2613
    %v2615 = vand.u32 %v2614, 4294901760
    %2616 = vmatpush.msra.mxu0 %v2615
    %v2617 = vand.u32 %v2442, 4294901760
    %v2618 = vsub.f32 %v2442, %v2617
    %v2619 = vand.u32 %v2618, 4294901760
    %v2620 = vsub.f32 %v2618, %v2619
    %v2621 = vand.u32 %v2620, 4294901760
    %2622 = vmatpush.msra.mxu0 %v2621
    %v2623 = vand.u32 %v2441, 4294901760
    %v2624 = vsub.f32 %v2441, %v2623
    %v2625 = vand.u32 %v2624, 4294901760
    %v2626 = vsub.f32 %v2624, %v2625
    %v2627 = vand.u32 %v2626, 4294901760
    %2628 = vmatpush.msra.mxu0 %v2627
    %v2629 = vand.u32 %v2440, 4294901760
    %v2630 = vsub.f32 %v2440, %v2629
    %v2631 = vand.u32 %v2630, 4294901760
    %v2632 = vsub.f32 %v2630, %v2631
    %v2633 = vand.u32 %v2632, 4294901760
    %2634 = vmatpush.msra.mxu0 %v2633
    %v2635 = vand.u32 %v2439, 4294901760
    %v2636 = vsub.f32 %v2439, %v2635
    %v2637 = vand.u32 %v2636, 4294901760
    %v2638 = vsub.f32 %v2636, %v2637
    %v2639 = vand.u32 %v2638, 4294901760
    %2640 = vmatpush.msra.mxu0 %v2639
    %v2641 = vand.u32 %v2438, 4294901760
    %v2642 = vsub.f32 %v2438, %v2641
    %v2643 = vand.u32 %v2642, 4294901760
    %v2644 = vsub.f32 %v2642, %v2643
    %v2645 = vand.u32 %v2644, 4294901760
    %2646 = vmatpush.msra.mxu0 %v2645
    %v2647 = vand.u32 %v2437, 4294901760
    %v2648 = vsub.f32 %v2437, %v2647
    %v2649 = vand.u32 %v2648, 4294901760
    %v2650 = vsub.f32 %v2648, %v2649
    %v2651 = vand.u32 %v2650, 4294901760
    %2652 = vmatpush.msra.mxu0 %v2651
    %v2653 = vand.u32 %v2494, 4294901760
    %2654 = vmatmul.f32.gmra.mxu0 %v2653
    %v2655 = vpop.f32.mrf.mxu0
    %v2656 = vadd.f32 %v2543, %v2655
    %v2657 = vand.u32 %v2497, 4294901760
    %2658 = vmatmul.f32.gmra.mxu0 %v2657
    %v2659 = vpop.f32.mrf.mxu0
    %v2660 = vadd.f32 %v2551, %v2659
    %v2661 = vand.u32 %v2500, 4294901760
    %2662 = vmatmul.f32.gmra.mxu0 %v2661
    %v2663 = vpop.f32.mrf.mxu0
    %v2664 = vadd.f32 %v2559, %v2663
    %v2665 = vand.u32 %v2503, 4294901760
    %2666 = vmatmul.f32.gmra.mxu0 %v2665
    %v2667 = vpop.f32.mrf.mxu0
    %v2668 = vadd.f32 %v2567, %v2667
    %v2669 = vand.u32 %v2506, 4294901760
    %2670 = vmatmul.f32.gmra.mxu0 %v2669
    %v2671 = vpop.f32.mrf.mxu0
    %v2672 = vadd.f32 %v2575, %v2671
    %2673 = vdwg.mxu0
    %2674 = vmatpush.msra.mxu0 0.0
    %2675 = vmatpush.msra.mxu0 0.0
    %2676 = vmatpush.msra.mxu0 0.0
    %2677 = vmatpush.msra.mxu0 0.0
    %v2678 = vand.u32 %v2448, 4294901760
    %v2679 = vsub.f32 %v2448, %v2678
    %2680 = vmatpush.msra.mxu0 %v2679
    %v2681 = vand.u32 %v2447, 4294901760
    %v2682 = vsub.f32 %v2447, %v2681
    %2683 = vmatpush.msra.mxu0 %v2682
    %v2684 = vand.u32 %v2446, 4294901760
    %v2685 = vsub.f32 %v2446, %v2684
    %2686 = vmatpush.msra.mxu0 %v2685
    %v2687 = vand.u32 %v2445, 4294901760
    %v2688 = vsub.f32 %v2445, %v2687
    %2689 = vmatpush.msra.mxu0 %v2688
    %v2690 = vand.u32 %v2444, 4294901760
    %v2691 = vsub.f32 %v2444, %v2690
    %2692 = vmatpush.msra.mxu0 %v2691
    %v2693 = vand.u32 %v2443, 4294901760
    %v2694 = vsub.f32 %v2443, %v2693
    %2695 = vmatpush.msra.mxu0 %v2694
    %v2696 = vand.u32 %v2442, 4294901760
    %v2697 = vsub.f32 %v2442, %v2696
    %2698 = vmatpush.msra.mxu0 %v2697
    %v2699 = vand.u32 %v2441, 4294901760
    %v2700 = vsub.f32 %v2441, %v2699
    %2701 = vmatpush.msra.mxu0 %v2700
    %v2702 = vand.u32 %v2440, 4294901760
    %v2703 = vsub.f32 %v2440, %v2702
    %2704 = vmatpush.msra.mxu0 %v2703
    %v2705 = vand.u32 %v2439, 4294901760
    %v2706 = vsub.f32 %v2439, %v2705
    %2707 = vmatpush.msra.mxu0 %v2706
    %v2708 = vand.u32 %v2438, 4294901760
    %v2709 = vsub.f32 %v2438, %v2708
    %2710 = vmatpush.msra.mxu0 %v2709
    %v2711 = vand.u32 %v2437, 4294901760
    %v2712 = vsub.f32 %v2437, %v2711
    %2713 = vmatpush.msra.mxu0 %v2712
    %v2714 = vand.u32 %v2494, 4294901760
    %v2715 = vsub.f32 %v2494, %v2714
    %2716 = vmatmul.f32.gmra.mxu0 %v2715
    %v2717 = vpop.f32.mrf.mxu0
    %v2718 = vadd.f32 %v2656, %v2717
    %v2719 = vand.u32 %v2497, 4294901760
    %v2720 = vsub.f32 %v2497, %v2719
    %2721 = vmatmul.f32.gmra.mxu0 %v2720
    %v2722 = vpop.f32.mrf.mxu0
    %v2723 = vadd.f32 %v2660, %v2722
    %v2724 = vand.u32 %v2500, 4294901760
    %v2725 = vsub.f32 %v2500, %v2724
    %2726 = vmatmul.f32.gmra.mxu0 %v2725
    %v2727 = vpop.f32.mrf.mxu0
    %v2728 = vadd.f32 %v2664, %v2727
    %v2729 = vand.u32 %v2503, 4294901760
    %v2730 = vsub.f32 %v2503, %v2729
    %2731 = vmatmul.f32.gmra.mxu0 %v2730
    %v2732 = vpop.f32.mrf.mxu0
    %v2733 = vadd.f32 %v2668, %v2732
    %v2734 = vand.u32 %v2506, 4294901760
    %v2735 = vsub.f32 %v2506, %v2734
    %2736 = vmatmul.f32.gmra.mxu0 %v2735
    %v2737 = vpop.f32.mrf.mxu0
    %v2738 = vadd.f32 %v2672, %v2737
    %2739 = vdwg.mxu0
    %2740 = vmatpush.msra.mxu0 0.0
    %2741 = vmatpush.msra.mxu0 0.0
    %2742 = vmatpush.msra.mxu0 0.0
    %2743 = vmatpush.msra.mxu0 0.0
    %v2744 = vand.u32 %v2448, 4294901760
    %2745 = vmatpush.msra.mxu0 %v2744
    %v2746 = vand.u32 %v2447, 4294901760
    %2747 = vmatpush.msra.mxu0 %v2746
    %v2748 = vand.u32 %v2446, 4294901760
    %2749 = vmatpush.msra.mxu0 %v2748
    %v2750 = vand.u32 %v2445, 4294901760
    %2751 = vmatpush.msra.mxu0 %v2750
    %v2752 = vand.u32 %v2444, 4294901760
    %2753 = vmatpush.msra.mxu0 %v2752
    %v2754 = vand.u32 %v2443, 4294901760
    %2755 = vmatpush.msra.mxu0 %v2754
    %v2756 = vand.u32 %v2442, 4294901760
    %2757 = vmatpush.msra.mxu0 %v2756
    %v2758 = vand.u32 %v2441, 4294901760
    %2759 = vmatpush.msra.mxu0 %v2758
    %v2760 = vand.u32 %v2440, 4294901760
    %2761 = vmatpush.msra.mxu0 %v2760
    %v2762 = vand.u32 %v2439, 4294901760
    %2763 = vmatpush.msra.mxu0 %v2762
    %v2764 = vand.u32 %v2438, 4294901760
    %2765 = vmatpush.msra.mxu0 %v2764
    %v2766 = vand.u32 %v2437, 4294901760
    %2767 = vmatpush.msra.mxu0 %v2766
    %v2768 = vand.u32 %v2494, 4294901760
    %v2769 = vsub.f32 %v2494, %v2768
    %v2770 = vand.u32 %v2769, 4294901760
    %2771 = vmatmul.f32.gmra.mxu0 %v2770
    %v2772 = vpop.f32.mrf.mxu0
    %v2773 = vadd.f32 %v2718, %v2772
    %v2774 = vand.u32 %v2497, 4294901760
    %v2775 = vsub.f32 %v2497, %v2774
    %v2776 = vand.u32 %v2775, 4294901760
    %2777 = vmatmul.f32.gmra.mxu0 %v2776
    %v2778 = vpop.f32.mrf.mxu0
    %v2779 = vadd.f32 %v2723, %v2778
    %v2780 = vand.u32 %v2500, 4294901760
    %v2781 = vsub.f32 %v2500, %v2780
    %v2782 = vand.u32 %v2781, 4294901760
    %2783 = vmatmul.f32.gmra.mxu0 %v2782
    %v2784 = vpop.f32.mrf.mxu0
    %v2785 = vadd.f32 %v2728, %v2784
    %v2786 = vand.u32 %v2503, 4294901760
    %v2787 = vsub.f32 %v2503, %v2786
    %v2788 = vand.u32 %v2787, 4294901760
    %2789 = vmatmul.f32.gmra.mxu0 %v2788
    %v2790 = vpop.f32.mrf.mxu0
    %v2791 = vadd.f32 %v2733, %v2790
    %v2792 = vand.u32 %v2506, 4294901760
    %v2793 = vsub.f32 %v2506, %v2792
    %v2794 = vand.u32 %v2793, 4294901760
    %2795 = vmatmul.f32.gmra.mxu0 %v2794
    %v2796 = vpop.f32.mrf.mxu0
    %v2797 = vadd.f32 %v2738, %v2796
    %2798 = vdwg.mxu0
    %2799 = vmatpush.msra.mxu0 0.0
    %2800 = vmatpush.msra.mxu0 0.0
    %2801 = vmatpush.msra.mxu0 0.0
    %2802 = vmatpush.msra.mxu0 0.0
    %v2803 = vand.u32 %v2448, 4294901760
    %v2804 = vsub.f32 %v2448, %v2803
    %v2805 = vand.u32 %v2804, 4294901760
    %2806 = vmatpush.msra.mxu0 %v2805
    %v2807 = vand.u32 %v2447, 4294901760
    %v2808 = vsub.f32 %v2447, %v2807
    %v2809 = vand.u32 %v2808, 4294901760
    %2810 = vmatpush.msra.mxu0 %v2809
    %v2811 = vand.u32 %v2446, 4294901760
    %v2812 = vsub.f32 %v2446, %v2811
    %v2813 = vand.u32 %v2812, 4294901760
    %2814 = vmatpush.msra.mxu0 %v2813
    %v2815 = vand.u32 %v2445, 4294901760
    %v2816 = vsub.f32 %v2445, %v2815
    %v2817 = vand.u32 %v2816, 4294901760
    %2818 = vmatpush.msra.mxu0 %v2817
    %v2819 = vand.u32 %v2444, 4294901760
    %v2820 = vsub.f32 %v2444, %v2819
    %v2821 = vand.u32 %v2820, 4294901760
    %2822 = vmatpush.msra.mxu0 %v2821
    %v2823 = vand.u32 %v2443, 4294901760
    %v2824 = vsub.f32 %v2443, %v2823
    %v2825 = vand.u32 %v2824, 4294901760
    %2826 = vmatpush.msra.mxu0 %v2825
    %v2827 = vand.u32 %v2442, 4294901760
    %v2828 = vsub.f32 %v2442, %v2827
    %v2829 = vand.u32 %v2828, 4294901760
    %2830 = vmatpush.msra.mxu0 %v2829
    %v2831 = vand.u32 %v2441, 4294901760
    %v2832 = vsub.f32 %v2441, %v2831
    %v2833 = vand.u32 %v2832, 4294901760
    %2834 = vmatpush.msra.mxu0 %v2833
    %v2835 = vand.u32 %v2440, 4294901760
    %v2836 = vsub.f32 %v2440, %v2835
    %v2837 = vand.u32 %v2836, 4294901760
    %2838 = vmatpush.msra.mxu0 %v2837
    %v2839 = vand.u32 %v2439, 4294901760
    %v2840 = vsub.f32 %v2439, %v2839
    %v2841 = vand.u32 %v2840, 4294901760
    %2842 = vmatpush.msra.mxu0 %v2841
    %v2843 = vand.u32 %v2438, 4294901760
    %v2844 = vsub.f32 %v2438, %v2843
    %v2845 = vand.u32 %v2844, 4294901760
    %2846 = vmatpush.msra.mxu0 %v2845
    %v2847 = vand.u32 %v2437, 4294901760
    %v2848 = vsub.f32 %v2437, %v2847
    %v2849 = vand.u32 %v2848, 4294901760
    %2850 = vmatpush.msra.mxu0 %v2849
    %v2851 = vand.u32 %v2494, 4294901760
    %2852 = vmatmul.f32.gmra.mxu0 %v2851
    %v2853 = vpop.f32.mrf.mxu0
    %v2854 = vadd.f32 %v2773, %v2853
    %v2855 = vand.u32 %v2497, 4294901760
    %2856 = vmatmul.f32.gmra.mxu0 %v2855
    %v2857 = vpop.f32.mrf.mxu0
    %v2858 = vadd.f32 %v2779, %v2857
    %v2859 = vand.u32 %v2500, 4294901760
    %2860 = vmatmul.f32.gmra.mxu0 %v2859
    %v2861 = vpop.f32.mrf.mxu0
    %v2862 = vadd.f32 %v2785, %v2861
    %v2863 = vand.u32 %v2503, 4294901760
    %2864 = vmatmul.f32.gmra.mxu0 %v2863
    %v2865 = vpop.f32.mrf.mxu0
    %v2866 = vadd.f32 %v2791, %v2865
    %v2867 = vand.u32 %v2506, 4294901760
    %2868 = vmatmul.f32.gmra.mxu0 %v2867
    %v2869 = vpop.f32.mrf.mxu0
    %v2870 = vadd.f32 %v2797, %v2869
    %2871 = vdwg.mxu0
    %2872 = vmatpush.msra.mxu0 0.0
    %2873 = vmatpush.msra.mxu0 0.0
    %2874 = vmatpush.msra.mxu0 0.0
    %2875 = vmatpush.msra.mxu0 0.0
    %v2876 = vand.u32 %v2448, 4294901760
    %2877 = vmatpush.msra.mxu0 %v2876
    %v2878 = vand.u32 %v2447, 4294901760
    %2879 = vmatpush.msra.mxu0 %v2878
    %v2880 = vand.u32 %v2446, 4294901760
    %2881 = vmatpush.msra.mxu0 %v2880
    %v2882 = vand.u32 %v2445, 4294901760
    %2883 = vmatpush.msra.mxu0 %v2882
    %v2884 = vand.u32 %v2444, 4294901760
    %2885 = vmatpush.msra.mxu0 %v2884
    %v2886 = vand.u32 %v2443, 4294901760
    %2887 = vmatpush.msra.mxu0 %v2886
    %v2888 = vand.u32 %v2442, 4294901760
    %2889 = vmatpush.msra.mxu0 %v2888
    %v2890 = vand.u32 %v2441, 4294901760
    %2891 = vmatpush.msra.mxu0 %v2890
    %v2892 = vand.u32 %v2440, 4294901760
    %2893 = vmatpush.msra.mxu0 %v2892
    %v2894 = vand.u32 %v2439, 4294901760
    %2895 = vmatpush.msra.mxu0 %v2894
    %v2896 = vand.u32 %v2438, 4294901760
    %2897 = vmatpush.msra.mxu0 %v2896
    %v2898 = vand.u32 %v2437, 4294901760
    %2899 = vmatpush.msra.mxu0 %v2898
    %v2900 = vand.u32 %v2494, 4294901760
    %2901 = vmatmul.f32.gmra.mxu0 %v2900
    %v2902 = vpop.f32.mrf.mxu0
    %v2903 = vadd.f32 %v2854, %v2902
    %v2904 = vand.u32 %v2497, 4294901760
    %2905 = vmatmul.f32.gmra.mxu0 %v2904
    %v2906 = vpop.f32.mrf.mxu0
    %v2907 = vadd.f32 %v2858, %v2906
    %v2908 = vand.u32 %v2500, 4294901760
    %2909 = vmatmul.f32.gmra.mxu0 %v2908
    %v2910 = vpop.f32.mrf.mxu0
    %v2911 = vadd.f32 %v2862, %v2910
    %v2912 = vand.u32 %v2503, 4294901760
    %2913 = vmatmul.f32.gmra.mxu0 %v2912
    %v2914 = vpop.f32.mrf.mxu0
    %v2915 = vadd.f32 %v2866, %v2914
    %v2916 = vand.u32 %v2506, 4294901760
    %2917 = vmatmul.f32.gmra.mxu0 %v2916
    %v2918 = vpop.f32.mrf.mxu0
    %v2919 = vadd.f32 %v2870, %v2918
    %2920 = vdwg.mxu0
    %v2921 = vmul.f32 %v2393, %v2903
    %v2922 = vmul.f32 %v2397, %v2907
    %v2923 = vmul.f32 %v2401, %v2911
    %v2924 = vmul.f32 %v2405, %v2915
    %v2925 = vmul.f32 %v2409, %v2919
    %v2926 = vadd.f32 %v2921, %v2922
    %v2927 = vadd.f32 %v2926, %v2923
    %v2928 = vadd.f32 %v2927, %v2924
    %v2929 = vadd.f32 %v2928, %v2925
    %v2930 = vrot.slane %v2929, 4
    %v2931 = vadd.f32 %v2929, %v2930
    %v2932 = vrot.slane %v2931, 2
    %v2933 = vadd.f32 %v2931, %v2932
    %v2934 = vrot.slane %v2933, 1
    %v2935 = vadd.f32 %v2933, %v2934
    %2936 = vst [vmem:[#allocation2 + $0x2] sm:$0x1] %v2935
    %v2937 = vld [vmem:[%s0 + $0x3] sm:$0x1]
    %v2938 = vperm.slane %v2937, 0
    %vm2939 = vcmp.eq.s32.totalorder %v20, %v2938
    %vm2940 = vcmp.eq.s32.totalorder %v21, %v2938
    %vm2941 = vcmp.eq.s32.totalorder %v22, %v2938
    %vm2942 = vcmp.eq.s32.totalorder %v23, %v2938
    %vm2943 = vcmp.eq.s32.totalorder %v24, %v2938
    %vm2944 = vcmp.eq.s32.totalorder %v25, %v2938
    %vm2945 = vcmp.eq.s32.totalorder %v26, %v2938
    %vm2946 = vcmp.eq.s32.totalorder %v27, %v2938
    %v2947 = vsel %vm2939, 1, 0
    %v2948 = vsel %vm2940, 1, 0
    %v2949 = vsel %vm2941, 1, 0
    %v2950 = vsel %vm2942, 1, 0
    %v2951 = vsel %vm2943, 1, 0
    %v2952 = vsel %vm2944, 1, 0
    %v2953 = vsel %vm2945, 1, 0
    %v2954 = vsel %vm2946, 1, 0
    %v2955 = vcvt.s32.f32 %v2947
    %v2956 = vcvt.s32.f32 %v2948
    %v2957 = vcvt.s32.f32 %v2949
    %v2958 = vcvt.s32.f32 %v2950
    %v2959 = vcvt.s32.f32 %v2951
    %v2960 = vcvt.s32.f32 %v2952
    %v2961 = vcvt.s32.f32 %v2953
    %v2962 = vcvt.s32.f32 %v2954
    %v2963 = vld [vmem:[%s2] sm:$0xff]
    %v2964 = vld [vmem:[%s2 + $0x8] sm:$0xff]
    %v2965 = vld [vmem:[%s2 + $0x10] sm:$0xff]
    %v2966 = vld [vmem:[%s2 + $0x18] sm:$0xff]
    %v2967 = vld [vmem:[%s2 + $0x20] sm:$0xff]
    %v2968 = vld [vmem:[%s2 + $0x28] sm:$0xff]
    %v2969 = vld [vmem:[%s2 + $0x30] sm:$0xff]
    %v2970 = vld [vmem:[%s2 + $0x38] sm:$0xff]
    %2971 = vxpose.xlu0.b32.start [1/16] %v2963, 128
    %2972 = vxpose.xlu0.b32.cont [2/16] %v2964, 128
    %2973 = vxpose.xlu0.b32.cont [3/16] %v2965, 128
    %2974 = vxpose.xlu0.b32.cont [4/16] %v2966, 128
    %2975 = vxpose.xlu0.b32.cont [5/16] %v2967, 128
    %2976 = vxpose.xlu0.b32.cont [6/16] %v2968, 128
    %2977 = vxpose.xlu0.b32.cont [7/16] %v2969, 128
    %2978 = vxpose.xlu0.b32.cont [8/16] %v2970, 128
    %2979 = vxpose.xlu0.b32.cont [9/16] 0.0, 128
    %2980 = vxpose.xlu0.b32.cont [10/16] 0.0, 128
    %2981 = vxpose.xlu0.b32.cont [11/16] 0.0, 128
    %2982 = vxpose.xlu0.b32.cont [12/16] 0.0, 128
    %2983 = vxpose.xlu0.b32.cont [13/16] 0.0, 128
    %2984 = vxpose.xlu0.b32.cont [14/16] 0.0, 128
    %2985 = vxpose.xlu0.b32.cont [15/16] 0.0, 128
    %2986 = vxpose.xlu0.b32.end [16/16] 0.0, 128
    %v2987 = vpop.trf.xlu0
    %v2988 = vpop.trf.xlu0
    %v2989 = vpop.trf.xlu0
    %v2990 = vpop.trf.xlu0
    %v2991 = vpop.trf.xlu0
    %v2992 = vpop.trf.xlu0
    %v2993 = vpop.trf.xlu0
    %v2994 = vpop.trf.xlu0
    %v2995 = vpop.trf.xlu0
    %v2996 = vpop.trf.xlu0
    %v2997 = vpop.trf.xlu0
    %v2998 = vpop.trf.xlu0
    %v2999 = vpop.trf.xlu0
    %v3000 = vpop.trf.xlu0
    %v3001 = vpop.trf.xlu0
    %v3002 = vpop.trf.xlu0
    %v3004 = vsel %vm93, %v2987, 0
    %v3007 = vsel %vm93, %v2988, 0
    %v3010 = vsel %vm93, %v2989, 0
    %v3013 = vsel %vm93, %v2990, 0
    %v3016 = vsel %vm93, %v2991, 0
    %3018 = vmatpush.msra.mxu0 0.0
    %3019 = vmatpush.msra.mxu0 0.0
    %3020 = vmatpush.msra.mxu0 0.0
    %3021 = vmatpush.msra.mxu0 0.0
    %3022 = vmatpush.msra.mxu0 0.0
    %3023 = vmatpush.msra.mxu0 0.0
    %3024 = vmatpush.msra.mxu0 0.0
    %3025 = vmatpush.msra.mxu0 0.0
    %v3026 = vand.u32 %v2962, 4294901760
    %3027 = vmatpush.msra.mxu0 %v3026
    %v3028 = vand.u32 %v2961, 4294901760
    %3029 = vmatpush.msra.mxu0 %v3028
    %v3030 = vand.u32 %v2960, 4294901760
    %3031 = vmatpush.msra.mxu0 %v3030
    %v3032 = vand.u32 %v2959, 4294901760
    %3033 = vmatpush.msra.mxu0 %v3032
    %v3034 = vand.u32 %v2958, 4294901760
    %3035 = vmatpush.msra.mxu0 %v3034
    %v3036 = vand.u32 %v2957, 4294901760
    %3037 = vmatpush.msra.mxu0 %v3036
    %v3038 = vand.u32 %v2956, 4294901760
    %3039 = vmatpush.msra.mxu0 %v3038
    %v3040 = vand.u32 %v2955, 4294901760
    %3041 = vmatpush.msra.mxu0 %v3040
    %v3042 = vand.u32 %v3004, 4294901760
    %v3043 = vsub.f32 %v3004, %v3042
    %v3044 = vand.u32 %v3043, 4294901760
    %v3045 = vsub.f32 %v3043, %v3044
    %v3046 = vand.u32 %v3045, 4294901760
    %3047 = vmatmul.f32.gmra.mxu0 %v3046
    %v3048 = vpop.f32.mrf.mxu0
    %v3049 = vadd.f32 0.0, %v3048
    %v3050 = vand.u32 %v3007, 4294901760
    %v3051 = vsub.f32 %v3007, %v3050
    %v3052 = vand.u32 %v3051, 4294901760
    %v3053 = vsub.f32 %v3051, %v3052
    %v3054 = vand.u32 %v3053, 4294901760
    %3055 = vmatmul.f32.gmra.mxu0 %v3054
    %v3056 = vpop.f32.mrf.mxu0
    %v3057 = vadd.f32 0.0, %v3056
    %v3058 = vand.u32 %v3010, 4294901760
    %v3059 = vsub.f32 %v3010, %v3058
    %v3060 = vand.u32 %v3059, 4294901760
    %v3061 = vsub.f32 %v3059, %v3060
    %v3062 = vand.u32 %v3061, 4294901760
    %3063 = vmatmul.f32.gmra.mxu0 %v3062
    %v3064 = vpop.f32.mrf.mxu0
    %v3065 = vadd.f32 0.0, %v3064
    %v3066 = vand.u32 %v3013, 4294901760
    %v3067 = vsub.f32 %v3013, %v3066
    %v3068 = vand.u32 %v3067, 4294901760
    %v3069 = vsub.f32 %v3067, %v3068
    %v3070 = vand.u32 %v3069, 4294901760
    %3071 = vmatmul.f32.gmra.mxu0 %v3070
    %v3072 = vpop.f32.mrf.mxu0
    %v3073 = vadd.f32 0.0, %v3072
    %v3074 = vand.u32 %v3016, 4294901760
    %v3075 = vsub.f32 %v3016, %v3074
    %v3076 = vand.u32 %v3075, 4294901760
    %v3077 = vsub.f32 %v3075, %v3076
    %v3078 = vand.u32 %v3077, 4294901760
    %3079 = vmatmul.f32.gmra.mxu0 %v3078
    %v3080 = vpop.f32.mrf.mxu0
    %v3081 = vadd.f32 0.0, %v3080
    %3082 = vdwg.mxu0
    %3083 = vmatpush.msra.mxu0 0.0
    %3084 = vmatpush.msra.mxu0 0.0
    %3085 = vmatpush.msra.mxu0 0.0
    %3086 = vmatpush.msra.mxu0 0.0
    %3087 = vmatpush.msra.mxu0 0.0
    %3088 = vmatpush.msra.mxu0 0.0
    %3089 = vmatpush.msra.mxu0 0.0
    %3090 = vmatpush.msra.mxu0 0.0
    %v3091 = vand.u32 %v2962, 4294901760
    %v3092 = vsub.f32 %v2962, %v3091
    %v3093 = vand.u32 %v3092, 4294901760
    %v3094 = vsub.f32 %v3092, %v3093
    %v3095 = vand.u32 %v3094, 4294901760
    %3096 = vmatpush.msra.mxu0 %v3095
    %v3097 = vand.u32 %v2961, 4294901760
    %v3098 = vsub.f32 %v2961, %v3097
    %v3099 = vand.u32 %v3098, 4294901760
    %v3100 = vsub.f32 %v3098, %v3099
    %v3101 = vand.u32 %v3100, 4294901760
    %3102 = vmatpush.msra.mxu0 %v3101
    %v3103 = vand.u32 %v2960, 4294901760
    %v3104 = vsub.f32 %v2960, %v3103
    %v3105 = vand.u32 %v3104, 4294901760
    %v3106 = vsub.f32 %v3104, %v3105
    %v3107 = vand.u32 %v3106, 4294901760
    %3108 = vmatpush.msra.mxu0 %v3107
    %v3109 = vand.u32 %v2959, 4294901760
    %v3110 = vsub.f32 %v2959, %v3109
    %v3111 = vand.u32 %v3110, 4294901760
    %v3112 = vsub.f32 %v3110, %v3111
    %v3113 = vand.u32 %v3112, 4294901760
    %3114 = vmatpush.msra.mxu0 %v3113
    %v3115 = vand.u32 %v2958, 4294901760
    %v3116 = vsub.f32 %v2958, %v3115
    %v3117 = vand.u32 %v3116, 4294901760
    %v3118 = vsub.f32 %v3116, %v3117
    %v3119 = vand.u32 %v3118, 4294901760
    %3120 = vmatpush.msra.mxu0 %v3119
    %v3121 = vand.u32 %v2957, 4294901760
    %v3122 = vsub.f32 %v2957, %v3121
    %v3123 = vand.u32 %v3122, 4294901760
    %v3124 = vsub.f32 %v3122, %v3123
    %v3125 = vand.u32 %v3124, 4294901760
    %3126 = vmatpush.msra.mxu0 %v3125
    %v3127 = vand.u32 %v2956, 4294901760
    %v3128 = vsub.f32 %v2956, %v3127
    %v3129 = vand.u32 %v3128, 4294901760
    %v3130 = vsub.f32 %v3128, %v3129
    %v3131 = vand.u32 %v3130, 4294901760
    %3132 = vmatpush.msra.mxu0 %v3131
    %v3133 = vand.u32 %v2955, 4294901760
    %v3134 = vsub.f32 %v2955, %v3133
    %v3135 = vand.u32 %v3134, 4294901760
    %v3136 = vsub.f32 %v3134, %v3135
    %v3137 = vand.u32 %v3136, 4294901760
    %3138 = vmatpush.msra.mxu0 %v3137
    %v3139 = vand.u32 %v3004, 4294901760
    %3140 = vmatmul.f32.gmra.mxu0 %v3139
    %v3141 = vpop.f32.mrf.mxu0
    %v3142 = vadd.f32 %v3049, %v3141
    %v3143 = vand.u32 %v3007, 4294901760
    %3144 = vmatmul.f32.gmra.mxu0 %v3143
    %v3145 = vpop.f32.mrf.mxu0
    %v3146 = vadd.f32 %v3057, %v3145
    %v3147 = vand.u32 %v3010, 4294901760
    %3148 = vmatmul.f32.gmra.mxu0 %v3147
    %v3149 = vpop.f32.mrf.mxu0
    %v3150 = vadd.f32 %v3065, %v3149
    %v3151 = vand.u32 %v3013, 4294901760
    %3152 = vmatmul.f32.gmra.mxu0 %v3151
    %v3153 = vpop.f32.mrf.mxu0
    %v3154 = vadd.f32 %v3073, %v3153
    %v3155 = vand.u32 %v3016, 4294901760
    %3156 = vmatmul.f32.gmra.mxu0 %v3155
    %v3157 = vpop.f32.mrf.mxu0
    %v3158 = vadd.f32 %v3081, %v3157
    %3159 = vdwg.mxu0
    %3160 = vmatpush.msra.mxu0 0.0
    %3161 = vmatpush.msra.mxu0 0.0
    %3162 = vmatpush.msra.mxu0 0.0
    %3163 = vmatpush.msra.mxu0 0.0
    %3164 = vmatpush.msra.mxu0 0.0
    %3165 = vmatpush.msra.mxu0 0.0
    %3166 = vmatpush.msra.mxu0 0.0
    %3167 = vmatpush.msra.mxu0 0.0
    %v3168 = vand.u32 %v2962, 4294901760
    %v3169 = vsub.f32 %v2962, %v3168
    %3170 = vmatpush.msra.mxu0 %v3169
    %v3171 = vand.u32 %v2961, 4294901760
    %v3172 = vsub.f32 %v2961, %v3171
    %3173 = vmatpush.msra.mxu0 %v3172
    %v3174 = vand.u32 %v2960, 4294901760
    %v3175 = vsub.f32 %v2960, %v3174
    %3176 = vmatpush.msra.mxu0 %v3175
    %v3177 = vand.u32 %v2959, 4294901760
    %v3178 = vsub.f32 %v2959, %v3177
    %3179 = vmatpush.msra.mxu0 %v3178
    %v3180 = vand.u32 %v2958, 4294901760
    %v3181 = vsub.f32 %v2958, %v3180
    %3182 = vmatpush.msra.mxu0 %v3181
    %v3183 = vand.u32 %v2957, 4294901760
    %v3184 = vsub.f32 %v2957, %v3183
    %3185 = vmatpush.msra.mxu0 %v3184
    %v3186 = vand.u32 %v2956, 4294901760
    %v3187 = vsub.f32 %v2956, %v3186
    %3188 = vmatpush.msra.mxu0 %v3187
    %v3189 = vand.u32 %v2955, 4294901760
    %v3190 = vsub.f32 %v2955, %v3189
    %3191 = vmatpush.msra.mxu0 %v3190
    %v3192 = vand.u32 %v3004, 4294901760
    %v3193 = vsub.f32 %v3004, %v3192
    %3194 = vmatmul.f32.gmra.mxu0 %v3193
    %v3195 = vpop.f32.mrf.mxu0
    %v3196 = vadd.f32 %v3142, %v3195
    %v3197 = vand.u32 %v3007, 4294901760
    %v3198 = vsub.f32 %v3007, %v3197
    %3199 = vmatmul.f32.gmra.mxu0 %v3198
    %v3200 = vpop.f32.mrf.mxu0
    %v3201 = vadd.f32 %v3146, %v3200
    %v3202 = vand.u32 %v3010, 4294901760
    %v3203 = vsub.f32 %v3010, %v3202
    %3204 = vmatmul.f32.gmra.mxu0 %v3203
    %v3205 = vpop.f32.mrf.mxu0
    %v3206 = vadd.f32 %v3150, %v3205
    %v3207 = vand.u32 %v3013, 4294901760
    %v3208 = vsub.f32 %v3013, %v3207
    %3209 = vmatmul.f32.gmra.mxu0 %v3208
    %v3210 = vpop.f32.mrf.mxu0
    %v3211 = vadd.f32 %v3154, %v3210
    %v3212 = vand.u32 %v3016, 4294901760
    %v3213 = vsub.f32 %v3016, %v3212
    %3214 = vmatmul.f32.gmra.mxu0 %v3213
    %v3215 = vpop.f32.mrf.mxu0
    %v3216 = vadd.f32 %v3158, %v3215
    %3217 = vdwg.mxu0
    %3218 = vmatpush.msra.mxu0 0.0
    %3219 = vmatpush.msra.mxu0 0.0
    %3220 = vmatpush.msra.mxu0 0.0
    %3221 = vmatpush.msra.mxu0 0.0
    %3222 = vmatpush.msra.mxu0 0.0
    %3223 = vmatpush.msra.mxu0 0.0
    %3224 = vmatpush.msra.mxu0 0.0
    %3225 = vmatpush.msra.mxu0 0.0
    %v3226 = vand.u32 %v2962, 4294901760
    %3227 = vmatpush.msra.mxu0 %v3226
    %v3228 = vand.u32 %v2961, 4294901760
    %3229 = vmatpush.msra.mxu0 %v3228
    %v3230 = vand.u32 %v2960, 4294901760
    %3231 = vmatpush.msra.mxu0 %v3230
    %v3232 = vand.u32 %v2959, 4294901760
    %3233 = vmatpush.msra.mxu0 %v3232
    %v3234 = vand.u32 %v2958, 4294901760
    %3235 = vmatpush.msra.mxu0 %v3234
    %v3236 = vand.u32 %v2957, 4294901760
    %3237 = vmatpush.msra.mxu0 %v3236
    %v3238 = vand.u32 %v2956, 4294901760
    %3239 = vmatpush.msra.mxu0 %v3238
    %v3240 = vand.u32 %v2955, 4294901760
    %3241 = vmatpush.msra.mxu0 %v3240
    %v3242 = vand.u32 %v3004, 4294901760
    %v3243 = vsub.f32 %v3004, %v3242
    %v3244 = vand.u32 %v3243, 4294901760
    %3245 = vmatmul.f32.gmra.mxu0 %v3244
    %v3246 = vpop.f32.mrf.mxu0
    %v3247 = vadd.f32 %v3196, %v3246
    %v3248 = vand.u32 %v3007, 4294901760
    %v3249 = vsub.f32 %v3007, %v3248
    %v3250 = vand.u32 %v3249, 4294901760
    %3251 = vmatmul.f32.gmra.mxu0 %v3250
    %v3252 = vpop.f32.mrf.mxu0
    %v3253 = vadd.f32 %v3201, %v3252
    %v3254 = vand.u32 %v3010, 4294901760
    %v3255 = vsub.f32 %v3010, %v3254
    %v3256 = vand.u32 %v3255, 4294901760
    %3257 = vmatmul.f32.gmra.mxu0 %v3256
    %v3258 = vpop.f32.mrf.mxu0
    %v3259 = vadd.f32 %v3206, %v3258
    %v3260 = vand.u32 %v3013, 4294901760
    %v3261 = vsub.f32 %v3013, %v3260
    %v3262 = vand.u32 %v3261, 4294901760
    %3263 = vmatmul.f32.gmra.mxu0 %v3262
    %v3264 = vpop.f32.mrf.mxu0
    %v3265 = vadd.f32 %v3211, %v3264
    %v3266 = vand.u32 %v3016, 4294901760
    %v3267 = vsub.f32 %v3016, %v3266
    %v3268 = vand.u32 %v3267, 4294901760
    %3269 = vmatmul.f32.gmra.mxu0 %v3268
    %v3270 = vpop.f32.mrf.mxu0
    %v3271 = vadd.f32 %v3216, %v3270
    %3272 = vdwg.mxu0
    %3273 = vmatpush.msra.mxu0 0.0
    %3274 = vmatpush.msra.mxu0 0.0
    %3275 = vmatpush.msra.mxu0 0.0
    %3276 = vmatpush.msra.mxu0 0.0
    %3277 = vmatpush.msra.mxu0 0.0
    %3278 = vmatpush.msra.mxu0 0.0
    %3279 = vmatpush.msra.mxu0 0.0
    %3280 = vmatpush.msra.mxu0 0.0
    %v3281 = vand.u32 %v2962, 4294901760
    %v3282 = vsub.f32 %v2962, %v3281
    %v3283 = vand.u32 %v3282, 4294901760
    %3284 = vmatpush.msra.mxu0 %v3283
    %v3285 = vand.u32 %v2961, 4294901760
    %v3286 = vsub.f32 %v2961, %v3285
    %v3287 = vand.u32 %v3286, 4294901760
    %3288 = vmatpush.msra.mxu0 %v3287
    %v3289 = vand.u32 %v2960, 4294901760
    %v3290 = vsub.f32 %v2960, %v3289
    %v3291 = vand.u32 %v3290, 4294901760
    %3292 = vmatpush.msra.mxu0 %v3291
    %v3293 = vand.u32 %v2959, 4294901760
    %v3294 = vsub.f32 %v2959, %v3293
    %v3295 = vand.u32 %v3294, 4294901760
    %3296 = vmatpush.msra.mxu0 %v3295
    %v3297 = vand.u32 %v2958, 4294901760
    %v3298 = vsub.f32 %v2958, %v3297
    %v3299 = vand.u32 %v3298, 4294901760
    %3300 = vmatpush.msra.mxu0 %v3299
    %v3301 = vand.u32 %v2957, 4294901760
    %v3302 = vsub.f32 %v2957, %v3301
    %v3303 = vand.u32 %v3302, 4294901760
    %3304 = vmatpush.msra.mxu0 %v3303
    %v3305 = vand.u32 %v2956, 4294901760
    %v3306 = vsub.f32 %v2956, %v3305
    %v3307 = vand.u32 %v3306, 4294901760
    %3308 = vmatpush.msra.mxu0 %v3307
    %v3309 = vand.u32 %v2955, 4294901760
    %v3310 = vsub.f32 %v2955, %v3309
    %v3311 = vand.u32 %v3310, 4294901760
    %3312 = vmatpush.msra.mxu0 %v3311
    %v3313 = vand.u32 %v3004, 4294901760
    %3314 = vmatmul.f32.gmra.mxu0 %v3313
    %v3315 = vpop.f32.mrf.mxu0
    %v3316 = vadd.f32 %v3247, %v3315
    %v3317 = vand.u32 %v3007, 4294901760
    %3318 = vmatmul.f32.gmra.mxu0 %v3317
    %v3319 = vpop.f32.mrf.mxu0
    %v3320 = vadd.f32 %v3253, %v3319
    %v3321 = vand.u32 %v3010, 4294901760
    %3322 = vmatmul.f32.gmra.mxu0 %v3321
    %v3323 = vpop.f32.mrf.mxu0
    %v3324 = vadd.f32 %v3259, %v3323
    %v3325 = vand.u32 %v3013, 4294901760
    %3326 = vmatmul.f32.gmra.mxu0 %v3325
    %v3327 = vpop.f32.mrf.mxu0
    %v3328 = vadd.f32 %v3265, %v3327
    %v3329 = vand.u32 %v3016, 4294901760
    %3330 = vmatmul.f32.gmra.mxu0 %v3329
    %v3331 = vpop.f32.mrf.mxu0
    %v3332 = vadd.f32 %v3271, %v3331
    %3333 = vdwg.mxu0
    %3334 = vmatpush.msra.mxu0 0.0
    %3335 = vmatpush.msra.mxu0 0.0
    %3336 = vmatpush.msra.mxu0 0.0
    %3337 = vmatpush.msra.mxu0 0.0
    %3338 = vmatpush.msra.mxu0 0.0
    %3339 = vmatpush.msra.mxu0 0.0
    %3340 = vmatpush.msra.mxu0 0.0
    %3341 = vmatpush.msra.mxu0 0.0
    %v3342 = vand.u32 %v2962, 4294901760
    %3343 = vmatpush.msra.mxu0 %v3342
    %v3344 = vand.u32 %v2961, 4294901760
    %3345 = vmatpush.msra.mxu0 %v3344
    %v3346 = vand.u32 %v2960, 4294901760
    %3347 = vmatpush.msra.mxu0 %v3346
    %v3348 = vand.u32 %v2959, 4294901760
    %3349 = vmatpush.msra.mxu0 %v3348
    %v3350 = vand.u32 %v2958, 4294901760
    %3351 = vmatpush.msra.mxu0 %v3350
    %v3352 = vand.u32 %v2957, 4294901760
    %3353 = vmatpush.msra.mxu0 %v3352
    %v3354 = vand.u32 %v2956, 4294901760
    %3355 = vmatpush.msra.mxu0 %v3354
    %v3356 = vand.u32 %v2955, 4294901760
    %3357 = vmatpush.msra.mxu0 %v3356
    %v3358 = vand.u32 %v3004, 4294901760
    %3359 = vmatmul.f32.gmra.mxu0 %v3358
    %v3360 = vpop.f32.mrf.mxu0
    %v3361 = vadd.f32 %v3316, %v3360
    %v3362 = vand.u32 %v3007, 4294901760
    %3363 = vmatmul.f32.gmra.mxu0 %v3362
    %v3364 = vpop.f32.mrf.mxu0
    %v3365 = vadd.f32 %v3320, %v3364
    %v3366 = vand.u32 %v3010, 4294901760
    %3367 = vmatmul.f32.gmra.mxu0 %v3366
    %v3368 = vpop.f32.mrf.mxu0
    %v3369 = vadd.f32 %v3324, %v3368
    %v3370 = vand.u32 %v3013, 4294901760
    %3371 = vmatmul.f32.gmra.mxu0 %v3370
    %v3372 = vpop.f32.mrf.mxu0
    %v3373 = vadd.f32 %v3328, %v3372
    %v3374 = vand.u32 %v3016, 4294901760
    %3375 = vmatmul.f32.gmra.mxu0 %v3374
    %v3376 = vpop.f32.mrf.mxu0
    %v3377 = vadd.f32 %v3332, %v3376
    %3378 = vdwg.mxu0
    %v3379 = vld [vmem:[%s1 + $0x3] sm:$0x1]
    %v3380 = vperm.slane %v3379, 0
    %vm3381 = vcmp.eq.s32.totalorder %v20, %v3380
    %vm3382 = vcmp.eq.s32.totalorder %v21, %v3380
    %vm3383 = vcmp.eq.s32.totalorder %v22, %v3380
    %vm3384 = vcmp.eq.s32.totalorder %v23, %v3380
    %vm3385 = vcmp.eq.s32.totalorder %v24, %v3380
    %vm3386 = vcmp.eq.s32.totalorder %v25, %v3380
    %vm3387 = vcmp.eq.s32.totalorder %v26, %v3380
    %vm3388 = vcmp.eq.s32.totalorder %v27, %v3380
    %vm3389 = vcmp.eq.s32.totalorder %v471, %v3380
    %vm3390 = vcmp.eq.s32.totalorder %v472, %v3380
    %vm3391 = vcmp.eq.s32.totalorder %v473, %v3380
    %vm3392 = vcmp.eq.s32.totalorder %v474, %v3380
    %v3393 = vsel %vm3381, 1, 0
    %v3394 = vsel %vm3382, 1, 0
    %v3395 = vsel %vm3383, 1, 0
    %v3396 = vsel %vm3384, 1, 0
    %v3397 = vsel %vm3385, 1, 0
    %v3398 = vsel %vm3386, 1, 0
    %v3399 = vsel %vm3387, 1, 0
    %v3400 = vsel %vm3388, 1, 0
    %v3401 = vsel %vm3389, 1, 0
    %v3402 = vsel %vm3390, 1, 0
    %v3403 = vsel %vm3391, 1, 0
    %v3404 = vsel %vm3392, 1, 0
    %v3405 = vcvt.s32.f32 %v3393
    %v3406 = vcvt.s32.f32 %v3394
    %v3407 = vcvt.s32.f32 %v3395
    %v3408 = vcvt.s32.f32 %v3396
    %v3409 = vcvt.s32.f32 %v3397
    %v3410 = vcvt.s32.f32 %v3398
    %v3411 = vcvt.s32.f32 %v3399
    %v3412 = vcvt.s32.f32 %v3400
    %v3413 = vcvt.s32.f32 %v3401
    %v3414 = vcvt.s32.f32 %v3402
    %v3415 = vcvt.s32.f32 %v3403
    %v3416 = vcvt.s32.f32 %v3404
    %v3417 = vld [vmem:[%s3] sm:$0xff]
    %v3418 = vld [vmem:[%s3 + $0x8] sm:$0xff]
    %v3419 = vld [vmem:[%s3 + $0x10] sm:$0xff]
    %v3420 = vld [vmem:[%s3 + $0x18] sm:$0xff]
    %v3421 = vld [vmem:[%s3 + $0x20] sm:$0xff]
    %v3422 = vld [vmem:[%s3 + $0x28] sm:$0xff]
    %v3423 = vld [vmem:[%s3 + $0x30] sm:$0xff]
    %v3424 = vld [vmem:[%s3 + $0x38] sm:$0xff]
    %v3425 = vld [vmem:[%s3 + $0x40] sm:$0xff]
    %v3426 = vld [vmem:[%s3 + $0x48] sm:$0xff]
    %v3427 = vld [vmem:[%s3 + $0x50] sm:$0xff]
    %v3428 = vld [vmem:[%s3 + $0x58] sm:$0xff]
    %3429 = vxpose.xlu0.b32.start [1/16] %v3417, 128
    %3430 = vxpose.xlu0.b32.cont [2/16] %v3418, 128
    %3431 = vxpose.xlu0.b32.cont [3/16] %v3419, 128
    %3432 = vxpose.xlu0.b32.cont [4/16] %v3420, 128
    %3433 = vxpose.xlu0.b32.cont [5/16] %v3421, 128
    %3434 = vxpose.xlu0.b32.cont [6/16] %v3422, 128
    %3435 = vxpose.xlu0.b32.cont [7/16] %v3423, 128
    %3436 = vxpose.xlu0.b32.cont [8/16] %v3424, 128
    %3437 = vxpose.xlu0.b32.cont [9/16] %v3425, 128
    %3438 = vxpose.xlu0.b32.cont [10/16] %v3426, 128
    %3439 = vxpose.xlu0.b32.cont [11/16] %v3427, 128
    %3440 = vxpose.xlu0.b32.cont [12/16] %v3428, 128
    %3441 = vxpose.xlu0.b32.cont [13/16] 0.0, 128
    %3442 = vxpose.xlu0.b32.cont [14/16] 0.0, 128
    %3443 = vxpose.xlu0.b32.cont [15/16] 0.0, 128
    %3444 = vxpose.xlu0.b32.end [16/16] 0.0, 128
    %v3445 = vpop.trf.xlu0
    %v3446 = vpop.trf.xlu0
    %v3447 = vpop.trf.xlu0
    %v3448 = vpop.trf.xlu0
    %v3449 = vpop.trf.xlu0
    %v3450 = vpop.trf.xlu0
    %v3451 = vpop.trf.xlu0
    %v3452 = vpop.trf.xlu0
    %v3453 = vpop.trf.xlu0
    %v3454 = vpop.trf.xlu0
    %v3455 = vpop.trf.xlu0
    %v3456 = vpop.trf.xlu0
    %v3457 = vpop.trf.xlu0
    %v3458 = vpop.trf.xlu0
    %v3459 = vpop.trf.xlu0
    %v3460 = vpop.trf.xlu0
    %v3462 = vsel %vm556, %v3445, 0
    %v3465 = vsel %vm556, %v3446, 0
    %v3468 = vsel %vm556, %v3447, 0
    %v3471 = vsel %vm556, %v3448, 0
    %v3474 = vsel %vm556, %v3449, 0
    %3476 = vmatpush.msra.mxu0 0.0
    %3477 = vmatpush.msra.mxu0 0.0
    %3478 = vmatpush.msra.mxu0 0.0
    %3479 = vmatpush.msra.mxu0 0.0
    %v3480 = vand.u32 %v3416, 4294901760
    %3481 = vmatpush.msra.mxu0 %v3480
    %v3482 = vand.u32 %v3415, 4294901760
    %3483 = vmatpush.msra.mxu0 %v3482
    %v3484 = vand.u32 %v3414, 4294901760
    %3485 = vmatpush.msra.mxu0 %v3484
    %v3486 = vand.u32 %v3413, 4294901760
    %3487 = vmatpush.msra.mxu0 %v3486
    %v3488 = vand.u32 %v3412, 4294901760
    %3489 = vmatpush.msra.mxu0 %v3488
    %v3490 = vand.u32 %v3411, 4294901760
    %3491 = vmatpush.msra.mxu0 %v3490
    %v3492 = vand.u32 %v3410, 4294901760
    %3493 = vmatpush.msra.mxu0 %v3492
    %v3494 = vand.u32 %v3409, 4294901760
    %3495 = vmatpush.msra.mxu0 %v3494
    %v3496 = vand.u32 %v3408, 4294901760
    %3497 = vmatpush.msra.mxu0 %v3496
    %v3498 = vand.u32 %v3407, 4294901760
    %3499 = vmatpush.msra.mxu0 %v3498
    %v3500 = vand.u32 %v3406, 4294901760
    %3501 = vmatpush.msra.mxu0 %v3500
    %v3502 = vand.u32 %v3405, 4294901760
    %3503 = vmatpush.msra.mxu0 %v3502
    %v3504 = vand.u32 %v3462, 4294901760
    %v3505 = vsub.f32 %v3462, %v3504
    %v3506 = vand.u32 %v3505, 4294901760
    %v3507 = vsub.f32 %v3505, %v3506
    %v3508 = vand.u32 %v3507, 4294901760
    %3509 = vmatmul.f32.gmra.mxu0 %v3508
    %v3510 = vpop.f32.mrf.mxu0
    %v3511 = vadd.f32 0.0, %v3510
    %v3512 = vand.u32 %v3465, 4294901760
    %v3513 = vsub.f32 %v3465, %v3512
    %v3514 = vand.u32 %v3513, 4294901760
    %v3515 = vsub.f32 %v3513, %v3514
    %v3516 = vand.u32 %v3515, 4294901760
    %3517 = vmatmul.f32.gmra.mxu0 %v3516
    %v3518 = vpop.f32.mrf.mxu0
    %v3519 = vadd.f32 0.0, %v3518
    %v3520 = vand.u32 %v3468, 4294901760
    %v3521 = vsub.f32 %v3468, %v3520
    %v3522 = vand.u32 %v3521, 4294901760
    %v3523 = vsub.f32 %v3521, %v3522
    %v3524 = vand.u32 %v3523, 4294901760
    %3525 = vmatmul.f32.gmra.mxu0 %v3524
    %v3526 = vpop.f32.mrf.mxu0
    %v3527 = vadd.f32 0.0, %v3526
    %v3528 = vand.u32 %v3471, 4294901760
    %v3529 = vsub.f32 %v3471, %v3528
    %v3530 = vand.u32 %v3529, 4294901760
    %v3531 = vsub.f32 %v3529, %v3530
    %v3532 = vand.u32 %v3531, 4294901760
    %3533 = vmatmul.f32.gmra.mxu0 %v3532
    %v3534 = vpop.f32.mrf.mxu0
    %v3535 = vadd.f32 0.0, %v3534
    %v3536 = vand.u32 %v3474, 4294901760
    %v3537 = vsub.f32 %v3474, %v3536
    %v3538 = vand.u32 %v3537, 4294901760
    %v3539 = vsub.f32 %v3537, %v3538
    %v3540 = vand.u32 %v3539, 4294901760
    %3541 = vmatmul.f32.gmra.mxu0 %v3540
    %v3542 = vpop.f32.mrf.mxu0
    %v3543 = vadd.f32 0.0, %v3542
    %3544 = vdwg.mxu0
    %3545 = vmatpush.msra.mxu0 0.0
    %3546 = vmatpush.msra.mxu0 0.0
    %3547 = vmatpush.msra.mxu0 0.0
    %3548 = vmatpush.msra.mxu0 0.0
    %v3549 = vand.u32 %v3416, 4294901760
    %v3550 = vsub.f32 %v3416, %v3549
    %v3551 = vand.u32 %v3550, 4294901760
    %v3552 = vsub.f32 %v3550, %v3551
    %v3553 = vand.u32 %v3552, 4294901760
    %3554 = vmatpush.msra.mxu0 %v3553
    %v3555 = vand.u32 %v3415, 4294901760
    %v3556 = vsub.f32 %v3415, %v3555
    %v3557 = vand.u32 %v3556, 4294901760
    %v3558 = vsub.f32 %v3556, %v3557
    %v3559 = vand.u32 %v3558, 4294901760
    %3560 = vmatpush.msra.mxu0 %v3559
    %v3561 = vand.u32 %v3414, 4294901760
    %v3562 = vsub.f32 %v3414, %v3561
    %v3563 = vand.u32 %v3562, 4294901760
    %v3564 = vsub.f32 %v3562, %v3563
    %v3565 = vand.u32 %v3564, 4294901760
    %3566 = vmatpush.msra.mxu0 %v3565
    %v3567 = vand.u32 %v3413, 4294901760
    %v3568 = vsub.f32 %v3413, %v3567
    %v3569 = vand.u32 %v3568, 4294901760
    %v3570 = vsub.f32 %v3568, %v3569
    %v3571 = vand.u32 %v3570, 4294901760
    %3572 = vmatpush.msra.mxu0 %v3571
    %v3573 = vand.u32 %v3412, 4294901760
    %v3574 = vsub.f32 %v3412, %v3573
    %v3575 = vand.u32 %v3574, 4294901760
    %v3576 = vsub.f32 %v3574, %v3575
    %v3577 = vand.u32 %v3576, 4294901760
    %3578 = vmatpush.msra.mxu0 %v3577
    %v3579 = vand.u32 %v3411, 4294901760
    %v3580 = vsub.f32 %v3411, %v3579
    %v3581 = vand.u32 %v3580, 4294901760
    %v3582 = vsub.f32 %v3580, %v3581
    %v3583 = vand.u32 %v3582, 4294901760
    %3584 = vmatpush.msra.mxu0 %v3583
    %v3585 = vand.u32 %v3410, 4294901760
    %v3586 = vsub.f32 %v3410, %v3585
    %v3587 = vand.u32 %v3586, 4294901760
    %v3588 = vsub.f32 %v3586, %v3587
    %v3589 = vand.u32 %v3588, 4294901760
    %3590 = vmatpush.msra.mxu0 %v3589
    %v3591 = vand.u32 %v3409, 4294901760
    %v3592 = vsub.f32 %v3409, %v3591
    %v3593 = vand.u32 %v3592, 4294901760
    %v3594 = vsub.f32 %v3592, %v3593
    %v3595 = vand.u32 %v3594, 4294901760
    %3596 = vmatpush.msra.mxu0 %v3595
    %v3597 = vand.u32 %v3408, 4294901760
    %v3598 = vsub.f32 %v3408, %v3597
    %v3599 = vand.u32 %v3598, 4294901760
    %v3600 = vsub.f32 %v3598, %v3599
    %v3601 = vand.u32 %v3600, 4294901760
    %3602 = vmatpush.msra.mxu0 %v3601
    %v3603 = vand.u32 %v3407, 4294901760
    %v3604 = vsub.f32 %v3407, %v3603
    %v3605 = vand.u32 %v3604, 4294901760
    %v3606 = vsub.f32 %v3604, %v3605
    %v3607 = vand.u32 %v3606, 4294901760
    %3608 = vmatpush.msra.mxu0 %v3607
    %v3609 = vand.u32 %v3406, 4294901760
    %v3610 = vsub.f32 %v3406, %v3609
    %v3611 = vand.u32 %v3610, 4294901760
    %v3612 = vsub.f32 %v3610, %v3611
    %v3613 = vand.u32 %v3612, 4294901760
    %3614 = vmatpush.msra.mxu0 %v3613
    %v3615 = vand.u32 %v3405, 4294901760
    %v3616 = vsub.f32 %v3405, %v3615
    %v3617 = vand.u32 %v3616, 4294901760
    %v3618 = vsub.f32 %v3616, %v3617
    %v3619 = vand.u32 %v3618, 4294901760
    %3620 = vmatpush.msra.mxu0 %v3619
    %v3621 = vand.u32 %v3462, 4294901760
    %3622 = vmatmul.f32.gmra.mxu0 %v3621
    %v3623 = vpop.f32.mrf.mxu0
    %v3624 = vadd.f32 %v3511, %v3623
    %v3625 = vand.u32 %v3465, 4294901760
    %3626 = vmatmul.f32.gmra.mxu0 %v3625
    %v3627 = vpop.f32.mrf.mxu0
    %v3628 = vadd.f32 %v3519, %v3627
    %v3629 = vand.u32 %v3468, 4294901760
    %3630 = vmatmul.f32.gmra.mxu0 %v3629
    %v3631 = vpop.f32.mrf.mxu0
    %v3632 = vadd.f32 %v3527, %v3631
    %v3633 = vand.u32 %v3471, 4294901760
    %3634 = vmatmul.f32.gmra.mxu0 %v3633
    %v3635 = vpop.f32.mrf.mxu0
    %v3636 = vadd.f32 %v3535, %v3635
    %v3637 = vand.u32 %v3474, 4294901760
    %3638 = vmatmul.f32.gmra.mxu0 %v3637
    %v3639 = vpop.f32.mrf.mxu0
    %v3640 = vadd.f32 %v3543, %v3639
    %3641 = vdwg.mxu0
    %3642 = vmatpush.msra.mxu0 0.0
    %3643 = vmatpush.msra.mxu0 0.0
    %3644 = vmatpush.msra.mxu0 0.0
    %3645 = vmatpush.msra.mxu0 0.0
    %v3646 = vand.u32 %v3416, 4294901760
    %v3647 = vsub.f32 %v3416, %v3646
    %3648 = vmatpush.msra.mxu0 %v3647
    %v3649 = vand.u32 %v3415, 4294901760
    %v3650 = vsub.f32 %v3415, %v3649
    %3651 = vmatpush.msra.mxu0 %v3650
    %v3652 = vand.u32 %v3414, 4294901760
    %v3653 = vsub.f32 %v3414, %v3652
    %3654 = vmatpush.msra.mxu0 %v3653
    %v3655 = vand.u32 %v3413, 4294901760
    %v3656 = vsub.f32 %v3413, %v3655
    %3657 = vmatpush.msra.mxu0 %v3656
    %v3658 = vand.u32 %v3412, 4294901760
    %v3659 = vsub.f32 %v3412, %v3658
    %3660 = vmatpush.msra.mxu0 %v3659
    %v3661 = vand.u32 %v3411, 4294901760
    %v3662 = vsub.f32 %v3411, %v3661
    %3663 = vmatpush.msra.mxu0 %v3662
    %v3664 = vand.u32 %v3410, 4294901760
    %v3665 = vsub.f32 %v3410, %v3664
    %3666 = vmatpush.msra.mxu0 %v3665
    %v3667 = vand.u32 %v3409, 4294901760
    %v3668 = vsub.f32 %v3409, %v3667
    %3669 = vmatpush.msra.mxu0 %v3668
    %v3670 = vand.u32 %v3408, 4294901760
    %v3671 = vsub.f32 %v3408, %v3670
    %3672 = vmatpush.msra.mxu0 %v3671
    %v3673 = vand.u32 %v3407, 4294901760
    %v3674 = vsub.f32 %v3407, %v3673
    %3675 = vmatpush.msra.mxu0 %v3674
    %v3676 = vand.u32 %v3406, 4294901760
    %v3677 = vsub.f32 %v3406, %v3676
    %3678 = vmatpush.msra.mxu0 %v3677
    %v3679 = vand.u32 %v3405, 4294901760
    %v3680 = vsub.f32 %v3405, %v3679
    %3681 = vmatpush.msra.mxu0 %v3680
    %v3682 = vand.u32 %v3462, 4294901760
    %v3683 = vsub.f32 %v3462, %v3682
    %3684 = vmatmul.f32.gmra.mxu0 %v3683
    %v3685 = vpop.f32.mrf.mxu0
    %v3686 = vadd.f32 %v3624, %v3685
    %v3687 = vand.u32 %v3465, 4294901760
    %v3688 = vsub.f32 %v3465, %v3687
    %3689 = vmatmul.f32.gmra.mxu0 %v3688
    %v3690 = vpop.f32.mrf.mxu0
    %v3691 = vadd.f32 %v3628, %v3690
    %v3692 = vand.u32 %v3468, 4294901760
    %v3693 = vsub.f32 %v3468, %v3692
    %3694 = vmatmul.f32.gmra.mxu0 %v3693
    %v3695 = vpop.f32.mrf.mxu0
    %v3696 = vadd.f32 %v3632, %v3695
    %v3697 = vand.u32 %v3471, 4294901760
    %v3698 = vsub.f32 %v3471, %v3697
    %3699 = vmatmul.f32.gmra.mxu0 %v3698
    %v3700 = vpop.f32.mrf.mxu0
    %v3701 = vadd.f32 %v3636, %v3700
    %v3702 = vand.u32 %v3474, 4294901760
    %v3703 = vsub.f32 %v3474, %v3702
    %3704 = vmatmul.f32.gmra.mxu0 %v3703
    %v3705 = vpop.f32.mrf.mxu0
    %v3706 = vadd.f32 %v3640, %v3705
    %3707 = vdwg.mxu0
    %3708 = vmatpush.msra.mxu0 0.0
    %3709 = vmatpush.msra.mxu0 0.0
    %3710 = vmatpush.msra.mxu0 0.0
    %3711 = vmatpush.msra.mxu0 0.0
    %v3712 = vand.u32 %v3416, 4294901760
    %3713 = vmatpush.msra.mxu0 %v3712
    %v3714 = vand.u32 %v3415, 4294901760
    %3715 = vmatpush.msra.mxu0 %v3714
    %v3716 = vand.u32 %v3414, 4294901760
    %3717 = vmatpush.msra.mxu0 %v3716
    %v3718 = vand.u32 %v3413, 4294901760
    %3719 = vmatpush.msra.mxu0 %v3718
    %v3720 = vand.u32 %v3412, 4294901760
    %3721 = vmatpush.msra.mxu0 %v3720
    %v3722 = vand.u32 %v3411, 4294901760
    %3723 = vmatpush.msra.mxu0 %v3722
    %v3724 = vand.u32 %v3410, 4294901760
    %3725 = vmatpush.msra.mxu0 %v3724
    %v3726 = vand.u32 %v3409, 4294901760
    %3727 = vmatpush.msra.mxu0 %v3726
    %v3728 = vand.u32 %v3408, 4294901760
    %3729 = vmatpush.msra.mxu0 %v3728
    %v3730 = vand.u32 %v3407, 4294901760
    %3731 = vmatpush.msra.mxu0 %v3730
    %v3732 = vand.u32 %v3406, 4294901760
    %3733 = vmatpush.msra.mxu0 %v3732
    %v3734 = vand.u32 %v3405, 4294901760
    %3735 = vmatpush.msra.mxu0 %v3734
    %v3736 = vand.u32 %v3462, 4294901760
    %v3737 = vsub.f32 %v3462, %v3736
    %v3738 = vand.u32 %v3737, 4294901760
    %3739 = vmatmul.f32.gmra.mxu0 %v3738
    %v3740 = vpop.f32.mrf.mxu0
    %v3741 = vadd.f32 %v3686, %v3740
    %v3742 = vand.u32 %v3465, 4294901760
    %v3743 = vsub.f32 %v3465, %v3742
    %v3744 = vand.u32 %v3743, 4294901760
    %3745 = vmatmul.f32.gmra.mxu0 %v3744
    %v3746 = vpop.f32.mrf.mxu0
    %v3747 = vadd.f32 %v3691, %v3746
    %v3748 = vand.u32 %v3468, 4294901760
    %v3749 = vsub.f32 %v3468, %v3748
    %v3750 = vand.u32 %v3749, 4294901760
    %3751 = vmatmul.f32.gmra.mxu0 %v3750
    %v3752 = vpop.f32.mrf.mxu0
    %v3753 = vadd.f32 %v3696, %v3752
    %v3754 = vand.u32 %v3471, 4294901760
    %v3755 = vsub.f32 %v3471, %v3754
    %v3756 = vand.u32 %v3755, 4294901760
    %3757 = vmatmul.f32.gmra.mxu0 %v3756
    %v3758 = vpop.f32.mrf.mxu0
    %v3759 = vadd.f32 %v3701, %v3758
    %v3760 = vand.u32 %v3474, 4294901760
    %v3761 = vsub.f32 %v3474, %v3760
    %v3762 = vand.u32 %v3761, 4294901760
    %3763 = vmatmul.f32.gmra.mxu0 %v3762
    %v3764 = vpop.f32.mrf.mxu0
    %v3765 = vadd.f32 %v3706, %v3764
    %3766 = vdwg.mxu0
    %3767 = vmatpush.msra.mxu0 0.0
    %3768 = vmatpush.msra.mxu0 0.0
    %3769 = vmatpush.msra.mxu0 0.0
    %3770 = vmatpush.msra.mxu0 0.0
    %v3771 = vand.u32 %v3416, 4294901760
    %v3772 = vsub.f32 %v3416, %v3771
    %v3773 = vand.u32 %v3772, 4294901760
    %3774 = vmatpush.msra.mxu0 %v3773
    %v3775 = vand.u32 %v3415, 4294901760
    %v3776 = vsub.f32 %v3415, %v3775
    %v3777 = vand.u32 %v3776, 4294901760
    %3778 = vmatpush.msra.mxu0 %v3777
    %v3779 = vand.u32 %v3414, 4294901760
    %v3780 = vsub.f32 %v3414, %v3779
    %v3781 = vand.u32 %v3780, 4294901760
    %3782 = vmatpush.msra.mxu0 %v3781
    %v3783 = vand.u32 %v3413, 4294901760
    %v3784 = vsub.f32 %v3413, %v3783
    %v3785 = vand.u32 %v3784, 4294901760
    %3786 = vmatpush.msra.mxu0 %v3785
    %v3787 = vand.u32 %v3412, 4294901760
    %v3788 = vsub.f32 %v3412, %v3787
    %v3789 = vand.u32 %v3788, 4294901760
    %3790 = vmatpush.msra.mxu0 %v3789
    %v3791 = vand.u32 %v3411, 4294901760
    %v3792 = vsub.f32 %v3411, %v3791
    %v3793 = vand.u32 %v3792, 4294901760
    %3794 = vmatpush.msra.mxu0 %v3793
    %v3795 = vand.u32 %v3410, 4294901760
    %v3796 = vsub.f32 %v3410, %v3795
    %v3797 = vand.u32 %v3796, 4294901760
    %3798 = vmatpush.msra.mxu0 %v3797
    %v3799 = vand.u32 %v3409, 4294901760
    %v3800 = vsub.f32 %v3409, %v3799
    %v3801 = vand.u32 %v3800, 4294901760
    %3802 = vmatpush.msra.mxu0 %v3801
    %v3803 = vand.u32 %v3408, 4294901760
    %v3804 = vsub.f32 %v3408, %v3803
    %v3805 = vand.u32 %v3804, 4294901760
    %3806 = vmatpush.msra.mxu0 %v3805
    %v3807 = vand.u32 %v3407, 4294901760
    %v3808 = vsub.f32 %v3407, %v3807
    %v3809 = vand.u32 %v3808, 4294901760
    %3810 = vmatpush.msra.mxu0 %v3809
    %v3811 = vand.u32 %v3406, 4294901760
    %v3812 = vsub.f32 %v3406, %v3811
    %v3813 = vand.u32 %v3812, 4294901760
    %3814 = vmatpush.msra.mxu0 %v3813
    %v3815 = vand.u32 %v3405, 4294901760
    %v3816 = vsub.f32 %v3405, %v3815
    %v3817 = vand.u32 %v3816, 4294901760
    %3818 = vmatpush.msra.mxu0 %v3817
    %v3819 = vand.u32 %v3462, 4294901760
    %3820 = vmatmul.f32.gmra.mxu0 %v3819
    %v3821 = vpop.f32.mrf.mxu0
    %v3822 = vadd.f32 %v3741, %v3821
    %v3823 = vand.u32 %v3465, 4294901760
    %3824 = vmatmul.f32.gmra.mxu0 %v3823
    %v3825 = vpop.f32.mrf.mxu0
    %v3826 = vadd.f32 %v3747, %v3825
    %v3827 = vand.u32 %v3468, 4294901760
    %3828 = vmatmul.f32.gmra.mxu0 %v3827
    %v3829 = vpop.f32.mrf.mxu0
    %v3830 = vadd.f32 %v3753, %v3829
    %v3831 = vand.u32 %v3471, 4294901760
    %3832 = vmatmul.f32.gmra.mxu0 %v3831
    %v3833 = vpop.f32.mrf.mxu0
    %v3834 = vadd.f32 %v3759, %v3833
    %v3835 = vand.u32 %v3474, 4294901760
    %3836 = vmatmul.f32.gmra.mxu0 %v3835
    %v3837 = vpop.f32.mrf.mxu0
    %v3838 = vadd.f32 %v3765, %v3837
    %3839 = vdwg.mxu0
    %3840 = vmatpush.msra.mxu0 0.0
    %3841 = vmatpush.msra.mxu0 0.0
    %3842 = vmatpush.msra.mxu0 0.0
    %3843 = vmatpush.msra.mxu0 0.0
    %v3844 = vand.u32 %v3416, 4294901760
    %3845 = vmatpush.msra.mxu0 %v3844
    %v3846 = vand.u32 %v3415, 4294901760
    %3847 = vmatpush.msra.mxu0 %v3846
    %v3848 = vand.u32 %v3414, 4294901760
    %3849 = vmatpush.msra.mxu0 %v3848
    %v3850 = vand.u32 %v3413, 4294901760
    %3851 = vmatpush.msra.mxu0 %v3850
    %v3852 = vand.u32 %v3412, 4294901760
    %3853 = vmatpush.msra.mxu0 %v3852
    %v3854 = vand.u32 %v3411, 4294901760
    %3855 = vmatpush.msra.mxu0 %v3854
    %v3856 = vand.u32 %v3410, 4294901760
    %3857 = vmatpush.msra.mxu0 %v3856
    %v3858 = vand.u32 %v3409, 4294901760
    %3859 = vmatpush.msra.mxu0 %v3858
    %v3860 = vand.u32 %v3408, 4294901760
    %3861 = vmatpush.msra.mxu0 %v3860
    %v3862 = vand.u32 %v3407, 4294901760
    %3863 = vmatpush.msra.mxu0 %v3862
    %v3864 = vand.u32 %v3406, 4294901760
    %3865 = vmatpush.msra.mxu0 %v3864
    %v3866 = vand.u32 %v3405, 4294901760
    %3867 = vmatpush.msra.mxu0 %v3866
    %v3868 = vand.u32 %v3462, 4294901760
    %3869 = vmatmul.f32.gmra.mxu0 %v3868
    %v3870 = vpop.f32.mrf.mxu0
    %v3871 = vadd.f32 %v3822, %v3870
    %v3872 = vand.u32 %v3465, 4294901760
    %3873 = vmatmul.f32.gmra.mxu0 %v3872
    %v3874 = vpop.f32.mrf.mxu0
    %v3875 = vadd.f32 %v3826, %v3874
    %v3876 = vand.u32 %v3468, 4294901760
    %3877 = vmatmul.f32.gmra.mxu0 %v3876
    %v3878 = vpop.f32.mrf.mxu0
    %v3879 = vadd.f32 %v3830, %v3878
    %v3880 = vand.u32 %v3471, 4294901760
    %3881 = vmatmul.f32.gmra.mxu0 %v3880
    %v3882 = vpop.f32.mrf.mxu0
    %v3883 = vadd.f32 %v3834, %v3882
    %v3884 = vand.u32 %v3474, 4294901760
    %3885 = vmatmul.f32.gmra.mxu0 %v3884
    %v3886 = vpop.f32.mrf.mxu0
    %v3887 = vadd.f32 %v3838, %v3886
    %3888 = vdwg.mxu0
    %v3889 = vmul.f32 %v3361, %v3871
    %v3890 = vmul.f32 %v3365, %v3875
    %v3891 = vmul.f32 %v3369, %v3879
    %v3892 = vmul.f32 %v3373, %v3883
    %v3893 = vmul.f32 %v3377, %v3887
    %v3894 = vadd.f32 %v3889, %v3890
    %v3895 = vadd.f32 %v3894, %v3891
    %v3896 = vadd.f32 %v3895, %v3892
    %v3897 = vadd.f32 %v3896, %v3893
    %v3898 = vrot.slane %v3897, 4
    %v3899 = vadd.f32 %v3897, %v3898
    %v3900 = vrot.slane %v3899, 2
    %v3901 = vadd.f32 %v3899, %v3900
    %v3902 = vrot.slane %v3901, 1
    %v3903 = vadd.f32 %v3901, %v3902
    %3904 = vst [vmem:[#allocation2 + $0x3] sm:$0x1] %v3903
    %v3905 = vld [vmem:[%s0 + $0x4] sm:$0x1]
    %v3906 = vperm.slane %v3905, 0
    %vm3907 = vcmp.eq.s32.totalorder %v20, %v3906
    %vm3908 = vcmp.eq.s32.totalorder %v21, %v3906
    %vm3909 = vcmp.eq.s32.totalorder %v22, %v3906
    %vm3910 = vcmp.eq.s32.totalorder %v23, %v3906
    %vm3911 = vcmp.eq.s32.totalorder %v24, %v3906
    %vm3912 = vcmp.eq.s32.totalorder %v25, %v3906
    %vm3913 = vcmp.eq.s32.totalorder %v26, %v3906
    %vm3914 = vcmp.eq.s32.totalorder %v27, %v3906
    %v3915 = vsel %vm3907, 1, 0
    %v3916 = vsel %vm3908, 1, 0
    %v3917 = vsel %vm3909, 1, 0
    %v3918 = vsel %vm3910, 1, 0
    %v3919 = vsel %vm3911, 1, 0
    %v3920 = vsel %vm3912, 1, 0
    %v3921 = vsel %vm3913, 1, 0
    %v3922 = vsel %vm3914, 1, 0
    %v3923 = vcvt.s32.f32 %v3915
    %v3924 = vcvt.s32.f32 %v3916
    %v3925 = vcvt.s32.f32 %v3917
    %v3926 = vcvt.s32.f32 %v3918
    %v3927 = vcvt.s32.f32 %v3919
    %v3928 = vcvt.s32.f32 %v3920
    %v3929 = vcvt.s32.f32 %v3921
    %v3930 = vcvt.s32.f32 %v3922
    %v3931 = vld [vmem:[%s2] sm:$0xff]
    %v3932 = vld [vmem:[%s2 + $0x8] sm:$0xff]
    %v3933 = vld [vmem:[%s2 + $0x10] sm:$0xff]
    %v3934 = vld [vmem:[%s2 + $0x18] sm:$0xff]
    %v3935 = vld [vmem:[%s2 + $0x20] sm:$0xff]
    %v3936 = vld [vmem:[%s2 + $0x28] sm:$0xff]
    %v3937 = vld [vmem:[%s2 + $0x30] sm:$0xff]
    %v3938 = vld [vmem:[%s2 + $0x38] sm:$0xff]
    %3939 = vxpose.xlu0.b32.start [1/16] %v3931, 128
    %3940 = vxpose.xlu0.b32.cont [2/16] %v3932, 128
    %3941 = vxpose.xlu0.b32.cont [3/16] %v3933, 128
    %3942 = vxpose.xlu0.b32.cont [4/16] %v3934, 128
    %3943 = vxpose.xlu0.b32.cont [5/16] %v3935, 128
    %3944 = vxpose.xlu0.b32.cont [6/16] %v3936, 128
    %3945 = vxpose.xlu0.b32.cont [7/16] %v3937, 128
    %3946 = vxpose.xlu0.b32.cont [8/16] %v3938, 128
    %3947 = vxpose.xlu0.b32.cont [9/16] 0.0, 128
    %3948 = vxpose.xlu0.b32.cont [10/16] 0.0, 128
    %3949 = vxpose.xlu0.b32.cont [11/16] 0.0, 128
    %3950 = vxpose.xlu0.b32.cont [12/16] 0.0, 128
    %3951 = vxpose.xlu0.b32.cont [13/16] 0.0, 128
    %3952 = vxpose.xlu0.b32.cont [14/16] 0.0, 128
    %3953 = vxpose.xlu0.b32.cont [15/16] 0.0, 128
    %3954 = vxpose.xlu0.b32.end [16/16] 0.0, 128
    %v3955 = vpop.trf.xlu0
    %v3956 = vpop.trf.xlu0
    %v3957 = vpop.trf.xlu0
    %v3958 = vpop.trf.xlu0
    %v3959 = vpop.trf.xlu0
    %v3960 = vpop.trf.xlu0
    %v3961 = vpop.trf.xlu0
    %v3962 = vpop.trf.xlu0
    %v3963 = vpop.trf.xlu0
    %v3964 = vpop.trf.xlu0
    %v3965 = vpop.trf.xlu0
    %v3966 = vpop.trf.xlu0
    %v3967 = vpop.trf.xlu0
    %v3968 = vpop.trf.xlu0
    %v3969 = vpop.trf.xlu0
    %v3970 = vpop.trf.xlu0
    %v3972 = vsel %vm93, %v3955, 0
    %v3975 = vsel %vm93, %v3956, 0
    %v3978 = vsel %vm93, %v3957, 0
    %v3981 = vsel %vm93, %v3958, 0
    %v3984 = vsel %vm93, %v3959, 0
    %3986 = vmatpush.msra.mxu0 0.0
    %3987 = vmatpush.msra.mxu0 0.0
    %3988 = vmatpush.msra.mxu0 0.0
    %3989 = vmatpush.msra.mxu0 0.0
    %3990 = vmatpush.msra.mxu0 0.0
    %3991 = vmatpush.msra.mxu0 0.0
    %3992 = vmatpush.msra.mxu0 0.0
    %3993 = vmatpush.msra.mxu0 0.0
    %v3994 = vand.u32 %v3930, 4294901760
    %3995 = vmatpush.msra.mxu0 %v3994
    %v3996 = vand.u32 %v3929, 4294901760
    %3997 = vmatpush.msra.mxu0 %v3996
    %v3998 = vand.u32 %v3928, 4294901760
    %3999 = vmatpush.msra.mxu0 %v3998
    %v4000 = vand.u32 %v3927, 4294901760
    %4001 = vmatpush.msra.mxu0 %v4000
    %v4002 = vand.u32 %v3926, 4294901760
    %4003 = vmatpush.msra.mxu0 %v4002
    %v4004 = vand.u32 %v3925, 4294901760
    %4005 = vmatpush.msra.mxu0 %v4004
    %v4006 = vand.u32 %v3924, 4294901760
    %4007 = vmatpush.msra.mxu0 %v4006
    %v4008 = vand.u32 %v3923, 4294901760
    %4009 = vmatpush.msra.mxu0 %v4008
    %v4010 = vand.u32 %v3972, 4294901760
    %v4011 = vsub.f32 %v3972, %v4010
    %v4012 = vand.u32 %v4011, 4294901760
    %v4013 = vsub.f32 %v4011, %v4012
    %v4014 = vand.u32 %v4013, 4294901760
    %4015 = vmatmul.f32.gmra.mxu0 %v4014
    %v4016 = vpop.f32.mrf.mxu0
    %v4017 = vadd.f32 0.0, %v4016
    %v4018 = vand.u32 %v3975, 4294901760
    %v4019 = vsub.f32 %v3975, %v4018
    %v4020 = vand.u32 %v4019, 4294901760
    %v4021 = vsub.f32 %v4019, %v4020
    %v4022 = vand.u32 %v4021, 4294901760
    %4023 = vmatmul.f32.gmra.mxu0 %v4022
    %v4024 = vpop.f32.mrf.mxu0
    %v4025 = vadd.f32 0.0, %v4024
    %v4026 = vand.u32 %v3978, 4294901760
    %v4027 = vsub.f32 %v3978, %v4026
    %v4028 = vand.u32 %v4027, 4294901760
    %v4029 = vsub.f32 %v4027, %v4028
    %v4030 = vand.u32 %v4029, 4294901760
    %4031 = vmatmul.f32.gmra.mxu0 %v4030
    %v4032 = vpop.f32.mrf.mxu0
    %v4033 = vadd.f32 0.0, %v4032
    %v4034 = vand.u32 %v3981, 4294901760
    %v4035 = vsub.f32 %v3981, %v4034
    %v4036 = vand.u32 %v4035, 4294901760
    %v4037 = vsub.f32 %v4035, %v4036
    %v4038 = vand.u32 %v4037, 4294901760
    %4039 = vmatmul.f32.gmra.mxu0 %v4038
    %v4040 = vpop.f32.mrf.mxu0
    %v4041 = vadd.f32 0.0, %v4040
    %v4042 = vand.u32 %v3984, 4294901760
    %v4043 = vsub.f32 %v3984, %v4042
    %v4044 = vand.u32 %v4043, 4294901760
    %v4045 = vsub.f32 %v4043, %v4044
    %v4046 = vand.u32 %v4045, 4294901760
    %4047 = vmatmul.f32.gmra.mxu0 %v4046
    %v4048 = vpop.f32.mrf.mxu0
    %v4049 = vadd.f32 0.0, %v4048
    %4050 = vdwg.mxu0
    %4051 = vmatpush.msra.mxu0 0.0
    %4052 = vmatpush.msra.mxu0 0.0
    %4053 = vmatpush.msra.mxu0 0.0
    %4054 = vmatpush.msra.mxu0 0.0
    %4055 = vmatpush.msra.mxu0 0.0
    %4056 = vmatpush.msra.mxu0 0.0
    %4057 = vmatpush.msra.mxu0 0.0
    %4058 = vmatpush.msra.mxu0 0.0
    %v4059 = vand.u32 %v3930, 4294901760
    %v4060 = vsub.f32 %v3930, %v4059
    %v4061 = vand.u32 %v4060, 4294901760
    %v4062 = vsub.f32 %v4060, %v4061
    %v4063 = vand.u32 %v4062, 4294901760
    %4064 = vmatpush.msra.mxu0 %v4063
    %v4065 = vand.u32 %v3929, 4294901760
    %v4066 = vsub.f32 %v3929, %v4065
    %v4067 = vand.u32 %v4066, 4294901760
    %v4068 = vsub.f32 %v4066, %v4067
    %v4069 = vand.u32 %v4068, 4294901760
    %4070 = vmatpush.msra.mxu0 %v4069
    %v4071 = vand.u32 %v3928, 4294901760
    %v4072 = vsub.f32 %v3928, %v4071
    %v4073 = vand.u32 %v4072, 4294901760
    %v4074 = vsub.f32 %v4072, %v4073
    %v4075 = vand.u32 %v4074, 4294901760
    %4076 = vmatpush.msra.mxu0 %v4075
    %v4077 = vand.u32 %v3927, 4294901760
    %v4078 = vsub.f32 %v3927, %v4077
    %v4079 = vand.u32 %v4078, 4294901760
    %v4080 = vsub.f32 %v4078, %v4079
    %v4081 = vand.u32 %v4080, 4294901760
    %4082 = vmatpush.msra.mxu0 %v4081
    %v4083 = vand.u32 %v3926, 4294901760
    %v4084 = vsub.f32 %v3926, %v4083
    %v4085 = vand.u32 %v4084, 4294901760
    %v4086 = vsub.f32 %v4084, %v4085
    %v4087 = vand.u32 %v4086, 4294901760
    %4088 = vmatpush.msra.mxu0 %v4087
    %v4089 = vand.u32 %v3925, 4294901760
    %v4090 = vsub.f32 %v3925, %v4089
    %v4091 = vand.u32 %v4090, 4294901760
    %v4092 = vsub.f32 %v4090, %v4091
    %v4093 = vand.u32 %v4092, 4294901760
    %4094 = vmatpush.msra.mxu0 %v4093
    %v4095 = vand.u32 %v3924, 4294901760
    %v4096 = vsub.f32 %v3924, %v4095
    %v4097 = vand.u32 %v4096, 4294901760
    %v4098 = vsub.f32 %v4096, %v4097
    %v4099 = vand.u32 %v4098, 4294901760
    %4100 = vmatpush.msra.mxu0 %v4099
    %v4101 = vand.u32 %v3923, 4294901760
    %v4102 = vsub.f32 %v3923, %v4101
    %v4103 = vand.u32 %v4102, 4294901760
    %v4104 = vsub.f32 %v4102, %v4103
    %v4105 = vand.u32 %v4104, 4294901760
    %4106 = vmatpush.msra.mxu0 %v4105
    %v4107 = vand.u32 %v3972, 4294901760
    %4108 = vmatmul.f32.gmra.mxu0 %v4107
    %v4109 = vpop.f32.mrf.mxu0
    %v4110 = vadd.f32 %v4017, %v4109
    %v4111 = vand.u32 %v3975, 4294901760
    %4112 = vmatmul.f32.gmra.mxu0 %v4111
    %v4113 = vpop.f32.mrf.mxu0
    %v4114 = vadd.f32 %v4025, %v4113
    %v4115 = vand.u32 %v3978, 4294901760
    %4116 = vmatmul.f32.gmra.mxu0 %v4115
    %v4117 = vpop.f32.mrf.mxu0
    %v4118 = vadd.f32 %v4033, %v4117
    %v4119 = vand.u32 %v3981, 4294901760
    %4120 = vmatmul.f32.gmra.mxu0 %v4119
    %v4121 = vpop.f32.mrf.mxu0
    %v4122 = vadd.f32 %v4041, %v4121
    %v4123 = vand.u32 %v3984, 4294901760
    %4124 = vmatmul.f32.gmra.mxu0 %v4123
    %v4125 = vpop.f32.mrf.mxu0
    %v4126 = vadd.f32 %v4049, %v4125
    %4127 = vdwg.mxu0
    %4128 = vmatpush.msra.mxu0 0.0
    %4129 = vmatpush.msra.mxu0 0.0
    %4130 = vmatpush.msra.mxu0 0.0
    %4131 = vmatpush.msra.mxu0 0.0
    %4132 = vmatpush.msra.mxu0 0.0
    %4133 = vmatpush.msra.mxu0 0.0
    %4134 = vmatpush.msra.mxu0 0.0
    %4135 = vmatpush.msra.mxu0 0.0
    %v4136 = vand.u32 %v3930, 4294901760
    %v4137 = vsub.f32 %v3930, %v4136
    %4138 = vmatpush.msra.mxu0 %v4137
    %v4139 = vand.u32 %v3929, 4294901760
    %v4140 = vsub.f32 %v3929, %v4139
    %4141 = vmatpush.msra.mxu0 %v4140
    %v4142 = vand.u32 %v3928, 4294901760
    %v4143 = vsub.f32 %v3928, %v4142
    %4144 = vmatpush.msra.mxu0 %v4143
    %v4145 = vand.u32 %v3927, 4294901760
    %v4146 = vsub.f32 %v3927, %v4145
    %4147 = vmatpush.msra.mxu0 %v4146
    %v4148 = vand.u32 %v3926, 4294901760
    %v4149 = vsub.f32 %v3926, %v4148
    %4150 = vmatpush.msra.mxu0 %v4149
    %v4151 = vand.u32 %v3925, 4294901760
    %v4152 = vsub.f32 %v3925, %v4151
    %4153 = vmatpush.msra.mxu0 %v4152
    %v4154 = vand.u32 %v3924, 4294901760
    %v4155 = vsub.f32 %v3924, %v4154
    %4156 = vmatpush.msra.mxu0 %v4155
    %v4157 = vand.u32 %v3923, 4294901760
    %v4158 = vsub.f32 %v3923, %v4157
    %4159 = vmatpush.msra.mxu0 %v4158
    %v4160 = vand.u32 %v3972, 4294901760
    %v4161 = vsub.f32 %v3972, %v4160
    %4162 = vmatmul.f32.gmra.mxu0 %v4161
    %v4163 = vpop.f32.mrf.mxu0
    %v4164 = vadd.f32 %v4110, %v4163
    %v4165 = vand.u32 %v3975, 4294901760
    %v4166 = vsub.f32 %v3975, %v4165
    %4167 = vmatmul.f32.gmra.mxu0 %v4166
    %v4168 = vpop.f32.mrf.mxu0
    %v4169 = vadd.f32 %v4114, %v4168
    %v4170 = vand.u32 %v3978, 4294901760
    %v4171 = vsub.f32 %v3978, %v4170
    %4172 = vmatmul.f32.gmra.mxu0 %v4171
    %v4173 = vpop.f32.mrf.mxu0
    %v4174 = vadd.f32 %v4118, %v4173
    %v4175 = vand.u32 %v3981, 4294901760
    %v4176 = vsub.f32 %v3981, %v4175
    %4177 = vmatmul.f32.gmra.mxu0 %v4176
    %v4178 = vpop.f32.mrf.mxu0
    %v4179 = vadd.f32 %v4122, %v4178
    %v4180 = vand.u32 %v3984, 4294901760
    %v4181 = vsub.f32 %v3984, %v4180
    %4182 = vmatmul.f32.gmra.mxu0 %v4181
    %v4183 = vpop.f32.mrf.mxu0
    %v4184 = vadd.f32 %v4126, %v4183
    %4185 = vdwg.mxu0
    %4186 = vmatpush.msra.mxu0 0.0
    %4187 = vmatpush.msra.mxu0 0.0
    %4188 = vmatpush.msra.mxu0 0.0
    %4189 = vmatpush.msra.mxu0 0.0
    %4190 = vmatpush.msra.mxu0 0.0
    %4191 = vmatpush.msra.mxu0 0.0
    %4192 = vmatpush.msra.mxu0 0.0
    %4193 = vmatpush.msra.mxu0 0.0
    %v4194 = vand.u32 %v3930, 4294901760
    %4195 = vmatpush.msra.mxu0 %v4194
    %v4196 = vand.u32 %v3929, 4294901760
    %4197 = vmatpush.msra.mxu0 %v4196
    %v4198 = vand.u32 %v3928, 4294901760
    %4199 = vmatpush.msra.mxu0 %v4198
    %v4200 = vand.u32 %v3927, 4294901760
    %4201 = vmatpush.msra.mxu0 %v4200
    %v4202 = vand.u32 %v3926, 4294901760
    %4203 = vmatpush.msra.mxu0 %v4202
    %v4204 = vand.u32 %v3925, 4294901760
    %4205 = vmatpush.msra.mxu0 %v4204
    %v4206 = vand.u32 %v3924, 4294901760
    %4207 = vmatpush.msra.mxu0 %v4206
    %v4208 = vand.u32 %v3923, 4294901760
    %4209 = vmatpush.msra.mxu0 %v4208
    %v4210 = vand.u32 %v3972, 4294901760
    %v4211 = vsub.f32 %v3972, %v4210
    %v4212 = vand.u32 %v4211, 4294901760
    %4213 = vmatmul.f32.gmra.mxu0 %v4212
    %v4214 = vpop.f32.mrf.mxu0
    %v4215 = vadd.f32 %v4164, %v4214
    %v4216 = vand.u32 %v3975, 4294901760
    %v4217 = vsub.f32 %v3975, %v4216
    %v4218 = vand.u32 %v4217, 4294901760
    %4219 = vmatmul.f32.gmra.mxu0 %v4218
    %v4220 = vpop.f32.mrf.mxu0
    %v4221 = vadd.f32 %v4169, %v4220
    %v4222 = vand.u32 %v3978, 4294901760
    %v4223 = vsub.f32 %v3978, %v4222
    %v4224 = vand.u32 %v4223, 4294901760
    %4225 = vmatmul.f32.gmra.mxu0 %v4224
    %v4226 = vpop.f32.mrf.mxu0
    %v4227 = vadd.f32 %v4174, %v4226
    %v4228 = vand.u32 %v3981, 4294901760
    %v4229 = vsub.f32 %v3981, %v4228
    %v4230 = vand.u32 %v4229, 4294901760
    %4231 = vmatmul.f32.gmra.mxu0 %v4230
    %v4232 = vpop.f32.mrf.mxu0
    %v4233 = vadd.f32 %v4179, %v4232
    %v4234 = vand.u32 %v3984, 4294901760
    %v4235 = vsub.f32 %v3984, %v4234
    %v4236 = vand.u32 %v4235, 4294901760
    %4237 = vmatmul.f32.gmra.mxu0 %v4236
    %v4238 = vpop.f32.mrf.mxu0
    %v4239 = vadd.f32 %v4184, %v4238
    %4240 = vdwg.mxu0
    %4241 = vmatpush.msra.mxu0 0.0
    %4242 = vmatpush.msra.mxu0 0.0
    %4243 = vmatpush.msra.mxu0 0.0
    %4244 = vmatpush.msra.mxu0 0.0
    %4245 = vmatpush.msra.mxu0 0.0
    %4246 = vmatpush.msra.mxu0 0.0
    %4247 = vmatpush.msra.mxu0 0.0
    %4248 = vmatpush.msra.mxu0 0.0
    %v4249 = vand.u32 %v3930, 4294901760
    %v4250 = vsub.f32 %v3930, %v4249
    %v4251 = vand.u32 %v4250, 4294901760
    %4252 = vmatpush.msra.mxu0 %v4251
    %v4253 = vand.u32 %v3929, 4294901760
    %v4254 = vsub.f32 %v3929, %v4253
    %v4255 = vand.u32 %v4254, 4294901760
    %4256 = vmatpush.msra.mxu0 %v4255
    %v4257 = vand.u32 %v3928, 4294901760
    %v4258 = vsub.f32 %v3928, %v4257
    %v4259 = vand.u32 %v4258, 4294901760
    %4260 = vmatpush.msra.mxu0 %v4259
    %v4261 = vand.u32 %v3927, 4294901760
    %v4262 = vsub.f32 %v3927, %v4261
    %v4263 = vand.u32 %v4262, 4294901760
    %4264 = vmatpush.msra.mxu0 %v4263
    %v4265 = vand.u32 %v3926, 4294901760
    %v4266 = vsub.f32 %v3926, %v4265
    %v4267 = vand.u32 %v4266, 4294901760
    %4268 = vmatpush.msra.mxu0 %v4267
    %v4269 = vand.u32 %v3925, 4294901760
    %v4270 = vsub.f32 %v3925, %v4269
    %v4271 = vand.u32 %v4270, 4294901760
    %4272 = vmatpush.msra.mxu0 %v4271
    %v4273 = vand.u32 %v3924, 4294901760
    %v4274 = vsub.f32 %v3924, %v4273
    %v4275 = vand.u32 %v4274, 4294901760
    %4276 = vmatpush.msra.mxu0 %v4275
    %v4277 = vand.u32 %v3923, 4294901760
    %v4278 = vsub.f32 %v3923, %v4277
    %v4279 = vand.u32 %v4278, 4294901760
    %4280 = vmatpush.msra.mxu0 %v4279
    %v4281 = vand.u32 %v3972, 4294901760
    %4282 = vmatmul.f32.gmra.mxu0 %v4281
    %v4283 = vpop.f32.mrf.mxu0
    %v4284 = vadd.f32 %v4215, %v4283
    %v4285 = vand.u32 %v3975, 4294901760
    %4286 = vmatmul.f32.gmra.mxu0 %v4285
    %v4287 = vpop.f32.mrf.mxu0
    %v4288 = vadd.f32 %v4221, %v4287
    %v4289 = vand.u32 %v3978, 4294901760
    %4290 = vmatmul.f32.gmra.mxu0 %v4289
    %v4291 = vpop.f32.mrf.mxu0
    %v4292 = vadd.f32 %v4227, %v4291
    %v4293 = vand.u32 %v3981, 4294901760
    %4294 = vmatmul.f32.gmra.mxu0 %v4293
    %v4295 = vpop.f32.mrf.mxu0
    %v4296 = vadd.f32 %v4233, %v4295
    %v4297 = vand.u32 %v3984, 4294901760
    %4298 = vmatmul.f32.gmra.mxu0 %v4297
    %v4299 = vpop.f32.mrf.mxu0
    %v4300 = vadd.f32 %v4239, %v4299
    %4301 = vdwg.mxu0
    %4302 = vmatpush.msra.mxu0 0.0
    %4303 = vmatpush.msra.mxu0 0.0
    %4304 = vmatpush.msra.mxu0 0.0
    %4305 = vmatpush.msra.mxu0 0.0
    %4306 = vmatpush.msra.mxu0 0.0
    %4307 = vmatpush.msra.mxu0 0.0
    %4308 = vmatpush.msra.mxu0 0.0
    %4309 = vmatpush.msra.mxu0 0.0
    %v4310 = vand.u32 %v3930, 4294901760
    %4311 = vmatpush.msra.mxu0 %v4310
    %v4312 = vand.u32 %v3929, 4294901760
    %4313 = vmatpush.msra.mxu0 %v4312
    %v4314 = vand.u32 %v3928, 4294901760
    %4315 = vmatpush.msra.mxu0 %v4314
    %v4316 = vand.u32 %v3927, 4294901760
    %4317 = vmatpush.msra.mxu0 %v4316
    %v4318 = vand.u32 %v3926, 4294901760
    %4319 = vmatpush.msra.mxu0 %v4318
    %v4320 = vand.u32 %v3925, 4294901760
    %4321 = vmatpush.msra.mxu0 %v4320
    %v4322 = vand.u32 %v3924, 4294901760
    %4323 = vmatpush.msra.mxu0 %v4322
    %v4324 = vand.u32 %v3923, 4294901760
    %4325 = vmatpush.msra.mxu0 %v4324
    %v4326 = vand.u32 %v3972, 4294901760
    %4327 = vmatmul.f32.gmra.mxu0 %v4326
    %v4328 = vpop.f32.mrf.mxu0
    %v4329 = vadd.f32 %v4284, %v4328
    %v4330 = vand.u32 %v3975, 4294901760
    %4331 = vmatmul.f32.gmra.mxu0 %v4330
    %v4332 = vpop.f32.mrf.mxu0
    %v4333 = vadd.f32 %v4288, %v4332
    %v4334 = vand.u32 %v3978, 4294901760
    %4335 = vmatmul.f32.gmra.mxu0 %v4334
    %v4336 = vpop.f32.mrf.mxu0
    %v4337 = vadd.f32 %v4292, %v4336
    %v4338 = vand.u32 %v3981, 4294901760
    %4339 = vmatmul.f32.gmra.mxu0 %v4338
    %v4340 = vpop.f32.mrf.mxu0
    %v4341 = vadd.f32 %v4296, %v4340
    %v4342 = vand.u32 %v3984, 4294901760
    %4343 = vmatmul.f32.gmra.mxu0 %v4342
    %v4344 = vpop.f32.mrf.mxu0
    %v4345 = vadd.f32 %v4300, %v4344
    %4346 = vdwg.mxu0
    %v4347 = vld [vmem:[%s1 + $0x4] sm:$0x1]
    %v4348 = vperm.slane %v4347, 0
    %vm4349 = vcmp.eq.s32.totalorder %v20, %v4348
    %vm4350 = vcmp.eq.s32.totalorder %v21, %v4348
    %vm4351 = vcmp.eq.s32.totalorder %v22, %v4348
    %vm4352 = vcmp.eq.s32.totalorder %v23, %v4348
    %vm4353 = vcmp.eq.s32.totalorder %v24, %v4348
    %vm4354 = vcmp.eq.s32.totalorder %v25, %v4348
    %vm4355 = vcmp.eq.s32.totalorder %v26, %v4348
    %vm4356 = vcmp.eq.s32.totalorder %v27, %v4348
    %vm4357 = vcmp.eq.s32.totalorder %v471, %v4348
    %vm4358 = vcmp.eq.s32.totalorder %v472, %v4348
    %vm4359 = vcmp.eq.s32.totalorder %v473, %v4348
    %vm4360 = vcmp.eq.s32.totalorder %v474, %v4348
    %v4361 = vsel %vm4349, 1, 0
    %v4362 = vsel %vm4350, 1, 0
    %v4363 = vsel %vm4351, 1, 0
    %v4364 = vsel %vm4352, 1, 0
    %v4365 = vsel %vm4353, 1, 0
    %v4366 = vsel %vm4354, 1, 0
    %v4367 = vsel %vm4355, 1, 0
    %v4368 = vsel %vm4356, 1, 0
    %v4369 = vsel %vm4357, 1, 0
    %v4370 = vsel %vm4358, 1, 0
    %v4371 = vsel %vm4359, 1, 0
    %v4372 = vsel %vm4360, 1, 0
    %v4373 = vcvt.s32.f32 %v4361
    %v4374 = vcvt.s32.f32 %v4362
    %v4375 = vcvt.s32.f32 %v4363
    %v4376 = vcvt.s32.f32 %v4364
    %v4377 = vcvt.s32.f32 %v4365
    %v4378 = vcvt.s32.f32 %v4366
    %v4379 = vcvt.s32.f32 %v4367
    %v4380 = vcvt.s32.f32 %v4368
    %v4381 = vcvt.s32.f32 %v4369
    %v4382 = vcvt.s32.f32 %v4370
    %v4383 = vcvt.s32.f32 %v4371
    %v4384 = vcvt.s32.f32 %v4372
    %v4385 = vld [vmem:[%s3] sm:$0xff]
    %v4386 = vld [vmem:[%s3 + $0x8] sm:$0xff]
    %v4387 = vld [vmem:[%s3 + $0x10] sm:$0xff]
    %v4388 = vld [vmem:[%s3 + $0x18] sm:$0xff]
    %v4389 = vld [vmem:[%s3 + $0x20] sm:$0xff]
    %v4390 = vld [vmem:[%s3 + $0x28] sm:$0xff]
    %v4391 = vld [vmem:[%s3 + $0x30] sm:$0xff]
    %v4392 = vld [vmem:[%s3 + $0x38] sm:$0xff]
    %v4393 = vld [vmem:[%s3 + $0x40] sm:$0xff]
    %v4394 = vld [vmem:[%s3 + $0x48] sm:$0xff]
    %v4395 = vld [vmem:[%s3 + $0x50] sm:$0xff]
    %v4396 = vld [vmem:[%s3 + $0x58] sm:$0xff]
    %4397 = vxpose.xlu0.b32.start [1/16] %v4385, 128
    %4398 = vxpose.xlu0.b32.cont [2/16] %v4386, 128
    %4399 = vxpose.xlu0.b32.cont [3/16] %v4387, 128
    %4400 = vxpose.xlu0.b32.cont [4/16] %v4388, 128
    %4401 = vxpose.xlu0.b32.cont [5/16] %v4389, 128
    %4402 = vxpose.xlu0.b32.cont [6/16] %v4390, 128
    %4403 = vxpose.xlu0.b32.cont [7/16] %v4391, 128
    %4404 = vxpose.xlu0.b32.cont [8/16] %v4392, 128
    %4405 = vxpose.xlu0.b32.cont [9/16] %v4393, 128
    %4406 = vxpose.xlu0.b32.cont [10/16] %v4394, 128
    %4407 = vxpose.xlu0.b32.cont [11/16] %v4395, 128
    %4408 = vxpose.xlu0.b32.cont [12/16] %v4396, 128
    %4409 = vxpose.xlu0.b32.cont [13/16] 0.0, 128
    %4410 = vxpose.xlu0.b32.cont [14/16] 0.0, 128
    %4411 = vxpose.xlu0.b32.cont [15/16] 0.0, 128
    %4412 = vxpose.xlu0.b32.end [16/16] 0.0, 128
    %v4413 = vpop.trf.xlu0
    %v4414 = vpop.trf.xlu0
    %v4415 = vpop.trf.xlu0
    %v4416 = vpop.trf.xlu0
    %v4417 = vpop.trf.xlu0
    %v4418 = vpop.trf.xlu0
    %v4419 = vpop.trf.xlu0
    %v4420 = vpop.trf.xlu0
    %v4421 = vpop.trf.xlu0
    %v4422 = vpop.trf.xlu0
    %v4423 = vpop.trf.xlu0
    %v4424 = vpop.trf.xlu0
    %v4425 = vpop.trf.xlu0
    %v4426 = vpop.trf.xlu0
    %v4427 = vpop.trf.xlu0
    %v4428 = vpop.trf.xlu0
    %v4430 = vsel %vm556, %v4413, 0
    %v4433 = vsel %vm556, %v4414, 0
    %v4436 = vsel %vm556, %v4415, 0
    %v4439 = vsel %vm556, %v4416, 0
    %v4442 = vsel %vm556, %v4417, 0
    %4444 = vmatpush.msra.mxu0 0.0
    %4445 = vmatpush.msra.mxu0 0.0
    %4446 = vmatpush.msra.mxu0 0.0
    %4447 = vmatpush.msra.mxu0 0.0
    %v4448 = vand.u32 %v4384, 4294901760
    %4449 = vmatpush.msra.mxu0 %v4448
    %v4450 = vand.u32 %v4383, 4294901760
    %4451 = vmatpush.msra.mxu0 %v4450
    %v4452 = vand.u32 %v4382, 4294901760
    %4453 = vmatpush.msra.mxu0 %v4452
    %v4454 = vand.u32 %v4381, 4294901760
    %4455 = vmatpush.msra.mxu0 %v4454
    %v4456 = vand.u32 %v4380, 4294901760
    %4457 = vmatpush.msra.mxu0 %v4456
    %v4458 = vand.u32 %v4379, 4294901760
    %4459 = vmatpush.msra.mxu0 %v4458
    %v4460 = vand.u32 %v4378, 4294901760
    %4461 = vmatpush.msra.mxu0 %v4460
    %v4462 = vand.u32 %v4377, 4294901760
    %4463 = vmatpush.msra.mxu0 %v4462
    %v4464 = vand.u32 %v4376, 4294901760
    %4465 = vmatpush.msra.mxu0 %v4464
    %v4466 = vand.u32 %v4375, 4294901760
    %4467 = vmatpush.msra.mxu0 %v4466
    %v4468 = vand.u32 %v4374, 4294901760
    %4469 = vmatpush.msra.mxu0 %v4468
    %v4470 = vand.u32 %v4373, 4294901760
    %4471 = vmatpush.msra.mxu0 %v4470
    %v4472 = vand.u32 %v4430, 4294901760
    %v4473 = vsub.f32 %v4430, %v4472
    %v4474 = vand.u32 %v4473, 4294901760
    %v4475 = vsub.f32 %v4473, %v4474
    %v4476 = vand.u32 %v4475, 4294901760
    %4477 = vmatmul.f32.gmra.mxu0 %v4476
    %v4478 = vpop.f32.mrf.mxu0
    %v4479 = vadd.f32 0.0, %v4478
    %v4480 = vand.u32 %v4433, 4294901760
    %v4481 = vsub.f32 %v4433, %v4480
    %v4482 = vand.u32 %v4481, 4294901760
    %v4483 = vsub.f32 %v4481, %v4482
    %v4484 = vand.u32 %v4483, 4294901760
    %4485 = vmatmul.f32.gmra.mxu0 %v4484
    %v4486 = vpop.f32.mrf.mxu0
    %v4487 = vadd.f32 0.0, %v4486
    %v4488 = vand.u32 %v4436, 4294901760
    %v4489 = vsub.f32 %v4436, %v4488
    %v4490 = vand.u32 %v4489, 4294901760
    %v4491 = vsub.f32 %v4489, %v4490
    %v4492 = vand.u32 %v4491, 4294901760
    %4493 = vmatmul.f32.gmra.mxu0 %v4492
    %v4494 = vpop.f32.mrf.mxu0
    %v4495 = vadd.f32 0.0, %v4494
    %v4496 = vand.u32 %v4439, 4294901760
    %v4497 = vsub.f32 %v4439, %v4496
    %v4498 = vand.u32 %v4497, 4294901760
    %v4499 = vsub.f32 %v4497, %v4498
    %v4500 = vand.u32 %v4499, 4294901760
    %4501 = vmatmul.f32.gmra.mxu0 %v4500
    %v4502 = vpop.f32.mrf.mxu0
    %v4503 = vadd.f32 0.0, %v4502
    %v4504 = vand.u32 %v4442, 4294901760
    %v4505 = vsub.f32 %v4442, %v4504
    %v4506 = vand.u32 %v4505, 4294901760
    %v4507 = vsub.f32 %v4505, %v4506
    %v4508 = vand.u32 %v4507, 4294901760
    %4509 = vmatmul.f32.gmra.mxu0 %v4508
    %v4510 = vpop.f32.mrf.mxu0
    %v4511 = vadd.f32 0.0, %v4510
    %4512 = vdwg.mxu0
    %4513 = vmatpush.msra.mxu0 0.0
    %4514 = vmatpush.msra.mxu0 0.0
    %4515 = vmatpush.msra.mxu0 0.0
    %4516 = vmatpush.msra.mxu0 0.0
    %v4517 = vand.u32 %v4384, 4294901760
    %v4518 = vsub.f32 %v4384, %v4517
    %v4519 = vand.u32 %v4518, 4294901760
    %v4520 = vsub.f32 %v4518, %v4519
    %v4521 = vand.u32 %v4520, 4294901760
    %4522 = vmatpush.msra.mxu0 %v4521
    %v4523 = vand.u32 %v4383, 4294901760
    %v4524 = vsub.f32 %v4383, %v4523
    %v4525 = vand.u32 %v4524, 4294901760
    %v4526 = vsub.f32 %v4524, %v4525
    %v4527 = vand.u32 %v4526, 4294901760
    %4528 = vmatpush.msra.mxu0 %v4527
    %v4529 = vand.u32 %v4382, 4294901760
    %v4530 = vsub.f32 %v4382, %v4529
    %v4531 = vand.u32 %v4530, 4294901760
    %v4532 = vsub.f32 %v4530, %v4531
    %v4533 = vand.u32 %v4532, 4294901760
    %4534 = vmatpush.msra.mxu0 %v4533
    %v4535 = vand.u32 %v4381, 4294901760
    %v4536 = vsub.f32 %v4381, %v4535
    %v4537 = vand.u32 %v4536, 4294901760
    %v4538 = vsub.f32 %v4536, %v4537
    %v4539 = vand.u32 %v4538, 4294901760
    %4540 = vmatpush.msra.mxu0 %v4539
    %v4541 = vand.u32 %v4380, 4294901760
    %v4542 = vsub.f32 %v4380, %v4541
    %v4543 = vand.u32 %v4542, 4294901760
    %v4544 = vsub.f32 %v4542, %v4543
    %v4545 = vand.u32 %v4544, 4294901760
    %4546 = vmatpush.msra.mxu0 %v4545
    %v4547 = vand.u32 %v4379, 4294901760
    %v4548 = vsub.f32 %v4379, %v4547
    %v4549 = vand.u32 %v4548, 4294901760
    %v4550 = vsub.f32 %v4548, %v4549
    %v4551 = vand.u32 %v4550, 4294901760
    %4552 = vmatpush.msra.mxu0 %v4551
    %v4553 = vand.u32 %v4378, 4294901760
    %v4554 = vsub.f32 %v4378, %v4553
    %v4555 = vand.u32 %v4554, 4294901760
    %v4556 = vsub.f32 %v4554, %v4555
    %v4557 = vand.u32 %v4556, 4294901760
    %4558 = vmatpush.msra.mxu0 %v4557
    %v4559 = vand.u32 %v4377, 4294901760
    %v4560 = vsub.f32 %v4377, %v4559
    %v4561 = vand.u32 %v4560, 4294901760
    %v4562 = vsub.f32 %v4560, %v4561
    %v4563 = vand.u32 %v4562, 4294901760
    %4564 = vmatpush.msra.mxu0 %v4563
    %v4565 = vand.u32 %v4376, 4294901760
    %v4566 = vsub.f32 %v4376, %v4565
    %v4567 = vand.u32 %v4566, 4294901760
    %v4568 = vsub.f32 %v4566, %v4567
    %v4569 = vand.u32 %v4568, 4294901760
    %4570 = vmatpush.msra.mxu0 %v4569
    %v4571 = vand.u32 %v4375, 4294901760
    %v4572 = vsub.f32 %v4375, %v4571
    %v4573 = vand.u32 %v4572, 4294901760
    %v4574 = vsub.f32 %v4572, %v4573
    %v4575 = vand.u32 %v4574, 4294901760
    %4576 = vmatpush.msra.mxu0 %v4575
    %v4577 = vand.u32 %v4374, 4294901760
    %v4578 = vsub.f32 %v4374, %v4577
    %v4579 = vand.u32 %v4578, 4294901760
    %v4580 = vsub.f32 %v4578, %v4579
    %v4581 = vand.u32 %v4580, 4294901760
    %4582 = vmatpush.msra.mxu0 %v4581
    %v4583 = vand.u32 %v4373, 4294901760
    %v4584 = vsub.f32 %v4373, %v4583
    %v4585 = vand.u32 %v4584, 4294901760
    %v4586 = vsub.f32 %v4584, %v4585
    %v4587 = vand.u32 %v4586, 4294901760
    %4588 = vmatpush.msra.mxu0 %v4587
    %v4589 = vand.u32 %v4430, 4294901760
    %4590 = vmatmul.f32.gmra.mxu0 %v4589
    %v4591 = vpop.f32.mrf.mxu0
    %v4592 = vadd.f32 %v4479, %v4591
    %v4593 = vand.u32 %v4433, 4294901760
    %4594 = vmatmul.f32.gmra.mxu0 %v4593
    %v4595 = vpop.f32.mrf.mxu0
    %v4596 = vadd.f32 %v4487, %v4595
    %v4597 = vand.u32 %v4436, 4294901760
    %4598 = vmatmul.f32.gmra.mxu0 %v4597
    %v4599 = vpop.f32.mrf.mxu0
    %v4600 = vadd.f32 %v4495, %v4599
    %v4601 = vand.u32 %v4439, 4294901760
    %4602 = vmatmul.f32.gmra.mxu0 %v4601
    %v4603 = vpop.f32.mrf.mxu0
    %v4604 = vadd.f32 %v4503, %v4603
    %v4605 = vand.u32 %v4442, 4294901760
    %4606 = vmatmul.f32.gmra.mxu0 %v4605
    %v4607 = vpop.f32.mrf.mxu0
    %v4608 = vadd.f32 %v4511, %v4607
    %4609 = vdwg.mxu0
    %4610 = vmatpush.msra.mxu0 0.0
    %4611 = vmatpush.msra.mxu0 0.0
    %4612 = vmatpush.msra.mxu0 0.0
    %4613 = vmatpush.msra.mxu0 0.0
    %v4614 = vand.u32 %v4384, 4294901760
    %v4615 = vsub.f32 %v4384, %v4614
    %4616 = vmatpush.msra.mxu0 %v4615
    %v4617 = vand.u32 %v4383, 4294901760
    %v4618 = vsub.f32 %v4383, %v4617
    %4619 = vmatpush.msra.mxu0 %v4618
    %v4620 = vand.u32 %v4382, 4294901760
    %v4621 = vsub.f32 %v4382, %v4620
    %4622 = vmatpush.msra.mxu0 %v4621
    %v4623 = vand.u32 %v4381, 4294901760
    %v4624 = vsub.f32 %v4381, %v4623
    %4625 = vmatpush.msra.mxu0 %v4624
    %v4626 = vand.u32 %v4380, 4294901760
    %v4627 = vsub.f32 %v4380, %v4626
    %4628 = vmatpush.msra.mxu0 %v4627
    %v4629 = vand.u32 %v4379, 4294901760
    %v4630 = vsub.f32 %v4379, %v4629
    %4631 = vmatpush.msra.mxu0 %v4630
    %v4632 = vand.u32 %v4378, 4294901760
    %v4633 = vsub.f32 %v4378, %v4632
    %4634 = vmatpush.msra.mxu0 %v4633
    %v4635 = vand.u32 %v4377, 4294901760
    %v4636 = vsub.f32 %v4377, %v4635
    %4637 = vmatpush.msra.mxu0 %v4636
    %v4638 = vand.u32 %v4376, 4294901760
    %v4639 = vsub.f32 %v4376, %v4638
    %4640 = vmatpush.msra.mxu0 %v4639
    %v4641 = vand.u32 %v4375, 4294901760
    %v4642 = vsub.f32 %v4375, %v4641
    %4643 = vmatpush.msra.mxu0 %v4642
    %v4644 = vand.u32 %v4374, 4294901760
    %v4645 = vsub.f32 %v4374, %v4644
    %4646 = vmatpush.msra.mxu0 %v4645
    %v4647 = vand.u32 %v4373, 4294901760
    %v4648 = vsub.f32 %v4373, %v4647
    %4649 = vmatpush.msra.mxu0 %v4648
    %v4650 = vand.u32 %v4430, 4294901760
    %v4651 = vsub.f32 %v4430, %v4650
    %4652 = vmatmul.f32.gmra.mxu0 %v4651
    %v4653 = vpop.f32.mrf.mxu0
    %v4654 = vadd.f32 %v4592, %v4653
    %v4655 = vand.u32 %v4433, 4294901760
    %v4656 = vsub.f32 %v4433, %v4655
    %4657 = vmatmul.f32.gmra.mxu0 %v4656
    %v4658 = vpop.f32.mrf.mxu0
    %v4659 = vadd.f32 %v4596, %v4658
    %v4660 = vand.u32 %v4436, 4294901760
    %v4661 = vsub.f32 %v4436, %v4660
    %4662 = vmatmul.f32.gmra.mxu0 %v4661
    %v4663 = vpop.f32.mrf.mxu0
    %v4664 = vadd.f32 %v4600, %v4663
    %v4665 = vand.u32 %v4439, 4294901760
    %v4666 = vsub.f32 %v4439, %v4665
    %4667 = vmatmul.f32.gmra.mxu0 %v4666
    %v4668 = vpop.f32.mrf.mxu0
    %v4669 = vadd.f32 %v4604, %v4668
    %v4670 = vand.u32 %v4442, 4294901760
    %v4671 = vsub.f32 %v4442, %v4670
    %4672 = vmatmul.f32.gmra.mxu0 %v4671
    %v4673 = vpop.f32.mrf.mxu0
    %v4674 = vadd.f32 %v4608, %v4673
    %4675 = vdwg.mxu0
    %4676 = vmatpush.msra.mxu0 0.0
    %4677 = vmatpush.msra.mxu0 0.0
    %4678 = vmatpush.msra.mxu0 0.0
    %4679 = vmatpush.msra.mxu0 0.0
    %v4680 = vand.u32 %v4384, 4294901760
    %4681 = vmatpush.msra.mxu0 %v4680
    %v4682 = vand.u32 %v4383, 4294901760
    %4683 = vmatpush.msra.mxu0 %v4682
    %v4684 = vand.u32 %v4382, 4294901760
    %4685 = vmatpush.msra.mxu0 %v4684
    %v4686 = vand.u32 %v4381, 4294901760
    %4687 = vmatpush.msra.mxu0 %v4686
    %v4688 = vand.u32 %v4380, 4294901760
    %4689 = vmatpush.msra.mxu0 %v4688
    %v4690 = vand.u32 %v4379, 4294901760
    %4691 = vmatpush.msra.mxu0 %v4690
    %v4692 = vand.u32 %v4378, 4294901760
    %4693 = vmatpush.msra.mxu0 %v4692
    %v4694 = vand.u32 %v4377, 4294901760
    %4695 = vmatpush.msra.mxu0 %v4694
    %v4696 = vand.u32 %v4376, 4294901760
    %4697 = vmatpush.msra.mxu0 %v4696
    %v4698 = vand.u32 %v4375, 4294901760
    %4699 = vmatpush.msra.mxu0 %v4698
    %v4700 = vand.u32 %v4374, 4294901760
    %4701 = vmatpush.msra.mxu0 %v4700
    %v4702 = vand.u32 %v4373, 4294901760
    %4703 = vmatpush.msra.mxu0 %v4702
    %v4704 = vand.u32 %v4430, 4294901760
    %v4705 = vsub.f32 %v4430, %v4704
    %v4706 = vand.u32 %v4705, 4294901760
    %4707 = vmatmul.f32.gmra.mxu0 %v4706
    %v4708 = vpop.f32.mrf.mxu0
    %v4709 = vadd.f32 %v4654, %v4708
    %v4710 = vand.u32 %v4433, 4294901760
    %v4711 = vsub.f32 %v4433, %v4710
    %v4712 = vand.u32 %v4711, 4294901760
    %4713 = vmatmul.f32.gmra.mxu0 %v4712
    %v4714 = vpop.f32.mrf.mxu0
    %v4715 = vadd.f32 %v4659, %v4714
    %v4716 = vand.u32 %v4436, 4294901760
    %v4717 = vsub.f32 %v4436, %v4716
    %v4718 = vand.u32 %v4717, 4294901760
    %4719 = vmatmul.f32.gmra.mxu0 %v4718
    %v4720 = vpop.f32.mrf.mxu0
    %v4721 = vadd.f32 %v4664, %v4720
    %v4722 = vand.u32 %v4439, 4294901760
    %v4723 = vsub.f32 %v4439, %v4722
    %v4724 = vand.u32 %v4723, 4294901760
    %4725 = vmatmul.f32.gmra.mxu0 %v4724
    %v4726 = vpop.f32.mrf.mxu0
    %v4727 = vadd.f32 %v4669, %v4726
    %v4728 = vand.u32 %v4442, 4294901760
    %v4729 = vsub.f32 %v4442, %v4728
    %v4730 = vand.u32 %v4729, 4294901760
    %4731 = vmatmul.f32.gmra.mxu0 %v4730
    %v4732 = vpop.f32.mrf.mxu0
    %v4733 = vadd.f32 %v4674, %v4732
    %4734 = vdwg.mxu0
    %4735 = vmatpush.msra.mxu0 0.0
    %4736 = vmatpush.msra.mxu0 0.0
    %4737 = vmatpush.msra.mxu0 0.0
    %4738 = vmatpush.msra.mxu0 0.0
    %v4739 = vand.u32 %v4384, 4294901760
    %v4740 = vsub.f32 %v4384, %v4739
    %v4741 = vand.u32 %v4740, 4294901760
    %4742 = vmatpush.msra.mxu0 %v4741
    %v4743 = vand.u32 %v4383, 4294901760
    %v4744 = vsub.f32 %v4383, %v4743
    %v4745 = vand.u32 %v4744, 4294901760
    %4746 = vmatpush.msra.mxu0 %v4745
    %v4747 = vand.u32 %v4382, 4294901760
    %v4748 = vsub.f32 %v4382, %v4747
    %v4749 = vand.u32 %v4748, 4294901760
    %4750 = vmatpush.msra.mxu0 %v4749
    %v4751 = vand.u32 %v4381, 4294901760
    %v4752 = vsub.f32 %v4381, %v4751
    %v4753 = vand.u32 %v4752, 4294901760
    %4754 = vmatpush.msra.mxu0 %v4753
    %v4755 = vand.u32 %v4380, 4294901760
    %v4756 = vsub.f32 %v4380, %v4755
    %v4757 = vand.u32 %v4756, 4294901760
    %4758 = vmatpush.msra.mxu0 %v4757
    %v4759 = vand.u32 %v4379, 4294901760
    %v4760 = vsub.f32 %v4379, %v4759
    %v4761 = vand.u32 %v4760, 4294901760
    %4762 = vmatpush.msra.mxu0 %v4761
    %v4763 = vand.u32 %v4378, 4294901760
    %v4764 = vsub.f32 %v4378, %v4763
    %v4765 = vand.u32 %v4764, 4294901760
    %4766 = vmatpush.msra.mxu0 %v4765
    %v4767 = vand.u32 %v4377, 4294901760
    %v4768 = vsub.f32 %v4377, %v4767
    %v4769 = vand.u32 %v4768, 4294901760
    %4770 = vmatpush.msra.mxu0 %v4769
    %v4771 = vand.u32 %v4376, 4294901760
    %v4772 = vsub.f32 %v4376, %v4771
    %v4773 = vand.u32 %v4772, 4294901760
    %4774 = vmatpush.msra.mxu0 %v4773
    %v4775 = vand.u32 %v4375, 4294901760
    %v4776 = vsub.f32 %v4375, %v4775
    %v4777 = vand.u32 %v4776, 4294901760
    %4778 = vmatpush.msra.mxu0 %v4777
    %v4779 = vand.u32 %v4374, 4294901760
    %v4780 = vsub.f32 %v4374, %v4779
    %v4781 = vand.u32 %v4780, 4294901760
    %4782 = vmatpush.msra.mxu0 %v4781
    %v4783 = vand.u32 %v4373, 4294901760
    %v4784 = vsub.f32 %v4373, %v4783
    %v4785 = vand.u32 %v4784, 4294901760
    %4786 = vmatpush.msra.mxu0 %v4785
    %v4787 = vand.u32 %v4430, 4294901760
    %4788 = vmatmul.f32.gmra.mxu0 %v4787
    %v4789 = vpop.f32.mrf.mxu0
    %v4790 = vadd.f32 %v4709, %v4789
    %v4791 = vand.u32 %v4433, 4294901760
    %4792 = vmatmul.f32.gmra.mxu0 %v4791
    %v4793 = vpop.f32.mrf.mxu0
    %v4794 = vadd.f32 %v4715, %v4793
    %v4795 = vand.u32 %v4436, 4294901760
    %4796 = vmatmul.f32.gmra.mxu0 %v4795
    %v4797 = vpop.f32.mrf.mxu0
    %v4798 = vadd.f32 %v4721, %v4797
    %v4799 = vand.u32 %v4439, 4294901760
    %4800 = vmatmul.f32.gmra.mxu0 %v4799
    %v4801 = vpop.f32.mrf.mxu0
    %v4802 = vadd.f32 %v4727, %v4801
    %v4803 = vand.u32 %v4442, 4294901760
    %4804 = vmatmul.f32.gmra.mxu0 %v4803
    %v4805 = vpop.f32.mrf.mxu0
    %v4806 = vadd.f32 %v4733, %v4805
    %4807 = vdwg.mxu0
    %4808 = vmatpush.msra.mxu0 0.0
    %4809 = vmatpush.msra.mxu0 0.0
    %4810 = vmatpush.msra.mxu0 0.0
    %4811 = vmatpush.msra.mxu0 0.0
    %v4812 = vand.u32 %v4384, 4294901760
    %4813 = vmatpush.msra.mxu0 %v4812
    %v4814 = vand.u32 %v4383, 4294901760
    %4815 = vmatpush.msra.mxu0 %v4814
    %v4816 = vand.u32 %v4382, 4294901760
    %4817 = vmatpush.msra.mxu0 %v4816
    %v4818 = vand.u32 %v4381, 4294901760
    %4819 = vmatpush.msra.mxu0 %v4818
    %v4820 = vand.u32 %v4380, 4294901760
    %4821 = vmatpush.msra.mxu0 %v4820
    %v4822 = vand.u32 %v4379, 4294901760
    %4823 = vmatpush.msra.mxu0 %v4822
    %v4824 = vand.u32 %v4378, 4294901760
    %4825 = vmatpush.msra.mxu0 %v4824
    %v4826 = vand.u32 %v4377, 4294901760
    %4827 = vmatpush.msra.mxu0 %v4826
    %v4828 = vand.u32 %v4376, 4294901760
    %4829 = vmatpush.msra.mxu0 %v4828
    %v4830 = vand.u32 %v4375, 4294901760
    %4831 = vmatpush.msra.mxu0 %v4830
    %v4832 = vand.u32 %v4374, 4294901760
    %4833 = vmatpush.msra.mxu0 %v4832
    %v4834 = vand.u32 %v4373, 4294901760
    %4835 = vmatpush.msra.mxu0 %v4834
    %v4836 = vand.u32 %v4430, 4294901760
    %4837 = vmatmul.f32.gmra.mxu0 %v4836
    %v4838 = vpop.f32.mrf.mxu0
    %v4839 = vadd.f32 %v4790, %v4838
    %v4840 = vand.u32 %v4433, 4294901760
    %4841 = vmatmul.f32.gmra.mxu0 %v4840
    %v4842 = vpop.f32.mrf.mxu0
    %v4843 = vadd.f32 %v4794, %v4842
    %v4844 = vand.u32 %v4436, 4294901760
    %4845 = vmatmul.f32.gmra.mxu0 %v4844
    %v4846 = vpop.f32.mrf.mxu0
    %v4847 = vadd.f32 %v4798, %v4846
    %v4848 = vand.u32 %v4439, 4294901760
    %4849 = vmatmul.f32.gmra.mxu0 %v4848
    %v4850 = vpop.f32.mrf.mxu0
    %v4851 = vadd.f32 %v4802, %v4850
    %v4852 = vand.u32 %v4442, 4294901760
    %4853 = vmatmul.f32.gmra.mxu0 %v4852
    %v4854 = vpop.f32.mrf.mxu0
    %v4855 = vadd.f32 %v4806, %v4854
    %4856 = vdwg.mxu0
    %v4857 = vmul.f32 %v4329, %v4839
    %v4858 = vmul.f32 %v4333, %v4843
    %v4859 = vmul.f32 %v4337, %v4847
    %v4860 = vmul.f32 %v4341, %v4851
    %v4861 = vmul.f32 %v4345, %v4855
    %v4862 = vadd.f32 %v4857, %v4858
    %v4863 = vadd.f32 %v4862, %v4859
    %v4864 = vadd.f32 %v4863, %v4860
    %v4865 = vadd.f32 %v4864, %v4861
    %v4866 = vrot.slane %v4865, 4
    %v4867 = vadd.f32 %v4865, %v4866
    %v4868 = vrot.slane %v4867, 2
    %v4869 = vadd.f32 %v4867, %v4868
    %v4870 = vrot.slane %v4869, 1
    %v4871 = vadd.f32 %v4869, %v4870
    %4872 = vst [vmem:[#allocation2 + $0x4] sm:$0x1] %v4871
    %v4873 = vld [vmem:[%s0 + $0x5] sm:$0x1]
    %v4874 = vperm.slane %v4873, 0
    %vm4875 = vcmp.eq.s32.totalorder %v20, %v4874
    %vm4876 = vcmp.eq.s32.totalorder %v21, %v4874
    %vm4877 = vcmp.eq.s32.totalorder %v22, %v4874
    %vm4878 = vcmp.eq.s32.totalorder %v23, %v4874
    %vm4879 = vcmp.eq.s32.totalorder %v24, %v4874
    %vm4880 = vcmp.eq.s32.totalorder %v25, %v4874
    %vm4881 = vcmp.eq.s32.totalorder %v26, %v4874
    %vm4882 = vcmp.eq.s32.totalorder %v27, %v4874
    %v4883 = vsel %vm4875, 1, 0
    %v4884 = vsel %vm4876, 1, 0
    %v4885 = vsel %vm4877, 1, 0
    %v4886 = vsel %vm4878, 1, 0
    %v4887 = vsel %vm4879, 1, 0
    %v4888 = vsel %vm4880, 1, 0
    %v4889 = vsel %vm4881, 1, 0
    %v4890 = vsel %vm4882, 1, 0
    %v4891 = vcvt.s32.f32 %v4883
    %v4892 = vcvt.s32.f32 %v4884
    %v4893 = vcvt.s32.f32 %v4885
    %v4894 = vcvt.s32.f32 %v4886
    %v4895 = vcvt.s32.f32 %v4887
    %v4896 = vcvt.s32.f32 %v4888
    %v4897 = vcvt.s32.f32 %v4889
    %v4898 = vcvt.s32.f32 %v4890
    %v4899 = vld [vmem:[%s2] sm:$0xff]
    %v4900 = vld [vmem:[%s2 + $0x8] sm:$0xff]
    %v4901 = vld [vmem:[%s2 + $0x10] sm:$0xff]
    %v4902 = vld [vmem:[%s2 + $0x18] sm:$0xff]
    %v4903 = vld [vmem:[%s2 + $0x20] sm:$0xff]
    %v4904 = vld [vmem:[%s2 + $0x28] sm:$0xff]
    %v4905 = vld [vmem:[%s2 + $0x30] sm:$0xff]
    %v4906 = vld [vmem:[%s2 + $0x38] sm:$0xff]
    %4907 = vxpose.xlu0.b32.start [1/16] %v4899, 128
    %4908 = vxpose.xlu0.b32.cont [2/16] %v4900, 128
    %4909 = vxpose.xlu0.b32.cont [3/16] %v4901, 128
    %4910 = vxpose.xlu0.b32.cont [4/16] %v4902, 128
    %4911 = vxpose.xlu0.b32.cont [5/16] %v4903, 128
    %4912 = vxpose.xlu0.b32.cont [6/16] %v4904, 128
    %4913 = vxpose.xlu0.b32.cont [7/16] %v4905, 128
    %4914 = vxpose.xlu0.b32.cont [8/16] %v4906, 128
    %4915 = vxpose.xlu0.b32.cont [9/16] 0.0, 128
    %4916 = vxpose.xlu0.b32.cont [10/16] 0.0, 128
    %4917 = vxpose.xlu0.b32.cont [11/16] 0.0, 128
    %4918 = vxpose.xlu0.b32.cont [12/16] 0.0, 128
    %4919 = vxpose.xlu0.b32.cont [13/16] 0.0, 128
    %4920 = vxpose.xlu0.b32.cont [14/16] 0.0, 128
    %4921 = vxpose.xlu0.b32.cont [15/16] 0.0, 128
    %4922 = vxpose.xlu0.b32.end [16/16] 0.0, 128
    %v4923 = vpop.trf.xlu0
    %v4924 = vpop.trf.xlu0
    %v4925 = vpop.trf.xlu0
    %v4926 = vpop.trf.xlu0
    %v4927 = vpop.trf.xlu0
    %v4928 = vpop.trf.xlu0
    %v4929 = vpop.trf.xlu0
    %v4930 = vpop.trf.xlu0
    %v4931 = vpop.trf.xlu0
    %v4932 = vpop.trf.xlu0
    %v4933 = vpop.trf.xlu0
    %v4934 = vpop.trf.xlu0
    %v4935 = vpop.trf.xlu0
    %v4936 = vpop.trf.xlu0
    %v4937 = vpop.trf.xlu0
    %v4938 = vpop.trf.xlu0
    %v4940 = vsel %vm93, %v4923, 0
    %v4943 = vsel %vm93, %v4924, 0
    %v4946 = vsel %vm93, %v4925, 0
    %v4949 = vsel %vm93, %v4926, 0
    %v4952 = vsel %vm93, %v4927, 0
    %4954 = vmatpush.msra.mxu0 0.0
    %4955 = vmatpush.msra.mxu0 0.0
    %4956 = vmatpush.msra.mxu0 0.0
    %4957 = vmatpush.msra.mxu0 0.0
    %4958 = vmatpush.msra.mxu0 0.0
    %4959 = vmatpush.msra.mxu0 0.0
    %4960 = vmatpush.msra.mxu0 0.0
    %4961 = vmatpush.msra.mxu0 0.0
    %v4962 = vand.u32 %v4898, 4294901760
    %4963 = vmatpush.msra.mxu0 %v4962
    %v4964 = vand.u32 %v4897, 4294901760
    %4965 = vmatpush.msra.mxu0 %v4964
    %v4966 = vand.u32 %v4896, 4294901760
    %4967 = vmatpush.msra.mxu0 %v4966
    %v4968 = vand.u32 %v4895, 4294901760
    %4969 = vmatpush.msra.mxu0 %v4968
    %v4970 = vand.u32 %v4894, 4294901760
    %4971 = vmatpush.msra.mxu0 %v4970
    %v4972 = vand.u32 %v4893, 4294901760
    %4973 = vmatpush.msra.mxu0 %v4972
    %v4974 = vand.u32 %v4892, 4294901760
    %4975 = vmatpush.msra.mxu0 %v4974
    %v4976 = vand.u32 %v4891, 4294901760
    %4977 = vmatpush.msra.mxu0 %v4976
    %v4978 = vand.u32 %v4940, 4294901760
    %v4979 = vsub.f32 %v4940, %v4978
    %v4980 = vand.u32 %v4979, 4294901760
    %v4981 = vsub.f32 %v4979, %v4980
    %v4982 = vand.u32 %v4981, 4294901760
    %4983 = vmatmul.f32.gmra.mxu0 %v4982
    %v4984 = vpop.f32.mrf.mxu0
    %v4985 = vadd.f32 0.0, %v4984
    %v4986 = vand.u32 %v4943, 4294901760
    %v4987 = vsub.f32 %v4943, %v4986
    %v4988 = vand.u32 %v4987, 4294901760
    %v4989 = vsub.f32 %v4987, %v4988
    %v4990 = vand.u32 %v4989, 4294901760
    %4991 = vmatmul.f32.gmra.mxu0 %v4990
    %v4992 = vpop.f32.mrf.mxu0
    %v4993 = vadd.f32 0.0, %v4992
    %v4994 = vand.u32 %v4946, 4294901760
    %v4995 = vsub.f32 %v4946, %v4994
    %v4996 = vand.u32 %v4995, 4294901760
    %v4997 = vsub.f32 %v4995, %v4996
    %v4998 = vand.u32 %v4997, 4294901760
    %4999 = vmatmul.f32.gmra.mxu0 %v4998
    %v5000 = vpop.f32.mrf.mxu0
    %v5001 = vadd.f32 0.0, %v5000
    %v5002 = vand.u32 %v4949, 4294901760
    %v5003 = vsub.f32 %v4949, %v5002
    %v5004 = vand.u32 %v5003, 4294901760
    %v5005 = vsub.f32 %v5003, %v5004
    %v5006 = vand.u32 %v5005, 4294901760
    %5007 = vmatmul.f32.gmra.mxu0 %v5006
    %v5008 = vpop.f32.mrf.mxu0
    %v5009 = vadd.f32 0.0, %v5008
    %v5010 = vand.u32 %v4952, 4294901760
    %v5011 = vsub.f32 %v4952, %v5010
    %v5012 = vand.u32 %v5011, 4294901760
    %v5013 = vsub.f32 %v5011, %v5012
    %v5014 = vand.u32 %v5013, 4294901760
    %5015 = vmatmul.f32.gmra.mxu0 %v5014
    %v5016 = vpop.f32.mrf.mxu0
    %v5017 = vadd.f32 0.0, %v5016
    %5018 = vdwg.mxu0
    %5019 = vmatpush.msra.mxu0 0.0
    %5020 = vmatpush.msra.mxu0 0.0
    %5021 = vmatpush.msra.mxu0 0.0
    %5022 = vmatpush.msra.mxu0 0.0
    %5023 = vmatpush.msra.mxu0 0.0
    %5024 = vmatpush.msra.mxu0 0.0
    %5025 = vmatpush.msra.mxu0 0.0
    %5026 = vmatpush.msra.mxu0 0.0
    %v5027 = vand.u32 %v4898, 4294901760
    %v5028 = vsub.f32 %v4898, %v5027
    %v5029 = vand.u32 %v5028, 4294901760
    %v5030 = vsub.f32 %v5028, %v5029
    %v5031 = vand.u32 %v5030, 4294901760
    %5032 = vmatpush.msra.mxu0 %v5031
    %v5033 = vand.u32 %v4897, 4294901760
    %v5034 = vsub.f32 %v4897, %v5033
    %v5035 = vand.u32 %v5034, 4294901760
    %v5036 = vsub.f32 %v5034, %v5035
    %v5037 = vand.u32 %v5036, 4294901760
    %5038 = vmatpush.msra.mxu0 %v5037
    %v5039 = vand.u32 %v4896, 4294901760
    %v5040 = vsub.f32 %v4896, %v5039
    %v5041 = vand.u32 %v5040, 4294901760
    %v5042 = vsub.f32 %v5040, %v5041
    %v5043 = vand.u32 %v5042, 4294901760
    %5044 = vmatpush.msra.mxu0 %v5043
    %v5045 = vand.u32 %v4895, 4294901760
    %v5046 = vsub.f32 %v4895, %v5045
    %v5047 = vand.u32 %v5046, 4294901760
    %v5048 = vsub.f32 %v5046, %v5047
    %v5049 = vand.u32 %v5048, 4294901760
    %5050 = vmatpush.msra.mxu0 %v5049
    %v5051 = vand.u32 %v4894, 4294901760
    %v5052 = vsub.f32 %v4894, %v5051
    %v5053 = vand.u32 %v5052, 4294901760
    %v5054 = vsub.f32 %v5052, %v5053
    %v5055 = vand.u32 %v5054, 4294901760
    %5056 = vmatpush.msra.mxu0 %v5055
    %v5057 = vand.u32 %v4893, 4294901760
    %v5058 = vsub.f32 %v4893, %v5057
    %v5059 = vand.u32 %v5058, 4294901760
    %v5060 = vsub.f32 %v5058, %v5059
    %v5061 = vand.u32 %v5060, 4294901760
    %5062 = vmatpush.msra.mxu0 %v5061
    %v5063 = vand.u32 %v4892, 4294901760
    %v5064 = vsub.f32 %v4892, %v5063
    %v5065 = vand.u32 %v5064, 4294901760
    %v5066 = vsub.f32 %v5064, %v5065
    %v5067 = vand.u32 %v5066, 4294901760
    %5068 = vmatpush.msra.mxu0 %v5067
    %v5069 = vand.u32 %v4891, 4294901760
    %v5070 = vsub.f32 %v4891, %v5069
    %v5071 = vand.u32 %v5070, 4294901760
    %v5072 = vsub.f32 %v5070, %v5071
    %v5073 = vand.u32 %v5072, 4294901760
    %5074 = vmatpush.msra.mxu0 %v5073
    %v5075 = vand.u32 %v4940, 4294901760
    %5076 = vmatmul.f32.gmra.mxu0 %v5075
    %v5077 = vpop.f32.mrf.mxu0
    %v5078 = vadd.f32 %v4985, %v5077
    %v5079 = vand.u32 %v4943, 4294901760
    %5080 = vmatmul.f32.gmra.mxu0 %v5079
    %v5081 = vpop.f32.mrf.mxu0
    %v5082 = vadd.f32 %v4993, %v5081
    %v5083 = vand.u32 %v4946, 4294901760
    %5084 = vmatmul.f32.gmra.mxu0 %v5083
    %v5085 = vpop.f32.mrf.mxu0
    %v5086 = vadd.f32 %v5001, %v5085
    %v5087 = vand.u32 %v4949, 4294901760
    %5088 = vmatmul.f32.gmra.mxu0 %v5087
    %v5089 = vpop.f32.mrf.mxu0
    %v5090 = vadd.f32 %v5009, %v5089
    %v5091 = vand.u32 %v4952, 4294901760
    %5092 = vmatmul.f32.gmra.mxu0 %v5091
    %v5093 = vpop.f32.mrf.mxu0
    %v5094 = vadd.f32 %v5017, %v5093
    %5095 = vdwg.mxu0
    %5096 = vmatpush.msra.mxu0 0.0
    %5097 = vmatpush.msra.mxu0 0.0
    %5098 = vmatpush.msra.mxu0 0.0
    %5099 = vmatpush.msra.mxu0 0.0
    %5100 = vmatpush.msra.mxu0 0.0
    %5101 = vmatpush.msra.mxu0 0.0
    %5102 = vmatpush.msra.mxu0 0.0
    %5103 = vmatpush.msra.mxu0 0.0
    %v5104 = vand.u32 %v4898, 4294901760
    %v5105 = vsub.f32 %v4898, %v5104
    %5106 = vmatpush.msra.mxu0 %v5105
    %v5107 = vand.u32 %v4897, 4294901760
    %v5108 = vsub.f32 %v4897, %v5107
    %5109 = vmatpush.msra.mxu0 %v5108
    %v5110 = vand.u32 %v4896, 4294901760
    %v5111 = vsub.f32 %v4896, %v5110
    %5112 = vmatpush.msra.mxu0 %v5111
    %v5113 = vand.u32 %v4895, 4294901760
    %v5114 = vsub.f32 %v4895, %v5113
    %5115 = vmatpush.msra.mxu0 %v5114
    %v5116 = vand.u32 %v4894, 4294901760
    %v5117 = vsub.f32 %v4894, %v5116
    %5118 = vmatpush.msra.mxu0 %v5117
    %v5119 = vand.u32 %v4893, 4294901760
    %v5120 = vsub.f32 %v4893, %v5119
    %5121 = vmatpush.msra.mxu0 %v5120
    %v5122 = vand.u32 %v4892, 4294901760
    %v5123 = vsub.f32 %v4892, %v5122
    %5124 = vmatpush.msra.mxu0 %v5123
    %v5125 = vand.u32 %v4891, 4294901760
    %v5126 = vsub.f32 %v4891, %v5125
    %5127 = vmatpush.msra.mxu0 %v5126
    %v5128 = vand.u32 %v4940, 4294901760
    %v5129 = vsub.f32 %v4940, %v5128
    %5130 = vmatmul.f32.gmra.mxu0 %v5129
    %v5131 = vpop.f32.mrf.mxu0
    %v5132 = vadd.f32 %v5078, %v5131
    %v5133 = vand.u32 %v4943, 4294901760
    %v5134 = vsub.f32 %v4943, %v5133
    %5135 = vmatmul.f32.gmra.mxu0 %v5134
    %v5136 = vpop.f32.mrf.mxu0
    %v5137 = vadd.f32 %v5082, %v5136
    %v5138 = vand.u32 %v4946, 4294901760
    %v5139 = vsub.f32 %v4946, %v5138
    %5140 = vmatmul.f32.gmra.mxu0 %v5139
    %v5141 = vpop.f32.mrf.mxu0
    %v5142 = vadd.f32 %v5086, %v5141
    %v5143 = vand.u32 %v4949, 4294901760
    %v5144 = vsub.f32 %v4949, %v5143
    %5145 = vmatmul.f32.gmra.mxu0 %v5144
    %v5146 = vpop.f32.mrf.mxu0
    %v5147 = vadd.f32 %v5090, %v5146
    %v5148 = vand.u32 %v4952, 4294901760
    %v5149 = vsub.f32 %v4952, %v5148
    %5150 = vmatmul.f32.gmra.mxu0 %v5149
    %v5151 = vpop.f32.mrf.mxu0
    %v5152 = vadd.f32 %v5094, %v5151
    %5153 = vdwg.mxu0
    %5154 = vmatpush.msra.mxu0 0.0
    %5155 = vmatpush.msra.mxu0 0.0
    %5156 = vmatpush.msra.mxu0 0.0
    %5157 = vmatpush.msra.mxu0 0.0
    %5158 = vmatpush.msra.mxu0 0.0
    %5159 = vmatpush.msra.mxu0 0.0
    %5160 = vmatpush.msra.mxu0 0.0
    %5161 = vmatpush.msra.mxu0 0.0
    %v5162 = vand.u32 %v4898, 4294901760
    %5163 = vmatpush.msra.mxu0 %v5162
    %v5164 = vand.u32 %v4897, 4294901760
    %5165 = vmatpush.msra.mxu0 %v5164
    %v5166 = vand.u32 %v4896, 4294901760
    %5167 = vmatpush.msra.mxu0 %v5166
    %v5168 = vand.u32 %v4895, 4294901760
    %5169 = vmatpush.msra.mxu0 %v5168
    %v5170 = vand.u32 %v4894, 4294901760
    %5171 = vmatpush.msra.mxu0 %v5170
    %v5172 = vand.u32 %v4893, 4294901760
    %5173 = vmatpush.msra.mxu0 %v5172
    %v5174 = vand.u32 %v4892, 4294901760
    %5175 = vmatpush.msra.mxu0 %v5174
    %v5176 = vand.u32 %v4891, 4294901760
    %5177 = vmatpush.msra.mxu0 %v5176
    %v5178 = vand.u32 %v4940, 4294901760
    %v5179 = vsub.f32 %v4940, %v5178
    %v5180 = vand.u32 %v5179, 4294901760
    %5181 = vmatmul.f32.gmra.mxu0 %v5180
    %v5182 = vpop.f32.mrf.mxu0
    %v5183 = vadd.f32 %v5132, %v5182
    %v5184 = vand.u32 %v4943, 4294901760
    %v5185 = vsub.f32 %v4943, %v5184
    %v5186 = vand.u32 %v5185, 4294901760
    %5187 = vmatmul.f32.gmra.mxu0 %v5186
    %v5188 = vpop.f32.mrf.mxu0
    %v5189 = vadd.f32 %v5137, %v5188
    %v5190 = vand.u32 %v4946, 4294901760
    %v5191 = vsub.f32 %v4946, %v5190
    %v5192 = vand.u32 %v5191, 4294901760
    %5193 = vmatmul.f32.gmra.mxu0 %v5192
    %v5194 = vpop.f32.mrf.mxu0
    %v5195 = vadd.f32 %v5142, %v5194
    %v5196 = vand.u32 %v4949, 4294901760
    %v5197 = vsub.f32 %v4949, %v5196
    %v5198 = vand.u32 %v5197, 4294901760
    %5199 = vmatmul.f32.gmra.mxu0 %v5198
    %v5200 = vpop.f32.mrf.mxu0
    %v5201 = vadd.f32 %v5147, %v5200
    %v5202 = vand.u32 %v4952, 4294901760
    %v5203 = vsub.f32 %v4952, %v5202
    %v5204 = vand.u32 %v5203, 4294901760
    %5205 = vmatmul.f32.gmra.mxu0 %v5204
    %v5206 = vpop.f32.mrf.mxu0
    %v5207 = vadd.f32 %v5152, %v5206
    %5208 = vdwg.mxu0
    %5209 = vmatpush.msra.mxu0 0.0
    %5210 = vmatpush.msra.mxu0 0.0
    %5211 = vmatpush.msra.mxu0 0.0
    %5212 = vmatpush.msra.mxu0 0.0
    %5213 = vmatpush.msra.mxu0 0.0
    %5214 = vmatpush.msra.mxu0 0.0
    %5215 = vmatpush.msra.mxu0 0.0
    %5216 = vmatpush.msra.mxu0 0.0
    %v5217 = vand.u32 %v4898, 4294901760
    %v5218 = vsub.f32 %v4898, %v5217
    %v5219 = vand.u32 %v5218, 4294901760
    %5220 = vmatpush.msra.mxu0 %v5219
    %v5221 = vand.u32 %v4897, 4294901760
    %v5222 = vsub.f32 %v4897, %v5221
    %v5223 = vand.u32 %v5222, 4294901760
    %5224 = vmatpush.msra.mxu0 %v5223
    %v5225 = vand.u32 %v4896, 4294901760
    %v5226 = vsub.f32 %v4896, %v5225
    %v5227 = vand.u32 %v5226, 4294901760
    %5228 = vmatpush.msra.mxu0 %v5227
    %v5229 = vand.u32 %v4895, 4294901760
    %v5230 = vsub.f32 %v4895, %v5229
    %v5231 = vand.u32 %v5230, 4294901760
    %5232 = vmatpush.msra.mxu0 %v5231
    %v5233 = vand.u32 %v4894, 4294901760
    %v5234 = vsub.f32 %v4894, %v5233
    %v5235 = vand.u32 %v5234, 4294901760
    %5236 = vmatpush.msra.mxu0 %v5235
    %v5237 = vand.u32 %v4893, 4294901760
    %v5238 = vsub.f32 %v4893, %v5237
    %v5239 = vand.u32 %v5238, 4294901760
    %5240 = vmatpush.msra.mxu0 %v5239
    %v5241 = vand.u32 %v4892, 4294901760
    %v5242 = vsub.f32 %v4892, %v5241
    %v5243 = vand.u32 %v5242, 4294901760
    %5244 = vmatpush.msra.mxu0 %v5243
    %v5245 = vand.u32 %v4891, 4294901760
    %v5246 = vsub.f32 %v4891, %v5245
    %v5247 = vand.u32 %v5246, 4294901760
    %5248 = vmatpush.msra.mxu0 %v5247
    %v5249 = vand.u32 %v4940, 4294901760
    %5250 = vmatmul.f32.gmra.mxu0 %v5249
    %v5251 = vpop.f32.mrf.mxu0
    %v5252 = vadd.f32 %v5183, %v5251
    %v5253 = vand.u32 %v4943, 4294901760
    %5254 = vmatmul.f32.gmra.mxu0 %v5253
    %v5255 = vpop.f32.mrf.mxu0
    %v5256 = vadd.f32 %v5189, %v5255
    %v5257 = vand.u32 %v4946, 4294901760
    %5258 = vmatmul.f32.gmra.mxu0 %v5257
    %v5259 = vpop.f32.mrf.mxu0
    %v5260 = vadd.f32 %v5195, %v5259
    %v5261 = vand.u32 %v4949, 4294901760
    %5262 = vmatmul.f32.gmra.mxu0 %v5261
    %v5263 = vpop.f32.mrf.mxu0
    %v5264 = vadd.f32 %v5201, %v5263
    %v5265 = vand.u32 %v4952, 4294901760
    %5266 = vmatmul.f32.gmra.mxu0 %v5265
    %v5267 = vpop.f32.mrf.mxu0
    %v5268 = vadd.f32 %v5207, %v5267
    %5269 = vdwg.mxu0
    %5270 = vmatpush.msra.mxu0 0.0
    %5271 = vmatpush.msra.mxu0 0.0
    %5272 = vmatpush.msra.mxu0 0.0
    %5273 = vmatpush.msra.mxu0 0.0
    %5274 = vmatpush.msra.mxu0 0.0
    %5275 = vmatpush.msra.mxu0 0.0
    %5276 = vmatpush.msra.mxu0 0.0
    %5277 = vmatpush.msra.mxu0 0.0
    %v5278 = vand.u32 %v4898, 4294901760
    %5279 = vmatpush.msra.mxu0 %v5278
    %v5280 = vand.u32 %v4897, 4294901760
    %5281 = vmatpush.msra.mxu0 %v5280
    %v5282 = vand.u32 %v4896, 4294901760
    %5283 = vmatpush.msra.mxu0 %v5282
    %v5284 = vand.u32 %v4895, 4294901760
    %5285 = vmatpush.msra.mxu0 %v5284
    %v5286 = vand.u32 %v4894, 4294901760
    %5287 = vmatpush.msra.mxu0 %v5286
    %v5288 = vand.u32 %v4893, 4294901760
    %5289 = vmatpush.msra.mxu0 %v5288
    %v5290 = vand.u32 %v4892, 4294901760
    %5291 = vmatpush.msra.mxu0 %v5290
    %v5292 = vand.u32 %v4891, 4294901760
    %5293 = vmatpush.msra.mxu0 %v5292
    %v5294 = vand.u32 %v4940, 4294901760
    %5295 = vmatmul.f32.gmra.mxu0 %v5294
    %v5296 = vpop.f32.mrf.mxu0
    %v5297 = vadd.f32 %v5252, %v5296
    %v5298 = vand.u32 %v4943, 4294901760
    %5299 = vmatmul.f32.gmra.mxu0 %v5298
    %v5300 = vpop.f32.mrf.mxu0
    %v5301 = vadd.f32 %v5256, %v5300
    %v5302 = vand.u32 %v4946, 4294901760
    %5303 = vmatmul.f32.gmra.mxu0 %v5302
    %v5304 = vpop.f32.mrf.mxu0
    %v5305 = vadd.f32 %v5260, %v5304
    %v5306 = vand.u32 %v4949, 4294901760
    %5307 = vmatmul.f32.gmra.mxu0 %v5306
    %v5308 = vpop.f32.mrf.mxu0
    %v5309 = vadd.f32 %v5264, %v5308
    %v5310 = vand.u32 %v4952, 4294901760
    %5311 = vmatmul.f32.gmra.mxu0 %v5310
    %v5312 = vpop.f32.mrf.mxu0
    %v5313 = vadd.f32 %v5268, %v5312
    %5314 = vdwg.mxu0
    %v5315 = vld [vmem:[%s1 + $0x5] sm:$0x1]
    %v5316 = vperm.slane %v5315, 0
    %vm5317 = vcmp.eq.s32.totalorder %v20, %v5316
    %vm5318 = vcmp.eq.s32.totalorder %v21, %v5316
    %vm5319 = vcmp.eq.s32.totalorder %v22, %v5316
    %vm5320 = vcmp.eq.s32.totalorder %v23, %v5316
    %vm5321 = vcmp.eq.s32.totalorder %v24, %v5316
    %vm5322 = vcmp.eq.s32.totalorder %v25, %v5316
    %vm5323 = vcmp.eq.s32.totalorder %v26, %v5316
    %vm5324 = vcmp.eq.s32.totalorder %v27, %v5316
    %vm5325 = vcmp.eq.s32.totalorder %v471, %v5316
    %vm5326 = vcmp.eq.s32.totalorder %v472, %v5316
    %vm5327 = vcmp.eq.s32.totalorder %v473, %v5316
    %vm5328 = vcmp.eq.s32.totalorder %v474, %v5316
    %v5329 = vsel %vm5317, 1, 0
    %v5330 = vsel %vm5318, 1, 0
    %v5331 = vsel %vm5319, 1, 0
    %v5332 = vsel %vm5320, 1, 0
    %v5333 = vsel %vm5321, 1, 0
    %v5334 = vsel %vm5322, 1, 0
    %v5335 = vsel %vm5323, 1, 0
    %v5336 = vsel %vm5324, 1, 0
    %v5337 = vsel %vm5325, 1, 0
    %v5338 = vsel %vm5326, 1, 0
    %v5339 = vsel %vm5327, 1, 0
    %v5340 = vsel %vm5328, 1, 0
    %v5341 = vcvt.s32.f32 %v5329
    %v5342 = vcvt.s32.f32 %v5330
    %v5343 = vcvt.s32.f32 %v5331
    %v5344 = vcvt.s32.f32 %v5332
    %v5345 = vcvt.s32.f32 %v5333
    %v5346 = vcvt.s32.f32 %v5334
    %v5347 = vcvt.s32.f32 %v5335
    %v5348 = vcvt.s32.f32 %v5336
    %v5349 = vcvt.s32.f32 %v5337
    %v5350 = vcvt.s32.f32 %v5338
    %v5351 = vcvt.s32.f32 %v5339
    %v5352 = vcvt.s32.f32 %v5340
    %v5353 = vld [vmem:[%s3] sm:$0xff]
    %v5354 = vld [vmem:[%s3 + $0x8] sm:$0xff]
    %v5355 = vld [vmem:[%s3 + $0x10] sm:$0xff]
    %v5356 = vld [vmem:[%s3 + $0x18] sm:$0xff]
    %v5357 = vld [vmem:[%s3 + $0x20] sm:$0xff]
    %v5358 = vld [vmem:[%s3 + $0x28] sm:$0xff]
    %v5359 = vld [vmem:[%s3 + $0x30] sm:$0xff]
    %v5360 = vld [vmem:[%s3 + $0x38] sm:$0xff]
    %v5361 = vld [vmem:[%s3 + $0x40] sm:$0xff]
    %v5362 = vld [vmem:[%s3 + $0x48] sm:$0xff]
    %v5363 = vld [vmem:[%s3 + $0x50] sm:$0xff]
    %v5364 = vld [vmem:[%s3 + $0x58] sm:$0xff]
    %5365 = vxpose.xlu0.b32.start [1/16] %v5353, 128
    %5366 = vxpose.xlu0.b32.cont [2/16] %v5354, 128
    %5367 = vxpose.xlu0.b32.cont [3/16] %v5355, 128
    %5368 = vxpose.xlu0.b32.cont [4/16] %v5356, 128
    %5369 = vxpose.xlu0.b32.cont [5/16] %v5357, 128
    %5370 = vxpose.xlu0.b32.cont [6/16] %v5358, 128
    %5371 = vxpose.xlu0.b32.cont [7/16] %v5359, 128
    %5372 = vxpose.xlu0.b32.cont [8/16] %v5360, 128
    %5373 = vxpose.xlu0.b32.cont [9/16] %v5361, 128
    %5374 = vxpose.xlu0.b32.cont [10/16] %v5362, 128
    %5375 = vxpose.xlu0.b32.cont [11/16] %v5363, 128
    %5376 = vxpose.xlu0.b32.cont [12/16] %v5364, 128
    %5377 = vxpose.xlu0.b32.cont [13/16] 0.0, 128
    %5378 = vxpose.xlu0.b32.cont [14/16] 0.0, 128
    %5379 = vxpose.xlu0.b32.cont [15/16] 0.0, 128
    %5380 = vxpose.xlu0.b32.end [16/16] 0.0, 128
    %v5381 = vpop.trf.xlu0
    %v5382 = vpop.trf.xlu0
    %v5383 = vpop.trf.xlu0
    %v5384 = vpop.trf.xlu0
    %v5385 = vpop.trf.xlu0
    %v5386 = vpop.trf.xlu0
    %v5387 = vpop.trf.xlu0
    %v5388 = vpop.trf.xlu0
    %v5389 = vpop.trf.xlu0
    %v5390 = vpop.trf.xlu0
    %v5391 = vpop.trf.xlu0
    %v5392 = vpop.trf.xlu0
    %v5393 = vpop.trf.xlu0
    %v5394 = vpop.trf.xlu0
    %v5395 = vpop.trf.xlu0
    %v5396 = vpop.trf.xlu0
    %v5398 = vsel %vm556, %v5381, 0
    %v5401 = vsel %vm556, %v5382, 0
    %v5404 = vsel %vm556, %v5383, 0
    %v5407 = vsel %vm556, %v5384, 0
    %v5410 = vsel %vm556, %v5385, 0
    %5412 = vmatpush.msra.mxu0 0.0
    %5413 = vmatpush.msra.mxu0 0.0
    %5414 = vmatpush.msra.mxu0 0.0
    %5415 = vmatpush.msra.mxu0 0.0
    %v5416 = vand.u32 %v5352, 4294901760
    %5417 = vmatpush.msra.mxu0 %v5416
    %v5418 = vand.u32 %v5351, 4294901760
    %5419 = vmatpush.msra.mxu0 %v5418
    %v5420 = vand.u32 %v5350, 4294901760
    %5421 = vmatpush.msra.mxu0 %v5420
    %v5422 = vand.u32 %v5349, 4294901760
    %5423 = vmatpush.msra.mxu0 %v5422
    %v5424 = vand.u32 %v5348, 4294901760
    %5425 = vmatpush.msra.mxu0 %v5424
    %v5426 = vand.u32 %v5347, 4294901760
    %5427 = vmatpush.msra.mxu0 %v5426
    %v5428 = vand.u32 %v5346, 4294901760
    %5429 = vmatpush.msra.mxu0 %v5428
    %v5430 = vand.u32 %v5345, 4294901760
    %5431 = vmatpush.msra.mxu0 %v5430
    %v5432 = vand.u32 %v5344, 4294901760
    %5433 = vmatpush.msra.mxu0 %v5432
    %v5434 = vand.u32 %v5343, 4294901760
    %5435 = vmatpush.msra.mxu0 %v5434
    %v5436 = vand.u32 %v5342, 4294901760
    %5437 = vmatpush.msra.mxu0 %v5436
    %v5438 = vand.u32 %v5341, 4294901760
    %5439 = vmatpush.msra.mxu0 %v5438
    %v5440 = vand.u32 %v5398, 4294901760
    %v5441 = vsub.f32 %v5398, %v5440
    %v5442 = vand.u32 %v5441, 4294901760
    %v5443 = vsub.f32 %v5441, %v5442
    %v5444 = vand.u32 %v5443, 4294901760
    %5445 = vmatmul.f32.gmra.mxu0 %v5444
    %v5446 = vpop.f32.mrf.mxu0
    %v5447 = vadd.f32 0.0, %v5446
    %v5448 = vand.u32 %v5401, 4294901760
    %v5449 = vsub.f32 %v5401, %v5448
    %v5450 = vand.u32 %v5449, 4294901760
    %v5451 = vsub.f32 %v5449, %v5450
    %v5452 = vand.u32 %v5451, 4294901760
    %5453 = vmatmul.f32.gmra.mxu0 %v5452
    %v5454 = vpop.f32.mrf.mxu0
    %v5455 = vadd.f32 0.0, %v5454
    %v5456 = vand.u32 %v5404, 4294901760
    %v5457 = vsub.f32 %v5404, %v5456
    %v5458 = vand.u32 %v5457, 4294901760
    %v5459 = vsub.f32 %v5457, %v5458
    %v5460 = vand.u32 %v5459, 4294901760
    %5461 = vmatmul.f32.gmra.mxu0 %v5460
    %v5462 = vpop.f32.mrf.mxu0
    %v5463 = vadd.f32 0.0, %v5462
    %v5464 = vand.u32 %v5407, 4294901760
    %v5465 = vsub.f32 %v5407, %v5464
    %v5466 = vand.u32 %v5465, 4294901760
    %v5467 = vsub.f32 %v5465, %v5466
    %v5468 = vand.u32 %v5467, 4294901760
    %5469 = vmatmul.f32.gmra.mxu0 %v5468
    %v5470 = vpop.f32.mrf.mxu0
    %v5471 = vadd.f32 0.0, %v5470
    %v5472 = vand.u32 %v5410, 4294901760
    %v5473 = vsub.f32 %v5410, %v5472
    %v5474 = vand.u32 %v5473, 4294901760
    %v5475 = vsub.f32 %v5473, %v5474
    %v5476 = vand.u32 %v5475, 4294901760
    %5477 = vmatmul.f32.gmra.mxu0 %v5476
    %v5478 = vpop.f32.mrf.mxu0
    %v5479 = vadd.f32 0.0, %v5478
    %5480 = vdwg.mxu0
    %5481 = vmatpush.msra.mxu0 0.0
    %5482 = vmatpush.msra.mxu0 0.0
    %5483 = vmatpush.msra.mxu0 0.0
    %5484 = vmatpush.msra.mxu0 0.0
    %v5485 = vand.u32 %v5352, 4294901760
    %v5486 = vsub.f32 %v5352, %v5485
    %v5487 = vand.u32 %v5486, 4294901760
    %v5488 = vsub.f32 %v5486, %v5487
    %v5489 = vand.u32 %v5488, 4294901760
    %5490 = vmatpush.msra.mxu0 %v5489
    %v5491 = vand.u32 %v5351, 4294901760
    %v5492 = vsub.f32 %v5351, %v5491
    %v5493 = vand.u32 %v5492, 4294901760
    %v5494 = vsub.f32 %v5492, %v5493
    %v5495 = vand.u32 %v5494, 4294901760
    %5496 = vmatpush.msra.mxu0 %v5495
    %v5497 = vand.u32 %v5350, 4294901760
    %v5498 = vsub.f32 %v5350, %v5497
    %v5499 = vand.u32 %v5498, 4294901760
    %v5500 = vsub.f32 %v5498, %v5499
    %v5501 = vand.u32 %v5500, 4294901760
    %5502 = vmatpush.msra.mxu0 %v5501
    %v5503 = vand.u32 %v5349, 4294901760
    %v5504 = vsub.f32 %v5349, %v5503
    %v5505 = vand.u32 %v5504, 4294901760
    %v5506 = vsub.f32 %v5504, %v5505
    %v5507 = vand.u32 %v5506, 4294901760
    %5508 = vmatpush.msra.mxu0 %v5507
    %v5509 = vand.u32 %v5348, 4294901760
    %v5510 = vsub.f32 %v5348, %v5509
    %v5511 = vand.u32 %v5510, 4294901760
    %v5512 = vsub.f32 %v5510, %v5511
    %v5513 = vand.u32 %v5512, 4294901760
    %5514 = vmatpush.msra.mxu0 %v5513
    %v5515 = vand.u32 %v5347, 4294901760
    %v5516 = vsub.f32 %v5347, %v5515
    %v5517 = vand.u32 %v5516, 4294901760
    %v5518 = vsub.f32 %v5516, %v5517
    %v5519 = vand.u32 %v5518, 4294901760
    %5520 = vmatpush.msra.mxu0 %v5519
    %v5521 = vand.u32 %v5346, 4294901760
    %v5522 = vsub.f32 %v5346, %v5521
    %v5523 = vand.u32 %v5522, 4294901760
    %v5524 = vsub.f32 %v5522, %v5523
    %v5525 = vand.u32 %v5524, 4294901760
    %5526 = vmatpush.msra.mxu0 %v5525
    %v5527 = vand.u32 %v5345, 4294901760
    %v5528 = vsub.f32 %v5345, %v5527
    %v5529 = vand.u32 %v5528, 4294901760
    %v5530 = vsub.f32 %v5528, %v5529
    %v5531 = vand.u32 %v5530, 4294901760
    %5532 = vmatpush.msra.mxu0 %v5531
    %v5533 = vand.u32 %v5344, 4294901760
    %v5534 = vsub.f32 %v5344, %v5533
    %v5535 = vand.u32 %v5534, 4294901760
    %v5536 = vsub.f32 %v5534, %v5535
    %v5537 = vand.u32 %v5536, 4294901760
    %5538 = vmatpush.msra.mxu0 %v5537
    %v5539 = vand.u32 %v5343, 4294901760
    %v5540 = vsub.f32 %v5343, %v5539
    %v5541 = vand.u32 %v5540, 4294901760
    %v5542 = vsub.f32 %v5540, %v5541
    %v5543 = vand.u32 %v5542, 4294901760
    %5544 = vmatpush.msra.mxu0 %v5543
    %v5545 = vand.u32 %v5342, 4294901760
    %v5546 = vsub.f32 %v5342, %v5545
    %v5547 = vand.u32 %v5546, 4294901760
    %v5548 = vsub.f32 %v5546, %v5547
    %v5549 = vand.u32 %v5548, 4294901760
    %5550 = vmatpush.msra.mxu0 %v5549
    %v5551 = vand.u32 %v5341, 4294901760
    %v5552 = vsub.f32 %v5341, %v5551
    %v5553 = vand.u32 %v5552, 4294901760
    %v5554 = vsub.f32 %v5552, %v5553
    %v5555 = vand.u32 %v5554, 4294901760
    %5556 = vmatpush.msra.mxu0 %v5555
    %v5557 = vand.u32 %v5398, 4294901760
    %5558 = vmatmul.f32.gmra.mxu0 %v5557
    %v5559 = vpop.f32.mrf.mxu0
    %v5560 = vadd.f32 %v5447, %v5559
    %v5561 = vand.u32 %v5401, 4294901760
    %5562 = vmatmul.f32.gmra.mxu0 %v5561
    %v5563 = vpop.f32.mrf.mxu0
    %v5564 = vadd.f32 %v5455, %v5563
    %v5565 = vand.u32 %v5404, 4294901760
    %5566 = vmatmul.f32.gmra.mxu0 %v5565
    %v5567 = vpop.f32.mrf.mxu0
    %v5568 = vadd.f32 %v5463, %v5567
    %v5569 = vand.u32 %v5407, 4294901760
    %5570 = vmatmul.f32.gmra.mxu0 %v5569
    %v5571 = vpop.f32.mrf.mxu0
    %v5572 = vadd.f32 %v5471, %v5571
    %v5573 = vand.u32 %v5410, 4294901760
    %5574 = vmatmul.f32.gmra.mxu0 %v5573
    %v5575 = vpop.f32.mrf.mxu0
    %v5576 = vadd.f32 %v5479, %v5575
    %5577 = vdwg.mxu0
    %5578 = vmatpush.msra.mxu0 0.0
    %5579 = vmatpush.msra.mxu0 0.0
    %5580 = vmatpush.msra.mxu0 0.0
    %5581 = vmatpush.msra.mxu0 0.0
    %v5582 = vand.u32 %v5352, 4294901760
    %v5583 = vsub.f32 %v5352, %v5582
    %5584 = vmatpush.msra.mxu0 %v5583
    %v5585 = vand.u32 %v5351, 4294901760
    %v5586 = vsub.f32 %v5351, %v5585
    %5587 = vmatpush.msra.mxu0 %v5586
    %v5588 = vand.u32 %v5350, 4294901760
    %v5589 = vsub.f32 %v5350, %v5588
    %5590 = vmatpush.msra.mxu0 %v5589
    %v5591 = vand.u32 %v5349, 4294901760
    %v5592 = vsub.f32 %v5349, %v5591
    %5593 = vmatpush.msra.mxu0 %v5592
    %v5594 = vand.u32 %v5348, 4294901760
    %v5595 = vsub.f32 %v5348, %v5594
    %5596 = vmatpush.msra.mxu0 %v5595
    %v5597 = vand.u32 %v5347, 4294901760
    %v5598 = vsub.f32 %v5347, %v5597
    %5599 = vmatpush.msra.mxu0 %v5598
    %v5600 = vand.u32 %v5346, 4294901760
    %v5601 = vsub.f32 %v5346, %v5600
    %5602 = vmatpush.msra.mxu0 %v5601
    %v5603 = vand.u32 %v5345, 4294901760
    %v5604 = vsub.f32 %v5345, %v5603
    %5605 = vmatpush.msra.mxu0 %v5604
    %v5606 = vand.u32 %v5344, 4294901760
    %v5607 = vsub.f32 %v5344, %v5606
    %5608 = vmatpush.msra.mxu0 %v5607
    %v5609 = vand.u32 %v5343, 4294901760
    %v5610 = vsub.f32 %v5343, %v5609
    %5611 = vmatpush.msra.mxu0 %v5610
    %v5612 = vand.u32 %v5342, 4294901760
    %v5613 = vsub.f32 %v5342, %v5612
    %5614 = vmatpush.msra.mxu0 %v5613
    %v5615 = vand.u32 %v5341, 4294901760
    %v5616 = vsub.f32 %v5341, %v5615
    %5617 = vmatpush.msra.mxu0 %v5616
    %v5618 = vand.u32 %v5398, 4294901760
    %v5619 = vsub.f32 %v5398, %v5618
    %5620 = vmatmul.f32.gmra.mxu0 %v5619
    %v5621 = vpop.f32.mrf.mxu0
    %v5622 = vadd.f32 %v5560, %v5621
    %v5623 = vand.u32 %v5401, 4294901760
    %v5624 = vsub.f32 %v5401, %v5623
    %5625 = vmatmul.f32.gmra.mxu0 %v5624
    %v5626 = vpop.f32.mrf.mxu0
    %v5627 = vadd.f32 %v5564, %v5626
    %v5628 = vand.u32 %v5404, 4294901760
    %v5629 = vsub.f32 %v5404, %v5628
    %5630 = vmatmul.f32.gmra.mxu0 %v5629
    %v5631 = vpop.f32.mrf.mxu0
    %v5632 = vadd.f32 %v5568, %v5631
    %v5633 = vand.u32 %v5407, 4294901760
    %v5634 = vsub.f32 %v5407, %v5633
    %5635 = vmatmul.f32.gmra.mxu0 %v5634
    %v5636 = vpop.f32.mrf.mxu0
    %v5637 = vadd.f32 %v5572, %v5636
    %v5638 = vand.u32 %v5410, 4294901760
    %v5639 = vsub.f32 %v5410, %v5638
    %5640 = vmatmul.f32.gmra.mxu0 %v5639
    %v5641 = vpop.f32.mrf.mxu0
    %v5642 = vadd.f32 %v5576, %v5641
    %5643 = vdwg.mxu0
    %5644 = vmatpush.msra.mxu0 0.0
    %5645 = vmatpush.msra.mxu0 0.0
    %5646 = vmatpush.msra.mxu0 0.0
    %5647 = vmatpush.msra.mxu0 0.0
    %v5648 = vand.u32 %v5352, 4294901760
    %5649 = vmatpush.msra.mxu0 %v5648
    %v5650 = vand.u32 %v5351, 4294901760
    %5651 = vmatpush.msra.mxu0 %v5650
    %v5652 = vand.u32 %v5350, 4294901760
    %5653 = vmatpush.msra.mxu0 %v5652
    %v5654 = vand.u32 %v5349, 4294901760
    %5655 = vmatpush.msra.mxu0 %v5654
    %v5656 = vand.u32 %v5348, 4294901760
    %5657 = vmatpush.msra.mxu0 %v5656
    %v5658 = vand.u32 %v5347, 4294901760
    %5659 = vmatpush.msra.mxu0 %v5658
    %v5660 = vand.u32 %v5346, 4294901760
    %5661 = vmatpush.msra.mxu0 %v5660
    %v5662 = vand.u32 %v5345, 4294901760
    %5663 = vmatpush.msra.mxu0 %v5662
    %v5664 = vand.u32 %v5344, 4294901760
    %5665 = vmatpush.msra.mxu0 %v5664
    %v5666 = vand.u32 %v5343, 4294901760
    %5667 = vmatpush.msra.mxu0 %v5666
    %v5668 = vand.u32 %v5342, 4294901760
    %5669 = vmatpush.msra.mxu0 %v5668
    %v5670 = vand.u32 %v5341, 4294901760
    %5671 = vmatpush.msra.mxu0 %v5670
    %v5672 = vand.u32 %v5398, 4294901760
    %v5673 = vsub.f32 %v5398, %v5672
    %v5674 = vand.u32 %v5673, 4294901760
    %5675 = vmatmul.f32.gmra.mxu0 %v5674
    %v5676 = vpop.f32.mrf.mxu0
    %v5677 = vadd.f32 %v5622, %v5676
    %v5678 = vand.u32 %v5401, 4294901760
    %v5679 = vsub.f32 %v5401, %v5678
    %v5680 = vand.u32 %v5679, 4294901760
    %5681 = vmatmul.f32.gmra.mxu0 %v5680
    %v5682 = vpop.f32.mrf.mxu0
    %v5683 = vadd.f32 %v5627, %v5682
    %v5684 = vand.u32 %v5404, 4294901760
    %v5685 = vsub.f32 %v5404, %v5684
    %v5686 = vand.u32 %v5685, 4294901760
    %5687 = vmatmul.f32.gmra.mxu0 %v5686
    %v5688 = vpop.f32.mrf.mxu0
    %v5689 = vadd.f32 %v5632, %v5688
    %v5690 = vand.u32 %v5407, 4294901760
    %v5691 = vsub.f32 %v5407, %v5690
    %v5692 = vand.u32 %v5691, 4294901760
    %5693 = vmatmul.f32.gmra.mxu0 %v5692
    %v5694 = vpop.f32.mrf.mxu0
    %v5695 = vadd.f32 %v5637, %v5694
    %v5696 = vand.u32 %v5410, 4294901760
    %v5697 = vsub.f32 %v5410, %v5696
    %v5698 = vand.u32 %v5697, 4294901760
    %5699 = vmatmul.f32.gmra.mxu0 %v5698
    %v5700 = vpop.f32.mrf.mxu0
    %v5701 = vadd.f32 %v5642, %v5700
    %5702 = vdwg.mxu0
    %5703 = vmatpush.msra.mxu0 0.0
    %5704 = vmatpush.msra.mxu0 0.0
    %5705 = vmatpush.msra.mxu0 0.0
    %5706 = vmatpush.msra.mxu0 0.0
    %v5707 = vand.u32 %v5352, 4294901760
    %v5708 = vsub.f32 %v5352, %v5707
    %v5709 = vand.u32 %v5708, 4294901760
    %5710 = vmatpush.msra.mxu0 %v5709
    %v5711 = vand.u32 %v5351, 4294901760
    %v5712 = vsub.f32 %v5351, %v5711
    %v5713 = vand.u32 %v5712, 4294901760
    %5714 = vmatpush.msra.mxu0 %v5713
    %v5715 = vand.u32 %v5350, 4294901760
    %v5716 = vsub.f32 %v5350, %v5715
    %v5717 = vand.u32 %v5716, 4294901760
    %5718 = vmatpush.msra.mxu0 %v5717
    %v5719 = vand.u32 %v5349, 4294901760
    %v5720 = vsub.f32 %v5349, %v5719
    %v5721 = vand.u32 %v5720, 4294901760
    %5722 = vmatpush.msra.mxu0 %v5721
    %v5723 = vand.u32 %v5348, 4294901760
    %v5724 = vsub.f32 %v5348, %v5723
    %v5725 = vand.u32 %v5724, 4294901760
    %5726 = vmatpush.msra.mxu0 %v5725
    %v5727 = vand.u32 %v5347, 4294901760
    %v5728 = vsub.f32 %v5347, %v5727
    %v5729 = vand.u32 %v5728, 4294901760
    %5730 = vmatpush.msra.mxu0 %v5729
    %v5731 = vand.u32 %v5346, 4294901760
    %v5732 = vsub.f32 %v5346, %v5731
    %v5733 = vand.u32 %v5732, 4294901760
    %5734 = vmatpush.msra.mxu0 %v5733
    %v5735 = vand.u32 %v5345, 4294901760
    %v5736 = vsub.f32 %v5345, %v5735
    %v5737 = vand.u32 %v5736, 4294901760
    %5738 = vmatpush.msra.mxu0 %v5737
    %v5739 = vand.u32 %v5344, 4294901760
    %v5740 = vsub.f32 %v5344, %v5739
    %v5741 = vand.u32 %v5740, 4294901760
    %5742 = vmatpush.msra.mxu0 %v5741
    %v5743 = vand.u32 %v5343, 4294901760
    %v5744 = vsub.f32 %v5343, %v5743
    %v5745 = vand.u32 %v5744, 4294901760
    %5746 = vmatpush.msra.mxu0 %v5745
    %v5747 = vand.u32 %v5342, 4294901760
    %v5748 = vsub.f32 %v5342, %v5747
    %v5749 = vand.u32 %v5748, 4294901760
    %5750 = vmatpush.msra.mxu0 %v5749
    %v5751 = vand.u32 %v5341, 4294901760
    %v5752 = vsub.f32 %v5341, %v5751
    %v5753 = vand.u32 %v5752, 4294901760
    %5754 = vmatpush.msra.mxu0 %v5753
    %v5755 = vand.u32 %v5398, 4294901760
    %5756 = vmatmul.f32.gmra.mxu0 %v5755
    %v5757 = vpop.f32.mrf.mxu0
    %v5758 = vadd.f32 %v5677, %v5757
    %v5759 = vand.u32 %v5401, 4294901760
    %5760 = vmatmul.f32.gmra.mxu0 %v5759
    %v5761 = vpop.f32.mrf.mxu0
    %v5762 = vadd.f32 %v5683, %v5761
    %v5763 = vand.u32 %v5404, 4294901760
    %5764 = vmatmul.f32.gmra.mxu0 %v5763
    %v5765 = vpop.f32.mrf.mxu0
    %v5766 = vadd.f32 %v5689, %v5765
    %v5767 = vand.u32 %v5407, 4294901760
    %5768 = vmatmul.f32.gmra.mxu0 %v5767
    %v5769 = vpop.f32.mrf.mxu0
    %v5770 = vadd.f32 %v5695, %v5769
    %v5771 = vand.u32 %v5410, 4294901760
    %5772 = vmatmul.f32.gmra.mxu0 %v5771
    %v5773 = vpop.f32.mrf.mxu0
    %v5774 = vadd.f32 %v5701, %v5773
    %5775 = vdwg.mxu0
    %5776 = vmatpush.msra.mxu0 0.0
    %5777 = vmatpush.msra.mxu0 0.0
    %5778 = vmatpush.msra.mxu0 0.0
    %5779 = vmatpush.msra.mxu0 0.0
    %v5780 = vand.u32 %v5352, 4294901760
    %5781 = vmatpush.msra.mxu0 %v5780
    %v5782 = vand.u32 %v5351, 4294901760
    %5783 = vmatpush.msra.mxu0 %v5782
    %v5784 = vand.u32 %v5350, 4294901760
    %5785 = vmatpush.msra.mxu0 %v5784
    %v5786 = vand.u32 %v5349, 4294901760
    %5787 = vmatpush.msra.mxu0 %v5786
    %v5788 = vand.u32 %v5348, 4294901760
    %5789 = vmatpush.msra.mxu0 %v5788
    %v5790 = vand.u32 %v5347, 4294901760
    %5791 = vmatpush.msra.mxu0 %v5790
    %v5792 = vand.u32 %v5346, 4294901760
    %5793 = vmatpush.msra.mxu0 %v5792
    %v5794 = vand.u32 %v5345, 4294901760
    %5795 = vmatpush.msra.mxu0 %v5794
    %v5796 = vand.u32 %v5344, 4294901760
    %5797 = vmatpush.msra.mxu0 %v5796
    %v5798 = vand.u32 %v5343, 4294901760
    %5799 = vmatpush.msra.mxu0 %v5798
    %v5800 = vand.u32 %v5342, 4294901760
    %5801 = vmatpush.msra.mxu0 %v5800
    %v5802 = vand.u32 %v5341, 4294901760
    %5803 = vmatpush.msra.mxu0 %v5802
    %v5804 = vand.u32 %v5398, 4294901760
    %5805 = vmatmul.f32.gmra.mxu0 %v5804
    %v5806 = vpop.f32.mrf.mxu0
    %v5807 = vadd.f32 %v5758, %v5806
    %v5808 = vand.u32 %v5401, 4294901760
    %5809 = vmatmul.f32.gmra.mxu0 %v5808
    %v5810 = vpop.f32.mrf.mxu0
    %v5811 = vadd.f32 %v5762, %v5810
    %v5812 = vand.u32 %v5404, 4294901760
    %5813 = vmatmul.f32.gmra.mxu0 %v5812
    %v5814 = vpop.f32.mrf.mxu0
    %v5815 = vadd.f32 %v5766, %v5814
    %v5816 = vand.u32 %v5407, 4294901760
    %5817 = vmatmul.f32.gmra.mxu0 %v5816
    %v5818 = vpop.f32.mrf.mxu0
    %v5819 = vadd.f32 %v5770, %v5818
    %v5820 = vand.u32 %v5410, 4294901760
    %5821 = vmatmul.f32.gmra.mxu0 %v5820
    %v5822 = vpop.f32.mrf.mxu0
    %v5823 = vadd.f32 %v5774, %v5822
    %5824 = vdwg.mxu0
    %v5825 = vmul.f32 %v5297, %v5807
    %v5826 = vmul.f32 %v5301, %v5811
    %v5827 = vmul.f32 %v5305, %v5815
    %v5828 = vmul.f32 %v5309, %v5819
    %v5829 = vmul.f32 %v5313, %v5823
    %v5830 = vadd.f32 %v5825, %v5826
    %v5831 = vadd.f32 %v5830, %v5827
    %v5832 = vadd.f32 %v5831, %v5828
    %v5833 = vadd.f32 %v5832, %v5829
    %v5834 = vrot.slane %v5833, 4
    %v5835 = vadd.f32 %v5833, %v5834
    %v5836 = vrot.slane %v5835, 2
    %v5837 = vadd.f32 %v5835, %v5836
    %v5838 = vrot.slane %v5837, 1
    %v5839 = vadd.f32 %v5837, %v5838
    %5840 = vst [vmem:[#allocation2 + $0x5] sm:$0x1] %v5839
    %v5841 = vld [vmem:[%s0 + $0x6] sm:$0x1]
    %v5842 = vperm.slane %v5841, 0
    %vm5843 = vcmp.eq.s32.totalorder %v20, %v5842
    %vm5844 = vcmp.eq.s32.totalorder %v21, %v5842
    %vm5845 = vcmp.eq.s32.totalorder %v22, %v5842
    %vm5846 = vcmp.eq.s32.totalorder %v23, %v5842
    %vm5847 = vcmp.eq.s32.totalorder %v24, %v5842
    %vm5848 = vcmp.eq.s32.totalorder %v25, %v5842
    %vm5849 = vcmp.eq.s32.totalorder %v26, %v5842
    %vm5850 = vcmp.eq.s32.totalorder %v27, %v5842
    %v5851 = vsel %vm5843, 1, 0
    %v5852 = vsel %vm5844, 1, 0
    %v5853 = vsel %vm5845, 1, 0
    %v5854 = vsel %vm5846, 1, 0
    %v5855 = vsel %vm5847, 1, 0
    %v5856 = vsel %vm5848, 1, 0
    %v5857 = vsel %vm5849, 1, 0
    %v5858 = vsel %vm5850, 1, 0
    %v5859 = vcvt.s32.f32 %v5851
    %v5860 = vcvt.s32.f32 %v5852
    %v5861 = vcvt.s32.f32 %v5853
    %v5862 = vcvt.s32.f32 %v5854
    %v5863 = vcvt.s32.f32 %v5855
    %v5864 = vcvt.s32.f32 %v5856
    %v5865 = vcvt.s32.f32 %v5857
    %v5866 = vcvt.s32.f32 %v5858
    %v5867 = vld [vmem:[%s2] sm:$0xff]
    %v5868 = vld [vmem:[%s2 + $0x8] sm:$0xff]
    %v5869 = vld [vmem:[%s2 + $0x10] sm:$0xff]
    %v5870 = vld [vmem:[%s2 + $0x18] sm:$0xff]
    %v5871 = vld [vmem:[%s2 + $0x20] sm:$0xff]
    %v5872 = vld [vmem:[%s2 + $0x28] sm:$0xff]
    %v5873 = vld [vmem:[%s2 + $0x30] sm:$0xff]
    %v5874 = vld [vmem:[%s2 + $0x38] sm:$0xff]
    %5875 = vxpose.xlu0.b32.start [1/16] %v5867, 128
    %5876 = vxpose.xlu0.b32.cont [2/16] %v5868, 128
    %5877 = vxpose.xlu0.b32.cont [3/16] %v5869, 128
    %5878 = vxpose.xlu0.b32.cont [4/16] %v5870, 128
    %5879 = vxpose.xlu0.b32.cont [5/16] %v5871, 128
    %5880 = vxpose.xlu0.b32.cont [6/16] %v5872, 128
    %5881 = vxpose.xlu0.b32.cont [7/16] %v5873, 128
    %5882 = vxpose.xlu0.b32.cont [8/16] %v5874, 128
    %5883 = vxpose.xlu0.b32.cont [9/16] 0.0, 128
    %5884 = vxpose.xlu0.b32.cont [10/16] 0.0, 128
    %5885 = vxpose.xlu0.b32.cont [11/16] 0.0, 128
    %5886 = vxpose.xlu0.b32.cont [12/16] 0.0, 128
    %5887 = vxpose.xlu0.b32.cont [13/16] 0.0, 128
    %5888 = vxpose.xlu0.b32.cont [14/16] 0.0, 128
    %5889 = vxpose.xlu0.b32.cont [15/16] 0.0, 128
    %5890 = vxpose.xlu0.b32.end [16/16] 0.0, 128
    %v5891 = vpop.trf.xlu0
    %v5892 = vpop.trf.xlu0
    %v5893 = vpop.trf.xlu0
    %v5894 = vpop.trf.xlu0
    %v5895 = vpop.trf.xlu0
    %v5896 = vpop.trf.xlu0
    %v5897 = vpop.trf.xlu0
    %v5898 = vpop.trf.xlu0
    %v5899 = vpop.trf.xlu0
    %v5900 = vpop.trf.xlu0
    %v5901 = vpop.trf.xlu0
    %v5902 = vpop.trf.xlu0
    %v5903 = vpop.trf.xlu0
    %v5904 = vpop.trf.xlu0
    %v5905 = vpop.trf.xlu0
    %v5906 = vpop.trf.xlu0
    %v5908 = vsel %vm93, %v5891, 0
    %v5911 = vsel %vm93, %v5892, 0
    %v5914 = vsel %vm93, %v5893, 0
    %v5917 = vsel %vm93, %v5894, 0
    %v5920 = vsel %vm93, %v5895, 0
    %5922 = vmatpush.msra.mxu0 0.0
    %5923 = vmatpush.msra.mxu0 0.0
    %5924 = vmatpush.msra.mxu0 0.0
    %5925 = vmatpush.msra.mxu0 0.0
    %5926 = vmatpush.msra.mxu0 0.0
    %5927 = vmatpush.msra.mxu0 0.0
    %5928 = vmatpush.msra.mxu0 0.0
    %5929 = vmatpush.msra.mxu0 0.0
    %v5930 = vand.u32 %v5866, 4294901760
    %5931 = vmatpush.msra.mxu0 %v5930
    %v5932 = vand.u32 %v5865, 4294901760
    %5933 = vmatpush.msra.mxu0 %v5932
    %v5934 = vand.u32 %v5864, 4294901760
    %5935 = vmatpush.msra.mxu0 %v5934
    %v5936 = vand.u32 %v5863, 4294901760
    %5937 = vmatpush.msra.mxu0 %v5936
    %v5938 = vand.u32 %v5862, 4294901760
    %5939 = vmatpush.msra.mxu0 %v5938
    %v5940 = vand.u32 %v5861, 4294901760
    %5941 = vmatpush.msra.mxu0 %v5940
    %v5942 = vand.u32 %v5860, 4294901760
    %5943 = vmatpush.msra.mxu0 %v5942
    %v5944 = vand.u32 %v5859, 4294901760
    %5945 = vmatpush.msra.mxu0 %v5944
    %v5946 = vand.u32 %v5908, 4294901760
    %v5947 = vsub.f32 %v5908, %v5946
    %v5948 = vand.u32 %v5947, 4294901760
    %v5949 = vsub.f32 %v5947, %v5948
    %v5950 = vand.u32 %v5949, 4294901760
    %5951 = vmatmul.f32.gmra.mxu0 %v5950
    %v5952 = vpop.f32.mrf.mxu0
    %v5953 = vadd.f32 0.0, %v5952
    %v5954 = vand.u32 %v5911, 4294901760
    %v5955 = vsub.f32 %v5911, %v5954
    %v5956 = vand.u32 %v5955, 4294901760
    %v5957 = vsub.f32 %v5955, %v5956
    %v5958 = vand.u32 %v5957, 4294901760
    %5959 = vmatmul.f32.gmra.mxu0 %v5958
    %v5960 = vpop.f32.mrf.mxu0
    %v5961 = vadd.f32 0.0, %v5960
    %v5962 = vand.u32 %v5914, 4294901760
    %v5963 = vsub.f32 %v5914, %v5962
    %v5964 = vand.u32 %v5963, 4294901760
    %v5965 = vsub.f32 %v5963, %v5964
    %v5966 = vand.u32 %v5965, 4294901760
    %5967 = vmatmul.f32.gmra.mxu0 %v5966
    %v5968 = vpop.f32.mrf.mxu0
    %v5969 = vadd.f32 0.0, %v5968
    %v5970 = vand.u32 %v5917, 4294901760
    %v5971 = vsub.f32 %v5917, %v5970
    %v5972 = vand.u32 %v5971, 4294901760
    %v5973 = vsub.f32 %v5971, %v5972
    %v5974 = vand.u32 %v5973, 4294901760
    %5975 = vmatmul.f32.gmra.mxu0 %v5974
    %v5976 = vpop.f32.mrf.mxu0
    %v5977 = vadd.f32 0.0, %v5976
    %v5978 = vand.u32 %v5920, 4294901760
    %v5979 = vsub.f32 %v5920, %v5978
    %v5980 = vand.u32 %v5979, 4294901760
    %v5981 = vsub.f32 %v5979, %v5980
    %v5982 = vand.u32 %v5981, 4294901760
    %5983 = vmatmul.f32.gmra.mxu0 %v5982
    %v5984 = vpop.f32.mrf.mxu0
    %v5985 = vadd.f32 0.0, %v5984
    %5986 = vdwg.mxu0
    %5987 = vmatpush.msra.mxu0 0.0
    %5988 = vmatpush.msra.mxu0 0.0
    %5989 = vmatpush.msra.mxu0 0.0
    %5990 = vmatpush.msra.mxu0 0.0
    %5991 = vmatpush.msra.mxu0 0.0
    %5992 = vmatpush.msra.mxu0 0.0
    %5993 = vmatpush.msra.mxu0 0.0
    %5994 = vmatpush.msra.mxu0 0.0
    %v5995 = vand.u32 %v5866, 4294901760
    %v5996 = vsub.f32 %v5866, %v5995
    %v5997 = vand.u32 %v5996, 4294901760
    %v5998 = vsub.f32 %v5996, %v5997
    %v5999 = vand.u32 %v5998, 4294901760
    %6000 = vmatpush.msra.mxu0 %v5999
    %v6001 = vand.u32 %v5865, 4294901760
    %v6002 = vsub.f32 %v5865, %v6001
    %v6003 = vand.u32 %v6002, 4294901760
    %v6004 = vsub.f32 %v6002, %v6003
    %v6005 = vand.u32 %v6004, 4294901760
    %6006 = vmatpush.msra.mxu0 %v6005
    %v6007 = vand.u32 %v5864, 4294901760
    %v6008 = vsub.f32 %v5864, %v6007
    %v6009 = vand.u32 %v6008, 4294901760
    %v6010 = vsub.f32 %v6008, %v6009
    %v6011 = vand.u32 %v6010, 4294901760
    %6012 = vmatpush.msra.mxu0 %v6011
    %v6013 = vand.u32 %v5863, 4294901760
    %v6014 = vsub.f32 %v5863, %v6013
    %v6015 = vand.u32 %v6014, 4294901760
    %v6016 = vsub.f32 %v6014, %v6015
    %v6017 = vand.u32 %v6016, 4294901760
    %6018 = vmatpush.msra.mxu0 %v6017
    %v6019 = vand.u32 %v5862, 4294901760
    %v6020 = vsub.f32 %v5862, %v6019
    %v6021 = vand.u32 %v6020, 4294901760
    %v6022 = vsub.f32 %v6020, %v6021
    %v6023 = vand.u32 %v6022, 4294901760
    %6024 = vmatpush.msra.mxu0 %v6023
    %v6025 = vand.u32 %v5861, 4294901760
    %v6026 = vsub.f32 %v5861, %v6025
    %v6027 = vand.u32 %v6026, 4294901760
    %v6028 = vsub.f32 %v6026, %v6027
    %v6029 = vand.u32 %v6028, 4294901760
    %6030 = vmatpush.msra.mxu0 %v6029
    %v6031 = vand.u32 %v5860, 4294901760
    %v6032 = vsub.f32 %v5860, %v6031
    %v6033 = vand.u32 %v6032, 4294901760
    %v6034 = vsub.f32 %v6032, %v6033
    %v6035 = vand.u32 %v6034, 4294901760
    %6036 = vmatpush.msra.mxu0 %v6035
    %v6037 = vand.u32 %v5859, 4294901760
    %v6038 = vsub.f32 %v5859, %v6037
    %v6039 = vand.u32 %v6038, 4294901760
    %v6040 = vsub.f32 %v6038, %v6039
    %v6041 = vand.u32 %v6040, 4294901760
    %6042 = vmatpush.msra.mxu0 %v6041
    %v6043 = vand.u32 %v5908, 4294901760
    %6044 = vmatmul.f32.gmra.mxu0 %v6043
    %v6045 = vpop.f32.mrf.mxu0
    %v6046 = vadd.f32 %v5953, %v6045
    %v6047 = vand.u32 %v5911, 4294901760
    %6048 = vmatmul.f32.gmra.mxu0 %v6047
    %v6049 = vpop.f32.mrf.mxu0
    %v6050 = vadd.f32 %v5961, %v6049
    %v6051 = vand.u32 %v5914, 4294901760
    %6052 = vmatmul.f32.gmra.mxu0 %v6051
    %v6053 = vpop.f32.mrf.mxu0
    %v6054 = vadd.f32 %v5969, %v6053
    %v6055 = vand.u32 %v5917, 4294901760
    %6056 = vmatmul.f32.gmra.mxu0 %v6055
    %v6057 = vpop.f32.mrf.mxu0
    %v6058 = vadd.f32 %v5977, %v6057
    %v6059 = vand.u32 %v5920, 4294901760
    %6060 = vmatmul.f32.gmra.mxu0 %v6059
    %v6061 = vpop.f32.mrf.mxu0
    %v6062 = vadd.f32 %v5985, %v6061
    %6063 = vdwg.mxu0
    %6064 = vmatpush.msra.mxu0 0.0
    %6065 = vmatpush.msra.mxu0 0.0
    %6066 = vmatpush.msra.mxu0 0.0
    %6067 = vmatpush.msra.mxu0 0.0
    %6068 = vmatpush.msra.mxu0 0.0
    %6069 = vmatpush.msra.mxu0 0.0
    %6070 = vmatpush.msra.mxu0 0.0
    %6071 = vmatpush.msra.mxu0 0.0
    %v6072 = vand.u32 %v5866, 4294901760
    %v6073 = vsub.f32 %v5866, %v6072
    %6074 = vmatpush.msra.mxu0 %v6073
    %v6075 = vand.u32 %v5865, 4294901760
    %v6076 = vsub.f32 %v5865, %v6075
    %6077 = vmatpush.msra.mxu0 %v6076
    %v6078 = vand.u32 %v5864, 4294901760
    %v6079 = vsub.f32 %v5864, %v6078
    %6080 = vmatpush.msra.mxu0 %v6079
    %v6081 = vand.u32 %v5863, 4294901760
    %v6082 = vsub.f32 %v5863, %v6081
    %6083 = vmatpush.msra.mxu0 %v6082
    %v6084 = vand.u32 %v5862, 4294901760
    %v6085 = vsub.f32 %v5862, %v6084
    %6086 = vmatpush.msra.mxu0 %v6085
    %v6087 = vand.u32 %v5861, 4294901760
    %v6088 = vsub.f32 %v5861, %v6087
    %6089 = vmatpush.msra.mxu0 %v6088
    %v6090 = vand.u32 %v5860, 4294901760
    %v6091 = vsub.f32 %v5860, %v6090
    %6092 = vmatpush.msra.mxu0 %v6091
    %v6093 = vand.u32 %v5859, 4294901760
    %v6094 = vsub.f32 %v5859, %v6093
    %6095 = vmatpush.msra.mxu0 %v6094
    %v6096 = vand.u32 %v5908, 4294901760
    %v6097 = vsub.f32 %v5908, %v6096
    %6098 = vmatmul.f32.gmra.mxu0 %v6097
    %v6099 = vpop.f32.mrf.mxu0
    %v6100 = vadd.f32 %v6046, %v6099
    %v6101 = vand.u32 %v5911, 4294901760
    %v6102 = vsub.f32 %v5911, %v6101
    %6103 = vmatmul.f32.gmra.mxu0 %v6102
    %v6104 = vpop.f32.mrf.mxu0
    %v6105 = vadd.f32 %v6050, %v6104
    %v6106 = vand.u32 %v5914, 4294901760
    %v6107 = vsub.f32 %v5914, %v6106
    %6108 = vmatmul.f32.gmra.mxu0 %v6107
    %v6109 = vpop.f32.mrf.mxu0
    %v6110 = vadd.f32 %v6054, %v6109
    %v6111 = vand.u32 %v5917, 4294901760
    %v6112 = vsub.f32 %v5917, %v6111
    %6113 = vmatmul.f32.gmra.mxu0 %v6112
    %v6114 = vpop.f32.mrf.mxu0
    %v6115 = vadd.f32 %v6058, %v6114
    %v6116 = vand.u32 %v5920, 4294901760
    %v6117 = vsub.f32 %v5920, %v6116
    %6118 = vmatmul.f32.gmra.mxu0 %v6117
    %v6119 = vpop.f32.mrf.mxu0
    %v6120 = vadd.f32 %v6062, %v6119
    %6121 = vdwg.mxu0
    %6122 = vmatpush.msra.mxu0 0.0
    %6123 = vmatpush.msra.mxu0 0.0
    %6124 = vmatpush.msra.mxu0 0.0
    %6125 = vmatpush.msra.mxu0 0.0
    %6126 = vmatpush.msra.mxu0 0.0
    %6127 = vmatpush.msra.mxu0 0.0
    %6128 = vmatpush.msra.mxu0 0.0
    %6129 = vmatpush.msra.mxu0 0.0
    %v6130 = vand.u32 %v5866, 4294901760
    %6131 = vmatpush.msra.mxu0 %v6130
    %v6132 = vand.u32 %v5865, 4294901760
    %6133 = vmatpush.msra.mxu0 %v6132
    %v6134 = vand.u32 %v5864, 4294901760
    %6135 = vmatpush.msra.mxu0 %v6134
    %v6136 = vand.u32 %v5863, 4294901760
    %6137 = vmatpush.msra.mxu0 %v6136
    %v6138 = vand.u32 %v5862, 4294901760
    %6139 = vmatpush.msra.mxu0 %v6138
    %v6140 = vand.u32 %v5861, 4294901760
    %6141 = vmatpush.msra.mxu0 %v6140
    %v6142 = vand.u32 %v5860, 4294901760
    %6143 = vmatpush.msra.mxu0 %v6142
    %v6144 = vand.u32 %v5859, 4294901760
    %6145 = vmatpush.msra.mxu0 %v6144
    %v6146 = vand.u32 %v5908, 4294901760
    %v6147 = vsub.f32 %v5908, %v6146
    %v6148 = vand.u32 %v6147, 4294901760
    %6149 = vmatmul.f32.gmra.mxu0 %v6148
    %v6150 = vpop.f32.mrf.mxu0
    %v6151 = vadd.f32 %v6100, %v6150
    %v6152 = vand.u32 %v5911, 4294901760
    %v6153 = vsub.f32 %v5911, %v6152
    %v6154 = vand.u32 %v6153, 4294901760
    %6155 = vmatmul.f32.gmra.mxu0 %v6154
    %v6156 = vpop.f32.mrf.mxu0
    %v6157 = vadd.f32 %v6105, %v6156
    %v6158 = vand.u32 %v5914, 4294901760
    %v6159 = vsub.f32 %v5914, %v6158
    %v6160 = vand.u32 %v6159, 4294901760
    %6161 = vmatmul.f32.gmra.mxu0 %v6160
    %v6162 = vpop.f32.mrf.mxu0
    %v6163 = vadd.f32 %v6110, %v6162
    %v6164 = vand.u32 %v5917, 4294901760
    %v6165 = vsub.f32 %v5917, %v6164
    %v6166 = vand.u32 %v6165, 4294901760
    %6167 = vmatmul.f32.gmra.mxu0 %v6166
    %v6168 = vpop.f32.mrf.mxu0
    %v6169 = vadd.f32 %v6115, %v6168
    %v6170 = vand.u32 %v5920, 4294901760
    %v6171 = vsub.f32 %v5920, %v6170
    %v6172 = vand.u32 %v6171, 4294901760
    %6173 = vmatmul.f32.gmra.mxu0 %v6172
    %v6174 = vpop.f32.mrf.mxu0
    %v6175 = vadd.f32 %v6120, %v6174
    %6176 = vdwg.mxu0
    %6177 = vmatpush.msra.mxu0 0.0
    %6178 = vmatpush.msra.mxu0 0.0
    %6179 = vmatpush.msra.mxu0 0.0
    %6180 = vmatpush.msra.mxu0 0.0
    %6181 = vmatpush.msra.mxu0 0.0
    %6182 = vmatpush.msra.mxu0 0.0
    %6183 = vmatpush.msra.mxu0 0.0
    %6184 = vmatpush.msra.mxu0 0.0
    %v6185 = vand.u32 %v5866, 4294901760
    %v6186 = vsub.f32 %v5866, %v6185
    %v6187 = vand.u32 %v6186, 4294901760
    %6188 = vmatpush.msra.mxu0 %v6187
    %v6189 = vand.u32 %v5865, 4294901760
    %v6190 = vsub.f32 %v5865, %v6189
    %v6191 = vand.u32 %v6190, 4294901760
    %6192 = vmatpush.msra.mxu0 %v6191
    %v6193 = vand.u32 %v5864, 4294901760
    %v6194 = vsub.f32 %v5864, %v6193
    %v6195 = vand.u32 %v6194, 4294901760
    %6196 = vmatpush.msra.mxu0 %v6195
    %v6197 = vand.u32 %v5863, 4294901760
    %v6198 = vsub.f32 %v5863, %v6197
    %v6199 = vand.u32 %v6198, 4294901760
    %6200 = vmatpush.msra.mxu0 %v6199
    %v6201 = vand.u32 %v5862, 4294901760
    %v6202 = vsub.f32 %v5862, %v6201
    %v6203 = vand.u32 %v6202, 4294901760
    %6204 = vmatpush.msra.mxu0 %v6203
    %v6205 = vand.u32 %v5861, 4294901760
    %v6206 = vsub.f32 %v5861, %v6205
    %v6207 = vand.u32 %v6206, 4294901760
    %6208 = vmatpush.msra.mxu0 %v6207
    %v6209 = vand.u32 %v5860, 4294901760
    %v6210 = vsub.f32 %v5860, %v6209
    %v6211 = vand.u32 %v6210, 4294901760
    %6212 = vmatpush.msra.mxu0 %v6211
    %v6213 = vand.u32 %v5859, 4294901760
    %v6214 = vsub.f32 %v5859, %v6213
    %v6215 = vand.u32 %v6214, 4294901760
    %6216 = vmatpush.msra.mxu0 %v6215
    %v6217 = vand.u32 %v5908, 4294901760
    %6218 = vmatmul.f32.gmra.mxu0 %v6217
    %v6219 = vpop.f32.mrf.mxu0
    %v6220 = vadd.f32 %v6151, %v6219
    %v6221 = vand.u32 %v5911, 4294901760
    %6222 = vmatmul.f32.gmra.mxu0 %v6221
    %v6223 = vpop.f32.mrf.mxu0
    %v6224 = vadd.f32 %v6157, %v6223
    %v6225 = vand.u32 %v5914, 4294901760
    %6226 = vmatmul.f32.gmra.mxu0 %v6225
    %v6227 = vpop.f32.mrf.mxu0
    %v6228 = vadd.f32 %v6163, %v6227
    %v6229 = vand.u32 %v5917, 4294901760
    %6230 = vmatmul.f32.gmra.mxu0 %v6229
    %v6231 = vpop.f32.mrf.mxu0
    %v6232 = vadd.f32 %v6169, %v6231
    %v6233 = vand.u32 %v5920, 4294901760
    %6234 = vmatmul.f32.gmra.mxu0 %v6233
    %v6235 = vpop.f32.mrf.mxu0
    %v6236 = vadd.f32 %v6175, %v6235
    %6237 = vdwg.mxu0
    %6238 = vmatpush.msra.mxu0 0.0
    %6239 = vmatpush.msra.mxu0 0.0
    %6240 = vmatpush.msra.mxu0 0.0
    %6241 = vmatpush.msra.mxu0 0.0
    %6242 = vmatpush.msra.mxu0 0.0
    %6243 = vmatpush.msra.mxu0 0.0
    %6244 = vmatpush.msra.mxu0 0.0
    %6245 = vmatpush.msra.mxu0 0.0
    %v6246 = vand.u32 %v5866, 4294901760
    %6247 = vmatpush.msra.mxu0 %v6246
    %v6248 = vand.u32 %v5865, 4294901760
    %6249 = vmatpush.msra.mxu0 %v6248
    %v6250 = vand.u32 %v5864, 4294901760
    %6251 = vmatpush.msra.mxu0 %v6250
    %v6252 = vand.u32 %v5863, 4294901760
    %6253 = vmatpush.msra.mxu0 %v6252
    %v6254 = vand.u32 %v5862, 4294901760
    %6255 = vmatpush.msra.mxu0 %v6254
    %v6256 = vand.u32 %v5861, 4294901760
    %6257 = vmatpush.msra.mxu0 %v6256
    %v6258 = vand.u32 %v5860, 4294901760
    %6259 = vmatpush.msra.mxu0 %v6258
    %v6260 = vand.u32 %v5859, 4294901760
    %6261 = vmatpush.msra.mxu0 %v6260
    %v6262 = vand.u32 %v5908, 4294901760
    %6263 = vmatmul.f32.gmra.mxu0 %v6262
    %v6264 = vpop.f32.mrf.mxu0
    %v6265 = vadd.f32 %v6220, %v6264
    %v6266 = vand.u32 %v5911, 4294901760
    %6267 = vmatmul.f32.gmra.mxu0 %v6266
    %v6268 = vpop.f32.mrf.mxu0
    %v6269 = vadd.f32 %v6224, %v6268
    %v6270 = vand.u32 %v5914, 4294901760
    %6271 = vmatmul.f32.gmra.mxu0 %v6270
    %v6272 = vpop.f32.mrf.mxu0
    %v6273 = vadd.f32 %v6228, %v6272
    %v6274 = vand.u32 %v5917, 4294901760
    %6275 = vmatmul.f32.gmra.mxu0 %v6274
    %v6276 = vpop.f32.mrf.mxu0
    %v6277 = vadd.f32 %v6232, %v6276
    %v6278 = vand.u32 %v5920, 4294901760
    %6279 = vmatmul.f32.gmra.mxu0 %v6278
    %v6280 = vpop.f32.mrf.mxu0
    %v6281 = vadd.f32 %v6236, %v6280
    %6282 = vdwg.mxu0
    %v6283 = vld [vmem:[%s1 + $0x6] sm:$0x1]
    %v6284 = vperm.slane %v6283, 0
    %vm6285 = vcmp.eq.s32.totalorder %v20, %v6284
    %vm6286 = vcmp.eq.s32.totalorder %v21, %v6284
    %vm6287 = vcmp.eq.s32.totalorder %v22, %v6284
    %vm6288 = vcmp.eq.s32.totalorder %v23, %v6284
    %vm6289 = vcmp.eq.s32.totalorder %v24, %v6284
    %vm6290 = vcmp.eq.s32.totalorder %v25, %v6284
    %vm6291 = vcmp.eq.s32.totalorder %v26, %v6284
    %vm6292 = vcmp.eq.s32.totalorder %v27, %v6284
    %vm6293 = vcmp.eq.s32.totalorder %v471, %v6284
    %vm6294 = vcmp.eq.s32.totalorder %v472, %v6284
    %vm6295 = vcmp.eq.s32.totalorder %v473, %v6284
    %vm6296 = vcmp.eq.s32.totalorder %v474, %v6284
    %v6297 = vsel %vm6285, 1, 0
    %v6298 = vsel %vm6286, 1, 0
    %v6299 = vsel %vm6287, 1, 0
    %v6300 = vsel %vm6288, 1, 0
    %v6301 = vsel %vm6289, 1, 0
    %v6302 = vsel %vm6290, 1, 0
    %v6303 = vsel %vm6291, 1, 0
    %v6304 = vsel %vm6292, 1, 0
    %v6305 = vsel %vm6293, 1, 0
    %v6306 = vsel %vm6294, 1, 0
    %v6307 = vsel %vm6295, 1, 0
    %v6308 = vsel %vm6296, 1, 0
    %v6309 = vcvt.s32.f32 %v6297
    %v6310 = vcvt.s32.f32 %v6298
    %v6311 = vcvt.s32.f32 %v6299
    %v6312 = vcvt.s32.f32 %v6300
    %v6313 = vcvt.s32.f32 %v6301
    %v6314 = vcvt.s32.f32 %v6302
    %v6315 = vcvt.s32.f32 %v6303
    %v6316 = vcvt.s32.f32 %v6304
    %v6317 = vcvt.s32.f32 %v6305
    %v6318 = vcvt.s32.f32 %v6306
    %v6319 = vcvt.s32.f32 %v6307
    %v6320 = vcvt.s32.f32 %v6308
    %v6321 = vld [vmem:[%s3] sm:$0xff]
    %v6322 = vld [vmem:[%s3 + $0x8] sm:$0xff]
    %v6323 = vld [vmem:[%s3 + $0x10] sm:$0xff]
    %v6324 = vld [vmem:[%s3 + $0x18] sm:$0xff]
    %v6325 = vld [vmem:[%s3 + $0x20] sm:$0xff]
    %v6326 = vld [vmem:[%s3 + $0x28] sm:$0xff]
    %v6327 = vld [vmem:[%s3 + $0x30] sm:$0xff]
    %v6328 = vld [vmem:[%s3 + $0x38] sm:$0xff]
    %v6329 = vld [vmem:[%s3 + $0x40] sm:$0xff]
    %v6330 = vld [vmem:[%s3 + $0x48] sm:$0xff]
    %v6331 = vld [vmem:[%s3 + $0x50] sm:$0xff]
    %v6332 = vld [vmem:[%s3 + $0x58] sm:$0xff]
    %6333 = vxpose.xlu0.b32.start [1/16] %v6321, 128
    %6334 = vxpose.xlu0.b32.cont [2/16] %v6322, 128
    %6335 = vxpose.xlu0.b32.cont [3/16] %v6323, 128
    %6336 = vxpose.xlu0.b32.cont [4/16] %v6324, 128
    %6337 = vxpose.xlu0.b32.cont [5/16] %v6325, 128
    %6338 = vxpose.xlu0.b32.cont [6/16] %v6326, 128
    %6339 = vxpose.xlu0.b32.cont [7/16] %v6327, 128
    %6340 = vxpose.xlu0.b32.cont [8/16] %v6328, 128
    %6341 = vxpose.xlu0.b32.cont [9/16] %v6329, 128
    %6342 = vxpose.xlu0.b32.cont [10/16] %v6330, 128
    %6343 = vxpose.xlu0.b32.cont [11/16] %v6331, 128
    %6344 = vxpose.xlu0.b32.cont [12/16] %v6332, 128
    %6345 = vxpose.xlu0.b32.cont [13/16] 0.0, 128
    %6346 = vxpose.xlu0.b32.cont [14/16] 0.0, 128
    %6347 = vxpose.xlu0.b32.cont [15/16] 0.0, 128
    %6348 = vxpose.xlu0.b32.end [16/16] 0.0, 128
    %v6349 = vpop.trf.xlu0
    %v6350 = vpop.trf.xlu0
    %v6351 = vpop.trf.xlu0
    %v6352 = vpop.trf.xlu0
    %v6353 = vpop.trf.xlu0
    %v6354 = vpop.trf.xlu0
    %v6355 = vpop.trf.xlu0
    %v6356 = vpop.trf.xlu0
    %v6357 = vpop.trf.xlu0
    %v6358 = vpop.trf.xlu0
    %v6359 = vpop.trf.xlu0
    %v6360 = vpop.trf.xlu0
    %v6361 = vpop.trf.xlu0
    %v6362 = vpop.trf.xlu0
    %v6363 = vpop.trf.xlu0
    %v6364 = vpop.trf.xlu0
    %v6366 = vsel %vm556, %v6349, 0
    %v6369 = vsel %vm556, %v6350, 0
    %v6372 = vsel %vm556, %v6351, 0
    %v6375 = vsel %vm556, %v6352, 0
    %v6378 = vsel %vm556, %v6353, 0
    %6380 = vmatpush.msra.mxu0 0.0
    %6381 = vmatpush.msra.mxu0 0.0
    %6382 = vmatpush.msra.mxu0 0.0
    %6383 = vmatpush.msra.mxu0 0.0
    %v6384 = vand.u32 %v6320, 4294901760
    %6385 = vmatpush.msra.mxu0 %v6384
    %v6386 = vand.u32 %v6319, 4294901760
    %6387 = vmatpush.msra.mxu0 %v6386
    %v6388 = vand.u32 %v6318, 4294901760
    %6389 = vmatpush.msra.mxu0 %v6388
    %v6390 = vand.u32 %v6317, 4294901760
    %6391 = vmatpush.msra.mxu0 %v6390
    %v6392 = vand.u32 %v6316, 4294901760
    %6393 = vmatpush.msra.mxu0 %v6392
    %v6394 = vand.u32 %v6315, 4294901760
    %6395 = vmatpush.msra.mxu0 %v6394
    %v6396 = vand.u32 %v6314, 4294901760
    %6397 = vmatpush.msra.mxu0 %v6396
    %v6398 = vand.u32 %v6313, 4294901760
    %6399 = vmatpush.msra.mxu0 %v6398
    %v6400 = vand.u32 %v6312, 4294901760
    %6401 = vmatpush.msra.mxu0 %v6400
    %v6402 = vand.u32 %v6311, 4294901760
    %6403 = vmatpush.msra.mxu0 %v6402
    %v6404 = vand.u32 %v6310, 4294901760
    %6405 = vmatpush.msra.mxu0 %v6404
    %v6406 = vand.u32 %v6309, 4294901760
    %6407 = vmatpush.msra.mxu0 %v6406
    %v6408 = vand.u32 %v6366, 4294901760
    %v6409 = vsub.f32 %v6366, %v6408
    %v6410 = vand.u32 %v6409, 4294901760
    %v6411 = vsub.f32 %v6409, %v6410
    %v6412 = vand.u32 %v6411, 4294901760
    %6413 = vmatmul.f32.gmra.mxu0 %v6412
    %v6414 = vpop.f32.mrf.mxu0
    %v6415 = vadd.f32 0.0, %v6414
    %v6416 = vand.u32 %v6369, 4294901760
    %v6417 = vsub.f32 %v6369, %v6416
    %v6418 = vand.u32 %v6417, 4294901760
    %v6419 = vsub.f32 %v6417, %v6418
    %v6420 = vand.u32 %v6419, 4294901760
    %6421 = vmatmul.f32.gmra.mxu0 %v6420
    %v6422 = vpop.f32.mrf.mxu0
    %v6423 = vadd.f32 0.0, %v6422
    %v6424 = vand.u32 %v6372, 4294901760
    %v6425 = vsub.f32 %v6372, %v6424
    %v6426 = vand.u32 %v6425, 4294901760
    %v6427 = vsub.f32 %v6425, %v6426
    %v6428 = vand.u32 %v6427, 4294901760
    %6429 = vmatmul.f32.gmra.mxu0 %v6428
    %v6430 = vpop.f32.mrf.mxu0
    %v6431 = vadd.f32 0.0, %v6430
    %v6432 = vand.u32 %v6375, 4294901760
    %v6433 = vsub.f32 %v6375, %v6432
    %v6434 = vand.u32 %v6433, 4294901760
    %v6435 = vsub.f32 %v6433, %v6434
    %v6436 = vand.u32 %v6435, 4294901760
    %6437 = vmatmul.f32.gmra.mxu0 %v6436
    %v6438 = vpop.f32.mrf.mxu0
    %v6439 = vadd.f32 0.0, %v6438
    %v6440 = vand.u32 %v6378, 4294901760
    %v6441 = vsub.f32 %v6378, %v6440
    %v6442 = vand.u32 %v6441, 4294901760
    %v6443 = vsub.f32 %v6441, %v6442
    %v6444 = vand.u32 %v6443, 4294901760
    %6445 = vmatmul.f32.gmra.mxu0 %v6444
    %v6446 = vpop.f32.mrf.mxu0
    %v6447 = vadd.f32 0.0, %v6446
    %6448 = vdwg.mxu0
    %6449 = vmatpush.msra.mxu0 0.0
    %6450 = vmatpush.msra.mxu0 0.0
    %6451 = vmatpush.msra.mxu0 0.0
    %6452 = vmatpush.msra.mxu0 0.0
    %v6453 = vand.u32 %v6320, 4294901760
    %v6454 = vsub.f32 %v6320, %v6453
    %v6455 = vand.u32 %v6454, 4294901760
    %v6456 = vsub.f32 %v6454, %v6455
    %v6457 = vand.u32 %v6456, 4294901760
    %6458 = vmatpush.msra.mxu0 %v6457
    %v6459 = vand.u32 %v6319, 4294901760
    %v6460 = vsub.f32 %v6319, %v6459
    %v6461 = vand.u32 %v6460, 4294901760
    %v6462 = vsub.f32 %v6460, %v6461
    %v6463 = vand.u32 %v6462, 4294901760
    %6464 = vmatpush.msra.mxu0 %v6463
    %v6465 = vand.u32 %v6318, 4294901760
    %v6466 = vsub.f32 %v6318, %v6465
    %v6467 = vand.u32 %v6466, 4294901760
    %v6468 = vsub.f32 %v6466, %v6467
    %v6469 = vand.u32 %v6468, 4294901760
    %6470 = vmatpush.msra.mxu0 %v6469
    %v6471 = vand.u32 %v6317, 4294901760
    %v6472 = vsub.f32 %v6317, %v6471
    %v6473 = vand.u32 %v6472, 4294901760
    %v6474 = vsub.f32 %v6472, %v6473
    %v6475 = vand.u32 %v6474, 4294901760
    %6476 = vmatpush.msra.mxu0 %v6475
    %v6477 = vand.u32 %v6316, 4294901760
    %v6478 = vsub.f32 %v6316, %v6477
    %v6479 = vand.u32 %v6478, 4294901760
    %v6480 = vsub.f32 %v6478, %v6479
    %v6481 = vand.u32 %v6480, 4294901760
    %6482 = vmatpush.msra.mxu0 %v6481
    %v6483 = vand.u32 %v6315, 4294901760
    %v6484 = vsub.f32 %v6315, %v6483
    %v6485 = vand.u32 %v6484, 4294901760
    %v6486 = vsub.f32 %v6484, %v6485
    %v6487 = vand.u32 %v6486, 4294901760
    %6488 = vmatpush.msra.mxu0 %v6487
    %v6489 = vand.u32 %v6314, 4294901760
    %v6490 = vsub.f32 %v6314, %v6489
    %v6491 = vand.u32 %v6490, 4294901760
    %v6492 = vsub.f32 %v6490, %v6491
    %v6493 = vand.u32 %v6492, 4294901760
    %6494 = vmatpush.msra.mxu0 %v6493
    %v6495 = vand.u32 %v6313, 4294901760
    %v6496 = vsub.f32 %v6313, %v6495
    %v6497 = vand.u32 %v6496, 4294901760
    %v6498 = vsub.f32 %v6496, %v6497
    %v6499 = vand.u32 %v6498, 4294901760
    %6500 = vmatpush.msra.mxu0 %v6499
    %v6501 = vand.u32 %v6312, 4294901760
    %v6502 = vsub.f32 %v6312, %v6501
    %v6503 = vand.u32 %v6502, 4294901760
    %v6504 = vsub.f32 %v6502, %v6503
    %v6505 = vand.u32 %v6504, 4294901760
    %6506 = vmatpush.msra.mxu0 %v6505
    %v6507 = vand.u32 %v6311, 4294901760
    %v6508 = vsub.f32 %v6311, %v6507
    %v6509 = vand.u32 %v6508, 4294901760
    %v6510 = vsub.f32 %v6508, %v6509
    %v6511 = vand.u32 %v6510, 4294901760
    %6512 = vmatpush.msra.mxu0 %v6511
    %v6513 = vand.u32 %v6310, 4294901760
    %v6514 = vsub.f32 %v6310, %v6513
    %v6515 = vand.u32 %v6514, 4294901760
    %v6516 = vsub.f32 %v6514, %v6515
    %v6517 = vand.u32 %v6516, 4294901760
    %6518 = vmatpush.msra.mxu0 %v6517
    %v6519 = vand.u32 %v6309, 4294901760
    %v6520 = vsub.f32 %v6309, %v6519
    %v6521 = vand.u32 %v6520, 4294901760
    %v6522 = vsub.f32 %v6520, %v6521
    %v6523 = vand.u32 %v6522, 4294901760
    %6524 = vmatpush.msra.mxu0 %v6523
    %v6525 = vand.u32 %v6366, 4294901760
    %6526 = vmatmul.f32.gmra.mxu0 %v6525
    %v6527 = vpop.f32.mrf.mxu0
    %v6528 = vadd.f32 %v6415, %v6527
    %v6529 = vand.u32 %v6369, 4294901760
    %6530 = vmatmul.f32.gmra.mxu0 %v6529
    %v6531 = vpop.f32.mrf.mxu0
    %v6532 = vadd.f32 %v6423, %v6531
    %v6533 = vand.u32 %v6372, 4294901760
    %6534 = vmatmul.f32.gmra.mxu0 %v6533
    %v6535 = vpop.f32.mrf.mxu0
    %v6536 = vadd.f32 %v6431, %v6535
    %v6537 = vand.u32 %v6375, 4294901760
    %6538 = vmatmul.f32.gmra.mxu0 %v6537
    %v6539 = vpop.f32.mrf.mxu0
    %v6540 = vadd.f32 %v6439, %v6539
    %v6541 = vand.u32 %v6378, 4294901760
    %6542 = vmatmul.f32.gmra.mxu0 %v6541
    %v6543 = vpop.f32.mrf.mxu0
    %v6544 = vadd.f32 %v6447, %v6543
    %6545 = vdwg.mxu0
    %6546 = vmatpush.msra.mxu0 0.0
    %6547 = vmatpush.msra.mxu0 0.0
    %6548 = vmatpush.msra.mxu0 0.0
    %6549 = vmatpush.msra.mxu0 0.0
    %v6550 = vand.u32 %v6320, 4294901760
    %v6551 = vsub.f32 %v6320, %v6550
    %6552 = vmatpush.msra.mxu0 %v6551
    %v6553 = vand.u32 %v6319, 4294901760
    %v6554 = vsub.f32 %v6319, %v6553
    %6555 = vmatpush.msra.mxu0 %v6554
    %v6556 = vand.u32 %v6318, 4294901760
    %v6557 = vsub.f32 %v6318, %v6556
    %6558 = vmatpush.msra.mxu0 %v6557
    %v6559 = vand.u32 %v6317, 4294901760
    %v6560 = vsub.f32 %v6317, %v6559
    %6561 = vmatpush.msra.mxu0 %v6560
    %v6562 = vand.u32 %v6316, 4294901760
    %v6563 = vsub.f32 %v6316, %v6562
    %6564 = vmatpush.msra.mxu0 %v6563
    %v6565 = vand.u32 %v6315, 4294901760
    %v6566 = vsub.f32 %v6315, %v6565
    %6567 = vmatpush.msra.mxu0 %v6566
    %v6568 = vand.u32 %v6314, 4294901760
    %v6569 = vsub.f32 %v6314, %v6568
    %6570 = vmatpush.msra.mxu0 %v6569
    %v6571 = vand.u32 %v6313, 4294901760
    %v6572 = vsub.f32 %v6313, %v6571
    %6573 = vmatpush.msra.mxu0 %v6572
    %v6574 = vand.u32 %v6312, 4294901760
    %v6575 = vsub.f32 %v6312, %v6574
    %6576 = vmatpush.msra.mxu0 %v6575
    %v6577 = vand.u32 %v6311, 4294901760
    %v6578 = vsub.f32 %v6311, %v6577
    %6579 = vmatpush.msra.mxu0 %v6578
    %v6580 = vand.u32 %v6310, 4294901760
    %v6581 = vsub.f32 %v6310, %v6580
    %6582 = vmatpush.msra.mxu0 %v6581
    %v6583 = vand.u32 %v6309, 4294901760
    %v6584 = vsub.f32 %v6309, %v6583
    %6585 = vmatpush.msra.mxu0 %v6584
    %v6586 = vand.u32 %v6366, 4294901760
    %v6587 = vsub.f32 %v6366, %v6586
    %6588 = vmatmul.f32.gmra.mxu0 %v6587
    %v6589 = vpop.f32.mrf.mxu0
    %v6590 = vadd.f32 %v6528, %v6589
    %v6591 = vand.u32 %v6369, 4294901760
    %v6592 = vsub.f32 %v6369, %v6591
    %6593 = vmatmul.f32.gmra.mxu0 %v6592
    %v6594 = vpop.f32.mrf.mxu0
    %v6595 = vadd.f32 %v6532, %v6594
    %v6596 = vand.u32 %v6372, 4294901760
    %v6597 = vsub.f32 %v6372, %v6596
    %6598 = vmatmul.f32.gmra.mxu0 %v6597
    %v6599 = vpop.f32.mrf.mxu0
    %v6600 = vadd.f32 %v6536, %v6599
    %v6601 = vand.u32 %v6375, 4294901760
    %v6602 = vsub.f32 %v6375, %v6601
    %6603 = vmatmul.f32.gmra.mxu0 %v6602
    %v6604 = vpop.f32.mrf.mxu0
    %v6605 = vadd.f32 %v6540, %v6604
    %v6606 = vand.u32 %v6378, 4294901760
    %v6607 = vsub.f32 %v6378, %v6606
    %6608 = vmatmul.f32.gmra.mxu0 %v6607
    %v6609 = vpop.f32.mrf.mxu0
    %v6610 = vadd.f32 %v6544, %v6609
    %6611 = vdwg.mxu0
    %6612 = vmatpush.msra.mxu0 0.0
    %6613 = vmatpush.msra.mxu0 0.0
    %6614 = vmatpush.msra.mxu0 0.0
    %6615 = vmatpush.msra.mxu0 0.0
    %v6616 = vand.u32 %v6320, 4294901760
    %6617 = vmatpush.msra.mxu0 %v6616
    %v6618 = vand.u32 %v6319, 4294901760
    %6619 = vmatpush.msra.mxu0 %v6618
    %v6620 = vand.u32 %v6318, 4294901760
    %6621 = vmatpush.msra.mxu0 %v6620
    %v6622 = vand.u32 %v6317, 4294901760
    %6623 = vmatpush.msra.mxu0 %v6622
    %v6624 = vand.u32 %v6316, 4294901760
    %6625 = vmatpush.msra.mxu0 %v6624
    %v6626 = vand.u32 %v6315, 4294901760
    %6627 = vmatpush.msra.mxu0 %v6626
    %v6628 = vand.u32 %v6314, 4294901760
    %6629 = vmatpush.msra.mxu0 %v6628
    %v6630 = vand.u32 %v6313, 4294901760
    %6631 = vmatpush.msra.mxu0 %v6630
    %v6632 = vand.u32 %v6312, 4294901760
    %6633 = vmatpush.msra.mxu0 %v6632
    %v6634 = vand.u32 %v6311, 4294901760
    %6635 = vmatpush.msra.mxu0 %v6634
    %v6636 = vand.u32 %v6310, 4294901760
    %6637 = vmatpush.msra.mxu0 %v6636
    %v6638 = vand.u32 %v6309, 4294901760
    %6639 = vmatpush.msra.mxu0 %v6638
    %v6640 = vand.u32 %v6366, 4294901760
    %v6641 = vsub.f32 %v6366, %v6640
    %v6642 = vand.u32 %v6641, 4294901760
    %6643 = vmatmul.f32.gmra.mxu0 %v6642
    %v6644 = vpop.f32.mrf.mxu0
    %v6645 = vadd.f32 %v6590, %v6644
    %v6646 = vand.u32 %v6369, 4294901760
    %v6647 = vsub.f32 %v6369, %v6646
    %v6648 = vand.u32 %v6647, 4294901760
    %6649 = vmatmul.f32.gmra.mxu0 %v6648
    %v6650 = vpop.f32.mrf.mxu0
    %v6651 = vadd.f32 %v6595, %v6650
    %v6652 = vand.u32 %v6372, 4294901760
    %v6653 = vsub.f32 %v6372, %v6652
    %v6654 = vand.u32 %v6653, 4294901760
    %6655 = vmatmul.f32.gmra.mxu0 %v6654
    %v6656 = vpop.f32.mrf.mxu0
    %v6657 = vadd.f32 %v6600, %v6656
    %v6658 = vand.u32 %v6375, 4294901760
    %v6659 = vsub.f32 %v6375, %v6658
    %v6660 = vand.u32 %v6659, 4294901760
    %6661 = vmatmul.f32.gmra.mxu0 %v6660
    %v6662 = vpop.f32.mrf.mxu0
    %v6663 = vadd.f32 %v6605, %v6662
    %v6664 = vand.u32 %v6378, 4294901760
    %v6665 = vsub.f32 %v6378, %v6664
    %v6666 = vand.u32 %v6665, 4294901760
    %6667 = vmatmul.f32.gmra.mxu0 %v6666
    %v6668 = vpop.f32.mrf.mxu0
    %v6669 = vadd.f32 %v6610, %v6668
    %6670 = vdwg.mxu0
    %6671 = vmatpush.msra.mxu0 0.0
    %6672 = vmatpush.msra.mxu0 0.0
    %6673 = vmatpush.msra.mxu0 0.0
    %6674 = vmatpush.msra.mxu0 0.0
    %v6675 = vand.u32 %v6320, 4294901760
    %v6676 = vsub.f32 %v6320, %v6675
    %v6677 = vand.u32 %v6676, 4294901760
    %6678 = vmatpush.msra.mxu0 %v6677
    %v6679 = vand.u32 %v6319, 4294901760
    %v6680 = vsub.f32 %v6319, %v6679
    %v6681 = vand.u32 %v6680, 4294901760
    %6682 = vmatpush.msra.mxu0 %v6681
    %v6683 = vand.u32 %v6318, 4294901760
    %v6684 = vsub.f32 %v6318, %v6683
    %v6685 = vand.u32 %v6684, 4294901760
    %6686 = vmatpush.msra.mxu0 %v6685
    %v6687 = vand.u32 %v6317, 4294901760
    %v6688 = vsub.f32 %v6317, %v6687
    %v6689 = vand.u32 %v6688, 4294901760
    %6690 = vmatpush.msra.mxu0 %v6689
    %v6691 = vand.u32 %v6316, 4294901760
    %v6692 = vsub.f32 %v6316, %v6691
    %v6693 = vand.u32 %v6692, 4294901760
    %6694 = vmatpush.msra.mxu0 %v6693
    %v6695 = vand.u32 %v6315, 4294901760
    %v6696 = vsub.f32 %v6315, %v6695
    %v6697 = vand.u32 %v6696, 4294901760
    %6698 = vmatpush.msra.mxu0 %v6697
    %v6699 = vand.u32 %v6314, 4294901760
    %v6700 = vsub.f32 %v6314, %v6699
    %v6701 = vand.u32 %v6700, 4294901760
    %6702 = vmatpush.msra.mxu0 %v6701
    %v6703 = vand.u32 %v6313, 4294901760
    %v6704 = vsub.f32 %v6313, %v6703
    %v6705 = vand.u32 %v6704, 4294901760
    %6706 = vmatpush.msra.mxu0 %v6705
    %v6707 = vand.u32 %v6312, 4294901760
    %v6708 = vsub.f32 %v6312, %v6707
    %v6709 = vand.u32 %v6708, 4294901760
    %6710 = vmatpush.msra.mxu0 %v6709
    %v6711 = vand.u32 %v6311, 4294901760
    %v6712 = vsub.f32 %v6311, %v6711
    %v6713 = vand.u32 %v6712, 4294901760
    %6714 = vmatpush.msra.mxu0 %v6713
    %v6715 = vand.u32 %v6310, 4294901760
    %v6716 = vsub.f32 %v6310, %v6715
    %v6717 = vand.u32 %v6716, 4294901760
    %6718 = vmatpush.msra.mxu0 %v6717
    %v6719 = vand.u32 %v6309, 4294901760
    %v6720 = vsub.f32 %v6309, %v6719
    %v6721 = vand.u32 %v6720, 4294901760
    %6722 = vmatpush.msra.mxu0 %v6721
    %v6723 = vand.u32 %v6366, 4294901760
    %6724 = vmatmul.f32.gmra.mxu0 %v6723
    %v6725 = vpop.f32.mrf.mxu0
    %v6726 = vadd.f32 %v6645, %v6725
    %v6727 = vand.u32 %v6369, 4294901760
    %6728 = vmatmul.f32.gmra.mxu0 %v6727
    %v6729 = vpop.f32.mrf.mxu0
    %v6730 = vadd.f32 %v6651, %v6729
    %v6731 = vand.u32 %v6372, 4294901760
    %6732 = vmatmul.f32.gmra.mxu0 %v6731
    %v6733 = vpop.f32.mrf.mxu0
    %v6734 = vadd.f32 %v6657, %v6733
    %v6735 = vand.u32 %v6375, 4294901760
    %6736 = vmatmul.f32.gmra.mxu0 %v6735
    %v6737 = vpop.f32.mrf.mxu0
    %v6738 = vadd.f32 %v6663, %v6737
    %v6739 = vand.u32 %v6378, 4294901760
    %6740 = vmatmul.f32.gmra.mxu0 %v6739
    %v6741 = vpop.f32.mrf.mxu0
    %v6742 = vadd.f32 %v6669, %v6741
    %6743 = vdwg.mxu0
    %6744 = vmatpush.msra.mxu0 0.0
    %6745 = vmatpush.msra.mxu0 0.0
    %6746 = vmatpush.msra.mxu0 0.0
    %6747 = vmatpush.msra.mxu0 0.0
    %v6748 = vand.u32 %v6320, 4294901760
    %6749 = vmatpush.msra.mxu0 %v6748
    %v6750 = vand.u32 %v6319, 4294901760
    %6751 = vmatpush.msra.mxu0 %v6750
    %v6752 = vand.u32 %v6318, 4294901760
    %6753 = vmatpush.msra.mxu0 %v6752
    %v6754 = vand.u32 %v6317, 4294901760
    %6755 = vmatpush.msra.mxu0 %v6754
    %v6756 = vand.u32 %v6316, 4294901760
    %6757 = vmatpush.msra.mxu0 %v6756
    %v6758 = vand.u32 %v6315, 4294901760
    %6759 = vmatpush.msra.mxu0 %v6758
    %v6760 = vand.u32 %v6314, 4294901760
    %6761 = vmatpush.msra.mxu0 %v6760
    %v6762 = vand.u32 %v6313, 4294901760
    %6763 = vmatpush.msra.mxu0 %v6762
    %v6764 = vand.u32 %v6312, 4294901760
    %6765 = vmatpush.msra.mxu0 %v6764
    %v6766 = vand.u32 %v6311, 4294901760
    %6767 = vmatpush.msra.mxu0 %v6766
    %v6768 = vand.u32 %v6310, 4294901760
    %6769 = vmatpush.msra.mxu0 %v6768
    %v6770 = vand.u32 %v6309, 4294901760
    %6771 = vmatpush.msra.mxu0 %v6770
    %v6772 = vand.u32 %v6366, 4294901760
    %6773 = vmatmul.f32.gmra.mxu0 %v6772
    %v6774 = vpop.f32.mrf.mxu0
    %v6775 = vadd.f32 %v6726, %v6774
    %v6776 = vand.u32 %v6369, 4294901760
    %6777 = vmatmul.f32.gmra.mxu0 %v6776
    %v6778 = vpop.f32.mrf.mxu0
    %v6779 = vadd.f32 %v6730, %v6778
    %v6780 = vand.u32 %v6372, 4294901760
    %6781 = vmatmul.f32.gmra.mxu0 %v6780
    %v6782 = vpop.f32.mrf.mxu0
    %v6783 = vadd.f32 %v6734, %v6782
    %v6784 = vand.u32 %v6375, 4294901760
    %6785 = vmatmul.f32.gmra.mxu0 %v6784
    %v6786 = vpop.f32.mrf.mxu0
    %v6787 = vadd.f32 %v6738, %v6786
    %v6788 = vand.u32 %v6378, 4294901760
    %6789 = vmatmul.f32.gmra.mxu0 %v6788
    %v6790 = vpop.f32.mrf.mxu0
    %v6791 = vadd.f32 %v6742, %v6790
    %6792 = vdwg.mxu0
    %v6793 = vmul.f32 %v6265, %v6775
    %v6794 = vmul.f32 %v6269, %v6779
    %v6795 = vmul.f32 %v6273, %v6783
    %v6796 = vmul.f32 %v6277, %v6787
    %v6797 = vmul.f32 %v6281, %v6791
    %v6798 = vadd.f32 %v6793, %v6794
    %v6799 = vadd.f32 %v6798, %v6795
    %v6800 = vadd.f32 %v6799, %v6796
    %v6801 = vadd.f32 %v6800, %v6797
    %v6802 = vrot.slane %v6801, 4
    %v6803 = vadd.f32 %v6801, %v6802
    %v6804 = vrot.slane %v6803, 2
    %v6805 = vadd.f32 %v6803, %v6804
    %v6806 = vrot.slane %v6805, 1
    %v6807 = vadd.f32 %v6805, %v6806
    %6808 = vst [vmem:[#allocation2 + $0x6] sm:$0x1] %v6807
    %v6809 = vld [vmem:[%s0 + $0x7] sm:$0x1]
    %v6810 = vperm.slane %v6809, 0
    %vm6811 = vcmp.eq.s32.totalorder %v20, %v6810
    %vm6812 = vcmp.eq.s32.totalorder %v21, %v6810
    %vm6813 = vcmp.eq.s32.totalorder %v22, %v6810
    %vm6814 = vcmp.eq.s32.totalorder %v23, %v6810
    %vm6815 = vcmp.eq.s32.totalorder %v24, %v6810
    %vm6816 = vcmp.eq.s32.totalorder %v25, %v6810
    %vm6817 = vcmp.eq.s32.totalorder %v26, %v6810
    %vm6818 = vcmp.eq.s32.totalorder %v27, %v6810
    %v6819 = vsel %vm6811, 1, 0
    %v6820 = vsel %vm6812, 1, 0
    %v6821 = vsel %vm6813, 1, 0
    %v6822 = vsel %vm6814, 1, 0
    %v6823 = vsel %vm6815, 1, 0
    %v6824 = vsel %vm6816, 1, 0
    %v6825 = vsel %vm6817, 1, 0
    %v6826 = vsel %vm6818, 1, 0
    %v6827 = vcvt.s32.f32 %v6819
    %v6828 = vcvt.s32.f32 %v6820
    %v6829 = vcvt.s32.f32 %v6821
    %v6830 = vcvt.s32.f32 %v6822
    %v6831 = vcvt.s32.f32 %v6823
    %v6832 = vcvt.s32.f32 %v6824
    %v6833 = vcvt.s32.f32 %v6825
    %v6834 = vcvt.s32.f32 %v6826
    %v6835 = vld [vmem:[%s2] sm:$0xff]
    %v6836 = vld [vmem:[%s2 + $0x8] sm:$0xff]
    %v6837 = vld [vmem:[%s2 + $0x10] sm:$0xff]
    %v6838 = vld [vmem:[%s2 + $0x18] sm:$0xff]
    %v6839 = vld [vmem:[%s2 + $0x20] sm:$0xff]
    %v6840 = vld [vmem:[%s2 + $0x28] sm:$0xff]
    %v6841 = vld [vmem:[%s2 + $0x30] sm:$0xff]
    %v6842 = vld [vmem:[%s2 + $0x38] sm:$0xff]
    %6843 = vxpose.xlu0.b32.start [1/16] %v6835, 128
    %6844 = vxpose.xlu0.b32.cont [2/16] %v6836, 128
    %6845 = vxpose.xlu0.b32.cont [3/16] %v6837, 128
    %6846 = vxpose.xlu0.b32.cont [4/16] %v6838, 128
    %6847 = vxpose.xlu0.b32.cont [5/16] %v6839, 128
    %6848 = vxpose.xlu0.b32.cont [6/16] %v6840, 128
    %6849 = vxpose.xlu0.b32.cont [7/16] %v6841, 128
    %6850 = vxpose.xlu0.b32.cont [8/16] %v6842, 128
    %6851 = vxpose.xlu0.b32.cont [9/16] 0.0, 128
    %6852 = vxpose.xlu0.b32.cont [10/16] 0.0, 128
    %6853 = vxpose.xlu0.b32.cont [11/16] 0.0, 128
    %6854 = vxpose.xlu0.b32.cont [12/16] 0.0, 128
    %6855 = vxpose.xlu0.b32.cont [13/16] 0.0, 128
    %6856 = vxpose.xlu0.b32.cont [14/16] 0.0, 128
    %6857 = vxpose.xlu0.b32.cont [15/16] 0.0, 128
    %6858 = vxpose.xlu0.b32.end [16/16] 0.0, 128
    %v6859 = vpop.trf.xlu0
    %v6860 = vpop.trf.xlu0
    %v6861 = vpop.trf.xlu0
    %v6862 = vpop.trf.xlu0
    %v6863 = vpop.trf.xlu0
    %v6864 = vpop.trf.xlu0
    %v6865 = vpop.trf.xlu0
    %v6866 = vpop.trf.xlu0
    %v6867 = vpop.trf.xlu0
    %v6868 = vpop.trf.xlu0
    %v6869 = vpop.trf.xlu0
    %v6870 = vpop.trf.xlu0
    %v6871 = vpop.trf.xlu0
    %v6872 = vpop.trf.xlu0
    %v6873 = vpop.trf.xlu0
    %v6874 = vpop.trf.xlu0
    %v6876 = vsel %vm93, %v6859, 0
    %v6879 = vsel %vm93, %v6860, 0
    %v6882 = vsel %vm93, %v6861, 0
    %v6885 = vsel %vm93, %v6862, 0
    %v6888 = vsel %vm93, %v6863, 0
    %6890 = vmatpush.msra.mxu0 0.0
    %6891 = vmatpush.msra.mxu0 0.0
    %6892 = vmatpush.msra.mxu0 0.0
    %6893 = vmatpush.msra.mxu0 0.0
    %6894 = vmatpush.msra.mxu0 0.0
    %6895 = vmatpush.msra.mxu0 0.0
    %6896 = vmatpush.msra.mxu0 0.0
    %6897 = vmatpush.msra.mxu0 0.0
    %v6898 = vand.u32 %v6834, 4294901760
    %6899 = vmatpush.msra.mxu0 %v6898
    %v6900 = vand.u32 %v6833, 4294901760
    %6901 = vmatpush.msra.mxu0 %v6900
    %v6902 = vand.u32 %v6832, 4294901760
    %6903 = vmatpush.msra.mxu0 %v6902
    %v6904 = vand.u32 %v6831, 4294901760
    %6905 = vmatpush.msra.mxu0 %v6904
    %v6906 = vand.u32 %v6830, 4294901760
    %6907 = vmatpush.msra.mxu0 %v6906
    %v6908 = vand.u32 %v6829, 4294901760
    %6909 = vmatpush.msra.mxu0 %v6908
    %v6910 = vand.u32 %v6828, 4294901760
    %6911 = vmatpush.msra.mxu0 %v6910
    %v6912 = vand.u32 %v6827, 4294901760
    %6913 = vmatpush.msra.mxu0 %v6912
    %v6914 = vand.u32 %v6876, 4294901760
    %v6915 = vsub.f32 %v6876, %v6914
    %v6916 = vand.u32 %v6915, 4294901760
    %v6917 = vsub.f32 %v6915, %v6916
    %v6918 = vand.u32 %v6917, 4294901760
    %6919 = vmatmul.f32.gmra.mxu0 %v6918
    %v6920 = vpop.f32.mrf.mxu0
    %v6921 = vadd.f32 0.0, %v6920
    %v6922 = vand.u32 %v6879, 4294901760
    %v6923 = vsub.f32 %v6879, %v6922
    %v6924 = vand.u32 %v6923, 4294901760
    %v6925 = vsub.f32 %v6923, %v6924
    %v6926 = vand.u32 %v6925, 4294901760
    %6927 = vmatmul.f32.gmra.mxu0 %v6926
    %v6928 = vpop.f32.mrf.mxu0
    %v6929 = vadd.f32 0.0, %v6928
    %v6930 = vand.u32 %v6882, 4294901760
    %v6931 = vsub.f32 %v6882, %v6930
    %v6932 = vand.u32 %v6931, 4294901760
    %v6933 = vsub.f32 %v6931, %v6932
    %v6934 = vand.u32 %v6933, 4294901760
    %6935 = vmatmul.f32.gmra.mxu0 %v6934
    %v6936 = vpop.f32.mrf.mxu0
    %v6937 = vadd.f32 0.0, %v6936
    %v6938 = vand.u32 %v6885, 4294901760
    %v6939 = vsub.f32 %v6885, %v6938
    %v6940 = vand.u32 %v6939, 4294901760
    %v6941 = vsub.f32 %v6939, %v6940
    %v6942 = vand.u32 %v6941, 4294901760
    %6943 = vmatmul.f32.gmra.mxu0 %v6942
    %v6944 = vpop.f32.mrf.mxu0
    %v6945 = vadd.f32 0.0, %v6944
    %v6946 = vand.u32 %v6888, 4294901760
    %v6947 = vsub.f32 %v6888, %v6946
    %v6948 = vand.u32 %v6947, 4294901760
    %v6949 = vsub.f32 %v6947, %v6948
    %v6950 = vand.u32 %v6949, 4294901760
    %6951 = vmatmul.f32.gmra.mxu0 %v6950
    %v6952 = vpop.f32.mrf.mxu0
    %v6953 = vadd.f32 0.0, %v6952
    %6954 = vdwg.mxu0
    %6955 = vmatpush.msra.mxu0 0.0
    %6956 = vmatpush.msra.mxu0 0.0
    %6957 = vmatpush.msra.mxu0 0.0
    %6958 = vmatpush.msra.mxu0 0.0
    %6959 = vmatpush.msra.mxu0 0.0
    %6960 = vmatpush.msra.mxu0 0.0
    %6961 = vmatpush.msra.mxu0 0.0
    %6962 = vmatpush.msra.mxu0 0.0
    %v6963 = vand.u32 %v6834, 4294901760
    %v6964 = vsub.f32 %v6834, %v6963
    %v6965 = vand.u32 %v6964, 4294901760
    %v6966 = vsub.f32 %v6964, %v6965
    %v6967 = vand.u32 %v6966, 4294901760
    %6968 = vmatpush.msra.mxu0 %v6967
    %v6969 = vand.u32 %v6833, 4294901760
    %v6970 = vsub.f32 %v6833, %v6969
    %v6971 = vand.u32 %v6970, 4294901760
    %v6972 = vsub.f32 %v6970, %v6971
    %v6973 = vand.u32 %v6972, 4294901760
    %6974 = vmatpush.msra.mxu0 %v6973
    %v6975 = vand.u32 %v6832, 4294901760
    %v6976 = vsub.f32 %v6832, %v6975
    %v6977 = vand.u32 %v6976, 4294901760
    %v6978 = vsub.f32 %v6976, %v6977
    %v6979 = vand.u32 %v6978, 4294901760
    %6980 = vmatpush.msra.mxu0 %v6979
    %v6981 = vand.u32 %v6831, 4294901760
    %v6982 = vsub.f32 %v6831, %v6981
    %v6983 = vand.u32 %v6982, 4294901760
    %v6984 = vsub.f32 %v6982, %v6983
    %v6985 = vand.u32 %v6984, 4294901760
    %6986 = vmatpush.msra.mxu0 %v6985
    %v6987 = vand.u32 %v6830, 4294901760
    %v6988 = vsub.f32 %v6830, %v6987
    %v6989 = vand.u32 %v6988, 4294901760
    %v6990 = vsub.f32 %v6988, %v6989
    %v6991 = vand.u32 %v6990, 4294901760
    %6992 = vmatpush.msra.mxu0 %v6991
    %v6993 = vand.u32 %v6829, 4294901760
    %v6994 = vsub.f32 %v6829, %v6993
    %v6995 = vand.u32 %v6994, 4294901760
    %v6996 = vsub.f32 %v6994, %v6995
    %v6997 = vand.u32 %v6996, 4294901760
    %6998 = vmatpush.msra.mxu0 %v6997
    %v6999 = vand.u32 %v6828, 4294901760
    %v7000 = vsub.f32 %v6828, %v6999
    %v7001 = vand.u32 %v7000, 4294901760
    %v7002 = vsub.f32 %v7000, %v7001
    %v7003 = vand.u32 %v7002, 4294901760
    %7004 = vmatpush.msra.mxu0 %v7003
    %v7005 = vand.u32 %v6827, 4294901760
    %v7006 = vsub.f32 %v6827, %v7005
    %v7007 = vand.u32 %v7006, 4294901760
    %v7008 = vsub.f32 %v7006, %v7007
    %v7009 = vand.u32 %v7008, 4294901760
    %7010 = vmatpush.msra.mxu0 %v7009
    %v7011 = vand.u32 %v6876, 4294901760
    %7012 = vmatmul.f32.gmra.mxu0 %v7011
    %v7013 = vpop.f32.mrf.mxu0
    %v7014 = vadd.f32 %v6921, %v7013
    %v7015 = vand.u32 %v6879, 4294901760
    %7016 = vmatmul.f32.gmra.mxu0 %v7015
    %v7017 = vpop.f32.mrf.mxu0
    %v7018 = vadd.f32 %v6929, %v7017
    %v7019 = vand.u32 %v6882, 4294901760
    %7020 = vmatmul.f32.gmra.mxu0 %v7019
    %v7021 = vpop.f32.mrf.mxu0
    %v7022 = vadd.f32 %v6937, %v7021
    %v7023 = vand.u32 %v6885, 4294901760
    %7024 = vmatmul.f32.gmra.mxu0 %v7023
    %v7025 = vpop.f32.mrf.mxu0
    %v7026 = vadd.f32 %v6945, %v7025
    %v7027 = vand.u32 %v6888, 4294901760
    %7028 = vmatmul.f32.gmra.mxu0 %v7027
    %v7029 = vpop.f32.mrf.mxu0
    %v7030 = vadd.f32 %v6953, %v7029
    %7031 = vdwg.mxu0
    %7032 = vmatpush.msra.mxu0 0.0
    %7033 = vmatpush.msra.mxu0 0.0
    %7034 = vmatpush.msra.mxu0 0.0
    %7035 = vmatpush.msra.mxu0 0.0
    %7036 = vmatpush.msra.mxu0 0.0
    %7037 = vmatpush.msra.mxu0 0.0
    %7038 = vmatpush.msra.mxu0 0.0
    %7039 = vmatpush.msra.mxu0 0.0
    %v7040 = vand.u32 %v6834, 4294901760
    %v7041 = vsub.f32 %v6834, %v7040
    %7042 = vmatpush.msra.mxu0 %v7041
    %v7043 = vand.u32 %v6833, 4294901760
    %v7044 = vsub.f32 %v6833, %v7043
    %7045 = vmatpush.msra.mxu0 %v7044
    %v7046 = vand.u32 %v6832, 4294901760
    %v7047 = vsub.f32 %v6832, %v7046
    %7048 = vmatpush.msra.mxu0 %v7047
    %v7049 = vand.u32 %v6831, 4294901760
    %v7050 = vsub.f32 %v6831, %v7049
    %7051 = vmatpush.msra.mxu0 %v7050
    %v7052 = vand.u32 %v6830, 4294901760
    %v7053 = vsub.f32 %v6830, %v7052
    %7054 = vmatpush.msra.mxu0 %v7053
    %v7055 = vand.u32 %v6829, 4294901760
    %v7056 = vsub.f32 %v6829, %v7055
    %7057 = vmatpush.msra.mxu0 %v7056
    %v7058 = vand.u32 %v6828, 4294901760
    %v7059 = vsub.f32 %v6828, %v7058
    %7060 = vmatpush.msra.mxu0 %v7059
    %v7061 = vand.u32 %v6827, 4294901760
    %v7062 = vsub.f32 %v6827, %v7061
    %7063 = vmatpush.msra.mxu0 %v7062
    %v7064 = vand.u32 %v6876, 4294901760
    %v7065 = vsub.f32 %v6876, %v7064
    %7066 = vmatmul.f32.gmra.mxu0 %v7065
    %v7067 = vpop.f32.mrf.mxu0
    %v7068 = vadd.f32 %v7014, %v7067
    %v7069 = vand.u32 %v6879, 4294901760
    %v7070 = vsub.f32 %v6879, %v7069
    %7071 = vmatmul.f32.gmra.mxu0 %v7070
    %v7072 = vpop.f32.mrf.mxu0
    %v7073 = vadd.f32 %v7018, %v7072
    %v7074 = vand.u32 %v6882, 4294901760
    %v7075 = vsub.f32 %v6882, %v7074
    %7076 = vmatmul.f32.gmra.mxu0 %v7075
    %v7077 = vpop.f32.mrf.mxu0
    %v7078 = vadd.f32 %v7022, %v7077
    %v7079 = vand.u32 %v6885, 4294901760
    %v7080 = vsub.f32 %v6885, %v7079
    %7081 = vmatmul.f32.gmra.mxu0 %v7080
    %v7082 = vpop.f32.mrf.mxu0
    %v7083 = vadd.f32 %v7026, %v7082
    %v7084 = vand.u32 %v6888, 4294901760
    %v7085 = vsub.f32 %v6888, %v7084
    %7086 = vmatmul.f32.gmra.mxu0 %v7085
    %v7087 = vpop.f32.mrf.mxu0
    %v7088 = vadd.f32 %v7030, %v7087
    %7089 = vdwg.mxu0
    %7090 = vmatpush.msra.mxu0 0.0
    %7091 = vmatpush.msra.mxu0 0.0
    %7092 = vmatpush.msra.mxu0 0.0
    %7093 = vmatpush.msra.mxu0 0.0
    %7094 = vmatpush.msra.mxu0 0.0
    %7095 = vmatpush.msra.mxu0 0.0
    %7096 = vmatpush.msra.mxu0 0.0
    %7097 = vmatpush.msra.mxu0 0.0
    %v7098 = vand.u32 %v6834, 4294901760
    %7099 = vmatpush.msra.mxu0 %v7098
    %v7100 = vand.u32 %v6833, 4294901760
    %7101 = vmatpush.msra.mxu0 %v7100
    %v7102 = vand.u32 %v6832, 4294901760
    %7103 = vmatpush.msra.mxu0 %v7102
    %v7104 = vand.u32 %v6831, 4294901760
    %7105 = vmatpush.msra.mxu0 %v7104
    %v7106 = vand.u32 %v6830, 4294901760
    %7107 = vmatpush.msra.mxu0 %v7106
    %v7108 = vand.u32 %v6829, 4294901760
    %7109 = vmatpush.msra.mxu0 %v7108
    %v7110 = vand.u32 %v6828, 4294901760
    %7111 = vmatpush.msra.mxu0 %v7110
    %v7112 = vand.u32 %v6827, 4294901760
    %7113 = vmatpush.msra.mxu0 %v7112
    %v7114 = vand.u32 %v6876, 4294901760
    %v7115 = vsub.f32 %v6876, %v7114
    %v7116 = vand.u32 %v7115, 4294901760
    %7117 = vmatmul.f32.gmra.mxu0 %v7116
    %v7118 = vpop.f32.mrf.mxu0
    %v7119 = vadd.f32 %v7068, %v7118
    %v7120 = vand.u32 %v6879, 4294901760
    %v7121 = vsub.f32 %v6879, %v7120
    %v7122 = vand.u32 %v7121, 4294901760
    %7123 = vmatmul.f32.gmra.mxu0 %v7122
    %v7124 = vpop.f32.mrf.mxu0
    %v7125 = vadd.f32 %v7073, %v7124
    %v7126 = vand.u32 %v6882, 4294901760
    %v7127 = vsub.f32 %v6882, %v7126
    %v7128 = vand.u32 %v7127, 4294901760
    %7129 = vmatmul.f32.gmra.mxu0 %v7128
    %v7130 = vpop.f32.mrf.mxu0
    %v7131 = vadd.f32 %v7078, %v7130
    %v7132 = vand.u32 %v6885, 4294901760
    %v7133 = vsub.f32 %v6885, %v7132
    %v7134 = vand.u32 %v7133, 4294901760
    %7135 = vmatmul.f32.gmra.mxu0 %v7134
    %v7136 = vpop.f32.mrf.mxu0
    %v7137 = vadd.f32 %v7083, %v7136
    %v7138 = vand.u32 %v6888, 4294901760
    %v7139 = vsub.f32 %v6888, %v7138
    %v7140 = vand.u32 %v7139, 4294901760
    %7141 = vmatmul.f32.gmra.mxu0 %v7140
    %v7142 = vpop.f32.mrf.mxu0
    %v7143 = vadd.f32 %v7088, %v7142
    %7144 = vdwg.mxu0
    %7145 = vmatpush.msra.mxu0 0.0
    %7146 = vmatpush.msra.mxu0 0.0
    %7147 = vmatpush.msra.mxu0 0.0
    %7148 = vmatpush.msra.mxu0 0.0
    %7149 = vmatpush.msra.mxu0 0.0
    %7150 = vmatpush.msra.mxu0 0.0
    %7151 = vmatpush.msra.mxu0 0.0
    %7152 = vmatpush.msra.mxu0 0.0
    %v7153 = vand.u32 %v6834, 4294901760
    %v7154 = vsub.f32 %v6834, %v7153
    %v7155 = vand.u32 %v7154, 4294901760
    %7156 = vmatpush.msra.mxu0 %v7155
    %v7157 = vand.u32 %v6833, 4294901760
    %v7158 = vsub.f32 %v6833, %v7157
    %v7159 = vand.u32 %v7158, 4294901760
    %7160 = vmatpush.msra.mxu0 %v7159
    %v7161 = vand.u32 %v6832, 4294901760
    %v7162 = vsub.f32 %v6832, %v7161
    %v7163 = vand.u32 %v7162, 4294901760
    %7164 = vmatpush.msra.mxu0 %v7163
    %v7165 = vand.u32 %v6831, 4294901760
    %v7166 = vsub.f32 %v6831, %v7165
    %v7167 = vand.u32 %v7166, 4294901760
    %7168 = vmatpush.msra.mxu0 %v7167
    %v7169 = vand.u32 %v6830, 4294901760
    %v7170 = vsub.f32 %v6830, %v7169
    %v7171 = vand.u32 %v7170, 4294901760
    %7172 = vmatpush.msra.mxu0 %v7171
    %v7173 = vand.u32 %v6829, 4294901760
    %v7174 = vsub.f32 %v6829, %v7173
    %v7175 = vand.u32 %v7174, 4294901760
    %7176 = vmatpush.msra.mxu0 %v7175
    %v7177 = vand.u32 %v6828, 4294901760
    %v7178 = vsub.f32 %v6828, %v7177
    %v7179 = vand.u32 %v7178, 4294901760
    %7180 = vmatpush.msra.mxu0 %v7179
    %v7181 = vand.u32 %v6827, 4294901760
    %v7182 = vsub.f32 %v6827, %v7181
    %v7183 = vand.u32 %v7182, 4294901760
    %7184 = vmatpush.msra.mxu0 %v7183
    %v7185 = vand.u32 %v6876, 4294901760
    %7186 = vmatmul.f32.gmra.mxu0 %v7185
    %v7187 = vpop.f32.mrf.mxu0
    %v7188 = vadd.f32 %v7119, %v7187
    %v7189 = vand.u32 %v6879, 4294901760
    %7190 = vmatmul.f32.gmra.mxu0 %v7189
    %v7191 = vpop.f32.mrf.mxu0
    %v7192 = vadd.f32 %v7125, %v7191
    %v7193 = vand.u32 %v6882, 4294901760
    %7194 = vmatmul.f32.gmra.mxu0 %v7193
    %v7195 = vpop.f32.mrf.mxu0
    %v7196 = vadd.f32 %v7131, %v7195
    %v7197 = vand.u32 %v6885, 4294901760
    %7198 = vmatmul.f32.gmra.mxu0 %v7197
    %v7199 = vpop.f32.mrf.mxu0
    %v7200 = vadd.f32 %v7137, %v7199
    %v7201 = vand.u32 %v6888, 4294901760
    %7202 = vmatmul.f32.gmra.mxu0 %v7201
    %v7203 = vpop.f32.mrf.mxu0
    %v7204 = vadd.f32 %v7143, %v7203
    %7205 = vdwg.mxu0
    %7206 = vmatpush.msra.mxu0 0.0
    %7207 = vmatpush.msra.mxu0 0.0
    %7208 = vmatpush.msra.mxu0 0.0
    %7209 = vmatpush.msra.mxu0 0.0
    %7210 = vmatpush.msra.mxu0 0.0
    %7211 = vmatpush.msra.mxu0 0.0
    %7212 = vmatpush.msra.mxu0 0.0
    %7213 = vmatpush.msra.mxu0 0.0
    %v7214 = vand.u32 %v6834, 4294901760
    %7215 = vmatpush.msra.mxu0 %v7214
    %v7216 = vand.u32 %v6833, 4294901760
    %7217 = vmatpush.msra.mxu0 %v7216
    %v7218 = vand.u32 %v6832, 4294901760
    %7219 = vmatpush.msra.mxu0 %v7218
    %v7220 = vand.u32 %v6831, 4294901760
    %7221 = vmatpush.msra.mxu0 %v7220
    %v7222 = vand.u32 %v6830, 4294901760
    %7223 = vmatpush.msra.mxu0 %v7222
    %v7224 = vand.u32 %v6829, 4294901760
    %7225 = vmatpush.msra.mxu0 %v7224
    %v7226 = vand.u32 %v6828, 4294901760
    %7227 = vmatpush.msra.mxu0 %v7226
    %v7228 = vand.u32 %v6827, 4294901760
    %7229 = vmatpush.msra.mxu0 %v7228
    %v7230 = vand.u32 %v6876, 4294901760
    %7231 = vmatmul.f32.gmra.mxu0 %v7230
    %v7232 = vpop.f32.mrf.mxu0
    %v7233 = vadd.f32 %v7188, %v7232
    %v7234 = vand.u32 %v6879, 4294901760
    %7235 = vmatmul.f32.gmra.mxu0 %v7234
    %v7236 = vpop.f32.mrf.mxu0
    %v7237 = vadd.f32 %v7192, %v7236
    %v7238 = vand.u32 %v6882, 4294901760
    %7239 = vmatmul.f32.gmra.mxu0 %v7238
    %v7240 = vpop.f32.mrf.mxu0
    %v7241 = vadd.f32 %v7196, %v7240
    %v7242 = vand.u32 %v6885, 4294901760
    %7243 = vmatmul.f32.gmra.mxu0 %v7242
    %v7244 = vpop.f32.mrf.mxu0
    %v7245 = vadd.f32 %v7200, %v7244
    %v7246 = vand.u32 %v6888, 4294901760
    %7247 = vmatmul.f32.gmra.mxu0 %v7246
    %v7248 = vpop.f32.mrf.mxu0
    %v7249 = vadd.f32 %v7204, %v7248
    %7250 = vdwg.mxu0
    %v7251 = vld [vmem:[%s1 + $0x7] sm:$0x1]
    %v7252 = vperm.slane %v7251, 0
    %vm7253 = vcmp.eq.s32.totalorder %v20, %v7252
    %vm7254 = vcmp.eq.s32.totalorder %v21, %v7252
    %vm7255 = vcmp.eq.s32.totalorder %v22, %v7252
    %vm7256 = vcmp.eq.s32.totalorder %v23, %v7252
    %vm7257 = vcmp.eq.s32.totalorder %v24, %v7252
    %vm7258 = vcmp.eq.s32.totalorder %v25, %v7252
    %vm7259 = vcmp.eq.s32.totalorder %v26, %v7252
    %vm7260 = vcmp.eq.s32.totalorder %v27, %v7252
    %vm7261 = vcmp.eq.s32.totalorder %v471, %v7252
    %vm7262 = vcmp.eq.s32.totalorder %v472, %v7252
    %vm7263 = vcmp.eq.s32.totalorder %v473, %v7252
    %vm7264 = vcmp.eq.s32.totalorder %v474, %v7252
    %v7265 = vsel %vm7253, 1, 0
    %v7266 = vsel %vm7254, 1, 0
    %v7267 = vsel %vm7255, 1, 0
    %v7268 = vsel %vm7256, 1, 0
    %v7269 = vsel %vm7257, 1, 0
    %v7270 = vsel %vm7258, 1, 0
    %v7271 = vsel %vm7259, 1, 0
    %v7272 = vsel %vm7260, 1, 0
    %v7273 = vsel %vm7261, 1, 0
    %v7274 = vsel %vm7262, 1, 0
    %v7275 = vsel %vm7263, 1, 0
    %v7276 = vsel %vm7264, 1, 0
    %v7277 = vcvt.s32.f32 %v7265
    %v7278 = vcvt.s32.f32 %v7266
    %v7279 = vcvt.s32.f32 %v7267
    %v7280 = vcvt.s32.f32 %v7268
    %v7281 = vcvt.s32.f32 %v7269
    %v7282 = vcvt.s32.f32 %v7270
    %v7283 = vcvt.s32.f32 %v7271
    %v7284 = vcvt.s32.f32 %v7272
    %v7285 = vcvt.s32.f32 %v7273
    %v7286 = vcvt.s32.f32 %v7274
    %v7287 = vcvt.s32.f32 %v7275
    %v7288 = vcvt.s32.f32 %v7276
    %v7289 = vld [vmem:[%s3] sm:$0xff]
    %v7290 = vld [vmem:[%s3 + $0x8] sm:$0xff]
    %v7291 = vld [vmem:[%s3 + $0x10] sm:$0xff]
    %v7292 = vld [vmem:[%s3 + $0x18] sm:$0xff]
    %v7293 = vld [vmem:[%s3 + $0x20] sm:$0xff]
    %v7294 = vld [vmem:[%s3 + $0x28] sm:$0xff]
    %v7295 = vld [vmem:[%s3 + $0x30] sm:$0xff]
    %v7296 = vld [vmem:[%s3 + $0x38] sm:$0xff]
    %v7297 = vld [vmem:[%s3 + $0x40] sm:$0xff]
    %v7298 = vld [vmem:[%s3 + $0x48] sm:$0xff]
    %v7299 = vld [vmem:[%s3 + $0x50] sm:$0xff]
    %v7300 = vld [vmem:[%s3 + $0x58] sm:$0xff]
    %7301 = vxpose.xlu0.b32.start [1/16] %v7289, 128
    %7302 = vxpose.xlu0.b32.cont [2/16] %v7290, 128
    %7303 = vxpose.xlu0.b32.cont [3/16] %v7291, 128
    %7304 = vxpose.xlu0.b32.cont [4/16] %v7292, 128
    %7305 = vxpose.xlu0.b32.cont [5/16] %v7293, 128
    %7306 = vxpose.xlu0.b32.cont [6/16] %v7294, 128
    %7307 = vxpose.xlu0.b32.cont [7/16] %v7295, 128
    %7308 = vxpose.xlu0.b32.cont [8/16] %v7296, 128
    %7309 = vxpose.xlu0.b32.cont [9/16] %v7297, 128
    %7310 = vxpose.xlu0.b32.cont [10/16] %v7298, 128
    %7311 = vxpose.xlu0.b32.cont [11/16] %v7299, 128
    %7312 = vxpose.xlu0.b32.cont [12/16] %v7300, 128
    %7313 = vxpose.xlu0.b32.cont [13/16] 0.0, 128
    %7314 = vxpose.xlu0.b32.cont [14/16] 0.0, 128
    %7315 = vxpose.xlu0.b32.cont [15/16] 0.0, 128
    %7316 = vxpose.xlu0.b32.end [16/16] 0.0, 128
    %v7317 = vpop.trf.xlu0
    %v7318 = vpop.trf.xlu0
    %v7319 = vpop.trf.xlu0
    %v7320 = vpop.trf.xlu0
    %v7321 = vpop.trf.xlu0
    %v7322 = vpop.trf.xlu0
    %v7323 = vpop.trf.xlu0
    %v7324 = vpop.trf.xlu0
    %v7325 = vpop.trf.xlu0
    %v7326 = vpop.trf.xlu0
    %v7327 = vpop.trf.xlu0
    %v7328 = vpop.trf.xlu0
    %v7329 = vpop.trf.xlu0
    %v7330 = vpop.trf.xlu0
    %v7331 = vpop.trf.xlu0
    %v7332 = vpop.trf.xlu0
    %v7334 = vsel %vm556, %v7317, 0
    %v7337 = vsel %vm556, %v7318, 0
    %v7340 = vsel %vm556, %v7319, 0
    %v7343 = vsel %vm556, %v7320, 0
    %v7346 = vsel %vm556, %v7321, 0
    %7348 = vmatpush.msra.mxu0 0.0
    %7349 = vmatpush.msra.mxu0 0.0
    %7350 = vmatpush.msra.mxu0 0.0
    %7351 = vmatpush.msra.mxu0 0.0
    %v7352 = vand.u32 %v7288, 4294901760
    %7353 = vmatpush.msra.mxu0 %v7352
    %v7354 = vand.u32 %v7287, 4294901760
    %7355 = vmatpush.msra.mxu0 %v7354
    %v7356 = vand.u32 %v7286, 4294901760
    %7357 = vmatpush.msra.mxu0 %v7356
    %v7358 = vand.u32 %v7285, 4294901760
    %7359 = vmatpush.msra.mxu0 %v7358
    %v7360 = vand.u32 %v7284, 4294901760
    %7361 = vmatpush.msra.mxu0 %v7360
    %v7362 = vand.u32 %v7283, 4294901760
    %7363 = vmatpush.msra.mxu0 %v7362
    %v7364 = vand.u32 %v7282, 4294901760
    %7365 = vmatpush.msra.mxu0 %v7364
    %v7366 = vand.u32 %v7281, 4294901760
    %7367 = vmatpush.msra.mxu0 %v7366
    %v7368 = vand.u32 %v7280, 4294901760
    %7369 = vmatpush.msra.mxu0 %v7368
    %v7370 = vand.u32 %v7279, 4294901760
    %7371 = vmatpush.msra.mxu0 %v7370
    %v7372 = vand.u32 %v7278, 4294901760
    %7373 = vmatpush.msra.mxu0 %v7372
    %v7374 = vand.u32 %v7277, 4294901760
    %7375 = vmatpush.msra.mxu0 %v7374
    %v7376 = vand.u32 %v7334, 4294901760
    %v7377 = vsub.f32 %v7334, %v7376
    %v7378 = vand.u32 %v7377, 4294901760
    %v7379 = vsub.f32 %v7377, %v7378
    %v7380 = vand.u32 %v7379, 4294901760
    %7381 = vmatmul.f32.gmra.mxu0 %v7380
    %v7382 = vpop.f32.mrf.mxu0
    %v7383 = vadd.f32 0.0, %v7382
    %v7384 = vand.u32 %v7337, 4294901760
    %v7385 = vsub.f32 %v7337, %v7384
    %v7386 = vand.u32 %v7385, 4294901760
    %v7387 = vsub.f32 %v7385, %v7386
    %v7388 = vand.u32 %v7387, 4294901760
    %7389 = vmatmul.f32.gmra.mxu0 %v7388
    %v7390 = vpop.f32.mrf.mxu0
    %v7391 = vadd.f32 0.0, %v7390
    %v7392 = vand.u32 %v7340, 4294901760
    %v7393 = vsub.f32 %v7340, %v7392
    %v7394 = vand.u32 %v7393, 4294901760
    %v7395 = vsub.f32 %v7393, %v7394
    %v7396 = vand.u32 %v7395, 4294901760
    %7397 = vmatmul.f32.gmra.mxu0 %v7396
    %v7398 = vpop.f32.mrf.mxu0
    %v7399 = vadd.f32 0.0, %v7398
    %v7400 = vand.u32 %v7343, 4294901760
    %v7401 = vsub.f32 %v7343, %v7400
    %v7402 = vand.u32 %v7401, 4294901760
    %v7403 = vsub.f32 %v7401, %v7402
    %v7404 = vand.u32 %v7403, 4294901760
    %7405 = vmatmul.f32.gmra.mxu0 %v7404
    %v7406 = vpop.f32.mrf.mxu0
    %v7407 = vadd.f32 0.0, %v7406
    %v7408 = vand.u32 %v7346, 4294901760
    %v7409 = vsub.f32 %v7346, %v7408
    %v7410 = vand.u32 %v7409, 4294901760
    %v7411 = vsub.f32 %v7409, %v7410
    %v7412 = vand.u32 %v7411, 4294901760
    %7413 = vmatmul.f32.gmra.mxu0 %v7412
    %v7414 = vpop.f32.mrf.mxu0
    %v7415 = vadd.f32 0.0, %v7414
    %7416 = vdwg.mxu0
    %7417 = vmatpush.msra.mxu0 0.0
    %7418 = vmatpush.msra.mxu0 0.0
    %7419 = vmatpush.msra.mxu0 0.0
    %7420 = vmatpush.msra.mxu0 0.0
    %v7421 = vand.u32 %v7288, 4294901760
    %v7422 = vsub.f32 %v7288, %v7421
    %v7423 = vand.u32 %v7422, 4294901760
    %v7424 = vsub.f32 %v7422, %v7423
    %v7425 = vand.u32 %v7424, 4294901760
    %7426 = vmatpush.msra.mxu0 %v7425
    %v7427 = vand.u32 %v7287, 4294901760
    %v7428 = vsub.f32 %v7287, %v7427
    %v7429 = vand.u32 %v7428, 4294901760
    %v7430 = vsub.f32 %v7428, %v7429
    %v7431 = vand.u32 %v7430, 4294901760
    %7432 = vmatpush.msra.mxu0 %v7431
    %v7433 = vand.u32 %v7286, 4294901760
    %v7434 = vsub.f32 %v7286, %v7433
    %v7435 = vand.u32 %v7434, 4294901760
    %v7436 = vsub.f32 %v7434, %v7435
    %v7437 = vand.u32 %v7436, 4294901760
    %7438 = vmatpush.msra.mxu0 %v7437
    %v7439 = vand.u32 %v7285, 4294901760
    %v7440 = vsub.f32 %v7285, %v7439
    %v7441 = vand.u32 %v7440, 4294901760
    %v7442 = vsub.f32 %v7440, %v7441
    %v7443 = vand.u32 %v7442, 4294901760
    %7444 = vmatpush.msra.mxu0 %v7443
    %v7445 = vand.u32 %v7284, 4294901760
    %v7446 = vsub.f32 %v7284, %v7445
    %v7447 = vand.u32 %v7446, 4294901760
    %v7448 = vsub.f32 %v7446, %v7447
    %v7449 = vand.u32 %v7448, 4294901760
    %7450 = vmatpush.msra.mxu0 %v7449
    %v7451 = vand.u32 %v7283, 4294901760
    %v7452 = vsub.f32 %v7283, %v7451
    %v7453 = vand.u32 %v7452, 4294901760
    %v7454 = vsub.f32 %v7452, %v7453
    %v7455 = vand.u32 %v7454, 4294901760
    %7456 = vmatpush.msra.mxu0 %v7455
    %v7457 = vand.u32 %v7282, 4294901760
    %v7458 = vsub.f32 %v7282, %v7457
    %v7459 = vand.u32 %v7458, 4294901760
    %v7460 = vsub.f32 %v7458, %v7459
    %v7461 = vand.u32 %v7460, 4294901760
    %7462 = vmatpush.msra.mxu0 %v7461
    %v7463 = vand.u32 %v7281, 4294901760
    %v7464 = vsub.f32 %v7281, %v7463
    %v7465 = vand.u32 %v7464, 4294901760
    %v7466 = vsub.f32 %v7464, %v7465
    %v7467 = vand.u32 %v7466, 4294901760
    %7468 = vmatpush.msra.mxu0 %v7467
    %v7469 = vand.u32 %v7280, 4294901760
    %v7470 = vsub.f32 %v7280, %v7469
    %v7471 = vand.u32 %v7470, 4294901760
    %v7472 = vsub.f32 %v7470, %v7471
    %v7473 = vand.u32 %v7472, 4294901760
    %7474 = vmatpush.msra.mxu0 %v7473
    %v7475 = vand.u32 %v7279, 4294901760
    %v7476 = vsub.f32 %v7279, %v7475
    %v7477 = vand.u32 %v7476, 4294901760
    %v7478 = vsub.f32 %v7476, %v7477
    %v7479 = vand.u32 %v7478, 4294901760
    %7480 = vmatpush.msra.mxu0 %v7479
    %v7481 = vand.u32 %v7278, 4294901760
    %v7482 = vsub.f32 %v7278, %v7481
    %v7483 = vand.u32 %v7482, 4294901760
    %v7484 = vsub.f32 %v7482, %v7483
    %v7485 = vand.u32 %v7484, 4294901760
    %7486 = vmatpush.msra.mxu0 %v7485
    %v7487 = vand.u32 %v7277, 4294901760
    %v7488 = vsub.f32 %v7277, %v7487
    %v7489 = vand.u32 %v7488, 4294901760
    %v7490 = vsub.f32 %v7488, %v7489
    %v7491 = vand.u32 %v7490, 4294901760
    %7492 = vmatpush.msra.mxu0 %v7491
    %v7493 = vand.u32 %v7334, 4294901760
    %7494 = vmatmul.f32.gmra.mxu0 %v7493
    %v7495 = vpop.f32.mrf.mxu0
    %v7496 = vadd.f32 %v7383, %v7495
    %v7497 = vand.u32 %v7337, 4294901760
    %7498 = vmatmul.f32.gmra.mxu0 %v7497
    %v7499 = vpop.f32.mrf.mxu0
    %v7500 = vadd.f32 %v7391, %v7499
    %v7501 = vand.u32 %v7340, 4294901760
    %7502 = vmatmul.f32.gmra.mxu0 %v7501
    %v7503 = vpop.f32.mrf.mxu0
    %v7504 = vadd.f32 %v7399, %v7503
    %v7505 = vand.u32 %v7343, 4294901760
    %7506 = vmatmul.f32.gmra.mxu0 %v7505
    %v7507 = vpop.f32.mrf.mxu0
    %v7508 = vadd.f32 %v7407, %v7507
    %v7509 = vand.u32 %v7346, 4294901760
    %7510 = vmatmul.f32.gmra.mxu0 %v7509
    %v7511 = vpop.f32.mrf.mxu0
    %v7512 = vadd.f32 %v7415, %v7511
    %7513 = vdwg.mxu0
    %7514 = vmatpush.msra.mxu0 0.0
    %7515 = vmatpush.msra.mxu0 0.0
    %7516 = vmatpush.msra.mxu0 0.0
    %7517 = vmatpush.msra.mxu0 0.0
    %v7518 = vand.u32 %v7288, 4294901760
    %v7519 = vsub.f32 %v7288, %v7518
    %7520 = vmatpush.msra.mxu0 %v7519
    %v7521 = vand.u32 %v7287, 4294901760
    %v7522 = vsub.f32 %v7287, %v7521
    %7523 = vmatpush.msra.mxu0 %v7522
    %v7524 = vand.u32 %v7286, 4294901760
    %v7525 = vsub.f32 %v7286, %v7524
    %7526 = vmatpush.msra.mxu0 %v7525
    %v7527 = vand.u32 %v7285, 4294901760
    %v7528 = vsub.f32 %v7285, %v7527
    %7529 = vmatpush.msra.mxu0 %v7528
    %v7530 = vand.u32 %v7284, 4294901760
    %v7531 = vsub.f32 %v7284, %v7530
    %7532 = vmatpush.msra.mxu0 %v7531
    %v7533 = vand.u32 %v7283, 4294901760
    %v7534 = vsub.f32 %v7283, %v7533
    %7535 = vmatpush.msra.mxu0 %v7534
    %v7536 = vand.u32 %v7282, 4294901760
    %v7537 = vsub.f32 %v7282, %v7536
    %7538 = vmatpush.msra.mxu0 %v7537
    %v7539 = vand.u32 %v7281, 4294901760
    %v7540 = vsub.f32 %v7281, %v7539
    %7541 = vmatpush.msra.mxu0 %v7540
    %v7542 = vand.u32 %v7280, 4294901760
    %v7543 = vsub.f32 %v7280, %v7542
    %7544 = vmatpush.msra.mxu0 %v7543
    %v7545 = vand.u32 %v7279, 4294901760
    %v7546 = vsub.f32 %v7279, %v7545
    %7547 = vmatpush.msra.mxu0 %v7546
    %v7548 = vand.u32 %v7278, 4294901760
    %v7549 = vsub.f32 %v7278, %v7548
    %7550 = vmatpush.msra.mxu0 %v7549
    %v7551 = vand.u32 %v7277, 4294901760
    %v7552 = vsub.f32 %v7277, %v7551
    %7553 = vmatpush.msra.mxu0 %v7552
    %v7554 = vand.u32 %v7334, 4294901760
    %v7555 = vsub.f32 %v7334, %v7554
    %7556 = vmatmul.f32.gmra.mxu0 %v7555
    %v7557 = vpop.f32.mrf.mxu0
    %v7558 = vadd.f32 %v7496, %v7557
    %v7559 = vand.u32 %v7337, 4294901760
    %v7560 = vsub.f32 %v7337, %v7559
    %7561 = vmatmul.f32.gmra.mxu0 %v7560
    %v7562 = vpop.f32.mrf.mxu0
    %v7563 = vadd.f32 %v7500, %v7562
    %v7564 = vand.u32 %v7340, 4294901760
    %v7565 = vsub.f32 %v7340, %v7564
    %7566 = vmatmul.f32.gmra.mxu0 %v7565
    %v7567 = vpop.f32.mrf.mxu0
    %v7568 = vadd.f32 %v7504, %v7567
    %v7569 = vand.u32 %v7343, 4294901760
    %v7570 = vsub.f32 %v7343, %v7569
    %7571 = vmatmul.f32.gmra.mxu0 %v7570
    %v7572 = vpop.f32.mrf.mxu0
    %v7573 = vadd.f32 %v7508, %v7572
    %v7574 = vand.u32 %v7346, 4294901760
    %v7575 = vsub.f32 %v7346, %v7574
    %7576 = vmatmul.f32.gmra.mxu0 %v7575
    %v7577 = vpop.f32.mrf.mxu0
    %v7578 = vadd.f32 %v7512, %v7577
    %7579 = vdwg.mxu0
    %7580 = vmatpush.msra.mxu0 0.0
    %7581 = vmatpush.msra.mxu0 0.0
    %7582 = vmatpush.msra.mxu0 0.0
    %7583 = vmatpush.msra.mxu0 0.0
    %v7584 = vand.u32 %v7288, 4294901760
    %7585 = vmatpush.msra.mxu0 %v7584
    %v7586 = vand.u32 %v7287, 4294901760
    %7587 = vmatpush.msra.mxu0 %v7586
    %v7588 = vand.u32 %v7286, 4294901760
    %7589 = vmatpush.msra.mxu0 %v7588
    %v7590 = vand.u32 %v7285, 4294901760
    %7591 = vmatpush.msra.mxu0 %v7590
    %v7592 = vand.u32 %v7284, 4294901760
    %7593 = vmatpush.msra.mxu0 %v7592
    %v7594 = vand.u32 %v7283, 4294901760
    %7595 = vmatpush.msra.mxu0 %v7594
    %v7596 = vand.u32 %v7282, 4294901760
    %7597 = vmatpush.msra.mxu0 %v7596
    %v7598 = vand.u32 %v7281, 4294901760
    %7599 = vmatpush.msra.mxu0 %v7598
    %v7600 = vand.u32 %v7280, 4294901760
    %7601 = vmatpush.msra.mxu0 %v7600
    %v7602 = vand.u32 %v7279, 4294901760
    %7603 = vmatpush.msra.mxu0 %v7602
    %v7604 = vand.u32 %v7278, 4294901760
    %7605 = vmatpush.msra.mxu0 %v7604
    %v7606 = vand.u32 %v7277, 4294901760
    %7607 = vmatpush.msra.mxu0 %v7606
    %v7608 = vand.u32 %v7334, 4294901760
    %v7609 = vsub.f32 %v7334, %v7608
    %v7610 = vand.u32 %v7609, 4294901760
    %7611 = vmatmul.f32.gmra.mxu0 %v7610
    %v7612 = vpop.f32.mrf.mxu0
    %v7613 = vadd.f32 %v7558, %v7612
    %v7614 = vand.u32 %v7337, 4294901760
    %v7615 = vsub.f32 %v7337, %v7614
    %v7616 = vand.u32 %v7615, 4294901760
    %7617 = vmatmul.f32.gmra.mxu0 %v7616
    %v7618 = vpop.f32.mrf.mxu0
    %v7619 = vadd.f32 %v7563, %v7618
    %v7620 = vand.u32 %v7340, 4294901760
    %v7621 = vsub.f32 %v7340, %v7620
    %v7622 = vand.u32 %v7621, 4294901760
    %7623 = vmatmul.f32.gmra.mxu0 %v7622
    %v7624 = vpop.f32.mrf.mxu0
    %v7625 = vadd.f32 %v7568, %v7624
    %v7626 = vand.u32 %v7343, 4294901760
    %v7627 = vsub.f32 %v7343, %v7626
    %v7628 = vand.u32 %v7627, 4294901760
    %7629 = vmatmul.f32.gmra.mxu0 %v7628
    %v7630 = vpop.f32.mrf.mxu0
    %v7631 = vadd.f32 %v7573, %v7630
    %v7632 = vand.u32 %v7346, 4294901760
    %v7633 = vsub.f32 %v7346, %v7632
    %v7634 = vand.u32 %v7633, 4294901760
    %7635 = vmatmul.f32.gmra.mxu0 %v7634
    %v7636 = vpop.f32.mrf.mxu0
    %v7637 = vadd.f32 %v7578, %v7636
    %7638 = vdwg.mxu0
    %7639 = vmatpush.msra.mxu0 0.0
    %7640 = vmatpush.msra.mxu0 0.0
    %7641 = vmatpush.msra.mxu0 0.0
    %7642 = vmatpush.msra.mxu0 0.0
    %v7643 = vand.u32 %v7288, 4294901760
    %v7644 = vsub.f32 %v7288, %v7643
    %v7645 = vand.u32 %v7644, 4294901760
    %7646 = vmatpush.msra.mxu0 %v7645
    %v7647 = vand.u32 %v7287, 4294901760
    %v7648 = vsub.f32 %v7287, %v7647
    %v7649 = vand.u32 %v7648, 4294901760
    %7650 = vmatpush.msra.mxu0 %v7649
    %v7651 = vand.u32 %v7286, 4294901760
    %v7652 = vsub.f32 %v7286, %v7651
    %v7653 = vand.u32 %v7652, 4294901760
    %7654 = vmatpush.msra.mxu0 %v7653
    %v7655 = vand.u32 %v7285, 4294901760
    %v7656 = vsub.f32 %v7285, %v7655
    %v7657 = vand.u32 %v7656, 4294901760
    %7658 = vmatpush.msra.mxu0 %v7657
    %v7659 = vand.u32 %v7284, 4294901760
    %v7660 = vsub.f32 %v7284, %v7659
    %v7661 = vand.u32 %v7660, 4294901760
    %7662 = vmatpush.msra.mxu0 %v7661
    %v7663 = vand.u32 %v7283, 4294901760
    %v7664 = vsub.f32 %v7283, %v7663
    %v7665 = vand.u32 %v7664, 4294901760
    %7666 = vmatpush.msra.mxu0 %v7665
    %v7667 = vand.u32 %v7282, 4294901760
    %v7668 = vsub.f32 %v7282, %v7667
    %v7669 = vand.u32 %v7668, 4294901760
    %7670 = vmatpush.msra.mxu0 %v7669
    %v7671 = vand.u32 %v7281, 4294901760
    %v7672 = vsub.f32 %v7281, %v7671
    %v7673 = vand.u32 %v7672, 4294901760
    %7674 = vmatpush.msra.mxu0 %v7673
    %v7675 = vand.u32 %v7280, 4294901760
    %v7676 = vsub.f32 %v7280, %v7675
    %v7677 = vand.u32 %v7676, 4294901760
    %7678 = vmatpush.msra.mxu0 %v7677
    %v7679 = vand.u32 %v7279, 4294901760
    %v7680 = vsub.f32 %v7279, %v7679
    %v7681 = vand.u32 %v7680, 4294901760
    %7682 = vmatpush.msra.mxu0 %v7681
    %v7683 = vand.u32 %v7278, 4294901760
    %v7684 = vsub.f32 %v7278, %v7683
    %v7685 = vand.u32 %v7684, 4294901760
    %7686 = vmatpush.msra.mxu0 %v7685
    %v7687 = vand.u32 %v7277, 4294901760
    %v7688 = vsub.f32 %v7277, %v7687
    %v7689 = vand.u32 %v7688, 4294901760
    %7690 = vmatpush.msra.mxu0 %v7689
    %v7691 = vand.u32 %v7334, 4294901760
    %7692 = vmatmul.f32.gmra.mxu0 %v7691
    %v7693 = vpop.f32.mrf.mxu0
    %v7694 = vadd.f32 %v7613, %v7693
    %v7695 = vand.u32 %v7337, 4294901760
    %7696 = vmatmul.f32.gmra.mxu0 %v7695
    %v7697 = vpop.f32.mrf.mxu0
    %v7698 = vadd.f32 %v7619, %v7697
    %v7699 = vand.u32 %v7340, 4294901760
    %7700 = vmatmul.f32.gmra.mxu0 %v7699
    %v7701 = vpop.f32.mrf.mxu0
    %v7702 = vadd.f32 %v7625, %v7701
    %v7703 = vand.u32 %v7343, 4294901760
    %7704 = vmatmul.f32.gmra.mxu0 %v7703
    %v7705 = vpop.f32.mrf.mxu0
    %v7706 = vadd.f32 %v7631, %v7705
    %v7707 = vand.u32 %v7346, 4294901760
    %7708 = vmatmul.f32.gmra.mxu0 %v7707
    %v7709 = vpop.f32.mrf.mxu0
    %v7710 = vadd.f32 %v7637, %v7709
    %7711 = vdwg.mxu0
    %7712 = vmatpush.msra.mxu0 0.0
    %7713 = vmatpush.msra.mxu0 0.0
    %7714 = vmatpush.msra.mxu0 0.0
    %7715 = vmatpush.msra.mxu0 0.0
    %v7716 = vand.u32 %v7288, 4294901760
    %7717 = vmatpush.msra.mxu0 %v7716
    %v7718 = vand.u32 %v7287, 4294901760
    %7719 = vmatpush.msra.mxu0 %v7718
    %v7720 = vand.u32 %v7286, 4294901760
    %7721 = vmatpush.msra.mxu0 %v7720
    %v7722 = vand.u32 %v7285, 4294901760
    %7723 = vmatpush.msra.mxu0 %v7722
    %v7724 = vand.u32 %v7284, 4294901760
    %7725 = vmatpush.msra.mxu0 %v7724
    %v7726 = vand.u32 %v7283, 4294901760
    %7727 = vmatpush.msra.mxu0 %v7726
    %v7728 = vand.u32 %v7282, 4294901760
    %7729 = vmatpush.msra.mxu0 %v7728
    %v7730 = vand.u32 %v7281, 4294901760
    %7731 = vmatpush.msra.mxu0 %v7730
    %v7732 = vand.u32 %v7280, 4294901760
    %7733 = vmatpush.msra.mxu0 %v7732
    %v7734 = vand.u32 %v7279, 4294901760
    %7735 = vmatpush.msra.mxu0 %v7734
    %v7736 = vand.u32 %v7278, 4294901760
    %7737 = vmatpush.msra.mxu0 %v7736
    %v7738 = vand.u32 %v7277, 4294901760
    %7739 = vmatpush.msra.mxu0 %v7738
    %v7740 = vand.u32 %v7334, 4294901760
    %7741 = vmatmul.f32.gmra.mxu0 %v7740
    %v7742 = vpop.f32.mrf.mxu0
    %v7743 = vadd.f32 %v7694, %v7742
    %v7744 = vand.u32 %v7337, 4294901760
    %7745 = vmatmul.f32.gmra.mxu0 %v7744
    %v7746 = vpop.f32.mrf.mxu0
    %v7747 = vadd.f32 %v7698, %v7746
    %v7748 = vand.u32 %v7340, 4294901760
    %7749 = vmatmul.f32.gmra.mxu0 %v7748
    %v7750 = vpop.f32.mrf.mxu0
    %v7751 = vadd.f32 %v7702, %v7750
    %v7752 = vand.u32 %v7343, 4294901760
    %7753 = vmatmul.f32.gmra.mxu0 %v7752
    %v7754 = vpop.f32.mrf.mxu0
    %v7755 = vadd.f32 %v7706, %v7754
    %v7756 = vand.u32 %v7346, 4294901760
    %7757 = vmatmul.f32.gmra.mxu0 %v7756
    %v7758 = vpop.f32.mrf.mxu0
    %v7759 = vadd.f32 %v7710, %v7758
    %7760 = vdwg.mxu0
    %v7761 = vmul.f32 %v7233, %v7743
    %v7762 = vmul.f32 %v7237, %v7747
    %v7763 = vmul.f32 %v7241, %v7751
    %v7764 = vmul.f32 %v7245, %v7755
    %v7765 = vmul.f32 %v7249, %v7759
    %v7766 = vadd.f32 %v7761, %v7762
    %v7767 = vadd.f32 %v7766, %v7763
    %v7768 = vadd.f32 %v7767, %v7764
    %v7769 = vadd.f32 %v7768, %v7765
    %v7770 = vrot.slane %v7769, 4
    %v7771 = vadd.f32 %v7769, %v7770
    %v7772 = vrot.slane %v7771, 2
    %v7773 = vadd.f32 %v7771, %v7772
    %v7774 = vrot.slane %v7773, 1
    %v7775 = vadd.f32 %v7773, %v7774
    %7776 = vst [vmem:[#allocation2 + $0x7] sm:$0x1] %v7775
    // Predicated region
    $region18: #{tpu_custom_call.1} parent=1 // pred_check
      _
    $region19: #{tpu_custom_call.1} parent=1 // pred_check_branch
      %7778 = sbr.rel (0) target = $region21
    $region20: #{tpu_custom_call.1} parent=1 // pred_region
      %7780 = vsyncadd [#allocation3], 0
      %s7782 = sshll.u32 [#allocation2], 4
      %s7783 = int_to_ptr.vmem [resolvable:$true] %s7782
      %s7784 = sshll.u32 %s4, 4
      %s7785 = int_to_ptr.hbm [resolvable:$true] %s7784
      %7787 = dma.vmem_to_hbm [thread:$0]  %s7783, 128, %s7785, [#allocation3]
    $region21: #{tpu_custom_call.1} parent=1 // pred_fallthru
      _
    // Predicated region
    $region22: #{tpu_custom_call.1} parent=1 // pred_check
      _
    $region23: #{tpu_custom_call.1} parent=1 // pred_check_branch
      %7789 = sbr.rel (0) target = $region25
    $region24: #{tpu_custom_call.1} parent=1 // pred_region
      %7791 = dma.done [#allocation3], 128
    $region25: #{tpu_custom_call.1} parent=1 // pred_fallthru
      _
    %7792 = vsyncpa [#allocation3], 1

</llo_original>
